<compile_context>
chip_gen: v6e
topology: v6e:2x2x1
jax: 0.10.0
libtpu: 0.0.40
codegen_flags: <defaults>
</compile_context>

<pallas_src>
import functools

import jax
import jax.numpy as jnp
import numpy as np
from jax.experimental import pallas as pl
from jax.experimental.pallas import tpu as pltpu


# ----------------------------------------------------------------------------
# Fused kernel: GAT(flatten+ELU) -> GAT(mean) -> WeightedSumAndMax -> Capsule
#               -> predict.  Single grid step; everything stays in VMEM.
# ----------------------------------------------------------------------------
def _deepreac_kernel(hs_ref, adj_ref, w1_ref, w2_ref, wg_ref, rw_ref, wp_ref,
                     bg_ref, bp_ref, gf_ref, pred_ref, *,
                     num_heads, head_dim, alpha, num_out, num_iterations):
    G, B, N, Fin = hs_ref.shape
    H, D = num_heads, head_dim
    HD, HN = H * D, H * N
    GB = G * B
    M = GB * N

    # eye_tile[r, h*N + s] = 1.0 iff s == r mod N  (constant selection mask).
    ri = jax.lax.broadcasted_iota(jnp.int32, (M, HN), 0)
    ci = jax.lax.broadcasted_iota(jnp.int32, (M, HN), 1)
    if (N & (N - 1)) == 0:                       # power-of-two fast path
        eye_tile = ((ri & (N - 1)) == (ci & (N - 1))).astype(jnp.float32)
    else:
        eye_tile = ((ri % N) == (ci % N)).astype(jnp.float32)

    # mask[dst_global, src_local]; self loops guarantee >=1 edge per row.
    mask = adj_ref[...].reshape(M, N) > 0.0

    def gat_layer(x, w_ref, res, agg_flatten):
        # One MXU matmul yields [wh | (res) | el spread | er spread].
        proj = jnp.dot(x, w_ref[...], preferred_element_type=jnp.float32)
        wh = proj[:, :HD]                                    # (M, H*D)
        off = HD
        if res is None:                                      # layer 1: real residual proj
            res = proj[:, HD:2 * HD]
            off = 2 * HD
        el_sp = proj[:, off:off + HN]                        # (M, H*N): el[r, h] at (h, *)
        er_sp = proj[:, off + HN:off + 2 * HN]               # (M, H*N): er[r, h] at (h, *)

        # el_full[gb*N+i, h*N+s] = el[gb*N+s, h]: diag-select + per-graph sublane sum
        # (sum has exactly one non-zero term -> exact), then broadcast over dst rows.
        el_sel = (el_sp * eye_tile).reshape(GB, N, HN)
        el_row = jnp.sum(el_sel, axis=1, keepdims=True)      # (GB, 1, H*N)
        el_full = jnp.broadcast_to(el_row, (GB, N, HN)).reshape(M, HN)

        e = er_sp + el_full                                  # e[dst, (h, src)]
        e = jnp.where(e > 0, e, alpha * e)                   # LeakyReLU

        outs = []
        for h in range(H):
            cs = slice(h * N, (h + 1) * N)
            eh = jnp.where(mask, e[:, cs], -1e30)
            eh = eh - jnp.max(eh, axis=1, keepdims=True)
            ph = jnp.where(mask, jnp.exp(eh), 0.0)
            # NOTE: guard only protects rows with zero neighbors; with self loops
            # always present it never changes the result vs. the reference.
            attn = ph / jnp.maximum(jnp.sum(ph, axis=1, keepdims=True), 1e-30)
            oh = jnp.einsum("bij,bjd->bid",
                            attn.reshape(GB, N, N),
                            wh[:, h * D:(h + 1) * D].reshape(GB, N, D),
                            preferred_element_type=jnp.float32)
            outs.append(oh.reshape(M, D))

        if agg_flatten:
            return jnp.concatenate(outs, axis=1) + res       # (M, H*D)
        acc = outs[0]
        for h in range(1, H):
            acc = acc + outs[h]
        for h in range(H):                                   # identity residual, per head
            acc = acc + res[:, h * D:(h + 1) * D]
        return acc * (1.0 / H)                               # (M, D)

    # ---- GAT layer 1: agg 'flatten' + ELU ------------------------------------
    x0 = hs_ref[...].reshape(M, Fin)
    h1 = gat_layer(x0, w1_ref, None, True)
    h1 = jnp.where(h1 > 0, h1, jnp.exp(jnp.minimum(h1, 0.0)) - 1.0)   # ELU(alpha=1)

    # ---- GAT layer 2: agg 'mean', identity residual (in_feats == H*D) --------
    h2 = gat_layer(h1, w2_ref, h1, False)                             # (M, D)

    # ---- WeightedSumAndMax readout, all G*B graphs at once -------------------
    h3 = h2.reshape(GB, N, D)
    wg = wg_ref[...].reshape(1, 1, D)
    logits = jnp.sum(h3 * wg, axis=-1, keepdims=True) + bg_ref[0, 0]
    gate = 1.0 / (1.0 + jnp.exp(-logits))                             # sigmoid
    h_sum = jnp.sum(gate * h3, axis=1)                                # (GB, D)
    h_max = jnp.max(h3, axis=1)                                       # (GB, D)
    feats = jnp.concatenate([h_sum, h_max], axis=1)                   # (GB, 2D)
    feats3 = feats.reshape(G, B, 2 * D)                               # feats3[g, b, :]

    # ---- CapsuleLayer (dynamic routing) + predict Linear ----------------------
    caps = []
    for c in range(num_out):
        pri = jnp.einsum("gbi,gid->gbd", feats3, rw_ref[c],
                         preferred_element_type=jnp.float32)          # (G, B, Dout)
        logit = jnp.zeros_like(pri)
        out = None
        for it in range(num_iterations):
            mlog = jnp.max(logit, axis=0, keepdims=True)
            ex = jnp.exp(logit - mlog)
            probs = ex / jnp.sum(ex, axis=0, keepdims=True)           # softmax over in-nodes
            s = jnp.sum(probs * pri, axis=0, keepdims=True)           # (1, B, Dout)
            sq = jnp.sum(s * s, axis=-1, keepdims=True)               # (1, B, 1)
            # squash (matches reference; maximum() only guards the sq == 0 NaN case)
            out = (sq / (1.0 + sq)) * s / jnp.sqrt(jnp.maximum(sq, 1e-30))
            if it != num_iterations - 1:
                logit = logit + jnp.sum(pri * out, axis=-1, keepdims=True)
        caps.append(out[0])                                           # (B, Dout)

    g_feats = jnp.concatenate(caps, axis=1)                           # (B, C*Dout)
    gf_ref[...] = g_feats
    pred_ref[...] = (jnp.sum(g_feats * wp_ref[...], axis=1, keepdims=True)
                     + bp_ref[0, 0])


# ----------------------------------------------------------------------------
# Constant weight repackaging (would be precomputed once in a real deployment).
# ----------------------------------------------------------------------------
def _expand_attn(a, n_nodes):
    """(H, D) attention vector -> (H*D, H*n) so wh @ A_exp spreads el/er over n lanes."""
    H, D = a.shape
    cols = []
    for h in range(H):
        block = jnp.zeros((H * D, n_nodes), jnp.float32)
        block = block.at[h * D:(h + 1) * D, :].set(a[h][:, None])
        cols.append(block)
    return jnp.concatenate(cols, axis=1)


# ----------------------------------------------------------------------------
# Full DeepReac_noG forward (single fused Pallas call).
# ----------------------------------------------------------------------------
def deepreac_forward(hs, adjs, params, *, num_iterations=3):
    """hs: (G, B, N, Fin) node feats; adjs: (G, B, N, N) dense adjacency."""
    G, B, N, Fin = hs.shape
    H, D = params["al1"].shape
    C = params["RW"].shape[0]
    Dout = params["RW"].shape[3]

    # Fold attention-score weights (and layer-1 residual) into the projections.
    w1full = jnp.concatenate(
        [params["W1"], params["rW1"],
         params["W1"] @ _expand_attn(params["al1"], N),
         params["W1"] @ _expand_attn(params["ar1"], N)], axis=1)      # (Fin, 2HD+2HN)
    w2full = jnp.concatenate(
        [params["W2"],
         params["W2"] @ _expand_attn(params["al2"], N),
         params["W2"] @ _expand_attn(params["ar2"], N)], axis=1)      # (HD, HD+2HN)
    wg_row = params["Wg"].reshape(1, D)
    wp_row = params["Wp"].reshape(1, C * Dout)
    bg = params["bg"].reshape(1, 1)
    bp = params["bp"].reshape(1, 1)

    kernel = functools.partial(_deepreac_kernel, num_heads=H, head_dim=D,
                               alpha=0.2, num_out=C, num_iterations=num_iterations)
    g_feats, pred = pl.pallas_call(
        kernel,
        out_shape=(jax.ShapeDtypeStruct((B, C * Dout), jnp.float32),
                   jax.ShapeDtypeStruct((B, 1), jnp.float32)),
        grid=(1,),
        in_specs=[
            pl.BlockSpec((G, B, N, Fin), lambda i: (0, 0, 0, 0)),
            pl.BlockSpec((G, B, N, N), lambda i: (0, 0, 0, 0)),
            pl.BlockSpec(w1full.shape, lambda i: (0, 0)),
            pl.BlockSpec(w2full.shape, lambda i: (0, 0)),
            pl.BlockSpec((1, D), lambda i: (0, 0)),
            pl.BlockSpec(params["RW"].shape, lambda i: (0, 0, 0, 0)),
            pl.BlockSpec((1, C * Dout), lambda i: (0, 0)),
            pl.BlockSpec(memory_space=pltpu.MemorySpace.SMEM),
            pl.BlockSpec(memory_space=pltpu.MemorySpace.SMEM),
        ],
        out_specs=(pl.BlockSpec((B, C * Dout), lambda i: (0, 0)),
                   pl.BlockSpec((B, 1), lambda i: (0, 0))),
        compiler_params=pltpu.CompilerParams(dimension_semantics=("arbitrary",)),
    )(hs, adjs, w1full, w2full, wg_row, params["RW"], wp_row, bg, bp)
    return pred, g_feats


# ----------------------------------------------------------------------------
# Pure-JAX reference (same math) for validation.
# ----------------------------------------------------------------------------
def _gat_layer_ref(h, adj, W, al, ar, rW, *, agg_mode, apply_elu, alpha=0.2):
    GB, N, _ = h.shape
    H, D = al.shape
    whh = (h @ W).reshape(GB, N, H, D)
    res = (h @ rW).reshape(GB, N, H, D)
    el = jnp.sum(whh * al[None, None], axis=-1)
    er = jnp.sum(whh * ar[None, None], axis=-1)
    e = er[:, :, None, :] + el[:, None, :, :]
    e = jnp.where(e > 0, e, alpha * e)
    mask = adj[..., None] > 0
    e = jnp.where(mask, e, -1e30)
    e = e - jnp.max(e, axis=2, keepdims=True)
    p = jnp.where(mask, jnp.exp(e), 0.0)
    attn = p / jnp.sum(p, axis=2, keepdims=True)
    out = jnp.einsum("bijh,bjhd->bihd", attn, whh) + res
    out = out.reshape(GB, N, H * D) if agg_mode == "flatten" else jnp.mean(out, axis=2)
    if apply_elu:
        out = jnp.where(out > 0, out, jnp.exp(out) - 1.0)
    return out


def _readout_ref(nodes, Wg, bg):
    w = 1.0 / (1.0 + jnp.exp(-(nodes @ Wg + bg[0, 0])))
    return jnp.concatenate([jnp.sum(w * nodes, axis=1), jnp.max(nodes, axis=1)], axis=1)


def _capsule_ref(feats, RW, num_iterations=3):
    priors = jnp.einsum("bgi,cgid->cbgd", feats, RW)
    logits = jnp.zeros_like(priors)
    outputs = None
    for it in range(num_iterations):
        m = jnp.max(logits, axis=2, keepdims=True)
        ex = jnp.exp(logits - m)
        probs = ex / jnp.sum(ex, axis=2, keepdims=True)
        s = jnp.sum(probs * priors, axis=2, keepdims=True)
        sq = jnp.sum(s * s, axis=-1, keepdims=True)
        outputs = (sq / (1.0 + sq)) * s / jnp.sqrt(sq)
        if it != num_iterations - 1:
            logits = logits + jnp.sum(priors * outputs, axis=-1, keepdims=True)
    out = jnp.transpose(outputs[:, :, 0, :], (1, 0, 2))   # (B, C, Dout)
    return out.reshape(out.shape[0], -1)


def deepreac_forward_ref(hs, adjs, params):
    G, B, N, Fin = hs.shape
    h = hs.reshape(G * B, N, Fin)
    a = adjs.reshape(G * B, N, N)
    h1 = _gat_layer_ref(h, a, params["W1"], params["al1"], params["ar1"], params["rW1"],
                        agg_mode="flatten", apply_elu=True)
    h2 = _gat_layer_ref(h1, a, params["W2"], params["al2"], params["ar2"], params["rW2"],
                        agg_mode="mean", apply_elu=False)
    graph_feats = _readout_ref(h2, params["Wg"], params["bg"])
    feats = graph_feats.reshape(G, B, graph_feats.shape[-1]).transpose(1, 0, 2)
    g_feats = _capsule_ref(feats, params["RW"])
    pred = g_feats @ params["Wp"] + params["bp"]
    return pred, g_feats


if __name__ == "__main__":
    G_NUM, B, N = 3, 2, 8
    IN_FEATS, HIDDEN, HEADS, OUT_DIM = 16, 32, 4, 32
    IN_DIM = 2 * HIDDEN

    key = jax.random.PRNGKey(0)
    ks = jax.random.split(key, 14)

    # Inputs: node features per graph and symmetric dense adjacency with self loops.
    hs = jax.random.normal(ks[0], (G_NUM, B, N, IN_FEATS), jnp.float32)
    a = jax.random.uniform(ks[1], (G_NUM, B, N, N))
    a = 0.5 * (a + jnp.swapaxes(a, -1, -2))
    adjs = (a > 0.5).astype(jnp.float32)
    adjs = jnp.maximum(adjs, jnp.eye(N, dtype=jnp.float32))

    def nrm(k, shape, scale):
        return scale * jax.random.normal(k, shape, jnp.float32)

    params = dict(
        # GAT layer 1 (in_feats -> 4 heads x 32, residual projection)
        W1=nrm(ks[2], (IN_FEATS, HEADS * HIDDEN), 1.0 / np.sqrt(IN_FEATS)),
        rW1=nrm(ks[3], (IN_FEATS, HEADS * HIDDEN), 1.0 / np.sqrt(IN_FEATS)),
        al1=nrm(ks[4], (HEADS, HIDDEN), 1.0 / np.sqrt(HIDDEN)),
        ar1=nrm(ks[5], (HEADS, HIDDEN), 1.0 / np.sqrt(HIDDEN)),
        # GAT layer 2 (128 -> 4 heads x 32, identity residual since in == H*D)
        W2=nrm(ks[6], (HEADS * HIDDEN, HEADS * HIDDEN), 1.0 / np.sqrt(HEADS * HIDDEN)),
        rW2=jnp.eye(HEADS * HIDDEN, dtype=jnp.float32),
        al2=nrm(ks[7], (HEADS, HIDDEN), 1.0 / np.sqrt(HIDDEN)),
        ar2=nrm(ks[8], (HEADS, HIDDEN), 1.0 / np.sqrt(HIDDEN)),
        # WeightedSumAndMax gating Linear(hidden, 1)
        Wg=nrm(ks[9], (HIDDEN, 1), 1.0 / np.sqrt(HIDDEN)),
        bg=jnp.zeros((1, 1), jnp.float32),
        # CapsuleLayer route weights (out_nodes=2, in_nodes=g_num, in_dim, out_dim)
        RW=nrm(ks[10], (2, G_NUM, IN_DIM, OUT_DIM), 0.5),
        # predict: Linear(out_dim*2, 1)  (Dropout(p=0) == identity)
        Wp=nrm(ks[11], (2 * OUT_DIM, 1), 1.0 / np.sqrt(2 * OUT_DIM)),
        bp=0.01 * jnp.ones((1, 1), jnp.float32),
    )

    pred, g_feats = deepreac_forward(hs, adjs, params)
    jax.block_until_ready((pred, g_feats))

    pred_ref, g_feats_ref = deepreac_forward_ref(hs, adjs, params)
    np.testing.assert_allclose(np.asarray(g_feats), np.asarray(g_feats_ref),
                               rtol=2e-3, atol=2e-3)
    np.testing.assert_allclose(np.asarray(pred), np.asarray(pred_ref),
                               rtol=2e-3, atol=2e-3)

    print("KERNEL_OK")
</pallas_src>

<mosaic_0001>
module attributes {stable_mosaic.version = 11 : i64} {
  func.func @_deepreac_kernel(%arg0: i32, %arg1: memref<3x2x8x16xf32, #tpu.memory_space<vmem>>, %arg2: memref<3x2x8x8xf32, #tpu.memory_space<vmem>>, %arg3: memref<16x320xf32, #tpu.memory_space<vmem>>, %arg4: memref<128x192xf32, #tpu.memory_space<vmem>>, %arg5: memref<1x32xf32, #tpu.memory_space<vmem>>, %arg6: memref<2x3x64x32xf32, #tpu.memory_space<vmem>>, %arg7: memref<1x64xf32, #tpu.memory_space<vmem>>, %arg8: memref<1x1xf32, #tpu.memory_space<smem>>, %arg9: memref<1x1xf32, #tpu.memory_space<smem>>, %arg10: memref<2x64xf32, #tpu.memory_space<vmem>>, %arg11: memref<2x1xf32, #tpu.memory_space<vmem>>) attributes {dimension_semantics = [#tpu.dimension_semantics<arbitrary>], iteration_bounds = array<i64: 1>, scalar_prefetch = 0 : i64, scratch_operands = 0 : i64, tpu.core_type = #tpu.core_type<tc>, window_params = [{pipeline_mode = #tpu.pipeline_mode<synchronous>, transform_indices = @transform_0, window_bounds = array<i64: 3, 2, 8, 16>}, {pipeline_mode = #tpu.pipeline_mode<synchronous>, transform_indices = @transform_1, window_bounds = array<i64: 3, 2, 8, 8>}, {pipeline_mode = #tpu.pipeline_mode<synchronous>, transform_indices = @transform_2, window_bounds = array<i64: 16, 320>}, {pipeline_mode = #tpu.pipeline_mode<synchronous>, transform_indices = @transform_3, window_bounds = array<i64: 128, 192>}, {pipeline_mode = #tpu.pipeline_mode<synchronous>, transform_indices = @transform_4, window_bounds = array<i64: 1, 32>}, {pipeline_mode = #tpu.pipeline_mode<synchronous>, transform_indices = @transform_5, window_bounds = array<i64: 2, 3, 64, 32>}, {pipeline_mode = #tpu.pipeline_mode<synchronous>, transform_indices = @transform_6, window_bounds = array<i64: 1, 64>}, {transform_indices = @transform_7, window_bounds = array<i64: 1, 1>}, {transform_indices = @transform_8, window_bounds = array<i64: 1, 1>}, {pipeline_mode = #tpu.pipeline_mode<synchronous>, transform_indices = @transform_9, window_bounds = array<i64: 2, 64>}, {pipeline_mode = #tpu.pipeline_mode<synchronous>, transform_indices = @transform_10, window_bounds = array<i64: 2, 1>}]} {
    %0 = tpu.iota {dimensions = array<i32: 0>} : vector<48x32xi32>
    %1 = tpu.iota {dimensions = array<i32: 1>} : vector<48x32xi32>
    %c7_i32 = arith.constant 7 : i32
    %2 = vector.broadcast %c7_i32 : i32 to vector<48x32xi32>
    %3 = arith.andi %0, %2 : vector<48x32xi32>
    %c7_i32_0 = arith.constant 7 : i32
    %4 = vector.broadcast %c7_i32_0 : i32 to vector<48x32xi32>
    %5 = arith.andi %1, %4 : vector<48x32xi32>
    %6 = arith.cmpi eq, %3, %5 : vector<48x32xi32>
    %7 = arith.extui %6 : vector<48x32xi1> to vector<48x32xi32>
    %8 = arith.sitofp %7 : vector<48x32xi32> to vector<48x32xf32>
    %c0 = arith.constant 0 : index
    %c0_1 = arith.constant 0 : index
    %c0_2 = arith.constant 0 : index
    %c0_3 = arith.constant 0 : index
    %9 = vector.load %arg2[%c0, %c0_1, %c0_2, %c0_3] : memref<3x2x8x8xf32, #tpu.memory_space<vmem>>, vector<3x2x8x8xf32>
    %10 = vector.shape_cast %9 : vector<3x2x8x8xf32> to vector<48x8xf32>
    %cst = arith.constant 0.000000e+00 : f32
    %11 = vector.broadcast %cst : f32 to vector<48x8xf32>
    %12 = arith.cmpf ogt, %10, %11 : vector<48x8xf32>
    %c0_4 = arith.constant 0 : index
    %c0_5 = arith.constant 0 : index
    %c0_6 = arith.constant 0 : index
    %c0_7 = arith.constant 0 : index
    %13 = vector.load %arg1[%c0_4, %c0_5, %c0_6, %c0_7] : memref<3x2x8x16xf32, #tpu.memory_space<vmem>>, vector<3x2x8x16xf32>
    %14 = vector.shape_cast %13 : vector<3x2x8x16xf32> to vector<48x16xf32>
    %c0_8 = arith.constant 0 : index
    %c0_9 = arith.constant 0 : index
    %15 = vector.load %arg3[%c0_8, %c0_9] : memref<16x320xf32, #tpu.memory_space<vmem>>, vector<16x320xf32>
    %cst_10 = arith.constant dense<0.000000e+00> : vector<48x320xf32>
    %16 = tpu.matmul %14, %15, %cst_10 {dimension_numbers = #tpu.dot_dimension_numbers<[1], [0], [0], [1], [0, 0, 1, 1], [], []>} : vector<48x16xf32>, vector<16x320xf32>, vector<48x320xf32> -> vector<48x320xf32>
    %17 = vector.extract_strided_slice %16 {offsets = [0, 0], sizes = [48, 128], strides = [1, 1]} : vector<48x320xf32> to vector<48x128xf32>
    %18 = vector.extract_strided_slice %16 {offsets = [0, 128], sizes = [48, 128], strides = [1, 1]} : vector<48x320xf32> to vector<48x128xf32>
    %19 = vector.extract_strided_slice %16 {offsets = [0, 256], sizes = [48, 32], strides = [1, 1]} : vector<48x320xf32> to vector<48x32xf32>
    %20 = vector.extract_strided_slice %16 {offsets = [0, 288], sizes = [48, 32], strides = [1, 1]} : vector<48x320xf32> to vector<48x32xf32>
    %21 = arith.mulf %19, %8 : vector<48x32xf32>
    %22 = vector.shape_cast %21 : vector<48x32xf32> to vector<6x8x32xf32>
    %cst_11 = arith.constant dense<0.000000e+00> : vector<6x32xf32>
    %23 = vector.multi_reduction <add>, %22, %cst_11 [1] : vector<6x8x32xf32> to vector<6x32xf32>
    %24 = vector.shape_cast %23 : vector<6x32xf32> to vector<6x1x32xf32>
    %25 = vector.shape_cast %24 : vector<6x1x32xf32> to vector<6x1x32xf32>
    %26 = vector.broadcast %25 : vector<6x1x32xf32> to vector<6x8x32xf32>
    %27 = vector.shape_cast %26 : vector<6x8x32xf32> to vector<48x32xf32>
    %28 = arith.addf %20, %27 : vector<48x32xf32>
    %cst_12 = arith.constant 0.000000e+00 : f32
    %29 = vector.broadcast %cst_12 : f32 to vector<48x32xf32>
    %30 = arith.cmpf ogt, %28, %29 : vector<48x32xf32>
    %cst_13 = arith.constant 2.000000e-01 : f32
    %31 = vector.broadcast %cst_13 : f32 to vector<48x32xf32>
    %32 = arith.mulf %31, %28 : vector<48x32xf32>
    %33 = arith.select %30, %28, %32 : vector<48x32xi1>, vector<48x32xf32>
    %34 = vector.extract_strided_slice %33 {offsets = [0, 0], sizes = [48, 8], strides = [1, 1]} : vector<48x32xf32> to vector<48x8xf32>
    %cst_14 = arith.constant -1.000000e+30 : f32
    %35 = vector.broadcast %cst_14 : f32 to vector<48x8xf32>
    %36 = arith.select %12, %34, %35 : vector<48x8xi1>, vector<48x8xf32>
    %cst_15 = arith.constant dense<0xFF800000> : vector<48xf32>
    %37 = vector.multi_reduction <maximumf>, %36, %cst_15 [1] : vector<48x8xf32> to vector<48xf32>
    %38 = vector.shape_cast %37 : vector<48xf32> to vector<48x1xf32>
    %39 = vector.broadcast %38 : vector<48x1xf32> to vector<48x8xf32>
    %40 = arith.subf %36, %39 : vector<48x8xf32>
    %41 = math.exp %40 : vector<48x8xf32>
    %cst_16 = arith.constant 0.000000e+00 : f32
    %42 = vector.broadcast %cst_16 : f32 to vector<48x8xf32>
    %43 = arith.select %12, %41, %42 : vector<48x8xi1>, vector<48x8xf32>
    %cst_17 = arith.constant dense<0.000000e+00> : vector<48xf32>
    %44 = vector.multi_reduction <add>, %43, %cst_17 [1] : vector<48x8xf32> to vector<48xf32>
    %45 = vector.shape_cast %44 : vector<48xf32> to vector<48x1xf32>
    %cst_18 = arith.constant 1.000000e-30 : f32
    %46 = vector.broadcast %cst_18 : f32 to vector<48x1xf32>
    %47 = arith.maximumf %45, %46 : vector<48x1xf32>
    %48 = vector.broadcast %47 : vector<48x1xf32> to vector<48x8xf32>
    %49 = arith.divf %43, %48 : vector<48x8xf32>
    %50 = vector.shape_cast %49 : vector<48x8xf32> to vector<6x8x8xf32>
    %51 = vector.extract_strided_slice %17 {offsets = [0, 0], sizes = [48, 32], strides = [1, 1]} : vector<48x128xf32> to vector<48x32xf32>
    %52 = vector.shape_cast %51 : vector<48x32xf32> to vector<6x8x32xf32>
    "tpu.trace_start"() <{level = 10 : i32, message = "bij,bjd->bid"}> : () -> ()
    %cst_19 = arith.constant dense<0.000000e+00> : vector<6x8x32xf32>
    %53 = tpu.matmul %50, %52, %cst_19 {dimension_numbers = #tpu.dot_dimension_numbers<[2], [1], [1], [2], [0, 0, 0, 1, 1, 2], [0], [0]>} : vector<6x8x8xf32>, vector<6x8x32xf32>, vector<6x8x32xf32> -> vector<6x8x32xf32>
    "tpu.trace_stop"() : () -> ()
    %54 = vector.shape_cast %53 : vector<6x8x32xf32> to vector<48x32xf32>
    %55 = vector.extract_strided_slice %33 {offsets = [0, 8], sizes = [48, 8], strides = [1, 1]} : vector<48x32xf32> to vector<48x8xf32>
    %cst_20 = arith.constant -1.000000e+30 : f32
    %56 = vector.broadcast %cst_20 : f32 to vector<48x8xf32>
    %57 = arith.select %12, %55, %56 : vector<48x8xi1>, vector<48x8xf32>
    %cst_21 = arith.constant dense<0xFF800000> : vector<48xf32>
    %58 = vector.multi_reduction <maximumf>, %57, %cst_21 [1] : vector<48x8xf32> to vector<48xf32>
    %59 = vector.shape_cast %58 : vector<48xf32> to vector<48x1xf32>
    %60 = vector.broadcast %59 : vector<48x1xf32> to vector<48x8xf32>
    %61 = arith.subf %57, %60 : vector<48x8xf32>
    %62 = math.exp %61 : vector<48x8xf32>
    %cst_22 = arith.constant 0.000000e+00 : f32
    %63 = vector.broadcast %cst_22 : f32 to vector<48x8xf32>
    %64 = arith.select %12, %62, %63 : vector<48x8xi1>, vector<48x8xf32>
    %cst_23 = arith.constant dense<0.000000e+00> : vector<48xf32>
    %65 = vector.multi_reduction <add>, %64, %cst_23 [1] : vector<48x8xf32> to vector<48xf32>
    %66 = vector.shape_cast %65 : vector<48xf32> to vector<48x1xf32>
    %cst_24 = arith.constant 1.000000e-30 : f32
    %67 = vector.broadcast %cst_24 : f32 to vector<48x1xf32>
    %68 = arith.maximumf %66, %67 : vector<48x1xf32>
    %69 = vector.broadcast %68 : vector<48x1xf32> to vector<48x8xf32>
    %70 = arith.divf %64, %69 : vector<48x8xf32>
    %71 = vector.shape_cast %70 : vector<48x8xf32> to vector<6x8x8xf32>
    %72 = vector.extract_strided_slice %17 {offsets = [0, 32], sizes = [48, 32], strides = [1, 1]} : vector<48x128xf32> to vector<48x32xf32>
    %73 = vector.shape_cast %72 : vector<48x32xf32> to vector<6x8x32xf32>
    "tpu.trace_start"() <{level = 10 : i32, message = "bij,bjd->bid"}> : () -> ()
    %cst_25 = arith.constant dense<0.000000e+00> : vector<6x8x32xf32>
    %74 = tpu.matmul %71, %73, %cst_25 {dimension_numbers = #tpu.dot_dimension_numbers<[2], [1], [1], [2], [0, 0, 0, 1, 1, 2], [0], [0]>} : vector<6x8x8xf32>, vector<6x8x32xf32>, vector<6x8x32xf32> -> vector<6x8x32xf32>
    "tpu.trace_stop"() : () -> ()
    %75 = vector.shape_cast %74 : vector<6x8x32xf32> to vector<48x32xf32>
    %76 = vector.extract_strided_slice %33 {offsets = [0, 16], sizes = [48, 8], strides = [1, 1]} : vector<48x32xf32> to vector<48x8xf32>
    %cst_26 = arith.constant -1.000000e+30 : f32
    %77 = vector.broadcast %cst_26 : f32 to vector<48x8xf32>
    %78 = arith.select %12, %76, %77 : vector<48x8xi1>, vector<48x8xf32>
    %cst_27 = arith.constant dense<0xFF800000> : vector<48xf32>
    %79 = vector.multi_reduction <maximumf>, %78, %cst_27 [1] : vector<48x8xf32> to vector<48xf32>
    %80 = vector.shape_cast %79 : vector<48xf32> to vector<48x1xf32>
    %81 = vector.broadcast %80 : vector<48x1xf32> to vector<48x8xf32>
    %82 = arith.subf %78, %81 : vector<48x8xf32>
    %83 = math.exp %82 : vector<48x8xf32>
    %cst_28 = arith.constant 0.000000e+00 : f32
    %84 = vector.broadcast %cst_28 : f32 to vector<48x8xf32>
    %85 = arith.select %12, %83, %84 : vector<48x8xi1>, vector<48x8xf32>
    %cst_29 = arith.constant dense<0.000000e+00> : vector<48xf32>
    %86 = vector.multi_reduction <add>, %85, %cst_29 [1] : vector<48x8xf32> to vector<48xf32>
    %87 = vector.shape_cast %86 : vector<48xf32> to vector<48x1xf32>
    %cst_30 = arith.constant 1.000000e-30 : f32
    %88 = vector.broadcast %cst_30 : f32 to vector<48x1xf32>
    %89 = arith.maximumf %87, %88 : vector<48x1xf32>
    %90 = vector.broadcast %89 : vector<48x1xf32> to vector<48x8xf32>
    %91 = arith.divf %85, %90 : vector<48x8xf32>
    %92 = vector.shape_cast %91 : vector<48x8xf32> to vector<6x8x8xf32>
    %93 = vector.extract_strided_slice %17 {offsets = [0, 64], sizes = [48, 32], strides = [1, 1]} : vector<48x128xf32> to vector<48x32xf32>
    %94 = vector.shape_cast %93 : vector<48x32xf32> to vector<6x8x32xf32>
    "tpu.trace_start"() <{level = 10 : i32, message = "bij,bjd->bid"}> : () -> ()
    %cst_31 = arith.constant dense<0.000000e+00> : vector<6x8x32xf32>
    %95 = tpu.matmul %92, %94, %cst_31 {dimension_numbers = #tpu.dot_dimension_numbers<[2], [1], [1], [2], [0, 0, 0, 1, 1, 2], [0], [0]>} : vector<6x8x8xf32>, vector<6x8x32xf32>, vector<6x8x32xf32> -> vector<6x8x32xf32>
    "tpu.trace_stop"() : () -> ()
    %96 = vector.shape_cast %95 : vector<6x8x32xf32> to vector<48x32xf32>
    %97 = vector.extract_strided_slice %33 {offsets = [0, 24], sizes = [48, 8], strides = [1, 1]} : vector<48x32xf32> to vector<48x8xf32>
    %cst_32 = arith.constant -1.000000e+30 : f32
    %98 = vector.broadcast %cst_32 : f32 to vector<48x8xf32>
    %99 = arith.select %12, %97, %98 : vector<48x8xi1>, vector<48x8xf32>
    %cst_33 = arith.constant dense<0xFF800000> : vector<48xf32>
    %100 = vector.multi_reduction <maximumf>, %99, %cst_33 [1] : vector<48x8xf32> to vector<48xf32>
    %101 = vector.shape_cast %100 : vector<48xf32> to vector<48x1xf32>
    %102 = vector.broadcast %101 : vector<48x1xf32> to vector<48x8xf32>
    %103 = arith.subf %99, %102 : vector<48x8xf32>
    %104 = math.exp %103 : vector<48x8xf32>
    %cst_34 = arith.constant 0.000000e+00 : f32
    %105 = vector.broadcast %cst_34 : f32 to vector<48x8xf32>
    %106 = arith.select %12, %104, %105 : vector<48x8xi1>, vector<48x8xf32>
    %cst_35 = arith.constant dense<0.000000e+00> : vector<48xf32>
    %107 = vector.multi_reduction <add>, %106, %cst_35 [1] : vector<48x8xf32> to vector<48xf32>
    %108 = vector.shape_cast %107 : vector<48xf32> to vector<48x1xf32>
    %cst_36 = arith.constant 1.000000e-30 : f32
    %109 = vector.broadcast %cst_36 : f32 to vector<48x1xf32>
    %110 = arith.maximumf %108, %109 : vector<48x1xf32>
    %111 = vector.broadcast %110 : vector<48x1xf32> to vector<48x8xf32>
    %112 = arith.divf %106, %111 : vector<48x8xf32>
    %113 = vector.shape_cast %112 : vector<48x8xf32> to vector<6x8x8xf32>
    %114 = vector.extract_strided_slice %17 {offsets = [0, 96], sizes = [48, 32], strides = [1, 1]} : vector<48x128xf32> to vector<48x32xf32>
    %115 = vector.shape_cast %114 : vector<48x32xf32> to vector<6x8x32xf32>
    "tpu.trace_start"() <{level = 10 : i32, message = "bij,bjd->bid"}> : () -> ()
    %cst_37 = arith.constant dense<0.000000e+00> : vector<6x8x32xf32>
    %116 = tpu.matmul %113, %115, %cst_37 {dimension_numbers = #tpu.dot_dimension_numbers<[2], [1], [1], [2], [0, 0, 0, 1, 1, 2], [0], [0]>} : vector<6x8x8xf32>, vector<6x8x32xf32>, vector<6x8x32xf32> -> vector<6x8x32xf32>
    "tpu.trace_stop"() : () -> ()
    %117 = vector.shape_cast %116 : vector<6x8x32xf32> to vector<48x32xf32>
    %118 = tpu.concatenate %54, %75, %96, %117 in 1 : vector<48x32xf32>, vector<48x32xf32>, vector<48x32xf32>, vector<48x32xf32> -> vector<48x128xf32>
    %119 = arith.addf %118, %18 : vector<48x128xf32>
    %cst_38 = arith.constant 0.000000e+00 : f32
    %120 = vector.broadcast %cst_38 : f32 to vector<48x128xf32>
    %121 = arith.cmpf ogt, %119, %120 : vector<48x128xf32>
    %cst_39 = arith.constant 0.000000e+00 : f32
    %122 = vector.broadcast %cst_39 : f32 to vector<48x128xf32>
    %123 = arith.minimumf %119, %122 : vector<48x128xf32>
    %124 = math.exp %123 : vector<48x128xf32>
    %cst_40 = arith.constant 1.000000e+00 : f32
    %125 = vector.broadcast %cst_40 : f32 to vector<48x128xf32>
    %126 = arith.subf %124, %125 : vector<48x128xf32>
    %127 = arith.select %121, %119, %126 : vector<48x128xi1>, vector<48x128xf32>
    %c0_41 = arith.constant 0 : index
    %c0_42 = arith.constant 0 : index
    %128 = vector.load %arg4[%c0_41, %c0_42] : memref<128x192xf32, #tpu.memory_space<vmem>>, vector<128x192xf32>
    %cst_43 = arith.constant dense<0.000000e+00> : vector<48x192xf32>
    %129 = tpu.matmul %127, %128, %cst_43 {dimension_numbers = #tpu.dot_dimension_numbers<[1], [0], [0], [1], [0, 0, 1, 1], [], []>} : vector<48x128xf32>, vector<128x192xf32>, vector<48x192xf32> -> vector<48x192xf32>
    %130 = vector.extract_strided_slice %129 {offsets = [0, 0], sizes = [48, 128], strides = [1, 1]} : vector<48x192xf32> to vector<48x128xf32>
    %131 = vector.extract_strided_slice %129 {offsets = [0, 128], sizes = [48, 32], strides = [1, 1]} : vector<48x192xf32> to vector<48x32xf32>
    %132 = vector.extract_strided_slice %129 {offsets = [0, 160], sizes = [48, 32], strides = [1, 1]} : vector<48x192xf32> to vector<48x32xf32>
    %133 = arith.mulf %131, %8 : vector<48x32xf32>
    %134 = vector.shape_cast %133 : vector<48x32xf32> to vector<6x8x32xf32>
    %cst_44 = arith.constant dense<0.000000e+00> : vector<6x32xf32>
    %135 = vector.multi_reduction <add>, %134, %cst_44 [1] : vector<6x8x32xf32> to vector<6x32xf32>
    %136 = vector.shape_cast %135 : vector<6x32xf32> to vector<6x1x32xf32>
    %137 = vector.shape_cast %136 : vector<6x1x32xf32> to vector<6x1x32xf32>
    %138 = vector.broadcast %137 : vector<6x1x32xf32> to vector<6x8x32xf32>
    %139 = vector.shape_cast %138 : vector<6x8x32xf32> to vector<48x32xf32>
    %140 = arith.addf %132, %139 : vector<48x32xf32>
    %cst_45 = arith.constant 0.000000e+00 : f32
    %141 = vector.broadcast %cst_45 : f32 to vector<48x32xf32>
    %142 = arith.cmpf ogt, %140, %141 : vector<48x32xf32>
    %cst_46 = arith.constant 2.000000e-01 : f32
    %143 = vector.broadcast %cst_46 : f32 to vector<48x32xf32>
    %144 = arith.mulf %143, %140 : vector<48x32xf32>
    %145 = arith.select %142, %140, %144 : vector<48x32xi1>, vector<48x32xf32>
    %146 = vector.extract_strided_slice %145 {offsets = [0, 0], sizes = [48, 8], strides = [1, 1]} : vector<48x32xf32> to vector<48x8xf32>
    %cst_47 = arith.constant -1.000000e+30 : f32
    %147 = vector.broadcast %cst_47 : f32 to vector<48x8xf32>
    %148 = arith.select %12, %146, %147 : vector<48x8xi1>, vector<48x8xf32>
    %cst_48 = arith.constant dense<0xFF800000> : vector<48xf32>
    %149 = vector.multi_reduction <maximumf>, %148, %cst_48 [1] : vector<48x8xf32> to vector<48xf32>
    %150 = vector.shape_cast %149 : vector<48xf32> to vector<48x1xf32>
    %151 = vector.broadcast %150 : vector<48x1xf32> to vector<48x8xf32>
    %152 = arith.subf %148, %151 : vector<48x8xf32>
    %153 = math.exp %152 : vector<48x8xf32>
    %cst_49 = arith.constant 0.000000e+00 : f32
    %154 = vector.broadcast %cst_49 : f32 to vector<48x8xf32>
    %155 = arith.select %12, %153, %154 : vector<48x8xi1>, vector<48x8xf32>
    %cst_50 = arith.constant dense<0.000000e+00> : vector<48xf32>
    %156 = vector.multi_reduction <add>, %155, %cst_50 [1] : vector<48x8xf32> to vector<48xf32>
    %157 = vector.shape_cast %156 : vector<48xf32> to vector<48x1xf32>
    %cst_51 = arith.constant 1.000000e-30 : f32
    %158 = vector.broadcast %cst_51 : f32 to vector<48x1xf32>
    %159 = arith.maximumf %157, %158 : vector<48x1xf32>
    %160 = vector.broadcast %159 : vector<48x1xf32> to vector<48x8xf32>
    %161 = arith.divf %155, %160 : vector<48x8xf32>
    %162 = vector.shape_cast %161 : vector<48x8xf32> to vector<6x8x8xf32>
    %163 = vector.extract_strided_slice %130 {offsets = [0, 0], sizes = [48, 32], strides = [1, 1]} : vector<48x128xf32> to vector<48x32xf32>
    %164 = vector.shape_cast %163 : vector<48x32xf32> to vector<6x8x32xf32>
    "tpu.trace_start"() <{level = 10 : i32, message = "bij,bjd->bid"}> : () -> ()
    %cst_52 = arith.constant dense<0.000000e+00> : vector<6x8x32xf32>
    %165 = tpu.matmul %162, %164, %cst_52 {dimension_numbers = #tpu.dot_dimension_numbers<[2], [1], [1], [2], [0, 0, 0, 1, 1, 2], [0], [0]>} : vector<6x8x8xf32>, vector<6x8x32xf32>, vector<6x8x32xf32> -> vector<6x8x32xf32>
    "tpu.trace_stop"() : () -> ()
    %166 = vector.shape_cast %165 : vector<6x8x32xf32> to vector<48x32xf32>
    %167 = vector.extract_strided_slice %145 {offsets = [0, 8], sizes = [48, 8], strides = [1, 1]} : vector<48x32xf32> to vector<48x8xf32>
    %cst_53 = arith.constant -1.000000e+30 : f32
    %168 = vector.broadcast %cst_53 : f32 to vector<48x8xf32>
    %169 = arith.select %12, %167, %168 : vector<48x8xi1>, vector<48x8xf32>
    %cst_54 = arith.constant dense<0xFF800000> : vector<48xf32>
    %170 = vector.multi_reduction <maximumf>, %169, %cst_54 [1] : vector<48x8xf32> to vector<48xf32>
    %171 = vector.shape_cast %170 : vector<48xf32> to vector<48x1xf32>
    %172 = vector.broadcast %171 : vector<48x1xf32> to vector<48x8xf32>
    %173 = arith.subf %169, %172 : vector<48x8xf32>
    %174 = math.exp %173 : vector<48x8xf32>
    %cst_55 = arith.constant 0.000000e+00 : f32
    %175 = vector.broadcast %cst_55 : f32 to vector<48x8xf32>
    %176 = arith.select %12, %174, %175 : vector<48x8xi1>, vector<48x8xf32>
    %cst_56 = arith.constant dense<0.000000e+00> : vector<48xf32>
    %177 = vector.multi_reduction <add>, %176, %cst_56 [1] : vector<48x8xf32> to vector<48xf32>
    %178 = vector.shape_cast %177 : vector<48xf32> to vector<48x1xf32>
    %cst_57 = arith.constant 1.000000e-30 : f32
    %179 = vector.broadcast %cst_57 : f32 to vector<48x1xf32>
    %180 = arith.maximumf %178, %179 : vector<48x1xf32>
    %181 = vector.broadcast %180 : vector<48x1xf32> to vector<48x8xf32>
    %182 = arith.divf %176, %181 : vector<48x8xf32>
    %183 = vector.shape_cast %182 : vector<48x8xf32> to vector<6x8x8xf32>
    %184 = vector.extract_strided_slice %130 {offsets = [0, 32], sizes = [48, 32], strides = [1, 1]} : vector<48x128xf32> to vector<48x32xf32>
    %185 = vector.shape_cast %184 : vector<48x32xf32> to vector<6x8x32xf32>
    "tpu.trace_start"() <{level = 10 : i32, message = "bij,bjd->bid"}> : () -> ()
    %cst_58 = arith.constant dense<0.000000e+00> : vector<6x8x32xf32>
    %186 = tpu.matmul %183, %185, %cst_58 {dimension_numbers = #tpu.dot_dimension_numbers<[2], [1], [1], [2], [0, 0, 0, 1, 1, 2], [0], [0]>} : vector<6x8x8xf32>, vector<6x8x32xf32>, vector<6x8x32xf32> -> vector<6x8x32xf32>
    "tpu.trace_stop"() : () -> ()
    %187 = vector.shape_cast %186 : vector<6x8x32xf32> to vector<48x32xf32>
    %188 = vector.extract_strided_slice %145 {offsets = [0, 16], sizes = [48, 8], strides = [1, 1]} : vector<48x32xf32> to vector<48x8xf32>
    %cst_59 = arith.constant -1.000000e+30 : f32
    %189 = vector.broadcast %cst_59 : f32 to vector<48x8xf32>
    %190 = arith.select %12, %188, %189 : vector<48x8xi1>, vector<48x8xf32>
    %cst_60 = arith.constant dense<0xFF800000> : vector<48xf32>
    %191 = vector.multi_reduction <maximumf>, %190, %cst_60 [1] : vector<48x8xf32> to vector<48xf32>
    %192 = vector.shape_cast %191 : vector<48xf32> to vector<48x1xf32>
    %193 = vector.broadcast %192 : vector<48x1xf32> to vector<48x8xf32>
    %194 = arith.subf %190, %193 : vector<48x8xf32>
    %195 = math.exp %194 : vector<48x8xf32>
    %cst_61 = arith.constant 0.000000e+00 : f32
    %196 = vector.broadcast %cst_61 : f32 to vector<48x8xf32>
    %197 = arith.select %12, %195, %196 : vector<48x8xi1>, vector<48x8xf32>
    %cst_62 = arith.constant dense<0.000000e+00> : vector<48xf32>
    %198 = vector.multi_reduction <add>, %197, %cst_62 [1] : vector<48x8xf32> to vector<48xf32>
    %199 = vector.shape_cast %198 : vector<48xf32> to vector<48x1xf32>
    %cst_63 = arith.constant 1.000000e-30 : f32
    %200 = vector.broadcast %cst_63 : f32 to vector<48x1xf32>
    %201 = arith.maximumf %199, %200 : vector<48x1xf32>
    %202 = vector.broadcast %201 : vector<48x1xf32> to vector<48x8xf32>
    %203 = arith.divf %197, %202 : vector<48x8xf32>
    %204 = vector.shape_cast %203 : vector<48x8xf32> to vector<6x8x8xf32>
    %205 = vector.extract_strided_slice %130 {offsets = [0, 64], sizes = [48, 32], strides = [1, 1]} : vector<48x128xf32> to vector<48x32xf32>
    %206 = vector.shape_cast %205 : vector<48x32xf32> to vector<6x8x32xf32>
    "tpu.trace_start"() <{level = 10 : i32, message = "bij,bjd->bid"}> : () -> ()
    %cst_64 = arith.constant dense<0.000000e+00> : vector<6x8x32xf32>
    %207 = tpu.matmul %204, %206, %cst_64 {dimension_numbers = #tpu.dot_dimension_numbers<[2], [1], [1], [2], [0, 0, 0, 1, 1, 2], [0], [0]>} : vector<6x8x8xf32>, vector<6x8x32xf32>, vector<6x8x32xf32> -> vector<6x8x32xf32>
    "tpu.trace_stop"() : () -> ()
    %208 = vector.shape_cast %207 : vector<6x8x32xf32> to vector<48x32xf32>
    %209 = vector.extract_strided_slice %145 {offsets = [0, 24], sizes = [48, 8], strides = [1, 1]} : vector<48x32xf32> to vector<48x8xf32>
    %cst_65 = arith.constant -1.000000e+30 : f32
    %210 = vector.broadcast %cst_65 : f32 to vector<48x8xf32>
    %211 = arith.select %12, %209, %210 : vector<48x8xi1>, vector<48x8xf32>
    %cst_66 = arith.constant dense<0xFF800000> : vector<48xf32>
    %212 = vector.multi_reduction <maximumf>, %211, %cst_66 [1] : vector<48x8xf32> to vector<48xf32>
    %213 = vector.shape_cast %212 : vector<48xf32> to vector<48x1xf32>
    %214 = vector.broadcast %213 : vector<48x1xf32> to vector<48x8xf32>
    %215 = arith.subf %211, %214 : vector<48x8xf32>
    %216 = math.exp %215 : vector<48x8xf32>
    %cst_67 = arith.constant 0.000000e+00 : f32
    %217 = vector.broadcast %cst_67 : f32 to vector<48x8xf32>
    %218 = arith.select %12, %216, %217 : vector<48x8xi1>, vector<48x8xf32>
    %cst_68 = arith.constant dense<0.000000e+00> : vector<48xf32>
    %219 = vector.multi_reduction <add>, %218, %cst_68 [1] : vector<48x8xf32> to vector<48xf32>
    %220 = vector.shape_cast %219 : vector<48xf32> to vector<48x1xf32>
    %cst_69 = arith.constant 1.000000e-30 : f32
    %221 = vector.broadcast %cst_69 : f32 to vector<48x1xf32>
    %222 = arith.maximumf %220, %221 : vector<48x1xf32>
    %223 = vector.broadcast %222 : vector<48x1xf32> to vector<48x8xf32>
    %224 = arith.divf %218, %223 : vector<48x8xf32>
    %225 = vector.shape_cast %224 : vector<48x8xf32> to vector<6x8x8xf32>
    %226 = vector.extract_strided_slice %130 {offsets = [0, 96], sizes = [48, 32], strides = [1, 1]} : vector<48x128xf32> to vector<48x32xf32>
    %227 = vector.shape_cast %226 : vector<48x32xf32> to vector<6x8x32xf32>
    "tpu.trace_start"() <{level = 10 : i32, message = "bij,bjd->bid"}> : () -> ()
    %cst_70 = arith.constant dense<0.000000e+00> : vector<6x8x32xf32>
    %228 = tpu.matmul %225, %227, %cst_70 {dimension_numbers = #tpu.dot_dimension_numbers<[2], [1], [1], [2], [0, 0, 0, 1, 1, 2], [0], [0]>} : vector<6x8x8xf32>, vector<6x8x32xf32>, vector<6x8x32xf32> -> vector<6x8x32xf32>
    "tpu.trace_stop"() : () -> ()
    %229 = vector.shape_cast %228 : vector<6x8x32xf32> to vector<48x32xf32>
    %230 = arith.addf %166, %187 : vector<48x32xf32>
    %231 = arith.addf %230, %208 : vector<48x32xf32>
    %232 = arith.addf %231, %229 : vector<48x32xf32>
    %233 = vector.extract_strided_slice %127 {offsets = [0, 0], sizes = [48, 32], strides = [1, 1]} : vector<48x128xf32> to vector<48x32xf32>
    %234 = arith.addf %232, %233 : vector<48x32xf32>
    %235 = vector.extract_strided_slice %127 {offsets = [0, 32], sizes = [48, 32], strides = [1, 1]} : vector<48x128xf32> to vector<48x32xf32>
    %236 = arith.addf %234, %235 : vector<48x32xf32>
    %237 = vector.extract_strided_slice %127 {offsets = [0, 64], sizes = [48, 32], strides = [1, 1]} : vector<48x128xf32> to vector<48x32xf32>
    %238 = arith.addf %236, %237 : vector<48x32xf32>
    %239 = vector.extract_strided_slice %127 {offsets = [0, 96], sizes = [48, 32], strides = [1, 1]} : vector<48x128xf32> to vector<48x32xf32>
    %240 = arith.addf %238, %239 : vector<48x32xf32>
    %cst_71 = arith.constant 2.500000e-01 : f32
    %241 = vector.broadcast %cst_71 : f32 to vector<48x32xf32>
    %242 = arith.mulf %240, %241 : vector<48x32xf32>
    %243 = vector.shape_cast %242 : vector<48x32xf32> to vector<6x8x32xf32>
    %c0_72 = arith.constant 0 : index
    %c0_73 = arith.constant 0 : index
    %244 = vector.load %arg5[%c0_72, %c0_73] : memref<1x32xf32, #tpu.memory_space<vmem>>, vector<1x32xf32>
    %245 = vector.shape_cast %244 : vector<1x32xf32> to vector<1x1x32xf32>
    %246 = vector.broadcast %245 : vector<1x1x32xf32> to vector<6x8x32xf32>
    %247 = arith.mulf %243, %246 : vector<6x8x32xf32>
    %cst_74 = arith.constant dense<0.000000e+00> : vector<6x8xf32>
    %248 = vector.multi_reduction <add>, %247, %cst_74 [2] : vector<6x8x32xf32> to vector<6x8xf32>
    %249 = vector.shape_cast %248 : vector<6x8xf32> to vector<6x8x1xf32>
    %c0_75 = arith.constant 0 : index
    %c0_76 = arith.constant 0 : index
    %250 = memref.load %arg8[%c0_75, %c0_76] : memref<1x1xf32, #tpu.memory_space<smem>>
    %251 = vector.broadcast %250 : f32 to vector<6x8x1xf32>
    %252 = arith.addf %249, %251 : vector<6x8x1xf32>
    %cst_77 = arith.constant 0.000000e+00 : f32
    %253 = vector.broadcast %cst_77 : f32 to vector<6x8x1xf32>
    %254 = arith.subf %253, %252 : vector<6x8x1xf32>
    %255 = math.exp %254 : vector<6x8x1xf32>
    %cst_78 = arith.constant 1.000000e+00 : f32
    %256 = vector.broadcast %cst_78 : f32 to vector<6x8x1xf32>
    %257 = arith.addf %256, %255 : vector<6x8x1xf32>
    %cst_79 = arith.constant 1.000000e+00 : f32
    %258 = vector.broadcast %cst_79 : f32 to vector<6x8x1xf32>
    %259 = arith.divf %258, %257 : vector<6x8x1xf32>
    %260 = vector.broadcast %259 : vector<6x8x1xf32> to vector<6x8x32xf32>
    %261 = arith.mulf %260, %243 : vector<6x8x32xf32>
    %cst_80 = arith.constant dense<0.000000e+00> : vector<6x32xf32>
    %262 = vector.multi_reduction <add>, %261, %cst_80 [1] : vector<6x8x32xf32> to vector<6x32xf32>
    %cst_81 = arith.constant dense<0xFF800000> : vector<6x32xf32>
    %263 = vector.multi_reduction <maximumf>, %243, %cst_81 [1] : vector<6x8x32xf32> to vector<6x32xf32>
    %264 = tpu.concatenate %262, %263 in 1 : vector<6x32xf32>, vector<6x32xf32> -> vector<6x64xf32>
    %265 = vector.shape_cast %264 : vector<6x64xf32> to vector<3x2x64xf32>
    %c0_82 = arith.constant 0 : index
    %c0_83 = arith.constant 0 : index
    %c0_84 = arith.constant 0 : index
    %c0_85 = arith.constant 0 : index
    %266 = vector.load %arg6[%c0_82, %c0_83, %c0_84, %c0_85] : memref<2x3x64x32xf32, #tpu.memory_space<vmem>>, vector<1x3x64x32xf32>
    %267 = vector.shape_cast %266 : vector<1x3x64x32xf32> to vector<3x64x32xf32>
    "tpu.trace_start"() <{level = 10 : i32, message = "gbi,gid->gbd"}> : () -> ()
    %cst_86 = arith.constant dense<0.000000e+00> : vector<3x2x32xf32>
    %268 = tpu.matmul %265, %267, %cst_86 {dimension_numbers = #tpu.dot_dimension_numbers<[2], [1], [1], [2], [0, 0, 0, 1, 1, 2], [0], [0]>} : vector<3x2x64xf32>, vector<3x64x32xf32>, vector<3x2x32xf32> -> vector<3x2x32xf32>
    %cst_87 = arith.constant 0.000000e+00 : f32
    "tpu.trace_stop"() : () -> ()
    %269 = vector.broadcast %cst_87 : f32 to vector<3x2x32xf32>
    %cst_88 = arith.constant dense<0xFF800000> : vector<2x32xf32>
    %270 = vector.multi_reduction <maximumf>, %269, %cst_88 [0] : vector<3x2x32xf32> to vector<2x32xf32>
    %271 = vector.shape_cast %270 : vector<2x32xf32> to vector<1x2x32xf32>
    %272 = vector.broadcast %271 : vector<1x2x32xf32> to vector<3x2x32xf32>
    %273 = arith.subf %269, %272 : vector<3x2x32xf32>
    %274 = math.exp %273 : vector<3x2x32xf32>
    %cst_89 = arith.constant dense<0.000000e+00> : vector<2x32xf32>
    %275 = vector.multi_reduction <add>, %274, %cst_89 [0] : vector<3x2x32xf32> to vector<2x32xf32>
    %276 = vector.shape_cast %275 : vector<2x32xf32> to vector<1x2x32xf32>
    %277 = vector.broadcast %276 : vector<1x2x32xf32> to vector<3x2x32xf32>
    %278 = arith.divf %274, %277 : vector<3x2x32xf32>
    %279 = arith.mulf %278, %268 : vector<3x2x32xf32>
    %cst_90 = arith.constant dense<0.000000e+00> : vector<2x32xf32>
    %280 = vector.multi_reduction <add>, %279, %cst_90 [0] : vector<3x2x32xf32> to vector<2x32xf32>
    %281 = vector.shape_cast %280 : vector<2x32xf32> to vector<1x2x32xf32>
    %282 = arith.mulf %281, %281 : vector<1x2x32xf32>
    %cst_91 = arith.constant dense<0.000000e+00> : vector<1x2xf32>
    %283 = vector.multi_reduction <add>, %282, %cst_91 [2] : vector<1x2x32xf32> to vector<1x2xf32>
    %284 = vector.shape_cast %283 : vector<1x2xf32> to vector<1x2x1xf32>
    %cst_92 = arith.constant 1.000000e+00 : f32
    %285 = vector.broadcast %cst_92 : f32 to vector<1x2x1xf32>
    %286 = arith.addf %285, %284 : vector<1x2x1xf32>
    %287 = arith.divf %284, %286 : vector<1x2x1xf32>
    %288 = vector.broadcast %287 : vector<1x2x1xf32> to vector<1x2x32xf32>
    %289 = arith.mulf %288, %281 : vector<1x2x32xf32>
    %cst_93 = arith.constant 1.000000e-30 : f32
    %290 = vector.broadcast %cst_93 : f32 to vector<1x2x1xf32>
    %291 = arith.maximumf %284, %290 : vector<1x2x1xf32>
    %292 = math.sqrt %291 : vector<1x2x1xf32>
    %293 = vector.broadcast %292 : vector<1x2x1xf32> to vector<1x2x32xf32>
    %294 = arith.divf %289, %293 : vector<1x2x32xf32>
    %295 = vector.broadcast %294 : vector<1x2x32xf32> to vector<3x2x32xf32>
    %296 = arith.mulf %268, %295 : vector<3x2x32xf32>
    %cst_94 = arith.constant dense<0.000000e+00> : vector<3x2xf32>
    %297 = vector.multi_reduction <add>, %296, %cst_94 [2] : vector<3x2x32xf32> to vector<3x2xf32>
    %298 = vector.shape_cast %297 : vector<3x2xf32> to vector<3x2x1xf32>
    %299 = vector.broadcast %298 : vector<3x2x1xf32> to vector<3x2x32xf32>
    %300 = arith.addf %269, %299 : vector<3x2x32xf32>
    %cst_95 = arith.constant dense<0xFF800000> : vector<2x32xf32>
    %301 = vector.multi_reduction <maximumf>, %300, %cst_95 [0] : vector<3x2x32xf32> to vector<2x32xf32>
    %302 = vector.shape_cast %301 : vector<2x32xf32> to vector<1x2x32xf32>
    %303 = vector.broadcast %302 : vector<1x2x32xf32> to vector<3x2x32xf32>
    %304 = arith.subf %300, %303 : vector<3x2x32xf32>
    %305 = math.exp %304 : vector<3x2x32xf32>
    %cst_96 = arith.constant dense<0.000000e+00> : vector<2x32xf32>
    %306 = vector.multi_reduction <add>, %305, %cst_96 [0] : vector<3x2x32xf32> to vector<2x32xf32>
    %307 = vector.shape_cast %306 : vector<2x32xf32> to vector<1x2x32xf32>
    %308 = vector.broadcast %307 : vector<1x2x32xf32> to vector<3x2x32xf32>
    %309 = arith.divf %305, %308 : vector<3x2x32xf32>
    %310 = arith.mulf %309, %268 : vector<3x2x32xf32>
    %cst_97 = arith.constant dense<0.000000e+00> : vector<2x32xf32>
    %311 = vector.multi_reduction <add>, %310, %cst_97 [0] : vector<3x2x32xf32> to vector<2x32xf32>
    %312 = vector.shape_cast %311 : vector<2x32xf32> to vector<1x2x32xf32>
    %313 = arith.mulf %312, %312 : vector<1x2x32xf32>
    %cst_98 = arith.constant dense<0.000000e+00> : vector<1x2xf32>
    %314 = vector.multi_reduction <add>, %313, %cst_98 [2] : vector<1x2x32xf32> to vector<1x2xf32>
    %315 = vector.shape_cast %314 : vector<1x2xf32> to vector<1x2x1xf32>
    %cst_99 = arith.constant 1.000000e+00 : f32
    %316 = vector.broadcast %cst_99 : f32 to vector<1x2x1xf32>
    %317 = arith.addf %316, %315 : vector<1x2x1xf32>
    %318 = arith.divf %315, %317 : vector<1x2x1xf32>
    %319 = vector.broadcast %318 : vector<1x2x1xf32> to vector<1x2x32xf32>
    %320 = arith.mulf %319, %312 : vector<1x2x32xf32>
    %cst_100 = arith.constant 1.000000e-30 : f32
    %321 = vector.broadcast %cst_100 : f32 to vector<1x2x1xf32>
    %322 = arith.maximumf %315, %321 : vector<1x2x1xf32>
    %323 = math.sqrt %322 : vector<1x2x1xf32>
    %324 = vector.broadcast %323 : vector<1x2x1xf32> to vector<1x2x32xf32>
    %325 = arith.divf %320, %324 : vector<1x2x32xf32>
    %326 = vector.broadcast %325 : vector<1x2x32xf32> to vector<3x2x32xf32>
    %327 = arith.mulf %268, %326 : vector<3x2x32xf32>
    %cst_101 = arith.constant dense<0.000000e+00> : vector<3x2xf32>
    %328 = vector.multi_reduction <add>, %327, %cst_101 [2] : vector<3x2x32xf32> to vector<3x2xf32>
    %329 = vector.shape_cast %328 : vector<3x2xf32> to vector<3x2x1xf32>
    %330 = vector.broadcast %329 : vector<3x2x1xf32> to vector<3x2x32xf32>
    %331 = arith.addf %300, %330 : vector<3x2x32xf32>
    %cst_102 = arith.constant dense<0xFF800000> : vector<2x32xf32>
    %332 = vector.multi_reduction <maximumf>, %331, %cst_102 [0] : vector<3x2x32xf32> to vector<2x32xf32>
    %333 = vector.shape_cast %332 : vector<2x32xf32> to vector<1x2x32xf32>
    %334 = vector.broadcast %333 : vector<1x2x32xf32> to vector<3x2x32xf32>
    %335 = arith.subf %331, %334 : vector<3x2x32xf32>
    %336 = math.exp %335 : vector<3x2x32xf32>
    %cst_103 = arith.constant dense<0.000000e+00> : vector<2x32xf32>
    %337 = vector.multi_reduction <add>, %336, %cst_103 [0] : vector<3x2x32xf32> to vector<2x32xf32>
    %338 = vector.shape_cast %337 : vector<2x32xf32> to vector<1x2x32xf32>
    %339 = vector.broadcast %338 : vector<1x2x32xf32> to vector<3x2x32xf32>
    %340 = arith.divf %336, %339 : vector<3x2x32xf32>
    %341 = arith.mulf %340, %268 : vector<3x2x32xf32>
    %cst_104 = arith.constant dense<0.000000e+00> : vector<2x32xf32>
    %342 = vector.multi_reduction <add>, %341, %cst_104 [0] : vector<3x2x32xf32> to vector<2x32xf32>
    %343 = vector.shape_cast %342 : vector<2x32xf32> to vector<1x2x32xf32>
    %344 = arith.mulf %343, %343 : vector<1x2x32xf32>
    %cst_105 = arith.constant dense<0.000000e+00> : vector<1x2xf32>
    %345 = vector.multi_reduction <add>, %344, %cst_105 [2] : vector<1x2x32xf32> to vector<1x2xf32>
    %346 = vector.shape_cast %345 : vector<1x2xf32> to vector<1x2x1xf32>
    %cst_106 = arith.constant 1.000000e+00 : f32
    %347 = vector.broadcast %cst_106 : f32 to vector<1x2x1xf32>
    %348 = arith.addf %347, %346 : vector<1x2x1xf32>
    %349 = arith.divf %346, %348 : vector<1x2x1xf32>
    %350 = vector.broadcast %349 : vector<1x2x1xf32> to vector<1x2x32xf32>
    %351 = arith.mulf %350, %343 : vector<1x2x32xf32>
    %cst_107 = arith.constant 1.000000e-30 : f32
    %352 = vector.broadcast %cst_107 : f32 to vector<1x2x1xf32>
    %353 = arith.maximumf %346, %352 : vector<1x2x1xf32>
    %354 = math.sqrt %353 : vector<1x2x1xf32>
    %355 = vector.broadcast %354 : vector<1x2x1xf32> to vector<1x2x32xf32>
    %356 = arith.divf %351, %355 : vector<1x2x32xf32>
    %357 = vector.shape_cast %356 : vector<1x2x32xf32> to vector<2x32xf32>
    %c1 = arith.constant 1 : index
    %c0_108 = arith.constant 0 : index
    %c0_109 = arith.constant 0 : index
    %c0_110 = arith.constant 0 : index
    %358 = vector.load %arg6[%c1, %c0_108, %c0_109, %c0_110] : memref<2x3x64x32xf32, #tpu.memory_space<vmem>>, vector<1x3x64x32xf32>
    %359 = vector.shape_cast %358 : vector<1x3x64x32xf32> to vector<3x64x32xf32>
    "tpu.trace_start"() <{level = 10 : i32, message = "gbi,gid->gbd"}> : () -> ()
    %cst_111 = arith.constant dense<0.000000e+00> : vector<3x2x32xf32>
    %360 = tpu.matmul %265, %359, %cst_111 {dimension_numbers = #tpu.dot_dimension_numbers<[2], [1], [1], [2], [0, 0, 0, 1, 1, 2], [0], [0]>} : vector<3x2x64xf32>, vector<3x64x32xf32>, vector<3x2x32xf32> -> vector<3x2x32xf32>
    %cst_112 = arith.constant 0.000000e+00 : f32
    "tpu.trace_stop"() : () -> ()
    %361 = vector.broadcast %cst_112 : f32 to vector<3x2x32xf32>
    %cst_113 = arith.constant dense<0xFF800000> : vector<2x32xf32>
    %362 = vector.multi_reduction <maximumf>, %361, %cst_113 [0] : vector<3x2x32xf32> to vector<2x32xf32>
    %363 = vector.shape_cast %362 : vector<2x32xf32> to vector<1x2x32xf32>
    %364 = vector.broadcast %363 : vector<1x2x32xf32> to vector<3x2x32xf32>
    %365 = arith.subf %361, %364 : vector<3x2x32xf32>
    %366 = math.exp %365 : vector<3x2x32xf32>
    %cst_114 = arith.constant dense<0.000000e+00> : vector<2x32xf32>
    %367 = vector.multi_reduction <add>, %366, %cst_114 [0] : vector<3x2x32xf32> to vector<2x32xf32>
    %368 = vector.shape_cast %367 : vector<2x32xf32> to vector<1x2x32xf32>
    %369 = vector.broadcast %368 : vector<1x2x32xf32> to vector<3x2x32xf32>
    %370 = arith.divf %366, %369 : vector<3x2x32xf32>
    %371 = arith.mulf %370, %360 : vector<3x2x32xf32>
    %cst_115 = arith.constant dense<0.000000e+00> : vector<2x32xf32>
    %372 = vector.multi_reduction <add>, %371, %cst_115 [0] : vector<3x2x32xf32> to vector<2x32xf32>
    %373 = vector.shape_cast %372 : vector<2x32xf32> to vector<1x2x32xf32>
    %374 = arith.mulf %373, %373 : vector<1x2x32xf32>
    %cst_116 = arith.constant dense<0.000000e+00> : vector<1x2xf32>
    %375 = vector.multi_reduction <add>, %374, %cst_116 [2] : vector<1x2x32xf32> to vector<1x2xf32>
    %376 = vector.shape_cast %375 : vector<1x2xf32> to vector<1x2x1xf32>
    %cst_117 = arith.constant 1.000000e+00 : f32
    %377 = vector.broadcast %cst_117 : f32 to vector<1x2x1xf32>
    %378 = arith.addf %377, %376 : vector<1x2x1xf32>
    %379 = arith.divf %376, %378 : vector<1x2x1xf32>
    %380 = vector.broadcast %379 : vector<1x2x1xf32> to vector<1x2x32xf32>
    %381 = arith.mulf %380, %373 : vector<1x2x32xf32>
    %cst_118 = arith.constant 1.000000e-30 : f32
    %382 = vector.broadcast %cst_118 : f32 to vector<1x2x1xf32>
    %383 = arith.maximumf %376, %382 : vector<1x2x1xf32>
    %384 = math.sqrt %383 : vector<1x2x1xf32>
    %385 = vector.broadcast %384 : vector<1x2x1xf32> to vector<1x2x32xf32>
    %386 = arith.divf %381, %385 : vector<1x2x32xf32>
    %387 = vector.broadcast %386 : vector<1x2x32xf32> to vector<3x2x32xf32>
    %388 = arith.mulf %360, %387 : vector<3x2x32xf32>
    %cst_119 = arith.constant dense<0.000000e+00> : vector<3x2xf32>
    %389 = vector.multi_reduction <add>, %388, %cst_119 [2] : vector<3x2x32xf32> to vector<3x2xf32>
    %390 = vector.shape_cast %389 : vector<3x2xf32> to vector<3x2x1xf32>
    %391 = vector.broadcast %390 : vector<3x2x1xf32> to vector<3x2x32xf32>
    %392 = arith.addf %361, %391 : vector<3x2x32xf32>
    %cst_120 = arith.constant dense<0xFF800000> : vector<2x32xf32>
    %393 = vector.multi_reduction <maximumf>, %392, %cst_120 [0] : vector<3x2x32xf32> to vector<2x32xf32>
    %394 = vector.shape_cast %393 : vector<2x32xf32> to vector<1x2x32xf32>
    %395 = vector.broadcast %394 : vector<1x2x32xf32> to vector<3x2x32xf32>
    %396 = arith.subf %392, %395 : vector<3x2x32xf32>
    %397 = math.exp %396 : vector<3x2x32xf32>
    %cst_121 = arith.constant dense<0.000000e+00> : vector<2x32xf32>
    %398 = vector.multi_reduction <add>, %397, %cst_121 [0] : vector<3x2x32xf32> to vector<2x32xf32>
    %399 = vector.shape_cast %398 : vector<2x32xf32> to vector<1x2x32xf32>
    %400 = vector.broadcast %399 : vector<1x2x32xf32> to vector<3x2x32xf32>
    %401 = arith.divf %397, %400 : vector<3x2x32xf32>
    %402 = arith.mulf %401, %360 : vector<3x2x32xf32>
    %cst_122 = arith.constant dense<0.000000e+00> : vector<2x32xf32>
    %403 = vector.multi_reduction <add>, %402, %cst_122 [0] : vector<3x2x32xf32> to vector<2x32xf32>
    %404 = vector.shape_cast %403 : vector<2x32xf32> to vector<1x2x32xf32>
    %405 = arith.mulf %404, %404 : vector<1x2x32xf32>
    %cst_123 = arith.constant dense<0.000000e+00> : vector<1x2xf32>
    %406 = vector.multi_reduction <add>, %405, %cst_123 [2] : vector<1x2x32xf32> to vector<1x2xf32>
    %407 = vector.shape_cast %406 : vector<1x2xf32> to vector<1x2x1xf32>
    %cst_124 = arith.constant 1.000000e+00 : f32
    %408 = vector.broadcast %cst_124 : f32 to vector<1x2x1xf32>
    %409 = arith.addf %408, %407 : vector<1x2x1xf32>
    %410 = arith.divf %407, %409 : vector<1x2x1xf32>
    %411 = vector.broadcast %410 : vector<1x2x1xf32> to vector<1x2x32xf32>
    %412 = arith.mulf %411, %404 : vector<1x2x32xf32>
    %cst_125 = arith.constant 1.000000e-30 : f32
    %413 = vector.broadcast %cst_125 : f32 to vector<1x2x1xf32>
    %414 = arith.maximumf %407, %413 : vector<1x2x1xf32>
    %415 = math.sqrt %414 : vector<1x2x1xf32>
    %416 = vector.broadcast %415 : vector<1x2x1xf32> to vector<1x2x32xf32>
    %417 = arith.divf %412, %416 : vector<1x2x32xf32>
    %418 = vector.broadcast %417 : vector<1x2x32xf32> to vector<3x2x32xf32>
    %419 = arith.mulf %360, %418 : vector<3x2x32xf32>
    %cst_126 = arith.constant dense<0.000000e+00> : vector<3x2xf32>
    %420 = vector.multi_reduction <add>, %419, %cst_126 [2] : vector<3x2x32xf32> to vector<3x2xf32>
    %421 = vector.shape_cast %420 : vector<3x2xf32> to vector<3x2x1xf32>
    %422 = vector.broadcast %421 : vector<3x2x1xf32> to vector<3x2x32xf32>
    %423 = arith.addf %392, %422 : vector<3x2x32xf32>
    %cst_127 = arith.constant dense<0xFF800000> : vector<2x32xf32>
    %424 = vector.multi_reduction <maximumf>, %423, %cst_127 [0] : vector<3x2x32xf32> to vector<2x32xf32>
    %425 = vector.shape_cast %424 : vector<2x32xf32> to vector<1x2x32xf32>
    %426 = vector.broadcast %425 : vector<1x2x32xf32> to vector<3x2x32xf32>
    %427 = arith.subf %423, %426 : vector<3x2x32xf32>
    %428 = math.exp %427 : vector<3x2x32xf32>
    %cst_128 = arith.constant dense<0.000000e+00> : vector<2x32xf32>
    %429 = vector.multi_reduction <add>, %428, %cst_128 [0] : vector<3x2x32xf32> to vector<2x32xf32>
    %430 = vector.shape_cast %429 : vector<2x32xf32> to vector<1x2x32xf32>
    %431 = vector.broadcast %430 : vector<1x2x32xf32> to vector<3x2x32xf32>
    %432 = arith.divf %428, %431 : vector<3x2x32xf32>
    %433 = arith.mulf %432, %360 : vector<3x2x32xf32>
    %cst_129 = arith.constant dense<0.000000e+00> : vector<2x32xf32>
    %434 = vector.multi_reduction <add>, %433, %cst_129 [0] : vector<3x2x32xf32> to vector<2x32xf32>
    %435 = vector.shape_cast %434 : vector<2x32xf32> to vector<1x2x32xf32>
    %436 = arith.mulf %435, %435 : vector<1x2x32xf32>
    %cst_130 = arith.constant dense<0.000000e+00> : vector<1x2xf32>
    %437 = vector.multi_reduction <add>, %436, %cst_130 [2] : vector<1x2x32xf32> to vector<1x2xf32>
    %438 = vector.shape_cast %437 : vector<1x2xf32> to vector<1x2x1xf32>
    %cst_131 = arith.constant 1.000000e+00 : f32
    %439 = vector.broadcast %cst_131 : f32 to vector<1x2x1xf32>
    %440 = arith.addf %439, %438 : vector<1x2x1xf32>
    %441 = arith.divf %438, %440 : vector<1x2x1xf32>
    %442 = vector.broadcast %441 : vector<1x2x1xf32> to vector<1x2x32xf32>
    %443 = arith.mulf %442, %435 : vector<1x2x32xf32>
    %cst_132 = arith.constant 1.000000e-30 : f32
    %444 = vector.broadcast %cst_132 : f32 to vector<1x2x1xf32>
    %445 = arith.maximumf %438, %444 : vector<1x2x1xf32>
    %446 = math.sqrt %445 : vector<1x2x1xf32>
    %447 = vector.broadcast %446 : vector<1x2x1xf32> to vector<1x2x32xf32>
    %448 = arith.divf %443, %447 : vector<1x2x32xf32>
    %449 = vector.shape_cast %448 : vector<1x2x32xf32> to vector<2x32xf32>
    %450 = tpu.concatenate %357, %449 in 1 : vector<2x32xf32>, vector<2x32xf32> -> vector<2x64xf32>
    %c0_133 = arith.constant 0 : index
    %c0_134 = arith.constant 0 : index
    %451 = vector.load %arg10[%c0_133, %c0_134] : memref<2x64xf32, #tpu.memory_space<vmem>>, vector<2x64xf32>
    tpu.vector_store %arg10[%c0_133, %c0_134], %450 {strides = array<i32>} : memref<2x64xf32, #tpu.memory_space<vmem>>, vector<2x64xf32>,
    %c0_135 = arith.constant 0 : index
    %c0_136 = arith.constant 0 : index
    %452 = vector.load %arg7[%c0_135, %c0_136] : memref<1x64xf32, #tpu.memory_space<vmem>>, vector<1x64xf32>
    %453 = vector.broadcast %452 : vector<1x64xf32> to vector<2x64xf32>
    %454 = arith.mulf %450, %453 : vector<2x64xf32>
    %cst_137 = arith.constant dense<0.000000e+00> : vector<2xf32>
    %455 = vector.multi_reduction <add>, %454, %cst_137 [1] : vector<2x64xf32> to vector<2xf32>
    %456 = vector.shape_cast %455 : vector<2xf32> to vector<2x1xf32>
    %c0_138 = arith.constant 0 : index
    %c0_139 = arith.constant 0 : index
    %457 = memref.load %arg9[%c0_138, %c0_139] : memref<1x1xf32, #tpu.memory_space<smem>>
    %458 = vector.broadcast %457 : f32 to vector<2x1xf32>
    %459 = arith.addf %456, %458 : vector<2x1xf32>
    %c0_140 = arith.constant 0 : index
    %c0_141 = arith.constant 0 : index
    %460 = vector.load %arg11[%c0_140, %c0_141] : memref<2x1xf32, #tpu.memory_space<vmem>>, vector<2x1xf32>
    tpu.vector_store %arg11[%c0_140, %c0_141], %459 {strides = array<i32>} : memref<2x1xf32, #tpu.memory_space<vmem>>, vector<2x1xf32>,
    return
  }
  func.func @transform_0(%arg0: i32) -> (i32, i32, i32, i32) {
    %c0_i32 = arith.constant 0 : i32
    %c0_i32_0 = arith.constant 0 : i32
    %c0_i32_1 = arith.constant 0 : i32
    %c0_i32_2 = arith.constant 0 : i32
    %c0_i32_3 = arith.constant 0 : i32
    return %c0_i32, %c0_i32_0, %c0_i32_1, %c0_i32_2 : i32, i32, i32, i32
  }
  func.func @transform_1(%arg0: i32) -> (i32, i32, i32, i32) {
    %c0_i32 = arith.constant 0 : i32
    %c0_i32_0 = arith.constant 0 : i32
    %c0_i32_1 = arith.constant 0 : i32
    %c0_i32_2 = arith.constant 0 : i32
    %c0_i32_3 = arith.constant 0 : i32
    return %c0_i32, %c0_i32_0, %c0_i32_1, %c0_i32_2 : i32, i32, i32, i32
  }
  func.func @transform_2(%arg0: i32) -> (i32, i32) {
    %c0_i32 = arith.constant 0 : i32
    %c0_i32_0 = arith.constant 0 : i32
    %c0_i32_1 = arith.constant 0 : i32
    return %c0_i32, %c0_i32_0 : i32, i32
  }
  func.func @transform_3(%arg0: i32) -> (i32, i32) {
    %c0_i32 = arith.constant 0 : i32
    %c0_i32_0 = arith.constant 0 : i32
    %c0_i32_1 = arith.constant 0 : i32
    return %c0_i32, %c0_i32_0 : i32, i32
  }
  func.func @transform_4(%arg0: i32) -> (i32, i32) {
    %c0_i32 = arith.constant 0 : i32
    %c0_i32_0 = arith.constant 0 : i32
    %c0_i32_1 = arith.constant 0 : i32
    return %c0_i32, %c0_i32_0 : i32, i32
  }
  func.func @transform_5(%arg0: i32) -> (i32, i32, i32, i32) {
    %c0_i32 = arith.constant 0 : i32
    %c0_i32_0 = arith.constant 0 : i32
    %c0_i32_1 = arith.constant 0 : i32
    %c0_i32_2 = arith.constant 0 : i32
    %c0_i32_3 = arith.constant 0 : i32
    return %c0_i32, %c0_i32_0, %c0_i32_1, %c0_i32_2 : i32, i32, i32, i32
  }
  func.func @transform_6(%arg0: i32) -> (i32, i32) {
    %c0_i32 = arith.constant 0 : i32
    %c0_i32_0 = arith.constant 0 : i32
    %c0_i32_1 = arith.constant 0 : i32
    return %c0_i32, %c0_i32_0 : i32, i32
  }
  func.func @transform_7(%arg0: i32) -> (i32, i32) {
    %c0_i32 = arith.constant 0 : i32
    %c0_i32_0 = arith.constant 0 : i32
    %c0_i32_1 = arith.constant 0 : i32
    return %c0_i32, %c0_i32_0 : i32, i32
  }
  func.func @transform_8(%arg0: i32) -> (i32, i32) {
    %c0_i32 = arith.constant 0 : i32
    %c0_i32_0 = arith.constant 0 : i32
    %c0_i32_1 = arith.constant 0 : i32
    return %c0_i32, %c0_i32_0 : i32, i32
  }
  func.func @transform_9(%arg0: i32) -> (i32, i32) {
    %c0_i32 = arith.constant 0 : i32
    %c0_i32_0 = arith.constant 0 : i32
    %c0_i32_1 = arith.constant 0 : i32
    return %c0_i32, %c0_i32_0 : i32, i32
  }
  func.func @transform_10(%arg0: i32) -> (i32, i32) {
    %c0_i32 = arith.constant 0 : i32
    %c0_i32_0 = arith.constant 0 : i32
    %c0_i32_1 = arith.constant 0 : i32
    return %c0_i32, %c0_i32_0 : i32, i32
  }
}

</mosaic_0001>

<llo_original>
// kernel: tpu_custom_call.1
$region0: #{tpu_custom_call.1}
  #allocation0 [shape = 'u32[]', space=smem, size = 0x4, offset = 0x4, fixed_abs, tag = 'smem constant byte address 0x4 - core index']
  #allocation1 [shape = 'u32[144,128]{1,0:T(1,128)}', space=vmem, size = 0x12000, scoped, tag = 'internal scratch']
  #allocation2 [shape = 'f32[1,1]{1,0:T(1,128)S(6)}', space=smem, size = 0x200, scoped, tag = 'scoped memory for tpu_custom_call.1']
  #allocation3 [shape = 'f32[1,1]{1,0:T(1,128)S(6)}', space=smem, size = 0x200, scoped, tag = 'scoped memory for tpu_custom_call.1']
  %s0 = inlined_call_operand.vmem [shape: f32[3,2,8,16], index: 0, kind: input, shape index: {}]
  %s1 = inlined_call_operand.vmem [shape: f32[3,2,8,8], index: 1, kind: input, shape index: {}]
  %s2 = inlined_call_operand.vmem [shape: f32[16,320], index: 2, kind: input, shape index: {}]
  %s3 = inlined_call_operand.vmem [shape: f32[128,192], index: 3, kind: input, shape index: {}]
  %s4 = inlined_call_operand.vmem [shape: f32[1,32], index: 4, kind: input, shape index: {}]
  %s5 = inlined_call_operand.vmem [shape: f32[2,3,64,32], index: 5, kind: input, shape index: {}]
  %s6 = inlined_call_operand.vmem [shape: f32[1,64], index: 6, kind: input, shape index: {}]
  %s7 = inlined_call_operand.<no memory space> [shape: f32[1,1], index: 7, kind: input, shape index: {}]
  %s8 = inlined_call_operand.<no memory space> [shape: f32[1,1], index: 8, kind: input, shape index: {}]
  %s9 = inlined_call_operand.hbm [shape: f32[2,64], index: 9, kind: output, shape index: {0}]
  %s10 = inlined_call_operand.vmem [shape: f32[2,1], index: 10, kind: output, shape index: {1}]
  %11 = xla_tuple %s9, %s10
  %s12 = sld [smem:[#allocation0]]
  $region54: #{tpu_custom_call.1} parent=0
    _
  %s14 = ssub.s32 1, %s12
  %s15 = scalar_select 0, %s14, %s12
  %16 = sst [smem:[#allocation2]] %s7
  %17 = sst [smem:[#allocation3]] %s8
  $region1: #{tpu_custom_call.1} parent=0
    #allocation4 [shape = 'u8[1024]{0}', space=vmem, size = 0x400, scoped, tag = 'output window, operand 0, single buffered']
    #allocation5 [shape = 's32[1]{0}', space=sflag, size = 0x4, scoped, tag = 'scoped memory for tpu_custom_call.1']
    %18 = vsyncpa [#allocation5], 0
    // Predicated region
    $region2: #{tpu_custom_call.1} parent=1 // pred_check
      _
    $region3: #{tpu_custom_call.1} parent=1 // pred_check_branch
      %20 = sbr.rel (0) target = $region5
    $region4: #{tpu_custom_call.1} parent=1 // pred_region
      _
    $region5: #{tpu_custom_call.1} parent=1 // pred_fallthru
      _
    // Predicated region
    $region6: #{tpu_custom_call.1} parent=1 // pred_check
      _
    $region7: #{tpu_custom_call.1} parent=1 // pred_check_branch
      %22 = sbr.rel (0) target = $region9
    $region8: #{tpu_custom_call.1} parent=1 // pred_region
      _
    $region9: #{tpu_custom_call.1} parent=1 // pred_fallthru
      _
    // Predicated region
    $region10: #{tpu_custom_call.1} parent=1 // pred_check
      _
    $region11: #{tpu_custom_call.1} parent=1 // pred_check_branch
      %24 = sbr.rel (0) target = $region13
    $region12: #{tpu_custom_call.1} parent=1 // pred_region
      _
    $region13: #{tpu_custom_call.1} parent=1 // pred_fallthru
      _
    // Predicated region
    $region14: #{tpu_custom_call.1} parent=1 // pred_check
      _
    $region15: #{tpu_custom_call.1} parent=1 // pred_check_branch
      %26 = sbr.rel (0) target = $region17
    $region16: #{tpu_custom_call.1} parent=1 // pred_region
      _
    $region17: #{tpu_custom_call.1} parent=1 // pred_fallthru
      _
    // Predicated region
    $region18: #{tpu_custom_call.1} parent=1 // pred_check
      _
    $region19: #{tpu_custom_call.1} parent=1 // pred_check_branch
      %28 = sbr.rel (0) target = $region21
    $region20: #{tpu_custom_call.1} parent=1 // pred_region
      _
    $region21: #{tpu_custom_call.1} parent=1 // pred_fallthru
      _
    // Predicated region
    $region22: #{tpu_custom_call.1} parent=1 // pred_check
      _
    $region23: #{tpu_custom_call.1} parent=1 // pred_check_branch
      %30 = sbr.rel (0) target = $region25
    $region24: #{tpu_custom_call.1} parent=1 // pred_region
      _
    $region25: #{tpu_custom_call.1} parent=1 // pred_fallthru
      _
    // Predicated region
    $region26: #{tpu_custom_call.1} parent=1 // pred_check
      _
    $region27: #{tpu_custom_call.1} parent=1 // pred_check_branch
      %32 = sbr.rel (0) target = $region29
    $region28: #{tpu_custom_call.1} parent=1 // pred_region
      _
    $region29: #{tpu_custom_call.1} parent=1 // pred_fallthru
      _
    // Predicated region
    $region30: #{tpu_custom_call.1} parent=1 // pred_check
      _
    $region31: #{tpu_custom_call.1} parent=1 // pred_check_branch
      %34 = sbr.rel (0) target = $region33
    $region32: #{tpu_custom_call.1} parent=1 // pred_region
      _
    $region33: #{tpu_custom_call.1} parent=1 // pred_fallthru
      _
    // Predicated region
    $region34: #{tpu_custom_call.1} parent=1 // pred_check
      _
    $region35: #{tpu_custom_call.1} parent=1 // pred_check_branch
      %36 = sbr.rel (0) target = $region37
    $region36: #{tpu_custom_call.1} parent=1 // pred_region
      _
    $region37: #{tpu_custom_call.1} parent=1 // pred_fallthru
      _
    %v37 = vlaneseq
    %v38 = vshrl.u32 %v37, 7
    %v39 = vadd.s32 %v38, 8
    %v40 = vadd.s32 %v38, 16
    %v41 = vadd.s32 %v38, 24
    %v42 = vadd.s32 %v38, 32
    %v43 = vadd.s32 %v38, 40
    %v44 = vlaneseq
    %v45 = vand.u32 %v44, 127
    %v46 = vand.u32 %v38, 7
    %v47 = vand.u32 %v39, 7
    %v48 = vand.u32 %v40, 7
    %v49 = vand.u32 %v41, 7
    %v50 = vand.u32 %v42, 7
    %v51 = vand.u32 %v43, 7
    %v52 = vand.u32 %v45, 7
    %vm53 = vcmp.eq.s32.totalorder %v46, %v52
    %vm54 = vcmp.eq.s32.totalorder %v47, %v52
    %vm55 = vcmp.eq.s32.totalorder %v48, %v52
    %vm56 = vcmp.eq.s32.totalorder %v49, %v52
    %vm57 = vcmp.eq.s32.totalorder %v50, %v52
    %vm58 = vcmp.eq.s32.totalorder %v51, %v52
    %v59 = vsel %vm53, 1, 0
    %v60 = vsel %vm54, 1, 0
    %v61 = vsel %vm55, 1, 0
    %v62 = vsel %vm56, 1, 0
    %v63 = vsel %vm57, 1, 0
    %v64 = vsel %vm58, 1, 0
    %v65 = vcvt.s32.f32 %v59
    %v66 = vcvt.s32.f32 %v60
    %v67 = vcvt.s32.f32 %v61
    %v68 = vcvt.s32.f32 %v62
    %v69 = vcvt.s32.f32 %v63
    %v70 = vcvt.s32.f32 %v64
    %v71 = vld [vmem:[%s1] sm:$0xff]
    %v72 = vld [vmem:[%s1 + $0x8] sm:$0xff]
    %v73 = vld [vmem:[%s1 + $0x10] sm:$0xff]
    %v74 = vld [vmem:[%s1 + $0x18] sm:$0xff]
    %v75 = vld [vmem:[%s1 + $0x20] sm:$0xff]
    %v76 = vld [vmem:[%s1 + $0x28] sm:$0xff]
    %vm77 = vcmp.gt.f32.partialorder %v71, 0.0
    %vm78 = vcmp.gt.f32.partialorder %v72, 0.0
    %vm79 = vcmp.gt.f32.partialorder %v73, 0.0
    %vm80 = vcmp.gt.f32.partialorder %v74, 0.0
    %vm81 = vcmp.gt.f32.partialorder %v75, 0.0
    %vm82 = vcmp.gt.f32.partialorder %v76, 0.0
    %v83 = vld [vmem:[%s0] sm:$0xff]
    %v84 = vld [vmem:[%s0 + $0x8] sm:$0xff]
    %v85 = vld [vmem:[%s0 + $0x10] sm:$0xff]
    %v86 = vld [vmem:[%s0 + $0x18] sm:$0xff]
    %v87 = vld [vmem:[%s0 + $0x20] sm:$0xff]
    %v88 = vld [vmem:[%s0 + $0x28] sm:$0xff]
    %v89 = vld [vmem:[%s2] sm:$0xff]
    %v90 = vld [vmem:[%s2 + $0x8] sm:$0xff]
    %v91 = vld [vmem:[%s2 + $0x10] sm:$0xff]
    %v92 = vld [vmem:[%s2 + $0x18] sm:$0xff]
    %v93 = vld [vmem:[%s2 + $0x20] sm:$0xff]
    %v94 = vld [vmem:[%s2 + $0x28] sm:$0xff]
    %vm95 = vcmask 130048
    %v97 = vsel %vm95, %v83, 0
    %v100 = vsel %vm95, %v84, 0
    %v103 = vsel %vm95, %v85, 0
    %v106 = vsel %vm95, %v86, 0
    %v109 = vsel %vm95, %v87, 0
    %v112 = vsel %vm95, %v88, 0
    %114 = vmatprep.subr.mxu0 0.0
    %115 = vmatpush1.msra.mxu0 0.0
    %116 = vmatprep.subr.mxu0 0.0
    %117 = vmatpush1.msra.mxu0 0.0
    %118 = vmatprep.subr.mxu0 0.0
    %119 = vmatpush1.msra.mxu0 0.0
    %120 = vmatprep.subr.mxu0 0.0
    %121 = vmatpush1.msra.mxu0 0.0
    %122 = vmatprep.subr.mxu0 0.0
    %123 = vmatpush1.msra.mxu0 0.0
    %124 = vmatprep.subr.mxu0 0.0
    %125 = vmatpush1.msra.mxu0 0.0
    %126 = vmatprep.subr.mxu0 0.0
    %127 = vmatpush1.msra.mxu0 0.0
    %128 = vmatprep.subr.mxu0 0.0
    %129 = vmatpush1.msra.mxu0 0.0
    %130 = vmatprep.subr.mxu0 0.0
    %131 = vmatpush1.msra.mxu0 0.0
    %132 = vmatprep.subr.mxu0 0.0
    %133 = vmatpush1.msra.mxu0 0.0
    %134 = vmatprep.subr.mxu0 0.0
    %135 = vmatpush1.msra.mxu0 0.0
    %136 = vmatprep.subr.mxu0 0.0
    %137 = vmatpush1.msra.mxu0 0.0
    %138 = vmatprep.subr.mxu0 0.0
    %139 = vmatpush1.msra.mxu0 0.0
    %140 = vmatprep.subr.mxu0 0.0
    %141 = vmatpush1.msra.mxu0 0.0
    %142 = vmatprep.subr.mxu0 %v93
    %143 = vmatpush1.msra.mxu0 %v92
    %144 = vmatprep.subr.mxu0 %v90
    %145 = vmatpush1.msra.mxu0 %v89
    %146 = vmatprep.subr.mxu0 0.0
    %147 = vmatpush2.msra.mxu0 0.0
    %148 = vmatprep.subr.mxu0 0.0
    %149 = vmatpush2.msra.mxu0 0.0
    %150 = vmatprep.subr.mxu0 0.0
    %151 = vmatpush2.msra.mxu0 0.0
    %152 = vmatprep.subr.mxu0 0.0
    %153 = vmatpush2.msra.mxu0 0.0
    %154 = vmatprep.subr.mxu0 0.0
    %155 = vmatpush2.msra.mxu0 0.0
    %156 = vmatprep.subr.mxu0 0.0
    %157 = vmatpush2.msra.mxu0 0.0
    %158 = vmatprep.subr.mxu0 0.0
    %159 = vmatpush2.msra.mxu0 0.0
    %160 = vmatprep.subr.mxu0 0.0
    %161 = vmatpush2.msra.mxu0 0.0
    %162 = vmatprep.subr.mxu0 0.0
    %163 = vmatpush2.msra.mxu0 0.0
    %164 = vmatprep.subr.mxu0 0.0
    %165 = vmatpush2.msra.mxu0 0.0
    %166 = vmatprep.subr.mxu0 0.0
    %167 = vmatpush2.msra.mxu0 0.0
    %168 = vmatprep.subr.mxu0 0.0
    %169 = vmatpush2.msra.mxu0 0.0
    %170 = vmatprep.subr.mxu0 0.0
    %171 = vmatpush2.msra.mxu0 0.0
    %172 = vmatprep.subr.mxu0 0.0
    %173 = vmatpush2.msra.mxu0 0.0
    %174 = vmatprep.subr.mxu0 0.0
    %175 = vmatpush2.msra.mxu0 0.0
    %176 = vmatprep.subr.mxu0 0.0
    %177 = vmatpush2.msra.mxu0 0.0
    %178 = vmatprep.mubr.f32.mxu0 0.0
    %179 = vmatmul.mubr.f32.gmra.mxu0 %v97
    %v180 = vpop.f32.mrf.mxu0
    %v181 = vadd.f32 0.0, %v180
    %v182 = vpop.f32.mrf.mxu0
    %v183 = vadd.f32 0.0, %v182
    %184 = vmatprep.mubr.f32.mxu0 0.0
    %185 = vmatmul.mubr.f32.gmra.mxu0 %v100
    %v186 = vpop.f32.mrf.mxu0
    %v187 = vadd.f32 0.0, %v186
    %v188 = vpop.f32.mrf.mxu0
    %v189 = vadd.f32 0.0, %v188
    %190 = vmatprep.mubr.f32.mxu0 0.0
    %191 = vmatmul.mubr.f32.gmra.mxu0 %v103
    %v192 = vpop.f32.mrf.mxu0
    %v193 = vadd.f32 0.0, %v192
    %v194 = vpop.f32.mrf.mxu0
    %v195 = vadd.f32 0.0, %v194
    %196 = vmatprep.mubr.f32.mxu0 0.0
    %197 = vmatmul.mubr.f32.gmra.mxu0 %v106
    %v198 = vpop.f32.mrf.mxu0
    %v199 = vadd.f32 0.0, %v198
    %v200 = vpop.f32.mrf.mxu0
    %v201 = vadd.f32 0.0, %v200
    %202 = vmatprep.mubr.f32.mxu0 0.0
    %203 = vmatmul.mubr.f32.gmra.mxu0 %v109
    %v204 = vpop.f32.mrf.mxu0
    %v205 = vadd.f32 0.0, %v204
    %v206 = vpop.f32.mrf.mxu0
    %v207 = vadd.f32 0.0, %v206
    %208 = vmatprep.mubr.f32.mxu0 0.0
    %209 = vmatmul.mubr.f32.gmra.mxu0 %v112
    %v210 = vpop.f32.mrf.mxu0
    %v211 = vadd.f32 0.0, %v210
    %v212 = vpop.f32.mrf.mxu0
    %v213 = vadd.f32 0.0, %v212
    %214 = vdwg.mxu0
    %215 = vmatprep.subr.mxu0 0.0
    %216 = vmatpush1.msra.mxu0 0.0
    %217 = vmatprep.subr.mxu0 0.0
    %218 = vmatpush1.msra.mxu0 0.0
    %219 = vmatprep.subr.mxu0 0.0
    %220 = vmatpush1.msra.mxu0 0.0
    %221 = vmatprep.subr.mxu0 0.0
    %222 = vmatpush1.msra.mxu0 0.0
    %223 = vmatprep.subr.mxu0 0.0
    %224 = vmatpush1.msra.mxu0 0.0
    %225 = vmatprep.subr.mxu0 0.0
    %226 = vmatpush1.msra.mxu0 0.0
    %227 = vmatprep.subr.mxu0 0.0
    %228 = vmatpush1.msra.mxu0 0.0
    %229 = vmatprep.subr.mxu0 0.0
    %230 = vmatpush1.msra.mxu0 0.0
    %231 = vmatprep.subr.mxu0 0.0
    %232 = vmatpush1.msra.mxu0 0.0
    %233 = vmatprep.subr.mxu0 0.0
    %234 = vmatpush1.msra.mxu0 0.0
    %235 = vmatprep.subr.mxu0 0.0
    %236 = vmatpush1.msra.mxu0 0.0
    %237 = vmatprep.subr.mxu0 0.0
    %238 = vmatpush1.msra.mxu0 0.0
    %239 = vmatprep.subr.mxu0 0.0
    %240 = vmatpush1.msra.mxu0 0.0
    %241 = vmatprep.subr.mxu0 0.0
    %242 = vmatpush1.msra.mxu0 0.0
    %243 = vmatprep.subr.mxu0 0.0
    %244 = vmatpush1.msra.mxu0 %v94
    %245 = vmatprep.subr.mxu0 0.0
    %246 = vmatpush1.msra.mxu0 %v91
    %247 = vmatprep.subr.mxu0 0.0
    %248 = vmatpush2.msra.mxu0 0.0
    %249 = vmatprep.subr.mxu0 0.0
    %250 = vmatpush2.msra.mxu0 0.0
    %251 = vmatprep.subr.mxu0 0.0
    %252 = vmatpush2.msra.mxu0 0.0
    %253 = vmatprep.subr.mxu0 0.0
    %254 = vmatpush2.msra.mxu0 0.0
    %255 = vmatprep.subr.mxu0 0.0
    %256 = vmatpush2.msra.mxu0 0.0
    %257 = vmatprep.subr.mxu0 0.0
    %258 = vmatpush2.msra.mxu0 0.0
    %259 = vmatprep.subr.mxu0 0.0
    %260 = vmatpush2.msra.mxu0 0.0
    %261 = vmatprep.subr.mxu0 0.0
    %262 = vmatpush2.msra.mxu0 0.0
    %263 = vmatprep.subr.mxu0 0.0
    %264 = vmatpush2.msra.mxu0 0.0
    %265 = vmatprep.subr.mxu0 0.0
    %266 = vmatpush2.msra.mxu0 0.0
    %267 = vmatprep.subr.mxu0 0.0
    %268 = vmatpush2.msra.mxu0 0.0
    %269 = vmatprep.subr.mxu0 0.0
    %270 = vmatpush2.msra.mxu0 0.0
    %271 = vmatprep.subr.mxu0 0.0
    %272 = vmatpush2.msra.mxu0 0.0
    %273 = vmatprep.subr.mxu0 0.0
    %274 = vmatpush2.msra.mxu0 0.0
    %275 = vmatprep.subr.mxu0 0.0
    %276 = vmatpush2.msra.mxu0 0.0
    %277 = vmatprep.subr.mxu0 0.0
    %278 = vmatpush2.msra.mxu0 0.0
    %279 = vmatprep.mubr.f32.mxu0 0.0
    %280 = vmatmul.mubr.f32.gmra.mxu0 %v97
    %v281 = vpop.f32.mrf.mxu0
    %v282 = vadd.f32 0.0, %v281
    %v283 = vpop.f32.mrf.mxu0
    %284 = vmatprep.mubr.f32.mxu0 0.0
    %285 = vmatmul.mubr.f32.gmra.mxu0 %v100
    %v286 = vpop.f32.mrf.mxu0
    %v287 = vadd.f32 0.0, %v286
    %v288 = vpop.f32.mrf.mxu0
    %289 = vmatprep.mubr.f32.mxu0 0.0
    %290 = vmatmul.mubr.f32.gmra.mxu0 %v103
    %v291 = vpop.f32.mrf.mxu0
    %v292 = vadd.f32 0.0, %v291
    %v293 = vpop.f32.mrf.mxu0
    %294 = vmatprep.mubr.f32.mxu0 0.0
    %295 = vmatmul.mubr.f32.gmra.mxu0 %v106
    %v296 = vpop.f32.mrf.mxu0
    %v297 = vadd.f32 0.0, %v296
    %v298 = vpop.f32.mrf.mxu0
    %299 = vmatprep.mubr.f32.mxu0 0.0
    %300 = vmatmul.mubr.f32.gmra.mxu0 %v109
    %v301 = vpop.f32.mrf.mxu0
    %v302 = vadd.f32 0.0, %v301
    %v303 = vpop.f32.mrf.mxu0
    %304 = vmatprep.mubr.f32.mxu0 0.0
    %305 = vmatmul.mubr.f32.gmra.mxu0 %v112
    %v306 = vpop.f32.mrf.mxu0
    %v307 = vadd.f32 0.0, %v306
    %v308 = vpop.f32.mrf.mxu0
    %309 = vdwg.mxu0
    %v310 = vmul.f32 %v282, %v65
    %v311 = vmul.f32 %v287, %v66
    %v312 = vmul.f32 %v292, %v67
    %v313 = vmul.f32 %v297, %v68
    %v314 = vmul.f32 %v302, %v69
    %v315 = vmul.f32 %v307, %v70
    %vm316 = vcmask 261120
    %v317 = vsel %vm316, %v310, 0.0
    %v318 = vrot.slane %v317, 4
    %v319 = vadd.f32 %v317, %v318
    %v320 = vrot.slane %v319, 2
    %v321 = vadd.f32 %v319, %v320
    %v322 = vrot.slane %v321, 1
    %v323 = vadd.f32 %v321, %v322
    %v324 = vsel %vm316, %v311, 0.0
    %v325 = vrot.slane %v324, 4
    %v326 = vadd.f32 %v324, %v325
    %v327 = vrot.slane %v326, 2
    %v328 = vadd.f32 %v326, %v327
    %v329 = vrot.slane %v328, 1
    %v330 = vadd.f32 %v328, %v329
    %v331 = vsel %vm316, %v312, 0.0
    %v332 = vrot.slane %v331, 4
    %v333 = vadd.f32 %v331, %v332
    %v334 = vrot.slane %v333, 2
    %v335 = vadd.f32 %v333, %v334
    %v336 = vrot.slane %v335, 1
    %v337 = vadd.f32 %v335, %v336
    %v338 = vsel %vm316, %v313, 0.0
    %v339 = vrot.slane %v338, 4
    %v340 = vadd.f32 %v338, %v339
    %v341 = vrot.slane %v340, 2
    %v342 = vadd.f32 %v340, %v341
    %v343 = vrot.slane %v342, 1
    %v344 = vadd.f32 %v342, %v343
    %v345 = vsel %vm316, %v314, 0.0
    %v346 = vrot.slane %v345, 4
    %v347 = vadd.f32 %v345, %v346
    %v348 = vrot.slane %v347, 2
    %v349 = vadd.f32 %v347, %v348
    %v350 = vrot.slane %v349, 1
    %v351 = vadd.f32 %v349, %v350
    %v352 = vsel %vm316, %v315, 0.0
    %v353 = vrot.slane %v352, 4
    %v354 = vadd.f32 %v352, %v353
    %v355 = vrot.slane %v354, 2
    %v356 = vadd.f32 %v354, %v355
    %v357 = vrot.slane %v356, 1
    %v358 = vadd.f32 %v356, %v357
    %365 = vrot.lane.b32.xlu0 %v323, 32
    %v366 = vpop.permute.xlu0 %365
    %367 = vrot.lane.b32.xlu0 %v330, 32
    %v368 = vpop.permute.xlu0 %367
    %369 = vrot.lane.b32.xlu0 %v337, 32
    %v370 = vpop.permute.xlu0 %369
    %371 = vrot.lane.b32.xlu0 %v344, 32
    %v372 = vpop.permute.xlu0 %371
    %373 = vrot.lane.b32.xlu0 %v351, 32
    %v374 = vpop.permute.xlu0 %373
    %375 = vrot.lane.b32.xlu0 %v358, 32
    %v376 = vpop.permute.xlu0 %375
    %v383 = vadd.f32 %v282, %v366
    %v384 = vadd.f32 %v287, %v368
    %v385 = vadd.f32 %v292, %v370
    %v386 = vadd.f32 %v297, %v372
    %v387 = vadd.f32 %v302, %v374
    %v388 = vadd.f32 %v307, %v376
    %vm389 = vcmp.gt.f32.partialorder %v383, 0.0
    %vm390 = vcmp.gt.f32.partialorder %v384, 0.0
    %vm391 = vcmp.gt.f32.partialorder %v385, 0.0
    %vm392 = vcmp.gt.f32.partialorder %v386, 0.0
    %vm393 = vcmp.gt.f32.partialorder %v387, 0.0
    %vm394 = vcmp.gt.f32.partialorder %v388, 0.0
    %v395 = vmul.f32 %v383, 0.2
    %v396 = vmul.f32 %v384, 0.2
    %v397 = vmul.f32 %v385, 0.2
    %v398 = vmul.f32 %v386, 0.2
    %v399 = vmul.f32 %v387, 0.2
    %v400 = vmul.f32 %v388, 0.2
    %v401 = vsel %vm389, %v383, %v395
    %v402 = vsel %vm390, %v384, %v396
    %v403 = vsel %vm391, %v385, %v397
    %v404 = vsel %vm392, %v386, %v398
    %v405 = vsel %vm393, %v387, %v399
    %v406 = vsel %vm394, %v388, %v400
    %413 = vrot.lane.b32.xlu0 %v401, 96
    %v414 = vpop.permute.xlu0 %413
    %415 = vrot.lane.b32.xlu0 %v402, 96
    %v416 = vpop.permute.xlu0 %415
    %417 = vrot.lane.b32.xlu0 %v403, 96
    %v418 = vpop.permute.xlu0 %417
    %419 = vrot.lane.b32.xlu0 %v404, 96
    %v420 = vpop.permute.xlu0 %419
    %421 = vrot.lane.b32.xlu0 %v405, 96
    %v422 = vpop.permute.xlu0 %421
    %423 = vrot.lane.b32.xlu0 %v406, 96
    %v424 = vpop.permute.xlu0 %423
    %v431 = vsel %vm77, %v414, -1e+30
    %v432 = vsel %vm78, %v416, -1e+30
    %v433 = vsel %vm79, %v418, -1e+30
    %v434 = vsel %vm80, %v420, -1e+30
    %v435 = vsel %vm81, %v422, -1e+30
    %v436 = vsel %vm82, %v424, -1e+30
    %vm437 = vcmask 64512
    %v438 = vsel %vm437, %v431, -inf
    %439 = vmax.xlane.f32.xlu0 %v438
    %v440 = vpop.xlane.xlu0 %439
    %v441 = vsel %vm437, %v432, -inf
    %442 = vmax.xlane.f32.xlu0 %v441
    %v443 = vpop.xlane.xlu0 %442
    %v444 = vsel %vm437, %v433, -inf
    %445 = vmax.xlane.f32.xlu0 %v444
    %v446 = vpop.xlane.xlu0 %445
    %v447 = vsel %vm437, %v434, -inf
    %448 = vmax.xlane.f32.xlu0 %v447
    %v449 = vpop.xlane.xlu0 %448
    %v450 = vsel %vm437, %v435, -inf
    %451 = vmax.xlane.f32.xlu0 %v450
    %v452 = vpop.xlane.xlu0 %451
    %v453 = vsel %vm437, %v436, -inf
    %454 = vmax.xlane.f32.xlu0 %v453
    %v455 = vpop.xlane.xlu0 %454
    %v456 = vsub.f32 %v431, %v440
    %v457 = vsub.f32 %v432, %v443
    %v458 = vsub.f32 %v433, %v446
    %v459 = vsub.f32 %v434, %v449
    %v460 = vsub.f32 %v435, %v452
    %v461 = vsub.f32 %v436, %v455
    %v462 = vmul.f32 %v456, 1.442695
    %v463 = vpow.pop %v462
    %v464 = vmul.f32 %v457, 1.442695
    %v465 = vpow.pop %v464
    %v466 = vmul.f32 %v458, 1.442695
    %v467 = vpow.pop %v466
    %v468 = vmul.f32 %v459, 1.442695
    %v469 = vpow.pop %v468
    %v470 = vmul.f32 %v460, 1.442695
    %v471 = vpow.pop %v470
    %v472 = vmul.f32 %v461, 1.442695
    %v473 = vpow.pop %v472
    %v474 = vsel %vm77, %v463, 0.0
    %v475 = vsel %vm78, %v465, 0.0
    %v476 = vsel %vm79, %v467, 0.0
    %v477 = vsel %vm80, %v469, 0.0
    %v478 = vsel %vm81, %v471, 0.0
    %v479 = vsel %vm82, %v473, 0.0
    %v480 = vsel %vm437, %v474, 0.0
    %481 = vadd.xlane.f32.xlu0 %v480
    %v482 = vpop.xlane.xlu0 %481
    %v483 = vsel %vm437, %v475, 0.0
    %484 = vadd.xlane.f32.xlu0 %v483
    %v485 = vpop.xlane.xlu0 %484
    %v486 = vsel %vm437, %v476, 0.0
    %487 = vadd.xlane.f32.xlu0 %v486
    %v488 = vpop.xlane.xlu0 %487
    %v489 = vsel %vm437, %v477, 0.0
    %490 = vadd.xlane.f32.xlu0 %v489
    %v491 = vpop.xlane.xlu0 %490
    %v492 = vsel %vm437, %v478, 0.0
    %493 = vadd.xlane.f32.xlu0 %v492
    %v494 = vpop.xlane.xlu0 %493
    %v495 = vsel %vm437, %v479, 0.0
    %496 = vadd.xlane.f32.xlu0 %v495
    %v497 = vpop.xlane.xlu0 %496
    %v498 = vmax.f32 %v482, 1e-30
    %v499 = vmax.f32 %v485, 1e-30
    %v500 = vmax.f32 %v488, 1e-30
    %v501 = vmax.f32 %v491, 1e-30
    %v502 = vmax.f32 %v494, 1e-30
    %v503 = vmax.f32 %v497, 1e-30
    %v504 = vrcp.pop %v498
    %v505 = vmul.f32 %v474, %v504
    %v506 = vrcp.pop %v499
    %v507 = vmul.f32 %v475, %v506
    %v508 = vrcp.pop %v500
    %v509 = vmul.f32 %v476, %v508
    %v510 = vrcp.pop %v501
    %v511 = vmul.f32 %v477, %v510
    %v512 = vrcp.pop %v502
    %v513 = vmul.f32 %v478, %v512
    %v514 = vrcp.pop %v503
    %v515 = vmul.f32 %v479, %v514
    %v517 = vsel %vm437, %v505, 0
    %519 = vmatprep.subr.mxu0 0.0
    %520 = vmatpush1.msra.mxu0 0.0
    %521 = vmatprep.subr.mxu0 0.0
    %522 = vmatpush1.msra.mxu0 0.0
    %523 = vmatprep.subr.mxu0 0.0
    %524 = vmatpush1.msra.mxu0 0.0
    %525 = vmatprep.subr.mxu0 0.0
    %526 = vmatpush1.msra.mxu0 0.0
    %527 = vmatprep.subr.mxu0 0.0
    %528 = vmatpush1.msra.mxu0 0.0
    %529 = vmatprep.subr.mxu0 0.0
    %530 = vmatpush1.msra.mxu0 0.0
    %531 = vmatprep.subr.mxu0 0.0
    %532 = vmatpush1.msra.mxu0 0.0
    %533 = vmatprep.subr.mxu0 0.0
    %534 = vmatpush1.msra.mxu0 0.0
    %535 = vmatprep.subr.mxu0 0.0
    %536 = vmatpush1.msra.mxu0 0.0
    %537 = vmatprep.subr.mxu0 0.0
    %538 = vmatpush1.msra.mxu0 0.0
    %539 = vmatprep.subr.mxu0 0.0
    %540 = vmatpush1.msra.mxu0 0.0
    %541 = vmatprep.subr.mxu0 0.0
    %542 = vmatpush1.msra.mxu0 0.0
    %543 = vmatprep.subr.mxu0 0.0
    %544 = vmatpush1.msra.mxu0 0.0
    %545 = vmatprep.subr.mxu0 0.0
    %546 = vmatpush1.msra.mxu0 0.0
    %547 = vmatprep.subr.mxu0 0.0
    %548 = vmatpush1.msra.mxu0 0.0
    %549 = vmatprep.subr.mxu0 0.0
    %550 = vmatpush1.msra.mxu0 %v181
    %551 = vmatprep.subr.mxu0 0.0
    %552 = vmatpush2.msra.mxu0 0.0
    %553 = vmatprep.subr.mxu0 0.0
    %554 = vmatpush2.msra.mxu0 0.0
    %555 = vmatprep.subr.mxu0 0.0
    %556 = vmatpush2.msra.mxu0 0.0
    %557 = vmatprep.subr.mxu0 0.0
    %558 = vmatpush2.msra.mxu0 0.0
    %559 = vmatprep.subr.mxu0 0.0
    %560 = vmatpush2.msra.mxu0 0.0
    %561 = vmatprep.subr.mxu0 0.0
    %562 = vmatpush2.msra.mxu0 0.0
    %563 = vmatprep.subr.mxu0 0.0
    %564 = vmatpush2.msra.mxu0 0.0
    %565 = vmatprep.subr.mxu0 0.0
    %566 = vmatpush2.msra.mxu0 0.0
    %567 = vmatprep.subr.mxu0 0.0
    %568 = vmatpush2.msra.mxu0 0.0
    %569 = vmatprep.subr.mxu0 0.0
    %570 = vmatpush2.msra.mxu0 0.0
    %571 = vmatprep.subr.mxu0 0.0
    %572 = vmatpush2.msra.mxu0 0.0
    %573 = vmatprep.subr.mxu0 0.0
    %574 = vmatpush2.msra.mxu0 0.0
    %575 = vmatprep.subr.mxu0 0.0
    %576 = vmatpush2.msra.mxu0 0.0
    %577 = vmatprep.subr.mxu0 0.0
    %578 = vmatpush2.msra.mxu0 0.0
    %579 = vmatprep.subr.mxu0 0.0
    %580 = vmatpush2.msra.mxu0 0.0
    %581 = vmatprep.subr.mxu0 0.0
    %582 = vmatpush2.msra.mxu0 0.0
    %583 = vmatprep.mubr.f32.mxu0 0.0
    %584 = vmatmul.mubr.f32.gmra.mxu0 %v517
    %v585 = vpop.f32.mrf.mxu0
    %v586 = vadd.f32 0.0, %v585
    %v587 = vpop.f32.mrf.mxu0
    %588 = vdwg.mxu0
    %v590 = vsel %vm437, %v507, 0
    %592 = vmatprep.subr.mxu0 0.0
    %593 = vmatpush1.msra.mxu0 0.0
    %594 = vmatprep.subr.mxu0 0.0
    %595 = vmatpush1.msra.mxu0 0.0
    %596 = vmatprep.subr.mxu0 0.0
    %597 = vmatpush1.msra.mxu0 0.0
    %598 = vmatprep.subr.mxu0 0.0
    %599 = vmatpush1.msra.mxu0 0.0
    %600 = vmatprep.subr.mxu0 0.0
    %601 = vmatpush1.msra.mxu0 0.0
    %602 = vmatprep.subr.mxu0 0.0
    %603 = vmatpush1.msra.mxu0 0.0
    %604 = vmatprep.subr.mxu0 0.0
    %605 = vmatpush1.msra.mxu0 0.0
    %606 = vmatprep.subr.mxu0 0.0
    %607 = vmatpush1.msra.mxu0 0.0
    %608 = vmatprep.subr.mxu0 0.0
    %609 = vmatpush1.msra.mxu0 0.0
    %610 = vmatprep.subr.mxu0 0.0
    %611 = vmatpush1.msra.mxu0 0.0
    %612 = vmatprep.subr.mxu0 0.0
    %613 = vmatpush1.msra.mxu0 0.0
    %614 = vmatprep.subr.mxu0 0.0
    %615 = vmatpush1.msra.mxu0 0.0
    %616 = vmatprep.subr.mxu0 0.0
    %617 = vmatpush1.msra.mxu0 0.0
    %618 = vmatprep.subr.mxu0 0.0
    %619 = vmatpush1.msra.mxu0 0.0
    %620 = vmatprep.subr.mxu0 0.0
    %621 = vmatpush1.msra.mxu0 0.0
    %622 = vmatprep.subr.mxu0 0.0
    %623 = vmatpush1.msra.mxu0 %v187
    %624 = vmatprep.subr.mxu0 0.0
    %625 = vmatpush2.msra.mxu0 0.0
    %626 = vmatprep.subr.mxu0 0.0
    %627 = vmatpush2.msra.mxu0 0.0
    %628 = vmatprep.subr.mxu0 0.0
    %629 = vmatpush2.msra.mxu0 0.0
    %630 = vmatprep.subr.mxu0 0.0
    %631 = vmatpush2.msra.mxu0 0.0
    %632 = vmatprep.subr.mxu0 0.0
    %633 = vmatpush2.msra.mxu0 0.0
    %634 = vmatprep.subr.mxu0 0.0
    %635 = vmatpush2.msra.mxu0 0.0
    %636 = vmatprep.subr.mxu0 0.0
    %637 = vmatpush2.msra.mxu0 0.0
    %638 = vmatprep.subr.mxu0 0.0
    %639 = vmatpush2.msra.mxu0 0.0
    %640 = vmatprep.subr.mxu0 0.0
    %641 = vmatpush2.msra.mxu0 0.0
    %642 = vmatprep.subr.mxu0 0.0
    %643 = vmatpush2.msra.mxu0 0.0
    %644 = vmatprep.subr.mxu0 0.0
    %645 = vmatpush2.msra.mxu0 0.0
    %646 = vmatprep.subr.mxu0 0.0
    %647 = vmatpush2.msra.mxu0 0.0
    %648 = vmatprep.subr.mxu0 0.0
    %649 = vmatpush2.msra.mxu0 0.0
    %650 = vmatprep.subr.mxu0 0.0
    %651 = vmatpush2.msra.mxu0 0.0
    %652 = vmatprep.subr.mxu0 0.0
    %653 = vmatpush2.msra.mxu0 0.0
    %654 = vmatprep.subr.mxu0 0.0
    %655 = vmatpush2.msra.mxu0 0.0
    %656 = vmatprep.mubr.f32.mxu0 0.0
    %657 = vmatmul.mubr.f32.gmra.mxu0 %v590
    %v658 = vpop.f32.mrf.mxu0
    %v659 = vadd.f32 0.0, %v658
    %v660 = vpop.f32.mrf.mxu0
    %661 = vdwg.mxu0
    %v663 = vsel %vm437, %v509, 0
    %665 = vmatprep.subr.mxu0 0.0
    %666 = vmatpush1.msra.mxu0 0.0
    %667 = vmatprep.subr.mxu0 0.0
    %668 = vmatpush1.msra.mxu0 0.0
    %669 = vmatprep.subr.mxu0 0.0
    %670 = vmatpush1.msra.mxu0 0.0
    %671 = vmatprep.subr.mxu0 0.0
    %672 = vmatpush1.msra.mxu0 0.0
    %673 = vmatprep.subr.mxu0 0.0
    %674 = vmatpush1.msra.mxu0 0.0
    %675 = vmatprep.subr.mxu0 0.0
    %676 = vmatpush1.msra.mxu0 0.0
    %677 = vmatprep.subr.mxu0 0.0
    %678 = vmatpush1.msra.mxu0 0.0
    %679 = vmatprep.subr.mxu0 0.0
    %680 = vmatpush1.msra.mxu0 0.0
    %681 = vmatprep.subr.mxu0 0.0
    %682 = vmatpush1.msra.mxu0 0.0
    %683 = vmatprep.subr.mxu0 0.0
    %684 = vmatpush1.msra.mxu0 0.0
    %685 = vmatprep.subr.mxu0 0.0
    %686 = vmatpush1.msra.mxu0 0.0
    %687 = vmatprep.subr.mxu0 0.0
    %688 = vmatpush1.msra.mxu0 0.0
    %689 = vmatprep.subr.mxu0 0.0
    %690 = vmatpush1.msra.mxu0 0.0
    %691 = vmatprep.subr.mxu0 0.0
    %692 = vmatpush1.msra.mxu0 0.0
    %693 = vmatprep.subr.mxu0 0.0
    %694 = vmatpush1.msra.mxu0 0.0
    %695 = vmatprep.subr.mxu0 0.0
    %696 = vmatpush1.msra.mxu0 %v193
    %697 = vmatprep.subr.mxu0 0.0
    %698 = vmatpush2.msra.mxu0 0.0
    %699 = vmatprep.subr.mxu0 0.0
    %700 = vmatpush2.msra.mxu0 0.0
    %701 = vmatprep.subr.mxu0 0.0
    %702 = vmatpush2.msra.mxu0 0.0
    %703 = vmatprep.subr.mxu0 0.0
    %704 = vmatpush2.msra.mxu0 0.0
    %705 = vmatprep.subr.mxu0 0.0
    %706 = vmatpush2.msra.mxu0 0.0
    %707 = vmatprep.subr.mxu0 0.0
    %708 = vmatpush2.msra.mxu0 0.0
    %709 = vmatprep.subr.mxu0 0.0
    %710 = vmatpush2.msra.mxu0 0.0
    %711 = vmatprep.subr.mxu0 0.0
    %712 = vmatpush2.msra.mxu0 0.0
    %713 = vmatprep.subr.mxu0 0.0
    %714 = vmatpush2.msra.mxu0 0.0
    %715 = vmatprep.subr.mxu0 0.0
    %716 = vmatpush2.msra.mxu0 0.0
    %717 = vmatprep.subr.mxu0 0.0
    %718 = vmatpush2.msra.mxu0 0.0
    %719 = vmatprep.subr.mxu0 0.0
    %720 = vmatpush2.msra.mxu0 0.0
    %721 = vmatprep.subr.mxu0 0.0
    %722 = vmatpush2.msra.mxu0 0.0
    %723 = vmatprep.subr.mxu0 0.0
    %724 = vmatpush2.msra.mxu0 0.0
    %725 = vmatprep.subr.mxu0 0.0
    %726 = vmatpush2.msra.mxu0 0.0
    %727 = vmatprep.subr.mxu0 0.0
    %728 = vmatpush2.msra.mxu0 0.0
    %729 = vmatprep.mubr.f32.mxu0 0.0
    %730 = vmatmul.mubr.f32.gmra.mxu0 %v663
    %v731 = vpop.f32.mrf.mxu0
    %v732 = vadd.f32 0.0, %v731
    %v733 = vpop.f32.mrf.mxu0
    %734 = vdwg.mxu0
    %v736 = vsel %vm437, %v511, 0
    %738 = vmatprep.subr.mxu0 0.0
    %739 = vmatpush1.msra.mxu0 0.0
    %740 = vmatprep.subr.mxu0 0.0
    %741 = vmatpush1.msra.mxu0 0.0
    %742 = vmatprep.subr.mxu0 0.0
    %743 = vmatpush1.msra.mxu0 0.0
    %744 = vmatprep.subr.mxu0 0.0
    %745 = vmatpush1.msra.mxu0 0.0
    %746 = vmatprep.subr.mxu0 0.0
    %747 = vmatpush1.msra.mxu0 0.0
    %748 = vmatprep.subr.mxu0 0.0
    %749 = vmatpush1.msra.mxu0 0.0
    %750 = vmatprep.subr.mxu0 0.0
    %751 = vmatpush1.msra.mxu0 0.0
    %752 = vmatprep.subr.mxu0 0.0
    %753 = vmatpush1.msra.mxu0 0.0
    %754 = vmatprep.subr.mxu0 0.0
    %755 = vmatpush1.msra.mxu0 0.0
    %756 = vmatprep.subr.mxu0 0.0
    %757 = vmatpush1.msra.mxu0 0.0
    %758 = vmatprep.subr.mxu0 0.0
    %759 = vmatpush1.msra.mxu0 0.0
    %760 = vmatprep.subr.mxu0 0.0
    %761 = vmatpush1.msra.mxu0 0.0
    %762 = vmatprep.subr.mxu0 0.0
    %763 = vmatpush1.msra.mxu0 0.0
    %764 = vmatprep.subr.mxu0 0.0
    %765 = vmatpush1.msra.mxu0 0.0
    %766 = vmatprep.subr.mxu0 0.0
    %767 = vmatpush1.msra.mxu0 0.0
    %768 = vmatprep.subr.mxu0 0.0
    %769 = vmatpush1.msra.mxu0 %v199
    %770 = vmatprep.subr.mxu0 0.0
    %771 = vmatpush2.msra.mxu0 0.0
    %772 = vmatprep.subr.mxu0 0.0
    %773 = vmatpush2.msra.mxu0 0.0
    %774 = vmatprep.subr.mxu0 0.0
    %775 = vmatpush2.msra.mxu0 0.0
    %776 = vmatprep.subr.mxu0 0.0
    %777 = vmatpush2.msra.mxu0 0.0
    %778 = vmatprep.subr.mxu0 0.0
    %779 = vmatpush2.msra.mxu0 0.0
    %780 = vmatprep.subr.mxu0 0.0
    %781 = vmatpush2.msra.mxu0 0.0
    %782 = vmatprep.subr.mxu0 0.0
    %783 = vmatpush2.msra.mxu0 0.0
    %784 = vmatprep.subr.mxu0 0.0
    %785 = vmatpush2.msra.mxu0 0.0
    %786 = vmatprep.subr.mxu0 0.0
    %787 = vmatpush2.msra.mxu0 0.0
    %788 = vmatprep.subr.mxu0 0.0
    %789 = vmatpush2.msra.mxu0 0.0
    %790 = vmatprep.subr.mxu0 0.0
    %791 = vmatpush2.msra.mxu0 0.0
    %792 = vmatprep.subr.mxu0 0.0
    %793 = vmatpush2.msra.mxu0 0.0
    %794 = vmatprep.subr.mxu0 0.0
    %795 = vmatpush2.msra.mxu0 0.0
    %796 = vmatprep.subr.mxu0 0.0
    %797 = vmatpush2.msra.mxu0 0.0
    %798 = vmatprep.subr.mxu0 0.0
    %799 = vmatpush2.msra.mxu0 0.0
    %800 = vmatprep.subr.mxu0 0.0
    %801 = vmatpush2.msra.mxu0 0.0
    %802 = vmatprep.mubr.f32.mxu0 0.0
    %803 = vmatmul.mubr.f32.gmra.mxu0 %v736
    %v804 = vpop.f32.mrf.mxu0
    %v805 = vadd.f32 0.0, %v804
    %v806 = vpop.f32.mrf.mxu0
    %807 = vdwg.mxu0
    %v809 = vsel %vm437, %v513, 0
    %811 = vmatprep.subr.mxu0 0.0
    %812 = vmatpush1.msra.mxu0 0.0
    %813 = vmatprep.subr.mxu0 0.0
    %814 = vmatpush1.msra.mxu0 0.0
    %815 = vmatprep.subr.mxu0 0.0
    %816 = vmatpush1.msra.mxu0 0.0
    %817 = vmatprep.subr.mxu0 0.0
    %818 = vmatpush1.msra.mxu0 0.0
    %819 = vmatprep.subr.mxu0 0.0
    %820 = vmatpush1.msra.mxu0 0.0
    %821 = vmatprep.subr.mxu0 0.0
    %822 = vmatpush1.msra.mxu0 0.0
    %823 = vmatprep.subr.mxu0 0.0
    %824 = vmatpush1.msra.mxu0 0.0
    %825 = vmatprep.subr.mxu0 0.0
    %826 = vmatpush1.msra.mxu0 0.0
    %827 = vmatprep.subr.mxu0 0.0
    %828 = vmatpush1.msra.mxu0 0.0
    %829 = vmatprep.subr.mxu0 0.0
    %830 = vmatpush1.msra.mxu0 0.0
    %831 = vmatprep.subr.mxu0 0.0
    %832 = vmatpush1.msra.mxu0 0.0
    %833 = vmatprep.subr.mxu0 0.0
    %834 = vmatpush1.msra.mxu0 0.0
    %835 = vmatprep.subr.mxu0 0.0
    %836 = vmatpush1.msra.mxu0 0.0
    %837 = vmatprep.subr.mxu0 0.0
    %838 = vmatpush1.msra.mxu0 0.0
    %839 = vmatprep.subr.mxu0 0.0
    %840 = vmatpush1.msra.mxu0 0.0
    %841 = vmatprep.subr.mxu0 0.0
    %842 = vmatpush1.msra.mxu0 %v205
    %843 = vmatprep.subr.mxu0 0.0
    %844 = vmatpush2.msra.mxu0 0.0
    %845 = vmatprep.subr.mxu0 0.0
    %846 = vmatpush2.msra.mxu0 0.0
    %847 = vmatprep.subr.mxu0 0.0
    %848 = vmatpush2.msra.mxu0 0.0
    %849 = vmatprep.subr.mxu0 0.0
    %850 = vmatpush2.msra.mxu0 0.0
    %851 = vmatprep.subr.mxu0 0.0
    %852 = vmatpush2.msra.mxu0 0.0
    %853 = vmatprep.subr.mxu0 0.0
    %854 = vmatpush2.msra.mxu0 0.0
    %855 = vmatprep.subr.mxu0 0.0
    %856 = vmatpush2.msra.mxu0 0.0
    %857 = vmatprep.subr.mxu0 0.0
    %858 = vmatpush2.msra.mxu0 0.0
    %859 = vmatprep.subr.mxu0 0.0
    %860 = vmatpush2.msra.mxu0 0.0
    %861 = vmatprep.subr.mxu0 0.0
    %862 = vmatpush2.msra.mxu0 0.0
    %863 = vmatprep.subr.mxu0 0.0
    %864 = vmatpush2.msra.mxu0 0.0
    %865 = vmatprep.subr.mxu0 0.0
    %866 = vmatpush2.msra.mxu0 0.0
    %867 = vmatprep.subr.mxu0 0.0
    %868 = vmatpush2.msra.mxu0 0.0
    %869 = vmatprep.subr.mxu0 0.0
    %870 = vmatpush2.msra.mxu0 0.0
    %871 = vmatprep.subr.mxu0 0.0
    %872 = vmatpush2.msra.mxu0 0.0
    %873 = vmatprep.subr.mxu0 0.0
    %874 = vmatpush2.msra.mxu0 0.0
    %875 = vmatprep.mubr.f32.mxu0 0.0
    %876 = vmatmul.mubr.f32.gmra.mxu0 %v809
    %v877 = vpop.f32.mrf.mxu0
    %v878 = vadd.f32 0.0, %v877
    %v879 = vpop.f32.mrf.mxu0
    %880 = vdwg.mxu0
    %v882 = vsel %vm437, %v515, 0
    %884 = vmatprep.subr.mxu0 0.0
    %885 = vmatpush1.msra.mxu0 0.0
    %886 = vmatprep.subr.mxu0 0.0
    %887 = vmatpush1.msra.mxu0 0.0
    %888 = vmatprep.subr.mxu0 0.0
    %889 = vmatpush1.msra.mxu0 0.0
    %890 = vmatprep.subr.mxu0 0.0
    %891 = vmatpush1.msra.mxu0 0.0
    %892 = vmatprep.subr.mxu0 0.0
    %893 = vmatpush1.msra.mxu0 0.0
    %894 = vmatprep.subr.mxu0 0.0
    %895 = vmatpush1.msra.mxu0 0.0
    %896 = vmatprep.subr.mxu0 0.0
    %897 = vmatpush1.msra.mxu0 0.0
    %898 = vmatprep.subr.mxu0 0.0
    %899 = vmatpush1.msra.mxu0 0.0
    %900 = vmatprep.subr.mxu0 0.0
    %901 = vmatpush1.msra.mxu0 0.0
    %902 = vmatprep.subr.mxu0 0.0
    %903 = vmatpush1.msra.mxu0 0.0
    %904 = vmatprep.subr.mxu0 0.0
    %905 = vmatpush1.msra.mxu0 0.0
    %906 = vmatprep.subr.mxu0 0.0
    %907 = vmatpush1.msra.mxu0 0.0
    %908 = vmatprep.subr.mxu0 0.0
    %909 = vmatpush1.msra.mxu0 0.0
    %910 = vmatprep.subr.mxu0 0.0
    %911 = vmatpush1.msra.mxu0 0.0
    %912 = vmatprep.subr.mxu0 0.0
    %913 = vmatpush1.msra.mxu0 0.0
    %914 = vmatprep.subr.mxu0 0.0
    %915 = vmatpush1.msra.mxu0 %v211
    %916 = vmatprep.subr.mxu0 0.0
    %917 = vmatpush2.msra.mxu0 0.0
    %918 = vmatprep.subr.mxu0 0.0
    %919 = vmatpush2.msra.mxu0 0.0
    %920 = vmatprep.subr.mxu0 0.0
    %921 = vmatpush2.msra.mxu0 0.0
    %922 = vmatprep.subr.mxu0 0.0
    %923 = vmatpush2.msra.mxu0 0.0
    %924 = vmatprep.subr.mxu0 0.0
    %925 = vmatpush2.msra.mxu0 0.0
    %926 = vmatprep.subr.mxu0 0.0
    %927 = vmatpush2.msra.mxu0 0.0
    %928 = vmatprep.subr.mxu0 0.0
    %929 = vmatpush2.msra.mxu0 0.0
    %930 = vmatprep.subr.mxu0 0.0
    %931 = vmatpush2.msra.mxu0 0.0
    %932 = vmatprep.subr.mxu0 0.0
    %933 = vmatpush2.msra.mxu0 0.0
    %934 = vmatprep.subr.mxu0 0.0
    %935 = vmatpush2.msra.mxu0 0.0
    %936 = vmatprep.subr.mxu0 0.0
    %937 = vmatpush2.msra.mxu0 0.0
    %938 = vmatprep.subr.mxu0 0.0
    %939 = vmatpush2.msra.mxu0 0.0
    %940 = vmatprep.subr.mxu0 0.0
    %941 = vmatpush2.msra.mxu0 0.0
    %942 = vmatprep.subr.mxu0 0.0
    %943 = vmatpush2.msra.mxu0 0.0
    %944 = vmatprep.subr.mxu0 0.0
    %945 = vmatpush2.msra.mxu0 0.0
    %946 = vmatprep.subr.mxu0 0.0
    %947 = vmatpush2.msra.mxu0 0.0
    %948 = vmatprep.mubr.f32.mxu0 0.0
    %949 = vmatmul.mubr.f32.gmra.mxu0 %v882
    %v950 = vpop.f32.mrf.mxu0
    %v951 = vadd.f32 0.0, %v950
    %v952 = vpop.f32.mrf.mxu0
    %953 = vdwg.mxu0
    %954 = vrot.lane.b32.xlu0 %v401, 88
    %v955 = vpop.permute.xlu0 %954
    %956 = vrot.lane.b32.xlu0 %v402, 88
    %v957 = vpop.permute.xlu0 %956
    %958 = vrot.lane.b32.xlu0 %v403, 88
    %v959 = vpop.permute.xlu0 %958
    %960 = vrot.lane.b32.xlu0 %v404, 88
    %v961 = vpop.permute.xlu0 %960
    %962 = vrot.lane.b32.xlu0 %v405, 88
    %v963 = vpop.permute.xlu0 %962
    %964 = vrot.lane.b32.xlu0 %v406, 88
    %v965 = vpop.permute.xlu0 %964
    %v972 = vsel %vm77, %v955, -1e+30
    %v973 = vsel %vm78, %v957, -1e+30
    %v974 = vsel %vm79, %v959, -1e+30
    %v975 = vsel %vm80, %v961, -1e+30
    %v976 = vsel %vm81, %v963, -1e+30
    %v977 = vsel %vm82, %v965, -1e+30
    %v978 = vsel %vm437, %v972, -inf
    %979 = vmax.xlane.f32.xlu0 %v978
    %v980 = vpop.xlane.xlu0 %979
    %v981 = vsel %vm437, %v973, -inf
    %982 = vmax.xlane.f32.xlu0 %v981
    %v983 = vpop.xlane.xlu0 %982
    %v984 = vsel %vm437, %v974, -inf
    %985 = vmax.xlane.f32.xlu0 %v984
    %v986 = vpop.xlane.xlu0 %985
    %v987 = vsel %vm437, %v975, -inf
    %988 = vmax.xlane.f32.xlu0 %v987
    %v989 = vpop.xlane.xlu0 %988
    %v990 = vsel %vm437, %v976, -inf
    %991 = vmax.xlane.f32.xlu0 %v990
    %v992 = vpop.xlane.xlu0 %991
    %v993 = vsel %vm437, %v977, -inf
    %994 = vmax.xlane.f32.xlu0 %v993
    %v995 = vpop.xlane.xlu0 %994
    %v996 = vsub.f32 %v972, %v980
    %v997 = vsub.f32 %v973, %v983
    %v998 = vsub.f32 %v974, %v986
    %v999 = vsub.f32 %v975, %v989
    %v1000 = vsub.f32 %v976, %v992
    %v1001 = vsub.f32 %v977, %v995
    %v1002 = vmul.f32 %v996, 1.442695
    %v1003 = vpow.pop %v1002
    %v1004 = vmul.f32 %v997, 1.442695
    %v1005 = vpow.pop %v1004
    %v1006 = vmul.f32 %v998, 1.442695
    %v1007 = vpow.pop %v1006
    %v1008 = vmul.f32 %v999, 1.442695
    %v1009 = vpow.pop %v1008
    %v1010 = vmul.f32 %v1000, 1.442695
    %v1011 = vpow.pop %v1010
    %v1012 = vmul.f32 %v1001, 1.442695
    %v1013 = vpow.pop %v1012
    %v1014 = vsel %vm77, %v1003, 0.0
    %v1015 = vsel %vm78, %v1005, 0.0
    %v1016 = vsel %vm79, %v1007, 0.0
    %v1017 = vsel %vm80, %v1009, 0.0
    %v1018 = vsel %vm81, %v1011, 0.0
    %v1019 = vsel %vm82, %v1013, 0.0
    %v1020 = vsel %vm437, %v1014, 0.0
    %1021 = vadd.xlane.f32.xlu0 %v1020
    %v1022 = vpop.xlane.xlu0 %1021
    %v1023 = vsel %vm437, %v1015, 0.0
    %1024 = vadd.xlane.f32.xlu0 %v1023
    %v1025 = vpop.xlane.xlu0 %1024
    %v1026 = vsel %vm437, %v1016, 0.0
    %1027 = vadd.xlane.f32.xlu0 %v1026
    %v1028 = vpop.xlane.xlu0 %1027
    %v1029 = vsel %vm437, %v1017, 0.0
    %1030 = vadd.xlane.f32.xlu0 %v1029
    %v1031 = vpop.xlane.xlu0 %1030
    %v1032 = vsel %vm437, %v1018, 0.0
    %1033 = vadd.xlane.f32.xlu0 %v1032
    %v1034 = vpop.xlane.xlu0 %1033
    %v1035 = vsel %vm437, %v1019, 0.0
    %1036 = vadd.xlane.f32.xlu0 %v1035
    %v1037 = vpop.xlane.xlu0 %1036
    %v1038 = vmax.f32 %v1022, 1e-30
    %v1039 = vmax.f32 %v1025, 1e-30
    %v1040 = vmax.f32 %v1028, 1e-30
    %v1041 = vmax.f32 %v1031, 1e-30
    %v1042 = vmax.f32 %v1034, 1e-30
    %v1043 = vmax.f32 %v1037, 1e-30
    %v1044 = vrcp.pop %v1038
    %v1045 = vmul.f32 %v1014, %v1044
    %v1046 = vrcp.pop %v1039
    %v1047 = vmul.f32 %v1015, %v1046
    %v1048 = vrcp.pop %v1040
    %v1049 = vmul.f32 %v1016, %v1048
    %v1050 = vrcp.pop %v1041
    %v1051 = vmul.f32 %v1017, %v1050
    %v1052 = vrcp.pop %v1042
    %v1053 = vmul.f32 %v1018, %v1052
    %v1054 = vrcp.pop %v1043
    %v1055 = vmul.f32 %v1019, %v1054
    %1057 = vrot.lane.b32.xlu0 %v181, 96
    %v1058 = vpop.permute.xlu0 %1057
    %v1061 = vsel %vm437, %v1045, 0
    %1063 = vmatprep.subr.mxu0 0.0
    %1064 = vmatpush1.msra.mxu0 0.0
    %1065 = vmatprep.subr.mxu0 0.0
    %1066 = vmatpush1.msra.mxu0 0.0
    %1067 = vmatprep.subr.mxu0 0.0
    %1068 = vmatpush1.msra.mxu0 0.0
    %1069 = vmatprep.subr.mxu0 0.0
    %1070 = vmatpush1.msra.mxu0 0.0
    %1071 = vmatprep.subr.mxu0 0.0
    %1072 = vmatpush1.msra.mxu0 0.0
    %1073 = vmatprep.subr.mxu0 0.0
    %1074 = vmatpush1.msra.mxu0 0.0
    %1075 = vmatprep.subr.mxu0 0.0
    %1076 = vmatpush1.msra.mxu0 0.0
    %1077 = vmatprep.subr.mxu0 0.0
    %1078 = vmatpush1.msra.mxu0 0.0
    %1079 = vmatprep.subr.mxu0 0.0
    %1080 = vmatpush1.msra.mxu0 0.0
    %1081 = vmatprep.subr.mxu0 0.0
    %1082 = vmatpush1.msra.mxu0 0.0
    %1083 = vmatprep.subr.mxu0 0.0
    %1084 = vmatpush1.msra.mxu0 0.0
    %1085 = vmatprep.subr.mxu0 0.0
    %1086 = vmatpush1.msra.mxu0 0.0
    %1087 = vmatprep.subr.mxu0 0.0
    %1088 = vmatpush1.msra.mxu0 0.0
    %1089 = vmatprep.subr.mxu0 0.0
    %1090 = vmatpush1.msra.mxu0 0.0
    %1091 = vmatprep.subr.mxu0 0.0
    %1092 = vmatpush1.msra.mxu0 0.0
    %1093 = vmatprep.subr.mxu0 0.0
    %1094 = vmatpush1.msra.mxu0 %v1058
    %1095 = vmatprep.subr.mxu0 0.0
    %1096 = vmatpush2.msra.mxu0 0.0
    %1097 = vmatprep.subr.mxu0 0.0
    %1098 = vmatpush2.msra.mxu0 0.0
    %1099 = vmatprep.subr.mxu0 0.0
    %1100 = vmatpush2.msra.mxu0 0.0
    %1101 = vmatprep.subr.mxu0 0.0
    %1102 = vmatpush2.msra.mxu0 0.0
    %1103 = vmatprep.subr.mxu0 0.0
    %1104 = vmatpush2.msra.mxu0 0.0
    %1105 = vmatprep.subr.mxu0 0.0
    %1106 = vmatpush2.msra.mxu0 0.0
    %1107 = vmatprep.subr.mxu0 0.0
    %1108 = vmatpush2.msra.mxu0 0.0
    %1109 = vmatprep.subr.mxu0 0.0
    %1110 = vmatpush2.msra.mxu0 0.0
    %1111 = vmatprep.subr.mxu0 0.0
    %1112 = vmatpush2.msra.mxu0 0.0
    %1113 = vmatprep.subr.mxu0 0.0
    %1114 = vmatpush2.msra.mxu0 0.0
    %1115 = vmatprep.subr.mxu0 0.0
    %1116 = vmatpush2.msra.mxu0 0.0
    %1117 = vmatprep.subr.mxu0 0.0
    %1118 = vmatpush2.msra.mxu0 0.0
    %1119 = vmatprep.subr.mxu0 0.0
    %1120 = vmatpush2.msra.mxu0 0.0
    %1121 = vmatprep.subr.mxu0 0.0
    %1122 = vmatpush2.msra.mxu0 0.0
    %1123 = vmatprep.subr.mxu0 0.0
    %1124 = vmatpush2.msra.mxu0 0.0
    %1125 = vmatprep.subr.mxu0 0.0
    %1126 = vmatpush2.msra.mxu0 0.0
    %1127 = vmatprep.mubr.f32.mxu0 0.0
    %1128 = vmatmul.mubr.f32.gmra.mxu0 %v1061
    %v1129 = vpop.f32.mrf.mxu0
    %v1130 = vadd.f32 0.0, %v1129
    %v1131 = vpop.f32.mrf.mxu0
    %1132 = vdwg.mxu0
    %1134 = vrot.lane.b32.xlu0 %v187, 96
    %v1135 = vpop.permute.xlu0 %1134
    %v1138 = vsel %vm437, %v1047, 0
    %1140 = vmatprep.subr.mxu0 0.0
    %1141 = vmatpush1.msra.mxu0 0.0
    %1142 = vmatprep.subr.mxu0 0.0
    %1143 = vmatpush1.msra.mxu0 0.0
    %1144 = vmatprep.subr.mxu0 0.0
    %1145 = vmatpush1.msra.mxu0 0.0
    %1146 = vmatprep.subr.mxu0 0.0
    %1147 = vmatpush1.msra.mxu0 0.0
    %1148 = vmatprep.subr.mxu0 0.0
    %1149 = vmatpush1.msra.mxu0 0.0
    %1150 = vmatprep.subr.mxu0 0.0
    %1151 = vmatpush1.msra.mxu0 0.0
    %1152 = vmatprep.subr.mxu0 0.0
    %1153 = vmatpush1.msra.mxu0 0.0
    %1154 = vmatprep.subr.mxu0 0.0
    %1155 = vmatpush1.msra.mxu0 0.0
    %1156 = vmatprep.subr.mxu0 0.0
    %1157 = vmatpush1.msra.mxu0 0.0
    %1158 = vmatprep.subr.mxu0 0.0
    %1159 = vmatpush1.msra.mxu0 0.0
    %1160 = vmatprep.subr.mxu0 0.0
    %1161 = vmatpush1.msra.mxu0 0.0
    %1162 = vmatprep.subr.mxu0 0.0
    %1163 = vmatpush1.msra.mxu0 0.0
    %1164 = vmatprep.subr.mxu0 0.0
    %1165 = vmatpush1.msra.mxu0 0.0
    %1166 = vmatprep.subr.mxu0 0.0
    %1167 = vmatpush1.msra.mxu0 0.0
    %1168 = vmatprep.subr.mxu0 0.0
    %1169 = vmatpush1.msra.mxu0 0.0
    %1170 = vmatprep.subr.mxu0 0.0
    %1171 = vmatpush1.msra.mxu0 %v1135
    %1172 = vmatprep.subr.mxu0 0.0
    %1173 = vmatpush2.msra.mxu0 0.0
    %1174 = vmatprep.subr.mxu0 0.0
    %1175 = vmatpush2.msra.mxu0 0.0
    %1176 = vmatprep.subr.mxu0 0.0
    %1177 = vmatpush2.msra.mxu0 0.0
    %1178 = vmatprep.subr.mxu0 0.0
    %1179 = vmatpush2.msra.mxu0 0.0
    %1180 = vmatprep.subr.mxu0 0.0
    %1181 = vmatpush2.msra.mxu0 0.0
    %1182 = vmatprep.subr.mxu0 0.0
    %1183 = vmatpush2.msra.mxu0 0.0
    %1184 = vmatprep.subr.mxu0 0.0
    %1185 = vmatpush2.msra.mxu0 0.0
    %1186 = vmatprep.subr.mxu0 0.0
    %1187 = vmatpush2.msra.mxu0 0.0
    %1188 = vmatprep.subr.mxu0 0.0
    %1189 = vmatpush2.msra.mxu0 0.0
    %1190 = vmatprep.subr.mxu0 0.0
    %1191 = vmatpush2.msra.mxu0 0.0
    %1192 = vmatprep.subr.mxu0 0.0
    %1193 = vmatpush2.msra.mxu0 0.0
    %1194 = vmatprep.subr.mxu0 0.0
    %1195 = vmatpush2.msra.mxu0 0.0
    %1196 = vmatprep.subr.mxu0 0.0
    %1197 = vmatpush2.msra.mxu0 0.0
    %1198 = vmatprep.subr.mxu0 0.0
    %1199 = vmatpush2.msra.mxu0 0.0
    %1200 = vmatprep.subr.mxu0 0.0
    %1201 = vmatpush2.msra.mxu0 0.0
    %1202 = vmatprep.subr.mxu0 0.0
    %1203 = vmatpush2.msra.mxu0 0.0
    %1204 = vmatprep.mubr.f32.mxu0 0.0
    %1205 = vmatmul.mubr.f32.gmra.mxu0 %v1138
    %v1206 = vpop.f32.mrf.mxu0
    %v1207 = vadd.f32 0.0, %v1206
    %v1208 = vpop.f32.mrf.mxu0
    %1209 = vdwg.mxu0
    %1211 = vrot.lane.b32.xlu0 %v193, 96
    %v1212 = vpop.permute.xlu0 %1211
    %v1215 = vsel %vm437, %v1049, 0
    %1217 = vmatprep.subr.mxu0 0.0
    %1218 = vmatpush1.msra.mxu0 0.0
    %1219 = vmatprep.subr.mxu0 0.0
    %1220 = vmatpush1.msra.mxu0 0.0
    %1221 = vmatprep.subr.mxu0 0.0
    %1222 = vmatpush1.msra.mxu0 0.0
    %1223 = vmatprep.subr.mxu0 0.0
    %1224 = vmatpush1.msra.mxu0 0.0
    %1225 = vmatprep.subr.mxu0 0.0
    %1226 = vmatpush1.msra.mxu0 0.0
    %1227 = vmatprep.subr.mxu0 0.0
    %1228 = vmatpush1.msra.mxu0 0.0
    %1229 = vmatprep.subr.mxu0 0.0
    %1230 = vmatpush1.msra.mxu0 0.0
    %1231 = vmatprep.subr.mxu0 0.0
    %1232 = vmatpush1.msra.mxu0 0.0
    %1233 = vmatprep.subr.mxu0 0.0
    %1234 = vmatpush1.msra.mxu0 0.0
    %1235 = vmatprep.subr.mxu0 0.0
    %1236 = vmatpush1.msra.mxu0 0.0
    %1237 = vmatprep.subr.mxu0 0.0
    %1238 = vmatpush1.msra.mxu0 0.0
    %1239 = vmatprep.subr.mxu0 0.0
    %1240 = vmatpush1.msra.mxu0 0.0
    %1241 = vmatprep.subr.mxu0 0.0
    %1242 = vmatpush1.msra.mxu0 0.0
    %1243 = vmatprep.subr.mxu0 0.0
    %1244 = vmatpush1.msra.mxu0 0.0
    %1245 = vmatprep.subr.mxu0 0.0
    %1246 = vmatpush1.msra.mxu0 0.0
    %1247 = vmatprep.subr.mxu0 0.0
    %1248 = vmatpush1.msra.mxu0 %v1212
    %1249 = vmatprep.subr.mxu0 0.0
    %1250 = vmatpush2.msra.mxu0 0.0
    %1251 = vmatprep.subr.mxu0 0.0
    %1252 = vmatpush2.msra.mxu0 0.0
    %1253 = vmatprep.subr.mxu0 0.0
    %1254 = vmatpush2.msra.mxu0 0.0
    %1255 = vmatprep.subr.mxu0 0.0
    %1256 = vmatpush2.msra.mxu0 0.0
    %1257 = vmatprep.subr.mxu0 0.0
    %1258 = vmatpush2.msra.mxu0 0.0
    %1259 = vmatprep.subr.mxu0 0.0
    %1260 = vmatpush2.msra.mxu0 0.0
    %1261 = vmatprep.subr.mxu0 0.0
    %1262 = vmatpush2.msra.mxu0 0.0
    %1263 = vmatprep.subr.mxu0 0.0
    %1264 = vmatpush2.msra.mxu0 0.0
    %1265 = vmatprep.subr.mxu0 0.0
    %1266 = vmatpush2.msra.mxu0 0.0
    %1267 = vmatprep.subr.mxu0 0.0
    %1268 = vmatpush2.msra.mxu0 0.0
    %1269 = vmatprep.subr.mxu0 0.0
    %1270 = vmatpush2.msra.mxu0 0.0
    %1271 = vmatprep.subr.mxu0 0.0
    %1272 = vmatpush2.msra.mxu0 0.0
    %1273 = vmatprep.subr.mxu0 0.0
    %1274 = vmatpush2.msra.mxu0 0.0
    %1275 = vmatprep.subr.mxu0 0.0
    %1276 = vmatpush2.msra.mxu0 0.0
    %1277 = vmatprep.subr.mxu0 0.0
    %1278 = vmatpush2.msra.mxu0 0.0
    %1279 = vmatprep.subr.mxu0 0.0
    %1280 = vmatpush2.msra.mxu0 0.0
    %1281 = vmatprep.mubr.f32.mxu0 0.0
    %1282 = vmatmul.mubr.f32.gmra.mxu0 %v1215
    %v1283 = vpop.f32.mrf.mxu0
    %v1284 = vadd.f32 0.0, %v1283
    %v1285 = vpop.f32.mrf.mxu0
    %1286 = vdwg.mxu0
    %1288 = vrot.lane.b32.xlu0 %v199, 96
    %v1289 = vpop.permute.xlu0 %1288
    %v1292 = vsel %vm437, %v1051, 0
    %1294 = vmatprep.subr.mxu0 0.0
    %1295 = vmatpush1.msra.mxu0 0.0
    %1296 = vmatprep.subr.mxu0 0.0
    %1297 = vmatpush1.msra.mxu0 0.0
    %1298 = vmatprep.subr.mxu0 0.0
    %1299 = vmatpush1.msra.mxu0 0.0
    %1300 = vmatprep.subr.mxu0 0.0
    %1301 = vmatpush1.msra.mxu0 0.0
    %1302 = vmatprep.subr.mxu0 0.0
    %1303 = vmatpush1.msra.mxu0 0.0
    %1304 = vmatprep.subr.mxu0 0.0
    %1305 = vmatpush1.msra.mxu0 0.0
    %1306 = vmatprep.subr.mxu0 0.0
    %1307 = vmatpush1.msra.mxu0 0.0
    %1308 = vmatprep.subr.mxu0 0.0
    %1309 = vmatpush1.msra.mxu0 0.0
    %1310 = vmatprep.subr.mxu0 0.0
    %1311 = vmatpush1.msra.mxu0 0.0
    %1312 = vmatprep.subr.mxu0 0.0
    %1313 = vmatpush1.msra.mxu0 0.0
    %1314 = vmatprep.subr.mxu0 0.0
    %1315 = vmatpush1.msra.mxu0 0.0
    %1316 = vmatprep.subr.mxu0 0.0
    %1317 = vmatpush1.msra.mxu0 0.0
    %1318 = vmatprep.subr.mxu0 0.0
    %1319 = vmatpush1.msra.mxu0 0.0
    %1320 = vmatprep.subr.mxu0 0.0
    %1321 = vmatpush1.msra.mxu0 0.0
    %1322 = vmatprep.subr.mxu0 0.0
    %1323 = vmatpush1.msra.mxu0 0.0
    %1324 = vmatprep.subr.mxu0 0.0
    %1325 = vmatpush1.msra.mxu0 %v1289
    %1326 = vmatprep.subr.mxu0 0.0
    %1327 = vmatpush2.msra.mxu0 0.0
    %1328 = vmatprep.subr.mxu0 0.0
    %1329 = vmatpush2.msra.mxu0 0.0
    %1330 = vmatprep.subr.mxu0 0.0
    %1331 = vmatpush2.msra.mxu0 0.0
    %1332 = vmatprep.subr.mxu0 0.0
    %1333 = vmatpush2.msra.mxu0 0.0
    %1334 = vmatprep.subr.mxu0 0.0
    %1335 = vmatpush2.msra.mxu0 0.0
    %1336 = vmatprep.subr.mxu0 0.0
    %1337 = vmatpush2.msra.mxu0 0.0
    %1338 = vmatprep.subr.mxu0 0.0
    %1339 = vmatpush2.msra.mxu0 0.0
    %1340 = vmatprep.subr.mxu0 0.0
    %1341 = vmatpush2.msra.mxu0 0.0
    %1342 = vmatprep.subr.mxu0 0.0
    %1343 = vmatpush2.msra.mxu0 0.0
    %1344 = vmatprep.subr.mxu0 0.0
    %1345 = vmatpush2.msra.mxu0 0.0
    %1346 = vmatprep.subr.mxu0 0.0
    %1347 = vmatpush2.msra.mxu0 0.0
    %1348 = vmatprep.subr.mxu0 0.0
    %1349 = vmatpush2.msra.mxu0 0.0
    %1350 = vmatprep.subr.mxu0 0.0
    %1351 = vmatpush2.msra.mxu0 0.0
    %1352 = vmatprep.subr.mxu0 0.0
    %1353 = vmatpush2.msra.mxu0 0.0
    %1354 = vmatprep.subr.mxu0 0.0
    %1355 = vmatpush2.msra.mxu0 0.0
    %1356 = vmatprep.subr.mxu0 0.0
    %1357 = vmatpush2.msra.mxu0 0.0
    %1358 = vmatprep.mubr.f32.mxu0 0.0
    %1359 = vmatmul.mubr.f32.gmra.mxu0 %v1292
    %v1360 = vpop.f32.mrf.mxu0
    %v1361 = vadd.f32 0.0, %v1360
    %v1362 = vpop.f32.mrf.mxu0
    %1363 = vdwg.mxu0
    %1365 = vrot.lane.b32.xlu0 %v205, 96
    %v1366 = vpop.permute.xlu0 %1365
    %v1369 = vsel %vm437, %v1053, 0
    %1371 = vmatprep.subr.mxu0 0.0
    %1372 = vmatpush1.msra.mxu0 0.0
    %1373 = vmatprep.subr.mxu0 0.0
    %1374 = vmatpush1.msra.mxu0 0.0
    %1375 = vmatprep.subr.mxu0 0.0
    %1376 = vmatpush1.msra.mxu0 0.0
    %1377 = vmatprep.subr.mxu0 0.0
    %1378 = vmatpush1.msra.mxu0 0.0
    %1379 = vmatprep.subr.mxu0 0.0
    %1380 = vmatpush1.msra.mxu0 0.0
    %1381 = vmatprep.subr.mxu0 0.0
    %1382 = vmatpush1.msra.mxu0 0.0
    %1383 = vmatprep.subr.mxu0 0.0
    %1384 = vmatpush1.msra.mxu0 0.0
    %1385 = vmatprep.subr.mxu0 0.0
    %1386 = vmatpush1.msra.mxu0 0.0
    %1387 = vmatprep.subr.mxu0 0.0
    %1388 = vmatpush1.msra.mxu0 0.0
    %1389 = vmatprep.subr.mxu0 0.0
    %1390 = vmatpush1.msra.mxu0 0.0
    %1391 = vmatprep.subr.mxu0 0.0
    %1392 = vmatpush1.msra.mxu0 0.0
    %1393 = vmatprep.subr.mxu0 0.0
    %1394 = vmatpush1.msra.mxu0 0.0
    %1395 = vmatprep.subr.mxu0 0.0
    %1396 = vmatpush1.msra.mxu0 0.0
    %1397 = vmatprep.subr.mxu0 0.0
    %1398 = vmatpush1.msra.mxu0 0.0
    %1399 = vmatprep.subr.mxu0 0.0
    %1400 = vmatpush1.msra.mxu0 0.0
    %1401 = vmatprep.subr.mxu0 0.0
    %1402 = vmatpush1.msra.mxu0 %v1366
    %1403 = vmatprep.subr.mxu0 0.0
    %1404 = vmatpush2.msra.mxu0 0.0
    %1405 = vmatprep.subr.mxu0 0.0
    %1406 = vmatpush2.msra.mxu0 0.0
    %1407 = vmatprep.subr.mxu0 0.0
    %1408 = vmatpush2.msra.mxu0 0.0
    %1409 = vmatprep.subr.mxu0 0.0
    %1410 = vmatpush2.msra.mxu0 0.0
    %1411 = vmatprep.subr.mxu0 0.0
    %1412 = vmatpush2.msra.mxu0 0.0
    %1413 = vmatprep.subr.mxu0 0.0
    %1414 = vmatpush2.msra.mxu0 0.0
    %1415 = vmatprep.subr.mxu0 0.0
    %1416 = vmatpush2.msra.mxu0 0.0
    %1417 = vmatprep.subr.mxu0 0.0
    %1418 = vmatpush2.msra.mxu0 0.0
    %1419 = vmatprep.subr.mxu0 0.0
    %1420 = vmatpush2.msra.mxu0 0.0
    %1421 = vmatprep.subr.mxu0 0.0
    %1422 = vmatpush2.msra.mxu0 0.0
    %1423 = vmatprep.subr.mxu0 0.0
    %1424 = vmatpush2.msra.mxu0 0.0
    %1425 = vmatprep.subr.mxu0 0.0
    %1426 = vmatpush2.msra.mxu0 0.0
    %1427 = vmatprep.subr.mxu0 0.0
    %1428 = vmatpush2.msra.mxu0 0.0
    %1429 = vmatprep.subr.mxu0 0.0
    %1430 = vmatpush2.msra.mxu0 0.0
    %1431 = vmatprep.subr.mxu0 0.0
    %1432 = vmatpush2.msra.mxu0 0.0
    %1433 = vmatprep.subr.mxu0 0.0
    %1434 = vmatpush2.msra.mxu0 0.0
    %1435 = vmatprep.mubr.f32.mxu0 0.0
    %1436 = vmatmul.mubr.f32.gmra.mxu0 %v1369
    %v1437 = vpop.f32.mrf.mxu0
    %v1438 = vadd.f32 0.0, %v1437
    %v1439 = vpop.f32.mrf.mxu0
    %1440 = vdwg.mxu0
    %1442 = vrot.lane.b32.xlu0 %v211, 96
    %v1443 = vpop.permute.xlu0 %1442
    %v1446 = vsel %vm437, %v1055, 0
    %1448 = vmatprep.subr.mxu0 0.0
    %1449 = vmatpush1.msra.mxu0 0.0
    %1450 = vmatprep.subr.mxu0 0.0
    %1451 = vmatpush1.msra.mxu0 0.0
    %1452 = vmatprep.subr.mxu0 0.0
    %1453 = vmatpush1.msra.mxu0 0.0
    %1454 = vmatprep.subr.mxu0 0.0
    %1455 = vmatpush1.msra.mxu0 0.0
    %1456 = vmatprep.subr.mxu0 0.0
    %1457 = vmatpush1.msra.mxu0 0.0
    %1458 = vmatprep.subr.mxu0 0.0
    %1459 = vmatpush1.msra.mxu0 0.0
    %1460 = vmatprep.subr.mxu0 0.0
    %1461 = vmatpush1.msra.mxu0 0.0
    %1462 = vmatprep.subr.mxu0 0.0
    %1463 = vmatpush1.msra.mxu0 0.0
    %1464 = vmatprep.subr.mxu0 0.0
    %1465 = vmatpush1.msra.mxu0 0.0
    %1466 = vmatprep.subr.mxu0 0.0
    %1467 = vmatpush1.msra.mxu0 0.0
    %1468 = vmatprep.subr.mxu0 0.0
    %1469 = vmatpush1.msra.mxu0 0.0
    %1470 = vmatprep.subr.mxu0 0.0
    %1471 = vmatpush1.msra.mxu0 0.0
    %1472 = vmatprep.subr.mxu0 0.0
    %1473 = vmatpush1.msra.mxu0 0.0
    %1474 = vmatprep.subr.mxu0 0.0
    %1475 = vmatpush1.msra.mxu0 0.0
    %1476 = vmatprep.subr.mxu0 0.0
    %1477 = vmatpush1.msra.mxu0 0.0
    %1478 = vmatprep.subr.mxu0 0.0
    %1479 = vmatpush1.msra.mxu0 %v1443
    %1480 = vmatprep.subr.mxu0 0.0
    %1481 = vmatpush2.msra.mxu0 0.0
    %1482 = vmatprep.subr.mxu0 0.0
    %1483 = vmatpush2.msra.mxu0 0.0
    %1484 = vmatprep.subr.mxu0 0.0
    %1485 = vmatpush2.msra.mxu0 0.0
    %1486 = vmatprep.subr.mxu0 0.0
    %1487 = vmatpush2.msra.mxu0 0.0
    %1488 = vmatprep.subr.mxu0 0.0
    %1489 = vmatpush2.msra.mxu0 0.0
    %1490 = vmatprep.subr.mxu0 0.0
    %1491 = vmatpush2.msra.mxu0 0.0
    %1492 = vmatprep.subr.mxu0 0.0
    %1493 = vmatpush2.msra.mxu0 0.0
    %1494 = vmatprep.subr.mxu0 0.0
    %1495 = vmatpush2.msra.mxu0 0.0
    %1496 = vmatprep.subr.mxu0 0.0
    %1497 = vmatpush2.msra.mxu0 0.0
    %1498 = vmatprep.subr.mxu0 0.0
    %1499 = vmatpush2.msra.mxu0 0.0
    %1500 = vmatprep.subr.mxu0 0.0
    %1501 = vmatpush2.msra.mxu0 0.0
    %1502 = vmatprep.subr.mxu0 0.0
    %1503 = vmatpush2.msra.mxu0 0.0
    %1504 = vmatprep.subr.mxu0 0.0
    %1505 = vmatpush2.msra.mxu0 0.0
    %1506 = vmatprep.subr.mxu0 0.0
    %1507 = vmatpush2.msra.mxu0 0.0
    %1508 = vmatprep.subr.mxu0 0.0
    %1509 = vmatpush2.msra.mxu0 0.0
    %1510 = vmatprep.subr.mxu0 0.0
    %1511 = vmatpush2.msra.mxu0 0.0
    %1512 = vmatprep.mubr.f32.mxu0 0.0
    %1513 = vmatmul.mubr.f32.gmra.mxu0 %v1446
    %v1514 = vpop.f32.mrf.mxu0
    %v1515 = vadd.f32 0.0, %v1514
    %v1516 = vpop.f32.mrf.mxu0
    %1517 = vdwg.mxu0
    %1518 = vrot.lane.b32.xlu0 %v401, 80
    %v1519 = vpop.permute.xlu0 %1518
    %1520 = vrot.lane.b32.xlu0 %v402, 80
    %v1521 = vpop.permute.xlu0 %1520
    %1522 = vrot.lane.b32.xlu0 %v403, 80
    %v1523 = vpop.permute.xlu0 %1522
    %1524 = vrot.lane.b32.xlu0 %v404, 80
    %v1525 = vpop.permute.xlu0 %1524
    %1526 = vrot.lane.b32.xlu0 %v405, 80
    %v1527 = vpop.permute.xlu0 %1526
    %1528 = vrot.lane.b32.xlu0 %v406, 80
    %v1529 = vpop.permute.xlu0 %1528
    %v1536 = vsel %vm77, %v1519, -1e+30
    %v1537 = vsel %vm78, %v1521, -1e+30
    %v1538 = vsel %vm79, %v1523, -1e+30
    %v1539 = vsel %vm80, %v1525, -1e+30
    %v1540 = vsel %vm81, %v1527, -1e+30
    %v1541 = vsel %vm82, %v1529, -1e+30
    %v1542 = vsel %vm437, %v1536, -inf
    %1543 = vmax.xlane.f32.xlu0 %v1542
    %v1544 = vpop.xlane.xlu0 %1543
    %v1545 = vsel %vm437, %v1537, -inf
    %1546 = vmax.xlane.f32.xlu0 %v1545
    %v1547 = vpop.xlane.xlu0 %1546
    %v1548 = vsel %vm437, %v1538, -inf
    %1549 = vmax.xlane.f32.xlu0 %v1548
    %v1550 = vpop.xlane.xlu0 %1549
    %v1551 = vsel %vm437, %v1539, -inf
    %1552 = vmax.xlane.f32.xlu0 %v1551
    %v1553 = vpop.xlane.xlu0 %1552
    %v1554 = vsel %vm437, %v1540, -inf
    %1555 = vmax.xlane.f32.xlu0 %v1554
    %v1556 = vpop.xlane.xlu0 %1555
    %v1557 = vsel %vm437, %v1541, -inf
    %1558 = vmax.xlane.f32.xlu0 %v1557
    %v1559 = vpop.xlane.xlu0 %1558
    %v1560 = vsub.f32 %v1536, %v1544
    %v1561 = vsub.f32 %v1537, %v1547
    %v1562 = vsub.f32 %v1538, %v1550
    %v1563 = vsub.f32 %v1539, %v1553
    %v1564 = vsub.f32 %v1540, %v1556
    %v1565 = vsub.f32 %v1541, %v1559
    %v1566 = vmul.f32 %v1560, 1.442695
    %v1567 = vpow.pop %v1566
    %v1568 = vmul.f32 %v1561, 1.442695
    %v1569 = vpow.pop %v1568
    %v1570 = vmul.f32 %v1562, 1.442695
    %v1571 = vpow.pop %v1570
    %v1572 = vmul.f32 %v1563, 1.442695
    %v1573 = vpow.pop %v1572
    %v1574 = vmul.f32 %v1564, 1.442695
    %v1575 = vpow.pop %v1574
    %v1576 = vmul.f32 %v1565, 1.442695
    %v1577 = vpow.pop %v1576
    %v1578 = vsel %vm77, %v1567, 0.0
    %v1579 = vsel %vm78, %v1569, 0.0
    %v1580 = vsel %vm79, %v1571, 0.0
    %v1581 = vsel %vm80, %v1573, 0.0
    %v1582 = vsel %vm81, %v1575, 0.0
    %v1583 = vsel %vm82, %v1577, 0.0
    %v1584 = vsel %vm437, %v1578, 0.0
    %1585 = vadd.xlane.f32.xlu0 %v1584
    %v1586 = vpop.xlane.xlu0 %1585
    %v1587 = vsel %vm437, %v1579, 0.0
    %1588 = vadd.xlane.f32.xlu0 %v1587
    %v1589 = vpop.xlane.xlu0 %1588
    %v1590 = vsel %vm437, %v1580, 0.0
    %1591 = vadd.xlane.f32.xlu0 %v1590
    %v1592 = vpop.xlane.xlu0 %1591
    %v1593 = vsel %vm437, %v1581, 0.0
    %1594 = vadd.xlane.f32.xlu0 %v1593
    %v1595 = vpop.xlane.xlu0 %1594
    %v1596 = vsel %vm437, %v1582, 0.0
    %1597 = vadd.xlane.f32.xlu0 %v1596
    %v1598 = vpop.xlane.xlu0 %1597
    %v1599 = vsel %vm437, %v1583, 0.0
    %1600 = vadd.xlane.f32.xlu0 %v1599
    %v1601 = vpop.xlane.xlu0 %1600
    %v1602 = vmax.f32 %v1586, 1e-30
    %v1603 = vmax.f32 %v1589, 1e-30
    %v1604 = vmax.f32 %v1592, 1e-30
    %v1605 = vmax.f32 %v1595, 1e-30
    %v1606 = vmax.f32 %v1598, 1e-30
    %v1607 = vmax.f32 %v1601, 1e-30
    %v1608 = vrcp.pop %v1602
    %v1609 = vmul.f32 %v1578, %v1608
    %v1610 = vrcp.pop %v1603
    %v1611 = vmul.f32 %v1579, %v1610
    %v1612 = vrcp.pop %v1604
    %v1613 = vmul.f32 %v1580, %v1612
    %v1614 = vrcp.pop %v1605
    %v1615 = vmul.f32 %v1581, %v1614
    %v1616 = vrcp.pop %v1606
    %v1617 = vmul.f32 %v1582, %v1616
    %v1618 = vrcp.pop %v1607
    %v1619 = vmul.f32 %v1583, %v1618
    %1620 = vrot.lane.b32.xlu0 %v181, 64
    %v1621 = vpop.permute.xlu0 %1620
    %v1624 = vsel %vm437, %v1609, 0
    %1626 = vmatprep.subr.mxu0 0.0
    %1627 = vmatpush1.msra.mxu0 0.0
    %1628 = vmatprep.subr.mxu0 0.0
    %1629 = vmatpush1.msra.mxu0 0.0
    %1630 = vmatprep.subr.mxu0 0.0
    %1631 = vmatpush1.msra.mxu0 0.0
    %1632 = vmatprep.subr.mxu0 0.0
    %1633 = vmatpush1.msra.mxu0 0.0
    %1634 = vmatprep.subr.mxu0 0.0
    %1635 = vmatpush1.msra.mxu0 0.0
    %1636 = vmatprep.subr.mxu0 0.0
    %1637 = vmatpush1.msra.mxu0 0.0
    %1638 = vmatprep.subr.mxu0 0.0
    %1639 = vmatpush1.msra.mxu0 0.0
    %1640 = vmatprep.subr.mxu0 0.0
    %1641 = vmatpush1.msra.mxu0 0.0
    %1642 = vmatprep.subr.mxu0 0.0
    %1643 = vmatpush1.msra.mxu0 0.0
    %1644 = vmatprep.subr.mxu0 0.0
    %1645 = vmatpush1.msra.mxu0 0.0
    %1646 = vmatprep.subr.mxu0 0.0
    %1647 = vmatpush1.msra.mxu0 0.0
    %1648 = vmatprep.subr.mxu0 0.0
    %1649 = vmatpush1.msra.mxu0 0.0
    %1650 = vmatprep.subr.mxu0 0.0
    %1651 = vmatpush1.msra.mxu0 0.0
    %1652 = vmatprep.subr.mxu0 0.0
    %1653 = vmatpush1.msra.mxu0 0.0
    %1654 = vmatprep.subr.mxu0 0.0
    %1655 = vmatpush1.msra.mxu0 0.0
    %1656 = vmatprep.subr.mxu0 0.0
    %1657 = vmatpush1.msra.mxu0 %v1621
    %1658 = vmatprep.subr.mxu0 0.0
    %1659 = vmatpush2.msra.mxu0 0.0
    %1660 = vmatprep.subr.mxu0 0.0
    %1661 = vmatpush2.msra.mxu0 0.0
    %1662 = vmatprep.subr.mxu0 0.0
    %1663 = vmatpush2.msra.mxu0 0.0
    %1664 = vmatprep.subr.mxu0 0.0
    %1665 = vmatpush2.msra.mxu0 0.0
    %1666 = vmatprep.subr.mxu0 0.0
    %1667 = vmatpush2.msra.mxu0 0.0
    %1668 = vmatprep.subr.mxu0 0.0
    %1669 = vmatpush2.msra.mxu0 0.0
    %1670 = vmatprep.subr.mxu0 0.0
    %1671 = vmatpush2.msra.mxu0 0.0
    %1672 = vmatprep.subr.mxu0 0.0
    %1673 = vmatpush2.msra.mxu0 0.0
    %1674 = vmatprep.subr.mxu0 0.0
    %1675 = vmatpush2.msra.mxu0 0.0
    %1676 = vmatprep.subr.mxu0 0.0
    %1677 = vmatpush2.msra.mxu0 0.0
    %1678 = vmatprep.subr.mxu0 0.0
    %1679 = vmatpush2.msra.mxu0 0.0
    %1680 = vmatprep.subr.mxu0 0.0
    %1681 = vmatpush2.msra.mxu0 0.0
    %1682 = vmatprep.subr.mxu0 0.0
    %1683 = vmatpush2.msra.mxu0 0.0
    %1684 = vmatprep.subr.mxu0 0.0
    %1685 = vmatpush2.msra.mxu0 0.0
    %1686 = vmatprep.subr.mxu0 0.0
    %1687 = vmatpush2.msra.mxu0 0.0
    %1688 = vmatprep.subr.mxu0 0.0
    %1689 = vmatpush2.msra.mxu0 0.0
    %1690 = vmatprep.mubr.f32.mxu0 0.0
    %1691 = vmatmul.mubr.f32.gmra.mxu0 %v1624
    %v1692 = vpop.f32.mrf.mxu0
    %v1693 = vadd.f32 0.0, %v1692
    %v1694 = vpop.f32.mrf.mxu0
    %1695 = vdwg.mxu0
    %1696 = vrot.lane.b32.xlu0 %v187, 64
    %v1697 = vpop.permute.xlu0 %1696
    %v1700 = vsel %vm437, %v1611, 0
    %1702 = vmatprep.subr.mxu0 0.0
    %1703 = vmatpush1.msra.mxu0 0.0
    %1704 = vmatprep.subr.mxu0 0.0
    %1705 = vmatpush1.msra.mxu0 0.0
    %1706 = vmatprep.subr.mxu0 0.0
    %1707 = vmatpush1.msra.mxu0 0.0
    %1708 = vmatprep.subr.mxu0 0.0
    %1709 = vmatpush1.msra.mxu0 0.0
    %1710 = vmatprep.subr.mxu0 0.0
    %1711 = vmatpush1.msra.mxu0 0.0
    %1712 = vmatprep.subr.mxu0 0.0
    %1713 = vmatpush1.msra.mxu0 0.0
    %1714 = vmatprep.subr.mxu0 0.0
    %1715 = vmatpush1.msra.mxu0 0.0
    %1716 = vmatprep.subr.mxu0 0.0
    %1717 = vmatpush1.msra.mxu0 0.0
    %1718 = vmatprep.subr.mxu0 0.0
    %1719 = vmatpush1.msra.mxu0 0.0
    %1720 = vmatprep.subr.mxu0 0.0
    %1721 = vmatpush1.msra.mxu0 0.0
    %1722 = vmatprep.subr.mxu0 0.0
    %1723 = vmatpush1.msra.mxu0 0.0
    %1724 = vmatprep.subr.mxu0 0.0
    %1725 = vmatpush1.msra.mxu0 0.0
    %1726 = vmatprep.subr.mxu0 0.0
    %1727 = vmatpush1.msra.mxu0 0.0
    %1728 = vmatprep.subr.mxu0 0.0
    %1729 = vmatpush1.msra.mxu0 0.0
    %1730 = vmatprep.subr.mxu0 0.0
    %1731 = vmatpush1.msra.mxu0 0.0
    %1732 = vmatprep.subr.mxu0 0.0
    %1733 = vmatpush1.msra.mxu0 %v1697
    %1734 = vmatprep.subr.mxu0 0.0
    %1735 = vmatpush2.msra.mxu0 0.0
    %1736 = vmatprep.subr.mxu0 0.0
    %1737 = vmatpush2.msra.mxu0 0.0
    %1738 = vmatprep.subr.mxu0 0.0
    %1739 = vmatpush2.msra.mxu0 0.0
    %1740 = vmatprep.subr.mxu0 0.0
    %1741 = vmatpush2.msra.mxu0 0.0
    %1742 = vmatprep.subr.mxu0 0.0
    %1743 = vmatpush2.msra.mxu0 0.0
    %1744 = vmatprep.subr.mxu0 0.0
    %1745 = vmatpush2.msra.mxu0 0.0
    %1746 = vmatprep.subr.mxu0 0.0
    %1747 = vmatpush2.msra.mxu0 0.0
    %1748 = vmatprep.subr.mxu0 0.0
    %1749 = vmatpush2.msra.mxu0 0.0
    %1750 = vmatprep.subr.mxu0 0.0
    %1751 = vmatpush2.msra.mxu0 0.0
    %1752 = vmatprep.subr.mxu0 0.0
    %1753 = vmatpush2.msra.mxu0 0.0
    %1754 = vmatprep.subr.mxu0 0.0
    %1755 = vmatpush2.msra.mxu0 0.0
    %1756 = vmatprep.subr.mxu0 0.0
    %1757 = vmatpush2.msra.mxu0 0.0
    %1758 = vmatprep.subr.mxu0 0.0
    %1759 = vmatpush2.msra.mxu0 0.0
    %1760 = vmatprep.subr.mxu0 0.0
    %1761 = vmatpush2.msra.mxu0 0.0
    %1762 = vmatprep.subr.mxu0 0.0
    %1763 = vmatpush2.msra.mxu0 0.0
    %1764 = vmatprep.subr.mxu0 0.0
    %1765 = vmatpush2.msra.mxu0 0.0
    %1766 = vmatprep.mubr.f32.mxu0 0.0
    %1767 = vmatmul.mubr.f32.gmra.mxu0 %v1700
    %v1768 = vpop.f32.mrf.mxu0
    %v1769 = vadd.f32 0.0, %v1768
    %v1770 = vpop.f32.mrf.mxu0
    %1771 = vdwg.mxu0
    %1772 = vrot.lane.b32.xlu0 %v193, 64
    %v1773 = vpop.permute.xlu0 %1772
    %v1776 = vsel %vm437, %v1613, 0
    %1778 = vmatprep.subr.mxu0 0.0
    %1779 = vmatpush1.msra.mxu0 0.0
    %1780 = vmatprep.subr.mxu0 0.0
    %1781 = vmatpush1.msra.mxu0 0.0
    %1782 = vmatprep.subr.mxu0 0.0
    %1783 = vmatpush1.msra.mxu0 0.0
    %1784 = vmatprep.subr.mxu0 0.0
    %1785 = vmatpush1.msra.mxu0 0.0
    %1786 = vmatprep.subr.mxu0 0.0
    %1787 = vmatpush1.msra.mxu0 0.0
    %1788 = vmatprep.subr.mxu0 0.0
    %1789 = vmatpush1.msra.mxu0 0.0
    %1790 = vmatprep.subr.mxu0 0.0
    %1791 = vmatpush1.msra.mxu0 0.0
    %1792 = vmatprep.subr.mxu0 0.0
    %1793 = vmatpush1.msra.mxu0 0.0
    %1794 = vmatprep.subr.mxu0 0.0
    %1795 = vmatpush1.msra.mxu0 0.0
    %1796 = vmatprep.subr.mxu0 0.0
    %1797 = vmatpush1.msra.mxu0 0.0
    %1798 = vmatprep.subr.mxu0 0.0
    %1799 = vmatpush1.msra.mxu0 0.0
    %1800 = vmatprep.subr.mxu0 0.0
    %1801 = vmatpush1.msra.mxu0 0.0
    %1802 = vmatprep.subr.mxu0 0.0
    %1803 = vmatpush1.msra.mxu0 0.0
    %1804 = vmatprep.subr.mxu0 0.0
    %1805 = vmatpush1.msra.mxu0 0.0
    %1806 = vmatprep.subr.mxu0 0.0
    %1807 = vmatpush1.msra.mxu0 0.0
    %1808 = vmatprep.subr.mxu0 0.0
    %1809 = vmatpush1.msra.mxu0 %v1773
    %1810 = vmatprep.subr.mxu0 0.0
    %1811 = vmatpush2.msra.mxu0 0.0
    %1812 = vmatprep.subr.mxu0 0.0
    %1813 = vmatpush2.msra.mxu0 0.0
    %1814 = vmatprep.subr.mxu0 0.0
    %1815 = vmatpush2.msra.mxu0 0.0
    %1816 = vmatprep.subr.mxu0 0.0
    %1817 = vmatpush2.msra.mxu0 0.0
    %1818 = vmatprep.subr.mxu0 0.0
    %1819 = vmatpush2.msra.mxu0 0.0
    %1820 = vmatprep.subr.mxu0 0.0
    %1821 = vmatpush2.msra.mxu0 0.0
    %1822 = vmatprep.subr.mxu0 0.0
    %1823 = vmatpush2.msra.mxu0 0.0
    %1824 = vmatprep.subr.mxu0 0.0
    %1825 = vmatpush2.msra.mxu0 0.0
    %1826 = vmatprep.subr.mxu0 0.0
    %1827 = vmatpush2.msra.mxu0 0.0
    %1828 = vmatprep.subr.mxu0 0.0
    %1829 = vmatpush2.msra.mxu0 0.0
    %1830 = vmatprep.subr.mxu0 0.0
    %1831 = vmatpush2.msra.mxu0 0.0
    %1832 = vmatprep.subr.mxu0 0.0
    %1833 = vmatpush2.msra.mxu0 0.0
    %1834 = vmatprep.subr.mxu0 0.0
    %1835 = vmatpush2.msra.mxu0 0.0
    %1836 = vmatprep.subr.mxu0 0.0
    %1837 = vmatpush2.msra.mxu0 0.0
    %1838 = vmatprep.subr.mxu0 0.0
    %1839 = vmatpush2.msra.mxu0 0.0
    %1840 = vmatprep.subr.mxu0 0.0
    %1841 = vmatpush2.msra.mxu0 0.0
    %1842 = vmatprep.mubr.f32.mxu0 0.0
    %1843 = vmatmul.mubr.f32.gmra.mxu0 %v1776
    %v1844 = vpop.f32.mrf.mxu0
    %v1845 = vadd.f32 0.0, %v1844
    %v1846 = vpop.f32.mrf.mxu0
    %1847 = vdwg.mxu0
    %1848 = vrot.lane.b32.xlu0 %v199, 64
    %v1849 = vpop.permute.xlu0 %1848
    %v1852 = vsel %vm437, %v1615, 0
    %1854 = vmatprep.subr.mxu0 0.0
    %1855 = vmatpush1.msra.mxu0 0.0
    %1856 = vmatprep.subr.mxu0 0.0
    %1857 = vmatpush1.msra.mxu0 0.0
    %1858 = vmatprep.subr.mxu0 0.0
    %1859 = vmatpush1.msra.mxu0 0.0
    %1860 = vmatprep.subr.mxu0 0.0
    %1861 = vmatpush1.msra.mxu0 0.0
    %1862 = vmatprep.subr.mxu0 0.0
    %1863 = vmatpush1.msra.mxu0 0.0
    %1864 = vmatprep.subr.mxu0 0.0
    %1865 = vmatpush1.msra.mxu0 0.0
    %1866 = vmatprep.subr.mxu0 0.0
    %1867 = vmatpush1.msra.mxu0 0.0
    %1868 = vmatprep.subr.mxu0 0.0
    %1869 = vmatpush1.msra.mxu0 0.0
    %1870 = vmatprep.subr.mxu0 0.0
    %1871 = vmatpush1.msra.mxu0 0.0
    %1872 = vmatprep.subr.mxu0 0.0
    %1873 = vmatpush1.msra.mxu0 0.0
    %1874 = vmatprep.subr.mxu0 0.0
    %1875 = vmatpush1.msra.mxu0 0.0
    %1876 = vmatprep.subr.mxu0 0.0
    %1877 = vmatpush1.msra.mxu0 0.0
    %1878 = vmatprep.subr.mxu0 0.0
    %1879 = vmatpush1.msra.mxu0 0.0
    %1880 = vmatprep.subr.mxu0 0.0
    %1881 = vmatpush1.msra.mxu0 0.0
    %1882 = vmatprep.subr.mxu0 0.0
    %1883 = vmatpush1.msra.mxu0 0.0
    %1884 = vmatprep.subr.mxu0 0.0
    %1885 = vmatpush1.msra.mxu0 %v1849
    %1886 = vmatprep.subr.mxu0 0.0
    %1887 = vmatpush2.msra.mxu0 0.0
    %1888 = vmatprep.subr.mxu0 0.0
    %1889 = vmatpush2.msra.mxu0 0.0
    %1890 = vmatprep.subr.mxu0 0.0
    %1891 = vmatpush2.msra.mxu0 0.0
    %1892 = vmatprep.subr.mxu0 0.0
    %1893 = vmatpush2.msra.mxu0 0.0
    %1894 = vmatprep.subr.mxu0 0.0
    %1895 = vmatpush2.msra.mxu0 0.0
    %1896 = vmatprep.subr.mxu0 0.0
    %1897 = vmatpush2.msra.mxu0 0.0
    %1898 = vmatprep.subr.mxu0 0.0
    %1899 = vmatpush2.msra.mxu0 0.0
    %1900 = vmatprep.subr.mxu0 0.0
    %1901 = vmatpush2.msra.mxu0 0.0
    %1902 = vmatprep.subr.mxu0 0.0
    %1903 = vmatpush2.msra.mxu0 0.0
    %1904 = vmatprep.subr.mxu0 0.0
    %1905 = vmatpush2.msra.mxu0 0.0
    %1906 = vmatprep.subr.mxu0 0.0
    %1907 = vmatpush2.msra.mxu0 0.0
    %1908 = vmatprep.subr.mxu0 0.0
    %1909 = vmatpush2.msra.mxu0 0.0
    %1910 = vmatprep.subr.mxu0 0.0
    %1911 = vmatpush2.msra.mxu0 0.0
    %1912 = vmatprep.subr.mxu0 0.0
    %1913 = vmatpush2.msra.mxu0 0.0
    %1914 = vmatprep.subr.mxu0 0.0
    %1915 = vmatpush2.msra.mxu0 0.0
    %1916 = vmatprep.subr.mxu0 0.0
    %1917 = vmatpush2.msra.mxu0 0.0
    %1918 = vmatprep.mubr.f32.mxu0 0.0
    %1919 = vmatmul.mubr.f32.gmra.mxu0 %v1852
    %v1920 = vpop.f32.mrf.mxu0
    %v1921 = vadd.f32 0.0, %v1920
    %v1922 = vpop.f32.mrf.mxu0
    %1923 = vdwg.mxu0
    %1924 = vrot.lane.b32.xlu0 %v205, 64
    %v1925 = vpop.permute.xlu0 %1924
    %v1928 = vsel %vm437, %v1617, 0
    %1930 = vmatprep.subr.mxu0 0.0
    %1931 = vmatpush1.msra.mxu0 0.0
    %1932 = vmatprep.subr.mxu0 0.0
    %1933 = vmatpush1.msra.mxu0 0.0
    %1934 = vmatprep.subr.mxu0 0.0
    %1935 = vmatpush1.msra.mxu0 0.0
    %1936 = vmatprep.subr.mxu0 0.0
    %1937 = vmatpush1.msra.mxu0 0.0
    %1938 = vmatprep.subr.mxu0 0.0
    %1939 = vmatpush1.msra.mxu0 0.0
    %1940 = vmatprep.subr.mxu0 0.0
    %1941 = vmatpush1.msra.mxu0 0.0
    %1942 = vmatprep.subr.mxu0 0.0
    %1943 = vmatpush1.msra.mxu0 0.0
    %1944 = vmatprep.subr.mxu0 0.0
    %1945 = vmatpush1.msra.mxu0 0.0
    %1946 = vmatprep.subr.mxu0 0.0
    %1947 = vmatpush1.msra.mxu0 0.0
    %1948 = vmatprep.subr.mxu0 0.0
    %1949 = vmatpush1.msra.mxu0 0.0
    %1950 = vmatprep.subr.mxu0 0.0
    %1951 = vmatpush1.msra.mxu0 0.0
    %1952 = vmatprep.subr.mxu0 0.0
    %1953 = vmatpush1.msra.mxu0 0.0
    %1954 = vmatprep.subr.mxu0 0.0
    %1955 = vmatpush1.msra.mxu0 0.0
    %1956 = vmatprep.subr.mxu0 0.0
    %1957 = vmatpush1.msra.mxu0 0.0
    %1958 = vmatprep.subr.mxu0 0.0
    %1959 = vmatpush1.msra.mxu0 0.0
    %1960 = vmatprep.subr.mxu0 0.0
    %1961 = vmatpush1.msra.mxu0 %v1925
    %1962 = vmatprep.subr.mxu0 0.0
    %1963 = vmatpush2.msra.mxu0 0.0
    %1964 = vmatprep.subr.mxu0 0.0
    %1965 = vmatpush2.msra.mxu0 0.0
    %1966 = vmatprep.subr.mxu0 0.0
    %1967 = vmatpush2.msra.mxu0 0.0
    %1968 = vmatprep.subr.mxu0 0.0
    %1969 = vmatpush2.msra.mxu0 0.0
    %1970 = vmatprep.subr.mxu0 0.0
    %1971 = vmatpush2.msra.mxu0 0.0
    %1972 = vmatprep.subr.mxu0 0.0
    %1973 = vmatpush2.msra.mxu0 0.0
    %1974 = vmatprep.subr.mxu0 0.0
    %1975 = vmatpush2.msra.mxu0 0.0
    %1976 = vmatprep.subr.mxu0 0.0
    %1977 = vmatpush2.msra.mxu0 0.0
    %1978 = vmatprep.subr.mxu0 0.0
    %1979 = vmatpush2.msra.mxu0 0.0
    %1980 = vmatprep.subr.mxu0 0.0
    %1981 = vmatpush2.msra.mxu0 0.0
    %1982 = vmatprep.subr.mxu0 0.0
    %1983 = vmatpush2.msra.mxu0 0.0
    %1984 = vmatprep.subr.mxu0 0.0
    %1985 = vmatpush2.msra.mxu0 0.0
    %1986 = vmatprep.subr.mxu0 0.0
    %1987 = vmatpush2.msra.mxu0 0.0
    %1988 = vmatprep.subr.mxu0 0.0
    %1989 = vmatpush2.msra.mxu0 0.0
    %1990 = vmatprep.subr.mxu0 0.0
    %1991 = vmatpush2.msra.mxu0 0.0
    %1992 = vmatprep.subr.mxu0 0.0
    %1993 = vmatpush2.msra.mxu0 0.0
    %1994 = vmatprep.mubr.f32.mxu0 0.0
    %1995 = vmatmul.mubr.f32.gmra.mxu0 %v1928
    %v1996 = vpop.f32.mrf.mxu0
    %v1997 = vadd.f32 0.0, %v1996
    %v1998 = vpop.f32.mrf.mxu0
    %1999 = vdwg.mxu0
    %2000 = vrot.lane.b32.xlu0 %v211, 64
    %v2001 = vpop.permute.xlu0 %2000
    %v2004 = vsel %vm437, %v1619, 0
    %2006 = vmatprep.subr.mxu0 0.0
    %2007 = vmatpush1.msra.mxu0 0.0
    %2008 = vmatprep.subr.mxu0 0.0
    %2009 = vmatpush1.msra.mxu0 0.0
    %2010 = vmatprep.subr.mxu0 0.0
    %2011 = vmatpush1.msra.mxu0 0.0
    %2012 = vmatprep.subr.mxu0 0.0
    %2013 = vmatpush1.msra.mxu0 0.0
    %2014 = vmatprep.subr.mxu0 0.0
    %2015 = vmatpush1.msra.mxu0 0.0
    %2016 = vmatprep.subr.mxu0 0.0
    %2017 = vmatpush1.msra.mxu0 0.0
    %2018 = vmatprep.subr.mxu0 0.0
    %2019 = vmatpush1.msra.mxu0 0.0
    %2020 = vmatprep.subr.mxu0 0.0
    %2021 = vmatpush1.msra.mxu0 0.0
    %2022 = vmatprep.subr.mxu0 0.0
    %2023 = vmatpush1.msra.mxu0 0.0
    %2024 = vmatprep.subr.mxu0 0.0
    %2025 = vmatpush1.msra.mxu0 0.0
    %2026 = vmatprep.subr.mxu0 0.0
    %2027 = vmatpush1.msra.mxu0 0.0
    %2028 = vmatprep.subr.mxu0 0.0
    %2029 = vmatpush1.msra.mxu0 0.0
    %2030 = vmatprep.subr.mxu0 0.0
    %2031 = vmatpush1.msra.mxu0 0.0
    %2032 = vmatprep.subr.mxu0 0.0
    %2033 = vmatpush1.msra.mxu0 0.0
    %2034 = vmatprep.subr.mxu0 0.0
    %2035 = vmatpush1.msra.mxu0 0.0
    %2036 = vmatprep.subr.mxu0 0.0
    %2037 = vmatpush1.msra.mxu0 %v2001
    %2038 = vmatprep.subr.mxu0 0.0
    %2039 = vmatpush2.msra.mxu0 0.0
    %2040 = vmatprep.subr.mxu0 0.0
    %2041 = vmatpush2.msra.mxu0 0.0
    %2042 = vmatprep.subr.mxu0 0.0
    %2043 = vmatpush2.msra.mxu0 0.0
    %2044 = vmatprep.subr.mxu0 0.0
    %2045 = vmatpush2.msra.mxu0 0.0
    %2046 = vmatprep.subr.mxu0 0.0
    %2047 = vmatpush2.msra.mxu0 0.0
    %2048 = vmatprep.subr.mxu0 0.0
    %2049 = vmatpush2.msra.mxu0 0.0
    %2050 = vmatprep.subr.mxu0 0.0
    %2051 = vmatpush2.msra.mxu0 0.0
    %2052 = vmatprep.subr.mxu0 0.0
    %2053 = vmatpush2.msra.mxu0 0.0
    %2054 = vmatprep.subr.mxu0 0.0
    %2055 = vmatpush2.msra.mxu0 0.0
    %2056 = vmatprep.subr.mxu0 0.0
    %2057 = vmatpush2.msra.mxu0 0.0
    %2058 = vmatprep.subr.mxu0 0.0
    %2059 = vmatpush2.msra.mxu0 0.0
    %2060 = vmatprep.subr.mxu0 0.0
    %2061 = vmatpush2.msra.mxu0 0.0
    %2062 = vmatprep.subr.mxu0 0.0
    %2063 = vmatpush2.msra.mxu0 0.0
    %2064 = vmatprep.subr.mxu0 0.0
    %2065 = vmatpush2.msra.mxu0 0.0
    %2066 = vmatprep.subr.mxu0 0.0
    %2067 = vmatpush2.msra.mxu0 0.0
    %2068 = vmatprep.subr.mxu0 0.0
    %2069 = vmatpush2.msra.mxu0 0.0
    %2070 = vmatprep.mubr.f32.mxu0 0.0
    %2071 = vmatmul.mubr.f32.gmra.mxu0 %v2004
    %v2072 = vpop.f32.mrf.mxu0
    %v2073 = vadd.f32 0.0, %v2072
    %v2074 = vpop.f32.mrf.mxu0
    %2075 = vdwg.mxu0
    %2076 = vrot.lane.b32.xlu0 %v401, 72
    %v2077 = vpop.permute.xlu0 %2076
    %2078 = vrot.lane.b32.xlu0 %v402, 72
    %v2079 = vpop.permute.xlu0 %2078
    %2080 = vrot.lane.b32.xlu0 %v403, 72
    %v2081 = vpop.permute.xlu0 %2080
    %2082 = vrot.lane.b32.xlu0 %v404, 72
    %v2083 = vpop.permute.xlu0 %2082
    %2084 = vrot.lane.b32.xlu0 %v405, 72
    %v2085 = vpop.permute.xlu0 %2084
    %2086 = vrot.lane.b32.xlu0 %v406, 72
    %v2087 = vpop.permute.xlu0 %2086
    %v2094 = vsel %vm77, %v2077, -1e+30
    %v2095 = vsel %vm78, %v2079, -1e+30
    %v2096 = vsel %vm79, %v2081, -1e+30
    %v2097 = vsel %vm80, %v2083, -1e+30
    %v2098 = vsel %vm81, %v2085, -1e+30
    %v2099 = vsel %vm82, %v2087, -1e+30
    %v2100 = vsel %vm437, %v2094, -inf
    %2101 = vmax.xlane.f32.xlu0 %v2100
    %v2102 = vpop.xlane.xlu0 %2101
    %v2103 = vsel %vm437, %v2095, -inf
    %2104 = vmax.xlane.f32.xlu0 %v2103
    %v2105 = vpop.xlane.xlu0 %2104
    %v2106 = vsel %vm437, %v2096, -inf
    %2107 = vmax.xlane.f32.xlu0 %v2106
    %v2108 = vpop.xlane.xlu0 %2107
    %v2109 = vsel %vm437, %v2097, -inf
    %2110 = vmax.xlane.f32.xlu0 %v2109
    %v2111 = vpop.xlane.xlu0 %2110
    %v2112 = vsel %vm437, %v2098, -inf
    %2113 = vmax.xlane.f32.xlu0 %v2112
    %v2114 = vpop.xlane.xlu0 %2113
    %v2115 = vsel %vm437, %v2099, -inf
    %2116 = vmax.xlane.f32.xlu0 %v2115
    %v2117 = vpop.xlane.xlu0 %2116
    %v2118 = vsub.f32 %v2094, %v2102
    %v2119 = vsub.f32 %v2095, %v2105
    %v2120 = vsub.f32 %v2096, %v2108
    %v2121 = vsub.f32 %v2097, %v2111
    %v2122 = vsub.f32 %v2098, %v2114
    %v2123 = vsub.f32 %v2099, %v2117
    %v2124 = vmul.f32 %v2118, 1.442695
    %v2125 = vpow.pop %v2124
    %v2126 = vmul.f32 %v2119, 1.442695
    %v2127 = vpow.pop %v2126
    %v2128 = vmul.f32 %v2120, 1.442695
    %v2129 = vpow.pop %v2128
    %v2130 = vmul.f32 %v2121, 1.442695
    %v2131 = vpow.pop %v2130
    %v2132 = vmul.f32 %v2122, 1.442695
    %v2133 = vpow.pop %v2132
    %v2134 = vmul.f32 %v2123, 1.442695
    %v2135 = vpow.pop %v2134
    %v2136 = vsel %vm77, %v2125, 0.0
    %v2137 = vsel %vm78, %v2127, 0.0
    %v2138 = vsel %vm79, %v2129, 0.0
    %v2139 = vsel %vm80, %v2131, 0.0
    %v2140 = vsel %vm81, %v2133, 0.0
    %v2141 = vsel %vm82, %v2135, 0.0
    %v2142 = vsel %vm437, %v2136, 0.0
    %2143 = vadd.xlane.f32.xlu0 %v2142
    %v2144 = vpop.xlane.xlu0 %2143
    %v2145 = vsel %vm437, %v2137, 0.0
    %2146 = vadd.xlane.f32.xlu0 %v2145
    %v2147 = vpop.xlane.xlu0 %2146
    %v2148 = vsel %vm437, %v2138, 0.0
    %2149 = vadd.xlane.f32.xlu0 %v2148
    %v2150 = vpop.xlane.xlu0 %2149
    %v2151 = vsel %vm437, %v2139, 0.0
    %2152 = vadd.xlane.f32.xlu0 %v2151
    %v2153 = vpop.xlane.xlu0 %2152
    %v2154 = vsel %vm437, %v2140, 0.0
    %2155 = vadd.xlane.f32.xlu0 %v2154
    %v2156 = vpop.xlane.xlu0 %2155
    %v2157 = vsel %vm437, %v2141, 0.0
    %2158 = vadd.xlane.f32.xlu0 %v2157
    %v2159 = vpop.xlane.xlu0 %2158
    %v2160 = vmax.f32 %v2144, 1e-30
    %v2161 = vmax.f32 %v2147, 1e-30
    %v2162 = vmax.f32 %v2150, 1e-30
    %v2163 = vmax.f32 %v2153, 1e-30
    %v2164 = vmax.f32 %v2156, 1e-30
    %v2165 = vmax.f32 %v2159, 1e-30
    %v2166 = vrcp.pop %v2160
    %v2167 = vmul.f32 %v2136, %v2166
    %v2168 = vrcp.pop %v2161
    %v2169 = vmul.f32 %v2137, %v2168
    %v2170 = vrcp.pop %v2162
    %v2171 = vmul.f32 %v2138, %v2170
    %v2172 = vrcp.pop %v2163
    %v2173 = vmul.f32 %v2139, %v2172
    %v2174 = vrcp.pop %v2164
    %v2175 = vmul.f32 %v2140, %v2174
    %v2176 = vrcp.pop %v2165
    %v2177 = vmul.f32 %v2141, %v2176
    %2178 = vrot.lane.b32.xlu0 %v181, 32
    %v2179 = vpop.permute.xlu0 %2178
    %v2182 = vsel %vm437, %v2167, 0
    %2184 = vmatprep.subr.mxu0 0.0
    %2185 = vmatpush1.msra.mxu0 0.0
    %2186 = vmatprep.subr.mxu0 0.0
    %2187 = vmatpush1.msra.mxu0 0.0
    %2188 = vmatprep.subr.mxu0 0.0
    %2189 = vmatpush1.msra.mxu0 0.0
    %2190 = vmatprep.subr.mxu0 0.0
    %2191 = vmatpush1.msra.mxu0 0.0
    %2192 = vmatprep.subr.mxu0 0.0
    %2193 = vmatpush1.msra.mxu0 0.0
    %2194 = vmatprep.subr.mxu0 0.0
    %2195 = vmatpush1.msra.mxu0 0.0
    %2196 = vmatprep.subr.mxu0 0.0
    %2197 = vmatpush1.msra.mxu0 0.0
    %2198 = vmatprep.subr.mxu0 0.0
    %2199 = vmatpush1.msra.mxu0 0.0
    %2200 = vmatprep.subr.mxu0 0.0
    %2201 = vmatpush1.msra.mxu0 0.0
    %2202 = vmatprep.subr.mxu0 0.0
    %2203 = vmatpush1.msra.mxu0 0.0
    %2204 = vmatprep.subr.mxu0 0.0
    %2205 = vmatpush1.msra.mxu0 0.0
    %2206 = vmatprep.subr.mxu0 0.0
    %2207 = vmatpush1.msra.mxu0 0.0
    %2208 = vmatprep.subr.mxu0 0.0
    %2209 = vmatpush1.msra.mxu0 0.0
    %2210 = vmatprep.subr.mxu0 0.0
    %2211 = vmatpush1.msra.mxu0 0.0
    %2212 = vmatprep.subr.mxu0 0.0
    %2213 = vmatpush1.msra.mxu0 0.0
    %2214 = vmatprep.subr.mxu0 0.0
    %2215 = vmatpush1.msra.mxu0 %v2179
    %2216 = vmatprep.subr.mxu0 0.0
    %2217 = vmatpush2.msra.mxu0 0.0
    %2218 = vmatprep.subr.mxu0 0.0
    %2219 = vmatpush2.msra.mxu0 0.0
    %2220 = vmatprep.subr.mxu0 0.0
    %2221 = vmatpush2.msra.mxu0 0.0
    %2222 = vmatprep.subr.mxu0 0.0
    %2223 = vmatpush2.msra.mxu0 0.0
    %2224 = vmatprep.subr.mxu0 0.0
    %2225 = vmatpush2.msra.mxu0 0.0
    %2226 = vmatprep.subr.mxu0 0.0
    %2227 = vmatpush2.msra.mxu0 0.0
    %2228 = vmatprep.subr.mxu0 0.0
    %2229 = vmatpush2.msra.mxu0 0.0
    %2230 = vmatprep.subr.mxu0 0.0
    %2231 = vmatpush2.msra.mxu0 0.0
    %2232 = vmatprep.subr.mxu0 0.0
    %2233 = vmatpush2.msra.mxu0 0.0
    %2234 = vmatprep.subr.mxu0 0.0
    %2235 = vmatpush2.msra.mxu0 0.0
    %2236 = vmatprep.subr.mxu0 0.0
    %2237 = vmatpush2.msra.mxu0 0.0
    %2238 = vmatprep.subr.mxu0 0.0
    %2239 = vmatpush2.msra.mxu0 0.0
    %2240 = vmatprep.subr.mxu0 0.0
    %2241 = vmatpush2.msra.mxu0 0.0
    %2242 = vmatprep.subr.mxu0 0.0
    %2243 = vmatpush2.msra.mxu0 0.0
    %2244 = vmatprep.subr.mxu0 0.0
    %2245 = vmatpush2.msra.mxu0 0.0
    %2246 = vmatprep.subr.mxu0 0.0
    %2247 = vmatpush2.msra.mxu0 0.0
    %2248 = vmatprep.mubr.f32.mxu0 0.0
    %2249 = vmatmul.mubr.f32.gmra.mxu0 %v2182
    %v2250 = vpop.f32.mrf.mxu0
    %v2251 = vadd.f32 0.0, %v2250
    %v2252 = vpop.f32.mrf.mxu0
    %2253 = vdwg.mxu0
    %2254 = vrot.lane.b32.xlu0 %v187, 32
    %v2255 = vpop.permute.xlu0 %2254
    %v2258 = vsel %vm437, %v2169, 0
    %2260 = vmatprep.subr.mxu0 0.0
    %2261 = vmatpush1.msra.mxu0 0.0
    %2262 = vmatprep.subr.mxu0 0.0
    %2263 = vmatpush1.msra.mxu0 0.0
    %2264 = vmatprep.subr.mxu0 0.0
    %2265 = vmatpush1.msra.mxu0 0.0
    %2266 = vmatprep.subr.mxu0 0.0
    %2267 = vmatpush1.msra.mxu0 0.0
    %2268 = vmatprep.subr.mxu0 0.0
    %2269 = vmatpush1.msra.mxu0 0.0
    %2270 = vmatprep.subr.mxu0 0.0
    %2271 = vmatpush1.msra.mxu0 0.0
    %2272 = vmatprep.subr.mxu0 0.0
    %2273 = vmatpush1.msra.mxu0 0.0
    %2274 = vmatprep.subr.mxu0 0.0
    %2275 = vmatpush1.msra.mxu0 0.0
    %2276 = vmatprep.subr.mxu0 0.0
    %2277 = vmatpush1.msra.mxu0 0.0
    %2278 = vmatprep.subr.mxu0 0.0
    %2279 = vmatpush1.msra.mxu0 0.0
    %2280 = vmatprep.subr.mxu0 0.0
    %2281 = vmatpush1.msra.mxu0 0.0
    %2282 = vmatprep.subr.mxu0 0.0
    %2283 = vmatpush1.msra.mxu0 0.0
    %2284 = vmatprep.subr.mxu0 0.0
    %2285 = vmatpush1.msra.mxu0 0.0
    %2286 = vmatprep.subr.mxu0 0.0
    %2287 = vmatpush1.msra.mxu0 0.0
    %2288 = vmatprep.subr.mxu0 0.0
    %2289 = vmatpush1.msra.mxu0 0.0
    %2290 = vmatprep.subr.mxu0 0.0
    %2291 = vmatpush1.msra.mxu0 %v2255
    %2292 = vmatprep.subr.mxu0 0.0
    %2293 = vmatpush2.msra.mxu0 0.0
    %2294 = vmatprep.subr.mxu0 0.0
    %2295 = vmatpush2.msra.mxu0 0.0
    %2296 = vmatprep.subr.mxu0 0.0
    %2297 = vmatpush2.msra.mxu0 0.0
    %2298 = vmatprep.subr.mxu0 0.0
    %2299 = vmatpush2.msra.mxu0 0.0
    %2300 = vmatprep.subr.mxu0 0.0
    %2301 = vmatpush2.msra.mxu0 0.0
    %2302 = vmatprep.subr.mxu0 0.0
    %2303 = vmatpush2.msra.mxu0 0.0
    %2304 = vmatprep.subr.mxu0 0.0
    %2305 = vmatpush2.msra.mxu0 0.0
    %2306 = vmatprep.subr.mxu0 0.0
    %2307 = vmatpush2.msra.mxu0 0.0
    %2308 = vmatprep.subr.mxu0 0.0
    %2309 = vmatpush2.msra.mxu0 0.0
    %2310 = vmatprep.subr.mxu0 0.0
    %2311 = vmatpush2.msra.mxu0 0.0
    %2312 = vmatprep.subr.mxu0 0.0
    %2313 = vmatpush2.msra.mxu0 0.0
    %2314 = vmatprep.subr.mxu0 0.0
    %2315 = vmatpush2.msra.mxu0 0.0
    %2316 = vmatprep.subr.mxu0 0.0
    %2317 = vmatpush2.msra.mxu0 0.0
    %2318 = vmatprep.subr.mxu0 0.0
    %2319 = vmatpush2.msra.mxu0 0.0
    %2320 = vmatprep.subr.mxu0 0.0
    %2321 = vmatpush2.msra.mxu0 0.0
    %2322 = vmatprep.subr.mxu0 0.0
    %2323 = vmatpush2.msra.mxu0 0.0
    %2324 = vmatprep.mubr.f32.mxu0 0.0
    %2325 = vmatmul.mubr.f32.gmra.mxu0 %v2258
    %v2326 = vpop.f32.mrf.mxu0
    %v2327 = vadd.f32 0.0, %v2326
    %v2328 = vpop.f32.mrf.mxu0
    %2329 = vdwg.mxu0
    %2330 = vrot.lane.b32.xlu0 %v193, 32
    %v2331 = vpop.permute.xlu0 %2330
    %v2334 = vsel %vm437, %v2171, 0
    %2336 = vmatprep.subr.mxu0 0.0
    %2337 = vmatpush1.msra.mxu0 0.0
    %2338 = vmatprep.subr.mxu0 0.0
    %2339 = vmatpush1.msra.mxu0 0.0
    %2340 = vmatprep.subr.mxu0 0.0
    %2341 = vmatpush1.msra.mxu0 0.0
    %2342 = vmatprep.subr.mxu0 0.0
    %2343 = vmatpush1.msra.mxu0 0.0
    %2344 = vmatprep.subr.mxu0 0.0
    %2345 = vmatpush1.msra.mxu0 0.0
    %2346 = vmatprep.subr.mxu0 0.0
    %2347 = vmatpush1.msra.mxu0 0.0
    %2348 = vmatprep.subr.mxu0 0.0
    %2349 = vmatpush1.msra.mxu0 0.0
    %2350 = vmatprep.subr.mxu0 0.0
    %2351 = vmatpush1.msra.mxu0 0.0
    %2352 = vmatprep.subr.mxu0 0.0
    %2353 = vmatpush1.msra.mxu0 0.0
    %2354 = vmatprep.subr.mxu0 0.0
    %2355 = vmatpush1.msra.mxu0 0.0
    %2356 = vmatprep.subr.mxu0 0.0
    %2357 = vmatpush1.msra.mxu0 0.0
    %2358 = vmatprep.subr.mxu0 0.0
    %2359 = vmatpush1.msra.mxu0 0.0
    %2360 = vmatprep.subr.mxu0 0.0
    %2361 = vmatpush1.msra.mxu0 0.0
    %2362 = vmatprep.subr.mxu0 0.0
    %2363 = vmatpush1.msra.mxu0 0.0
    %2364 = vmatprep.subr.mxu0 0.0
    %2365 = vmatpush1.msra.mxu0 0.0
    %2366 = vmatprep.subr.mxu0 0.0
    %2367 = vmatpush1.msra.mxu0 %v2331
    %2368 = vmatprep.subr.mxu0 0.0
    %2369 = vmatpush2.msra.mxu0 0.0
    %2370 = vmatprep.subr.mxu0 0.0
    %2371 = vmatpush2.msra.mxu0 0.0
    %2372 = vmatprep.subr.mxu0 0.0
    %2373 = vmatpush2.msra.mxu0 0.0
    %2374 = vmatprep.subr.mxu0 0.0
    %2375 = vmatpush2.msra.mxu0 0.0
    %2376 = vmatprep.subr.mxu0 0.0
    %2377 = vmatpush2.msra.mxu0 0.0
    %2378 = vmatprep.subr.mxu0 0.0
    %2379 = vmatpush2.msra.mxu0 0.0
    %2380 = vmatprep.subr.mxu0 0.0
    %2381 = vmatpush2.msra.mxu0 0.0
    %2382 = vmatprep.subr.mxu0 0.0
    %2383 = vmatpush2.msra.mxu0 0.0
    %2384 = vmatprep.subr.mxu0 0.0
    %2385 = vmatpush2.msra.mxu0 0.0
    %2386 = vmatprep.subr.mxu0 0.0
    %2387 = vmatpush2.msra.mxu0 0.0
    %2388 = vmatprep.subr.mxu0 0.0
    %2389 = vmatpush2.msra.mxu0 0.0
    %2390 = vmatprep.subr.mxu0 0.0
    %2391 = vmatpush2.msra.mxu0 0.0
    %2392 = vmatprep.subr.mxu0 0.0
    %2393 = vmatpush2.msra.mxu0 0.0
    %2394 = vmatprep.subr.mxu0 0.0
    %2395 = vmatpush2.msra.mxu0 0.0
    %2396 = vmatprep.subr.mxu0 0.0
    %2397 = vmatpush2.msra.mxu0 0.0
    %2398 = vmatprep.subr.mxu0 0.0
    %2399 = vmatpush2.msra.mxu0 0.0
    %2400 = vmatprep.mubr.f32.mxu0 0.0
    %2401 = vmatmul.mubr.f32.gmra.mxu0 %v2334
    %v2402 = vpop.f32.mrf.mxu0
    %v2403 = vadd.f32 0.0, %v2402
    %v2404 = vpop.f32.mrf.mxu0
    %2405 = vdwg.mxu0
    %2406 = vrot.lane.b32.xlu0 %v199, 32
    %v2407 = vpop.permute.xlu0 %2406
    %v2410 = vsel %vm437, %v2173, 0
    %2412 = vmatprep.subr.mxu0 0.0
    %2413 = vmatpush1.msra.mxu0 0.0
    %2414 = vmatprep.subr.mxu0 0.0
    %2415 = vmatpush1.msra.mxu0 0.0
    %2416 = vmatprep.subr.mxu0 0.0
    %2417 = vmatpush1.msra.mxu0 0.0
    %2418 = vmatprep.subr.mxu0 0.0
    %2419 = vmatpush1.msra.mxu0 0.0
    %2420 = vmatprep.subr.mxu0 0.0
    %2421 = vmatpush1.msra.mxu0 0.0
    %2422 = vmatprep.subr.mxu0 0.0
    %2423 = vmatpush1.msra.mxu0 0.0
    %2424 = vmatprep.subr.mxu0 0.0
    %2425 = vmatpush1.msra.mxu0 0.0
    %2426 = vmatprep.subr.mxu0 0.0
    %2427 = vmatpush1.msra.mxu0 0.0
    %2428 = vmatprep.subr.mxu0 0.0
    %2429 = vmatpush1.msra.mxu0 0.0
    %2430 = vmatprep.subr.mxu0 0.0
    %2431 = vmatpush1.msra.mxu0 0.0
    %2432 = vmatprep.subr.mxu0 0.0
    %2433 = vmatpush1.msra.mxu0 0.0
    %2434 = vmatprep.subr.mxu0 0.0
    %2435 = vmatpush1.msra.mxu0 0.0
    %2436 = vmatprep.subr.mxu0 0.0
    %2437 = vmatpush1.msra.mxu0 0.0
    %2438 = vmatprep.subr.mxu0 0.0
    %2439 = vmatpush1.msra.mxu0 0.0
    %2440 = vmatprep.subr.mxu0 0.0
    %2441 = vmatpush1.msra.mxu0 0.0
    %2442 = vmatprep.subr.mxu0 0.0
    %2443 = vmatpush1.msra.mxu0 %v2407
    %2444 = vmatprep.subr.mxu0 0.0
    %2445 = vmatpush2.msra.mxu0 0.0
    %2446 = vmatprep.subr.mxu0 0.0
    %2447 = vmatpush2.msra.mxu0 0.0
    %2448 = vmatprep.subr.mxu0 0.0
    %2449 = vmatpush2.msra.mxu0 0.0
    %2450 = vmatprep.subr.mxu0 0.0
    %2451 = vmatpush2.msra.mxu0 0.0
    %2452 = vmatprep.subr.mxu0 0.0
    %2453 = vmatpush2.msra.mxu0 0.0
    %2454 = vmatprep.subr.mxu0 0.0
    %2455 = vmatpush2.msra.mxu0 0.0
    %2456 = vmatprep.subr.mxu0 0.0
    %2457 = vmatpush2.msra.mxu0 0.0
    %2458 = vmatprep.subr.mxu0 0.0
    %2459 = vmatpush2.msra.mxu0 0.0
    %2460 = vmatprep.subr.mxu0 0.0
    %2461 = vmatpush2.msra.mxu0 0.0
    %2462 = vmatprep.subr.mxu0 0.0
    %2463 = vmatpush2.msra.mxu0 0.0
    %2464 = vmatprep.subr.mxu0 0.0
    %2465 = vmatpush2.msra.mxu0 0.0
    %2466 = vmatprep.subr.mxu0 0.0
    %2467 = vmatpush2.msra.mxu0 0.0
    %2468 = vmatprep.subr.mxu0 0.0
    %2469 = vmatpush2.msra.mxu0 0.0
    %2470 = vmatprep.subr.mxu0 0.0
    %2471 = vmatpush2.msra.mxu0 0.0
    %2472 = vmatprep.subr.mxu0 0.0
    %2473 = vmatpush2.msra.mxu0 0.0
    %2474 = vmatprep.subr.mxu0 0.0
    %2475 = vmatpush2.msra.mxu0 0.0
    %2476 = vmatprep.mubr.f32.mxu0 0.0
    %2477 = vmatmul.mubr.f32.gmra.mxu0 %v2410
    %v2478 = vpop.f32.mrf.mxu0
    %v2479 = vadd.f32 0.0, %v2478
    %v2480 = vpop.f32.mrf.mxu0
    %2481 = vdwg.mxu0
    %2482 = vrot.lane.b32.xlu0 %v205, 32
    %v2483 = vpop.permute.xlu0 %2482
    %v2486 = vsel %vm437, %v2175, 0
    %2488 = vmatprep.subr.mxu0 0.0
    %2489 = vmatpush1.msra.mxu0 0.0
    %2490 = vmatprep.subr.mxu0 0.0
    %2491 = vmatpush1.msra.mxu0 0.0
    %2492 = vmatprep.subr.mxu0 0.0
    %2493 = vmatpush1.msra.mxu0 0.0
    %2494 = vmatprep.subr.mxu0 0.0
    %2495 = vmatpush1.msra.mxu0 0.0
    %2496 = vmatprep.subr.mxu0 0.0
    %2497 = vmatpush1.msra.mxu0 0.0
    %2498 = vmatprep.subr.mxu0 0.0
    %2499 = vmatpush1.msra.mxu0 0.0
    %2500 = vmatprep.subr.mxu0 0.0
    %2501 = vmatpush1.msra.mxu0 0.0
    %2502 = vmatprep.subr.mxu0 0.0
    %2503 = vmatpush1.msra.mxu0 0.0
    %2504 = vmatprep.subr.mxu0 0.0
    %2505 = vmatpush1.msra.mxu0 0.0
    %2506 = vmatprep.subr.mxu0 0.0
    %2507 = vmatpush1.msra.mxu0 0.0
    %2508 = vmatprep.subr.mxu0 0.0
    %2509 = vmatpush1.msra.mxu0 0.0
    %2510 = vmatprep.subr.mxu0 0.0
    %2511 = vmatpush1.msra.mxu0 0.0
    %2512 = vmatprep.subr.mxu0 0.0
    %2513 = vmatpush1.msra.mxu0 0.0
    %2514 = vmatprep.subr.mxu0 0.0
    %2515 = vmatpush1.msra.mxu0 0.0
    %2516 = vmatprep.subr.mxu0 0.0
    %2517 = vmatpush1.msra.mxu0 0.0
    %2518 = vmatprep.subr.mxu0 0.0
    %2519 = vmatpush1.msra.mxu0 %v2483
    %2520 = vmatprep.subr.mxu0 0.0
    %2521 = vmatpush2.msra.mxu0 0.0
    %2522 = vmatprep.subr.mxu0 0.0
    %2523 = vmatpush2.msra.mxu0 0.0
    %2524 = vmatprep.subr.mxu0 0.0
    %2525 = vmatpush2.msra.mxu0 0.0
    %2526 = vmatprep.subr.mxu0 0.0
    %2527 = vmatpush2.msra.mxu0 0.0
    %2528 = vmatprep.subr.mxu0 0.0
    %2529 = vmatpush2.msra.mxu0 0.0
    %2530 = vmatprep.subr.mxu0 0.0
    %2531 = vmatpush2.msra.mxu0 0.0
    %2532 = vmatprep.subr.mxu0 0.0
    %2533 = vmatpush2.msra.mxu0 0.0
    %2534 = vmatprep.subr.mxu0 0.0
    %2535 = vmatpush2.msra.mxu0 0.0
    %2536 = vmatprep.subr.mxu0 0.0
    %2537 = vmatpush2.msra.mxu0 0.0
    %2538 = vmatprep.subr.mxu0 0.0
    %2539 = vmatpush2.msra.mxu0 0.0
    %2540 = vmatprep.subr.mxu0 0.0
    %2541 = vmatpush2.msra.mxu0 0.0
    %2542 = vmatprep.subr.mxu0 0.0
    %2543 = vmatpush2.msra.mxu0 0.0
    %2544 = vmatprep.subr.mxu0 0.0
    %2545 = vmatpush2.msra.mxu0 0.0
    %2546 = vmatprep.subr.mxu0 0.0
    %2547 = vmatpush2.msra.mxu0 0.0
    %2548 = vmatprep.subr.mxu0 0.0
    %2549 = vmatpush2.msra.mxu0 0.0
    %2550 = vmatprep.subr.mxu0 0.0
    %2551 = vmatpush2.msra.mxu0 0.0
    %2552 = vmatprep.mubr.f32.mxu0 0.0
    %2553 = vmatmul.mubr.f32.gmra.mxu0 %v2486
    %v2554 = vpop.f32.mrf.mxu0
    %v2555 = vadd.f32 0.0, %v2554
    %v2556 = vpop.f32.mrf.mxu0
    %2557 = vdwg.mxu0
    %2558 = vrot.lane.b32.xlu0 %v211, 32
    %v2559 = vpop.permute.xlu0 %2558
    %v2562 = vsel %vm437, %v2177, 0
    %2564 = vmatprep.subr.mxu0 0.0
    %2565 = vmatpush1.msra.mxu0 0.0
    %2566 = vmatprep.subr.mxu0 0.0
    %2567 = vmatpush1.msra.mxu0 0.0
    %2568 = vmatprep.subr.mxu0 0.0
    %2569 = vmatpush1.msra.mxu0 0.0
    %2570 = vmatprep.subr.mxu0 0.0
    %2571 = vmatpush1.msra.mxu0 0.0
    %2572 = vmatprep.subr.mxu0 0.0
    %2573 = vmatpush1.msra.mxu0 0.0
    %2574 = vmatprep.subr.mxu0 0.0
    %2575 = vmatpush1.msra.mxu0 0.0
    %2576 = vmatprep.subr.mxu0 0.0
    %2577 = vmatpush1.msra.mxu0 0.0
    %2578 = vmatprep.subr.mxu0 0.0
    %2579 = vmatpush1.msra.mxu0 0.0
    %2580 = vmatprep.subr.mxu0 0.0
    %2581 = vmatpush1.msra.mxu0 0.0
    %2582 = vmatprep.subr.mxu0 0.0
    %2583 = vmatpush1.msra.mxu0 0.0
    %2584 = vmatprep.subr.mxu0 0.0
    %2585 = vmatpush1.msra.mxu0 0.0
    %2586 = vmatprep.subr.mxu0 0.0
    %2587 = vmatpush1.msra.mxu0 0.0
    %2588 = vmatprep.subr.mxu0 0.0
    %2589 = vmatpush1.msra.mxu0 0.0
    %2590 = vmatprep.subr.mxu0 0.0
    %2591 = vmatpush1.msra.mxu0 0.0
    %2592 = vmatprep.subr.mxu0 0.0
    %2593 = vmatpush1.msra.mxu0 0.0
    %2594 = vmatprep.subr.mxu0 0.0
    %2595 = vmatpush1.msra.mxu0 %v2559
    %2596 = vmatprep.subr.mxu0 0.0
    %2597 = vmatpush2.msra.mxu0 0.0
    %2598 = vmatprep.subr.mxu0 0.0
    %2599 = vmatpush2.msra.mxu0 0.0
    %2600 = vmatprep.subr.mxu0 0.0
    %2601 = vmatpush2.msra.mxu0 0.0
    %2602 = vmatprep.subr.mxu0 0.0
    %2603 = vmatpush2.msra.mxu0 0.0
    %2604 = vmatprep.subr.mxu0 0.0
    %2605 = vmatpush2.msra.mxu0 0.0
    %2606 = vmatprep.subr.mxu0 0.0
    %2607 = vmatpush2.msra.mxu0 0.0
    %2608 = vmatprep.subr.mxu0 0.0
    %2609 = vmatpush2.msra.mxu0 0.0
    %2610 = vmatprep.subr.mxu0 0.0
    %2611 = vmatpush2.msra.mxu0 0.0
    %2612 = vmatprep.subr.mxu0 0.0
    %2613 = vmatpush2.msra.mxu0 0.0
    %2614 = vmatprep.subr.mxu0 0.0
    %2615 = vmatpush2.msra.mxu0 0.0
    %2616 = vmatprep.subr.mxu0 0.0
    %2617 = vmatpush2.msra.mxu0 0.0
    %2618 = vmatprep.subr.mxu0 0.0
    %2619 = vmatpush2.msra.mxu0 0.0
    %2620 = vmatprep.subr.mxu0 0.0
    %2621 = vmatpush2.msra.mxu0 0.0
    %2622 = vmatprep.subr.mxu0 0.0
    %2623 = vmatpush2.msra.mxu0 0.0
    %2624 = vmatprep.subr.mxu0 0.0
    %2625 = vmatpush2.msra.mxu0 0.0
    %2626 = vmatprep.subr.mxu0 0.0
    %2627 = vmatpush2.msra.mxu0 0.0
    %2628 = vmatprep.mubr.f32.mxu0 0.0
    %2629 = vmatmul.mubr.f32.gmra.mxu0 %v2562
    %v2630 = vpop.f32.mrf.mxu0
    %v2631 = vadd.f32 0.0, %v2630
    %v2632 = vpop.f32.mrf.mxu0
    %2633 = vdwg.mxu0
    %2640 = vrot.lane.b32.xlu0 %v1130, 32
    %v2641 = vpop.permute.xlu0 %2640
    %2642 = vrot.lane.b32.xlu0 %v1207, 32
    %v2643 = vpop.permute.xlu0 %2642
    %2644 = vrot.lane.b32.xlu0 %v1284, 32
    %v2645 = vpop.permute.xlu0 %2644
    %2646 = vrot.lane.b32.xlu0 %v1361, 32
    %v2647 = vpop.permute.xlu0 %2646
    %2648 = vrot.lane.b32.xlu0 %v1438, 32
    %v2649 = vpop.permute.xlu0 %2648
    %2650 = vrot.lane.b32.xlu0 %v1515, 32
    %v2651 = vpop.permute.xlu0 %2650
    %2664 = vrot.lane.b32.xlu0 %v1693, 64
    %v2665 = vpop.permute.xlu0 %2664
    %2666 = vrot.lane.b32.xlu0 %v1769, 64
    %v2667 = vpop.permute.xlu0 %2666
    %2668 = vrot.lane.b32.xlu0 %v1845, 64
    %v2669 = vpop.permute.xlu0 %2668
    %2670 = vrot.lane.b32.xlu0 %v1921, 64
    %v2671 = vpop.permute.xlu0 %2670
    %2672 = vrot.lane.b32.xlu0 %v1997, 64
    %v2673 = vpop.permute.xlu0 %2672
    %2674 = vrot.lane.b32.xlu0 %v2073, 64
    %v2675 = vpop.permute.xlu0 %2674
    %2688 = vrot.lane.b32.xlu0 %v2251, 96
    %v2689 = vpop.permute.xlu0 %2688
    %2690 = vrot.lane.b32.xlu0 %v2327, 96
    %v2691 = vpop.permute.xlu0 %2690
    %2692 = vrot.lane.b32.xlu0 %v2403, 96
    %v2693 = vpop.permute.xlu0 %2692
    %2694 = vrot.lane.b32.xlu0 %v2479, 96
    %v2695 = vpop.permute.xlu0 %2694
    %2696 = vrot.lane.b32.xlu0 %v2555, 96
    %v2697 = vpop.permute.xlu0 %2696
    %2698 = vrot.lane.b32.xlu0 %v2631, 96
    %v2699 = vpop.permute.xlu0 %2698
    %v2706 = vsel %vm316, %v586, %v2641
    %v2707 = vsel %vm316, %v659, %v2643
    %v2708 = vsel %vm316, %v732, %v2645
    %v2709 = vsel %vm316, %v805, %v2647
    %v2710 = vsel %vm316, %v878, %v2649
    %v2711 = vsel %vm316, %v951, %v2651
    %vm2712 = vcmask 523264
    %v2713 = vsel %vm2712, %v2706, %v2665
    %v2714 = vsel %vm2712, %v2707, %v2667
    %v2715 = vsel %vm2712, %v2708, %v2669
    %v2716 = vsel %vm2712, %v2709, %v2671
    %v2717 = vsel %vm2712, %v2710, %v2673
    %v2718 = vsel %vm2712, %v2711, %v2675
    %vm2719 = vcmask 785408
    %v2720 = vsel %vm2719, %v2713, %v2689
    %v2721 = vsel %vm2719, %v2714, %v2691
    %v2722 = vsel %vm2719, %v2715, %v2693
    %v2723 = vsel %vm2719, %v2716, %v2695
    %v2724 = vsel %vm2719, %v2717, %v2697
    %v2725 = vsel %vm2719, %v2718, %v2699
    %v2726 = vadd.f32 %v2720, %v183
    %v2727 = vadd.f32 %v2721, %v189
    %v2728 = vadd.f32 %v2722, %v195
    %v2729 = vadd.f32 %v2723, %v201
    %v2730 = vadd.f32 %v2724, %v207
    %v2731 = vadd.f32 %v2725, %v213
    %vm2732 = vcmp.gt.f32.partialorder %v2726, 0.0
    %vm2733 = vcmp.gt.f32.partialorder %v2727, 0.0
    %vm2734 = vcmp.gt.f32.partialorder %v2728, 0.0
    %vm2735 = vcmp.gt.f32.partialorder %v2729, 0.0
    %vm2736 = vcmp.gt.f32.partialorder %v2730, 0.0
    %vm2737 = vcmp.gt.f32.partialorder %v2731, 0.0
    %v2738 = vmin.f32 %v2726, 0.0
    %v2739 = vmin.f32 %v2727, 0.0
    %v2740 = vmin.f32 %v2728, 0.0
    %v2741 = vmin.f32 %v2729, 0.0
    %v2742 = vmin.f32 %v2730, 0.0
    %v2743 = vmin.f32 %v2731, 0.0
    %v2744 = vmul.f32 %v2738, 1.442695
    %v2745 = vpow.pop %v2744
    %v2746 = vmul.f32 %v2739, 1.442695
    %v2747 = vpow.pop %v2746
    %v2748 = vmul.f32 %v2740, 1.442695
    %v2749 = vpow.pop %v2748
    %v2750 = vmul.f32 %v2741, 1.442695
    %v2751 = vpow.pop %v2750
    %v2752 = vmul.f32 %v2742, 1.442695
    %v2753 = vpow.pop %v2752
    %v2754 = vmul.f32 %v2743, 1.442695
    %v2755 = vpow.pop %v2754
    %v2756 = vsub.f32 %v2745, 1.0
    %v2757 = vsub.f32 %v2747, 1.0
    %v2758 = vsub.f32 %v2749, 1.0
    %v2759 = vsub.f32 %v2751, 1.0
    %v2760 = vsub.f32 %v2753, 1.0
    %v2761 = vsub.f32 %v2755, 1.0
    %v2762 = vsel %vm2732, %v2726, %v2756
    %v2763 = vsel %vm2733, %v2727, %v2757
    %v2764 = vsel %vm2734, %v2728, %v2758
    %v2765 = vsel %vm2735, %v2729, %v2759
    %v2766 = vsel %vm2736, %v2730, %v2760
    %v2767 = vsel %vm2737, %v2731, %v2761
    %v2768 = vld [vmem:[%s3] sm:$0xff]
    %v2769 = vld [vmem:[%s3 + $0x8] sm:$0xff]
    %v2770 = vld [vmem:[%s3 + $0x10] sm:$0xff]
    %v2771 = vld [vmem:[%s3 + $0x18] sm:$0xff]
    %v2772 = vld [vmem:[%s3 + $0x20] sm:$0xff]
    %v2773 = vld [vmem:[%s3 + $0x28] sm:$0xff]
    %v2774 = vld [vmem:[%s3 + $0x30] sm:$0xff]
    %v2775 = vld [vmem:[%s3 + $0x38] sm:$0xff]
    %v2776 = vld [vmem:[%s3 + $0x40] sm:$0xff]
    %v2777 = vld [vmem:[%s3 + $0x48] sm:$0xff]
    %v2778 = vld [vmem:[%s3 + $0x50] sm:$0xff]
    %v2779 = vld [vmem:[%s3 + $0x58] sm:$0xff]
    %v2780 = vld [vmem:[%s3 + $0x60] sm:$0xff]
    %v2781 = vld [vmem:[%s3 + $0x68] sm:$0xff]
    %v2782 = vld [vmem:[%s3 + $0x70] sm:$0xff]
    %v2783 = vld [vmem:[%s3 + $0x78] sm:$0xff]
    %v2784 = vld [vmem:[%s3 + $0x80] sm:$0xff]
    %v2785 = vld [vmem:[%s3 + $0x88] sm:$0xff]
    %v2786 = vld [vmem:[%s3 + $0x90] sm:$0xff]
    %v2787 = vld [vmem:[%s3 + $0x98] sm:$0xff]
    %v2788 = vld [vmem:[%s3 + $0xa0] sm:$0xff]
    %v2789 = vld [vmem:[%s3 + $0xa8] sm:$0xff]
    %v2790 = vld [vmem:[%s3 + $0xb0] sm:$0xff]
    %v2791 = vld [vmem:[%s3 + $0xb8] sm:$0xff]
    %v2792 = vld [vmem:[%s3 + $0xc0] sm:$0xff]
    %v2793 = vld [vmem:[%s3 + $0xc8] sm:$0xff]
    %v2794 = vld [vmem:[%s3 + $0xd0] sm:$0xff]
    %v2795 = vld [vmem:[%s3 + $0xd8] sm:$0xff]
    %v2796 = vld [vmem:[%s3 + $0xe0] sm:$0xff]
    %v2797 = vld [vmem:[%s3 + $0xe8] sm:$0xff]
    %v2798 = vld [vmem:[%s3 + $0xf0] sm:$0xff]
    %v2799 = vld [vmem:[%s3 + $0xf8] sm:$0xff]
    %2800 = vmatprep.subr.mxu0 %v2799
    %2801 = vmatpush1.msra.mxu0 %v2798
    %2802 = vmatprep.subr.mxu0 %v2797
    %2803 = vmatpush1.msra.mxu0 %v2796
    %2804 = vmatprep.subr.mxu0 %v2795
    %2805 = vmatpush1.msra.mxu0 %v2794
    %2806 = vmatprep.subr.mxu0 %v2793
    %2807 = vmatpush1.msra.mxu0 %v2792
    %2808 = vmatprep.subr.mxu0 %v2791
    %2809 = vmatpush1.msra.mxu0 %v2790
    %2810 = vmatprep.subr.mxu0 %v2789
    %2811 = vmatpush1.msra.mxu0 %v2788
    %2812 = vmatprep.subr.mxu0 %v2787
    %2813 = vmatpush1.msra.mxu0 %v2786
    %2814 = vmatprep.subr.mxu0 %v2785
    %2815 = vmatpush1.msra.mxu0 %v2784
    %2816 = vmatprep.subr.mxu0 %v2783
    %2817 = vmatpush1.msra.mxu0 %v2782
    %2818 = vmatprep.subr.mxu0 %v2781
    %2819 = vmatpush1.msra.mxu0 %v2780
    %2820 = vmatprep.subr.mxu0 %v2779
    %2821 = vmatpush1.msra.mxu0 %v2778
    %2822 = vmatprep.subr.mxu0 %v2777
    %2823 = vmatpush1.msra.mxu0 %v2776
    %2824 = vmatprep.subr.mxu0 %v2775
    %2825 = vmatpush1.msra.mxu0 %v2774
    %2826 = vmatprep.subr.mxu0 %v2773
    %2827 = vmatpush1.msra.mxu0 %v2772
    %2828 = vmatprep.subr.mxu0 %v2771
    %2829 = vmatpush1.msra.mxu0 %v2770
    %2830 = vmatprep.subr.mxu0 %v2769
    %2831 = vmatpush1.msra.mxu0 %v2768
    %2832 = vmatprep.subr.mxu0 0.0
    %2833 = vmatpush2.msra.mxu0 0.0
    %2834 = vmatprep.subr.mxu0 0.0
    %2835 = vmatpush2.msra.mxu0 0.0
    %2836 = vmatprep.subr.mxu0 0.0
    %2837 = vmatpush2.msra.mxu0 0.0
    %2838 = vmatprep.subr.mxu0 0.0
    %2839 = vmatpush2.msra.mxu0 0.0
    %2840 = vmatprep.subr.mxu0 0.0
    %2841 = vmatpush2.msra.mxu0 0.0
    %2842 = vmatprep.subr.mxu0 0.0
    %2843 = vmatpush2.msra.mxu0 0.0
    %2844 = vmatprep.subr.mxu0 0.0
    %2845 = vmatpush2.msra.mxu0 0.0
    %2846 = vmatprep.subr.mxu0 0.0
    %2847 = vmatpush2.msra.mxu0 0.0
    %2848 = vmatprep.subr.mxu0 0.0
    %2849 = vmatpush2.msra.mxu0 0.0
    %2850 = vmatprep.subr.mxu0 0.0
    %2851 = vmatpush2.msra.mxu0 0.0
    %2852 = vmatprep.subr.mxu0 0.0
    %2853 = vmatpush2.msra.mxu0 0.0
    %2854 = vmatprep.subr.mxu0 0.0
    %2855 = vmatpush2.msra.mxu0 0.0
    %2856 = vmatprep.subr.mxu0 0.0
    %2857 = vmatpush2.msra.mxu0 0.0
    %2858 = vmatprep.subr.mxu0 0.0
    %2859 = vmatpush2.msra.mxu0 0.0
    %2860 = vmatprep.subr.mxu0 0.0
    %2861 = vmatpush2.msra.mxu0 0.0
    %2862 = vmatprep.subr.mxu0 0.0
    %2863 = vmatpush2.msra.mxu0 0.0
    %2864 = vmatprep.mubr.f32.mxu0 0.0
    %2865 = vmatmul.mubr.f32.gmra.mxu0 %v2762
    %v2866 = vpop.f32.mrf.mxu0
    %v2867 = vadd.f32 0.0, %v2866
    %v2868 = vpop.f32.mrf.mxu0
    %v2869 = vadd.f32 0.0, %v2868
    %2870 = vmatprep.mubr.f32.mxu0 0.0
    %2871 = vmatmul.mubr.f32.gmra.mxu0 %v2763
    %v2872 = vpop.f32.mrf.mxu0
    %v2873 = vadd.f32 0.0, %v2872
    %v2874 = vpop.f32.mrf.mxu0
    %v2875 = vadd.f32 0.0, %v2874
    %2876 = vmatprep.mubr.f32.mxu0 0.0
    %2877 = vmatmul.mubr.f32.gmra.mxu0 %v2764
    %v2878 = vpop.f32.mrf.mxu0
    %v2879 = vadd.f32 0.0, %v2878
    %v2880 = vpop.f32.mrf.mxu0
    %v2881 = vadd.f32 0.0, %v2880
    %2882 = vmatprep.mubr.f32.mxu0 0.0
    %2883 = vmatmul.mubr.f32.gmra.mxu0 %v2765
    %v2884 = vpop.f32.mrf.mxu0
    %v2885 = vadd.f32 0.0, %v2884
    %v2886 = vpop.f32.mrf.mxu0
    %v2887 = vadd.f32 0.0, %v2886
    %2888 = vmatprep.mubr.f32.mxu0 0.0
    %2889 = vmatmul.mubr.f32.gmra.mxu0 %v2766
    %v2890 = vpop.f32.mrf.mxu0
    %v2891 = vadd.f32 0.0, %v2890
    %v2892 = vpop.f32.mrf.mxu0
    %v2893 = vadd.f32 0.0, %v2892
    %2894 = vmatprep.mubr.f32.mxu0 0.0
    %2895 = vmatmul.mubr.f32.gmra.mxu0 %v2767
    %v2896 = vpop.f32.mrf.mxu0
    %v2897 = vadd.f32 0.0, %v2896
    %v2898 = vpop.f32.mrf.mxu0
    %v2899 = vadd.f32 0.0, %v2898
    %2900 = vdwg.mxu0
    %v2901 = vmul.f32 %v2869, %v65
    %v2902 = vmul.f32 %v2875, %v66
    %v2903 = vmul.f32 %v2881, %v67
    %v2904 = vmul.f32 %v2887, %v68
    %v2905 = vmul.f32 %v2893, %v69
    %v2906 = vmul.f32 %v2899, %v70
    %v2907 = vsel %vm316, %v2901, 0.0
    %v2908 = vrot.slane %v2907, 4
    %v2909 = vadd.f32 %v2907, %v2908
    %v2910 = vrot.slane %v2909, 2
    %v2911 = vadd.f32 %v2909, %v2910
    %v2912 = vrot.slane %v2911, 1
    %v2913 = vadd.f32 %v2911, %v2912
    %v2914 = vsel %vm316, %v2902, 0.0
    %v2915 = vrot.slane %v2914, 4
    %v2916 = vadd.f32 %v2914, %v2915
    %v2917 = vrot.slane %v2916, 2
    %v2918 = vadd.f32 %v2916, %v2917
    %v2919 = vrot.slane %v2918, 1
    %v2920 = vadd.f32 %v2918, %v2919
    %v2921 = vsel %vm316, %v2903, 0.0
    %v2922 = vrot.slane %v2921, 4
    %v2923 = vadd.f32 %v2921, %v2922
    %v2924 = vrot.slane %v2923, 2
    %v2925 = vadd.f32 %v2923, %v2924
    %v2926 = vrot.slane %v2925, 1
    %v2927 = vadd.f32 %v2925, %v2926
    %v2928 = vsel %vm316, %v2904, 0.0
    %v2929 = vrot.slane %v2928, 4
    %v2930 = vadd.f32 %v2928, %v2929
    %v2931 = vrot.slane %v2930, 2
    %v2932 = vadd.f32 %v2930, %v2931
    %v2933 = vrot.slane %v2932, 1
    %v2934 = vadd.f32 %v2932, %v2933
    %v2935 = vsel %vm316, %v2905, 0.0
    %v2936 = vrot.slane %v2935, 4
    %v2937 = vadd.f32 %v2935, %v2936
    %v2938 = vrot.slane %v2937, 2
    %v2939 = vadd.f32 %v2937, %v2938
    %v2940 = vrot.slane %v2939, 1
    %v2941 = vadd.f32 %v2939, %v2940
    %v2942 = vsel %vm316, %v2906, 0.0
    %v2943 = vrot.slane %v2942, 4
    %v2944 = vadd.f32 %v2942, %v2943
    %v2945 = vrot.slane %v2944, 2
    %v2946 = vadd.f32 %v2944, %v2945
    %v2947 = vrot.slane %v2946, 1
    %v2948 = vadd.f32 %v2946, %v2947
    %2955 = vrot.lane.b32.xlu0 %v2913, 32
    %v2956 = vpop.permute.xlu0 %2955
    %2957 = vrot.lane.b32.xlu0 %v2920, 32
    %v2958 = vpop.permute.xlu0 %2957
    %2959 = vrot.lane.b32.xlu0 %v2927, 32
    %v2960 = vpop.permute.xlu0 %2959
    %2961 = vrot.lane.b32.xlu0 %v2934, 32
    %v2962 = vpop.permute.xlu0 %2961
    %2963 = vrot.lane.b32.xlu0 %v2941, 32
    %v2964 = vpop.permute.xlu0 %2963
    %2965 = vrot.lane.b32.xlu0 %v2948, 32
    %v2966 = vpop.permute.xlu0 %2965
    %v2973 = vadd.f32 %v2869, %v2956
    %v2974 = vadd.f32 %v2875, %v2958
    %v2975 = vadd.f32 %v2881, %v2960
    %v2976 = vadd.f32 %v2887, %v2962
    %v2977 = vadd.f32 %v2893, %v2964
    %v2978 = vadd.f32 %v2899, %v2966
    %vm2979 = vcmp.gt.f32.partialorder %v2973, 0.0
    %vm2980 = vcmp.gt.f32.partialorder %v2974, 0.0
    %vm2981 = vcmp.gt.f32.partialorder %v2975, 0.0
    %vm2982 = vcmp.gt.f32.partialorder %v2976, 0.0
    %vm2983 = vcmp.gt.f32.partialorder %v2977, 0.0
    %vm2984 = vcmp.gt.f32.partialorder %v2978, 0.0
    %v2985 = vmul.f32 %v2973, 0.2
    %v2986 = vmul.f32 %v2974, 0.2
    %v2987 = vmul.f32 %v2975, 0.2
    %v2988 = vmul.f32 %v2976, 0.2
    %v2989 = vmul.f32 %v2977, 0.2
    %v2990 = vmul.f32 %v2978, 0.2
    %v2991 = vsel %vm2979, %v2973, %v2985
    %v2992 = vsel %vm2980, %v2974, %v2986
    %v2993 = vsel %vm2981, %v2975, %v2987
    %v2994 = vsel %vm2982, %v2976, %v2988
    %v2995 = vsel %vm2983, %v2977, %v2989
    %v2996 = vsel %vm2984, %v2978, %v2990
    %3003 = vrot.lane.b32.xlu0 %v2991, 96
    %v3004 = vpop.permute.xlu0 %3003
    %3005 = vrot.lane.b32.xlu0 %v2992, 96
    %v3006 = vpop.permute.xlu0 %3005
    %3007 = vrot.lane.b32.xlu0 %v2993, 96
    %v3008 = vpop.permute.xlu0 %3007
    %3009 = vrot.lane.b32.xlu0 %v2994, 96
    %v3010 = vpop.permute.xlu0 %3009
    %3011 = vrot.lane.b32.xlu0 %v2995, 96
    %v3012 = vpop.permute.xlu0 %3011
    %3013 = vrot.lane.b32.xlu0 %v2996, 96
    %v3014 = vpop.permute.xlu0 %3013
    %v3021 = vsel %vm77, %v3004, -1e+30
    %v3022 = vsel %vm78, %v3006, -1e+30
    %v3023 = vsel %vm79, %v3008, -1e+30
    %v3024 = vsel %vm80, %v3010, -1e+30
    %v3025 = vsel %vm81, %v3012, -1e+30
    %v3026 = vsel %vm82, %v3014, -1e+30
    %v3027 = vsel %vm437, %v3021, -inf
    %3028 = vmax.xlane.f32.xlu0 %v3027
    %v3029 = vpop.xlane.xlu0 %3028
    %v3030 = vsel %vm437, %v3022, -inf
    %3031 = vmax.xlane.f32.xlu0 %v3030
    %v3032 = vpop.xlane.xlu0 %3031
    %v3033 = vsel %vm437, %v3023, -inf
    %3034 = vmax.xlane.f32.xlu0 %v3033
    %v3035 = vpop.xlane.xlu0 %3034
    %v3036 = vsel %vm437, %v3024, -inf
    %3037 = vmax.xlane.f32.xlu0 %v3036
    %v3038 = vpop.xlane.xlu0 %3037
    %v3039 = vsel %vm437, %v3025, -inf
    %3040 = vmax.xlane.f32.xlu0 %v3039
    %v3041 = vpop.xlane.xlu0 %3040
    %v3042 = vsel %vm437, %v3026, -inf
    %3043 = vmax.xlane.f32.xlu0 %v3042
    %v3044 = vpop.xlane.xlu0 %3043
    %v3045 = vsub.f32 %v3021, %v3029
    %v3046 = vsub.f32 %v3022, %v3032
    %v3047 = vsub.f32 %v3023, %v3035
    %v3048 = vsub.f32 %v3024, %v3038
    %v3049 = vsub.f32 %v3025, %v3041
    %v3050 = vsub.f32 %v3026, %v3044
    %v3051 = vmul.f32 %v3045, 1.442695
    %v3052 = vpow.pop %v3051
    %v3053 = vmul.f32 %v3046, 1.442695
    %v3054 = vpow.pop %v3053
    %v3055 = vmul.f32 %v3047, 1.442695
    %v3056 = vpow.pop %v3055
    %v3057 = vmul.f32 %v3048, 1.442695
    %v3058 = vpow.pop %v3057
    %v3059 = vmul.f32 %v3049, 1.442695
    %v3060 = vpow.pop %v3059
    %v3061 = vmul.f32 %v3050, 1.442695
    %v3062 = vpow.pop %v3061
    %v3063 = vsel %vm77, %v3052, 0.0
    %v3064 = vsel %vm78, %v3054, 0.0
    %v3065 = vsel %vm79, %v3056, 0.0
    %v3066 = vsel %vm80, %v3058, 0.0
    %v3067 = vsel %vm81, %v3060, 0.0
    %v3068 = vsel %vm82, %v3062, 0.0
    %v3069 = vsel %vm437, %v3063, 0.0
    %3070 = vadd.xlane.f32.xlu0 %v3069
    %v3071 = vpop.xlane.xlu0 %3070
    %v3072 = vsel %vm437, %v3064, 0.0
    %3073 = vadd.xlane.f32.xlu0 %v3072
    %v3074 = vpop.xlane.xlu0 %3073
    %v3075 = vsel %vm437, %v3065, 0.0
    %3076 = vadd.xlane.f32.xlu0 %v3075
    %v3077 = vpop.xlane.xlu0 %3076
    %v3078 = vsel %vm437, %v3066, 0.0
    %3079 = vadd.xlane.f32.xlu0 %v3078
    %v3080 = vpop.xlane.xlu0 %3079
    %v3081 = vsel %vm437, %v3067, 0.0
    %3082 = vadd.xlane.f32.xlu0 %v3081
    %v3083 = vpop.xlane.xlu0 %3082
    %v3084 = vsel %vm437, %v3068, 0.0
    %3085 = vadd.xlane.f32.xlu0 %v3084
    %v3086 = vpop.xlane.xlu0 %3085
    %v3087 = vmax.f32 %v3071, 1e-30
    %v3088 = vmax.f32 %v3074, 1e-30
    %v3089 = vmax.f32 %v3077, 1e-30
    %v3090 = vmax.f32 %v3080, 1e-30
    %v3091 = vmax.f32 %v3083, 1e-30
    %v3092 = vmax.f32 %v3086, 1e-30
    %v3093 = vrcp.pop %v3087
    %v3094 = vmul.f32 %v3063, %v3093
    %v3095 = vrcp.pop %v3088
    %v3096 = vmul.f32 %v3064, %v3095
    %v3097 = vrcp.pop %v3089
    %v3098 = vmul.f32 %v3065, %v3097
    %v3099 = vrcp.pop %v3090
    %v3100 = vmul.f32 %v3066, %v3099
    %v3101 = vrcp.pop %v3091
    %v3102 = vmul.f32 %v3067, %v3101
    %v3103 = vrcp.pop %v3092
    %v3104 = vmul.f32 %v3068, %v3103
    %v3106 = vsel %vm437, %v3094, 0
    %3108 = vmatprep.subr.mxu0 0.0
    %3109 = vmatpush1.msra.mxu0 0.0
    %3110 = vmatprep.subr.mxu0 0.0
    %3111 = vmatpush1.msra.mxu0 0.0
    %3112 = vmatprep.subr.mxu0 0.0
    %3113 = vmatpush1.msra.mxu0 0.0
    %3114 = vmatprep.subr.mxu0 0.0
    %3115 = vmatpush1.msra.mxu0 0.0
    %3116 = vmatprep.subr.mxu0 0.0
    %3117 = vmatpush1.msra.mxu0 0.0
    %3118 = vmatprep.subr.mxu0 0.0
    %3119 = vmatpush1.msra.mxu0 0.0
    %3120 = vmatprep.subr.mxu0 0.0
    %3121 = vmatpush1.msra.mxu0 0.0
    %3122 = vmatprep.subr.mxu0 0.0
    %3123 = vmatpush1.msra.mxu0 0.0
    %3124 = vmatprep.subr.mxu0 0.0
    %3125 = vmatpush1.msra.mxu0 0.0
    %3126 = vmatprep.subr.mxu0 0.0
    %3127 = vmatpush1.msra.mxu0 0.0
    %3128 = vmatprep.subr.mxu0 0.0
    %3129 = vmatpush1.msra.mxu0 0.0
    %3130 = vmatprep.subr.mxu0 0.0
    %3131 = vmatpush1.msra.mxu0 0.0
    %3132 = vmatprep.subr.mxu0 0.0
    %3133 = vmatpush1.msra.mxu0 0.0
    %3134 = vmatprep.subr.mxu0 0.0
    %3135 = vmatpush1.msra.mxu0 0.0
    %3136 = vmatprep.subr.mxu0 0.0
    %3137 = vmatpush1.msra.mxu0 0.0
    %3138 = vmatprep.subr.mxu0 0.0
    %3139 = vmatpush1.msra.mxu0 %v2867
    %3140 = vmatprep.subr.mxu0 0.0
    %3141 = vmatpush2.msra.mxu0 0.0
    %3142 = vmatprep.subr.mxu0 0.0
    %3143 = vmatpush2.msra.mxu0 0.0
    %3144 = vmatprep.subr.mxu0 0.0
    %3145 = vmatpush2.msra.mxu0 0.0
    %3146 = vmatprep.subr.mxu0 0.0
    %3147 = vmatpush2.msra.mxu0 0.0
    %3148 = vmatprep.subr.mxu0 0.0
    %3149 = vmatpush2.msra.mxu0 0.0
    %3150 = vmatprep.subr.mxu0 0.0
    %3151 = vmatpush2.msra.mxu0 0.0
    %3152 = vmatprep.subr.mxu0 0.0
    %3153 = vmatpush2.msra.mxu0 0.0
    %3154 = vmatprep.subr.mxu0 0.0
    %3155 = vmatpush2.msra.mxu0 0.0
    %3156 = vmatprep.subr.mxu0 0.0
    %3157 = vmatpush2.msra.mxu0 0.0
    %3158 = vmatprep.subr.mxu0 0.0
    %3159 = vmatpush2.msra.mxu0 0.0
    %3160 = vmatprep.subr.mxu0 0.0
    %3161 = vmatpush2.msra.mxu0 0.0
    %3162 = vmatprep.subr.mxu0 0.0
    %3163 = vmatpush2.msra.mxu0 0.0
    %3164 = vmatprep.subr.mxu0 0.0
    %3165 = vmatpush2.msra.mxu0 0.0
    %3166 = vmatprep.subr.mxu0 0.0
    %3167 = vmatpush2.msra.mxu0 0.0
    %3168 = vmatprep.subr.mxu0 0.0
    %3169 = vmatpush2.msra.mxu0 0.0
    %3170 = vmatprep.subr.mxu0 0.0
    %3171 = vmatpush2.msra.mxu0 0.0
    %3172 = vmatprep.mubr.f32.mxu0 0.0
    %3173 = vmatmul.mubr.f32.gmra.mxu0 %v3106
    %v3174 = vpop.f32.mrf.mxu0
    %v3175 = vadd.f32 0.0, %v3174
    %v3176 = vpop.f32.mrf.mxu0
    %3177 = vdwg.mxu0
    %v3179 = vsel %vm437, %v3096, 0
    %3181 = vmatprep.subr.mxu0 0.0
    %3182 = vmatpush1.msra.mxu0 0.0
    %3183 = vmatprep.subr.mxu0 0.0
    %3184 = vmatpush1.msra.mxu0 0.0
    %3185 = vmatprep.subr.mxu0 0.0
    %3186 = vmatpush1.msra.mxu0 0.0
    %3187 = vmatprep.subr.mxu0 0.0
    %3188 = vmatpush1.msra.mxu0 0.0
    %3189 = vmatprep.subr.mxu0 0.0
    %3190 = vmatpush1.msra.mxu0 0.0
    %3191 = vmatprep.subr.mxu0 0.0
    %3192 = vmatpush1.msra.mxu0 0.0
    %3193 = vmatprep.subr.mxu0 0.0
    %3194 = vmatpush1.msra.mxu0 0.0
    %3195 = vmatprep.subr.mxu0 0.0
    %3196 = vmatpush1.msra.mxu0 0.0
    %3197 = vmatprep.subr.mxu0 0.0
    %3198 = vmatpush1.msra.mxu0 0.0
    %3199 = vmatprep.subr.mxu0 0.0
    %3200 = vmatpush1.msra.mxu0 0.0
    %3201 = vmatprep.subr.mxu0 0.0
    %3202 = vmatpush1.msra.mxu0 0.0
    %3203 = vmatprep.subr.mxu0 0.0
    %3204 = vmatpush1.msra.mxu0 0.0
    %3205 = vmatprep.subr.mxu0 0.0
    %3206 = vmatpush1.msra.mxu0 0.0
    %3207 = vmatprep.subr.mxu0 0.0
    %3208 = vmatpush1.msra.mxu0 0.0
    %3209 = vmatprep.subr.mxu0 0.0
    %3210 = vmatpush1.msra.mxu0 0.0
    %3211 = vmatprep.subr.mxu0 0.0
    %3212 = vmatpush1.msra.mxu0 %v2873
    %3213 = vmatprep.subr.mxu0 0.0
    %3214 = vmatpush2.msra.mxu0 0.0
    %3215 = vmatprep.subr.mxu0 0.0
    %3216 = vmatpush2.msra.mxu0 0.0
    %3217 = vmatprep.subr.mxu0 0.0
    %3218 = vmatpush2.msra.mxu0 0.0
    %3219 = vmatprep.subr.mxu0 0.0
    %3220 = vmatpush2.msra.mxu0 0.0
    %3221 = vmatprep.subr.mxu0 0.0
    %3222 = vmatpush2.msra.mxu0 0.0
    %3223 = vmatprep.subr.mxu0 0.0
    %3224 = vmatpush2.msra.mxu0 0.0
    %3225 = vmatprep.subr.mxu0 0.0
    %3226 = vmatpush2.msra.mxu0 0.0
    %3227 = vmatprep.subr.mxu0 0.0
    %3228 = vmatpush2.msra.mxu0 0.0
    %3229 = vmatprep.subr.mxu0 0.0
    %3230 = vmatpush2.msra.mxu0 0.0
    %3231 = vmatprep.subr.mxu0 0.0
    %3232 = vmatpush2.msra.mxu0 0.0
    %3233 = vmatprep.subr.mxu0 0.0
    %3234 = vmatpush2.msra.mxu0 0.0
    %3235 = vmatprep.subr.mxu0 0.0
    %3236 = vmatpush2.msra.mxu0 0.0
    %3237 = vmatprep.subr.mxu0 0.0
    %3238 = vmatpush2.msra.mxu0 0.0
    %3239 = vmatprep.subr.mxu0 0.0
    %3240 = vmatpush2.msra.mxu0 0.0
    %3241 = vmatprep.subr.mxu0 0.0
    %3242 = vmatpush2.msra.mxu0 0.0
    %3243 = vmatprep.subr.mxu0 0.0
    %3244 = vmatpush2.msra.mxu0 0.0
    %3245 = vmatprep.mubr.f32.mxu0 0.0
    %3246 = vmatmul.mubr.f32.gmra.mxu0 %v3179
    %v3247 = vpop.f32.mrf.mxu0
    %v3248 = vadd.f32 0.0, %v3247
    %v3249 = vpop.f32.mrf.mxu0
    %3250 = vdwg.mxu0
    %v3252 = vsel %vm437, %v3098, 0
    %3254 = vmatprep.subr.mxu0 0.0
    %3255 = vmatpush1.msra.mxu0 0.0
    %3256 = vmatprep.subr.mxu0 0.0
    %3257 = vmatpush1.msra.mxu0 0.0
    %3258 = vmatprep.subr.mxu0 0.0
    %3259 = vmatpush1.msra.mxu0 0.0
    %3260 = vmatprep.subr.mxu0 0.0
    %3261 = vmatpush1.msra.mxu0 0.0
    %3262 = vmatprep.subr.mxu0 0.0
    %3263 = vmatpush1.msra.mxu0 0.0
    %3264 = vmatprep.subr.mxu0 0.0
    %3265 = vmatpush1.msra.mxu0 0.0
    %3266 = vmatprep.subr.mxu0 0.0
    %3267 = vmatpush1.msra.mxu0 0.0
    %3268 = vmatprep.subr.mxu0 0.0
    %3269 = vmatpush1.msra.mxu0 0.0
    %3270 = vmatprep.subr.mxu0 0.0
    %3271 = vmatpush1.msra.mxu0 0.0
    %3272 = vmatprep.subr.mxu0 0.0
    %3273 = vmatpush1.msra.mxu0 0.0
    %3274 = vmatprep.subr.mxu0 0.0
    %3275 = vmatpush1.msra.mxu0 0.0
    %3276 = vmatprep.subr.mxu0 0.0
    %3277 = vmatpush1.msra.mxu0 0.0
    %3278 = vmatprep.subr.mxu0 0.0
    %3279 = vmatpush1.msra.mxu0 0.0
    %3280 = vmatprep.subr.mxu0 0.0
    %3281 = vmatpush1.msra.mxu0 0.0
    %3282 = vmatprep.subr.mxu0 0.0
    %3283 = vmatpush1.msra.mxu0 0.0
    %3284 = vmatprep.subr.mxu0 0.0
    %3285 = vmatpush1.msra.mxu0 %v2879
    %3286 = vmatprep.subr.mxu0 0.0
    %3287 = vmatpush2.msra.mxu0 0.0
    %3288 = vmatprep.subr.mxu0 0.0
    %3289 = vmatpush2.msra.mxu0 0.0
    %3290 = vmatprep.subr.mxu0 0.0
    %3291 = vmatpush2.msra.mxu0 0.0
    %3292 = vmatprep.subr.mxu0 0.0
    %3293 = vmatpush2.msra.mxu0 0.0
    %3294 = vmatprep.subr.mxu0 0.0
    %3295 = vmatpush2.msra.mxu0 0.0
    %3296 = vmatprep.subr.mxu0 0.0
    %3297 = vmatpush2.msra.mxu0 0.0
    %3298 = vmatprep.subr.mxu0 0.0
    %3299 = vmatpush2.msra.mxu0 0.0
    %3300 = vmatprep.subr.mxu0 0.0
    %3301 = vmatpush2.msra.mxu0 0.0
    %3302 = vmatprep.subr.mxu0 0.0
    %3303 = vmatpush2.msra.mxu0 0.0
    %3304 = vmatprep.subr.mxu0 0.0
    %3305 = vmatpush2.msra.mxu0 0.0
    %3306 = vmatprep.subr.mxu0 0.0
    %3307 = vmatpush2.msra.mxu0 0.0
    %3308 = vmatprep.subr.mxu0 0.0
    %3309 = vmatpush2.msra.mxu0 0.0
    %3310 = vmatprep.subr.mxu0 0.0
    %3311 = vmatpush2.msra.mxu0 0.0
    %3312 = vmatprep.subr.mxu0 0.0
    %3313 = vmatpush2.msra.mxu0 0.0
    %3314 = vmatprep.subr.mxu0 0.0
    %3315 = vmatpush2.msra.mxu0 0.0
    %3316 = vmatprep.subr.mxu0 0.0
    %3317 = vmatpush2.msra.mxu0 0.0
    %3318 = vmatprep.mubr.f32.mxu0 0.0
    %3319 = vmatmul.mubr.f32.gmra.mxu0 %v3252
    %v3320 = vpop.f32.mrf.mxu0
    %v3321 = vadd.f32 0.0, %v3320
    %v3322 = vpop.f32.mrf.mxu0
    %3323 = vdwg.mxu0
    %v3325 = vsel %vm437, %v3100, 0
    %3327 = vmatprep.subr.mxu0 0.0
    %3328 = vmatpush1.msra.mxu0 0.0
    %3329 = vmatprep.subr.mxu0 0.0
    %3330 = vmatpush1.msra.mxu0 0.0
    %3331 = vmatprep.subr.mxu0 0.0
    %3332 = vmatpush1.msra.mxu0 0.0
    %3333 = vmatprep.subr.mxu0 0.0
    %3334 = vmatpush1.msra.mxu0 0.0
    %3335 = vmatprep.subr.mxu0 0.0
    %3336 = vmatpush1.msra.mxu0 0.0
    %3337 = vmatprep.subr.mxu0 0.0
    %3338 = vmatpush1.msra.mxu0 0.0
    %3339 = vmatprep.subr.mxu0 0.0
    %3340 = vmatpush1.msra.mxu0 0.0
    %3341 = vmatprep.subr.mxu0 0.0
    %3342 = vmatpush1.msra.mxu0 0.0
    %3343 = vmatprep.subr.mxu0 0.0
    %3344 = vmatpush1.msra.mxu0 0.0
    %3345 = vmatprep.subr.mxu0 0.0
    %3346 = vmatpush1.msra.mxu0 0.0
    %3347 = vmatprep.subr.mxu0 0.0
    %3348 = vmatpush1.msra.mxu0 0.0
    %3349 = vmatprep.subr.mxu0 0.0
    %3350 = vmatpush1.msra.mxu0 0.0
    %3351 = vmatprep.subr.mxu0 0.0
    %3352 = vmatpush1.msra.mxu0 0.0
    %3353 = vmatprep.subr.mxu0 0.0
    %3354 = vmatpush1.msra.mxu0 0.0
    %3355 = vmatprep.subr.mxu0 0.0
    %3356 = vmatpush1.msra.mxu0 0.0
    %3357 = vmatprep.subr.mxu0 0.0
    %3358 = vmatpush1.msra.mxu0 %v2885
    %3359 = vmatprep.subr.mxu0 0.0
    %3360 = vmatpush2.msra.mxu0 0.0
    %3361 = vmatprep.subr.mxu0 0.0
    %3362 = vmatpush2.msra.mxu0 0.0
    %3363 = vmatprep.subr.mxu0 0.0
    %3364 = vmatpush2.msra.mxu0 0.0
    %3365 = vmatprep.subr.mxu0 0.0
    %3366 = vmatpush2.msra.mxu0 0.0
    %3367 = vmatprep.subr.mxu0 0.0
    %3368 = vmatpush2.msra.mxu0 0.0
    %3369 = vmatprep.subr.mxu0 0.0
    %3370 = vmatpush2.msra.mxu0 0.0
    %3371 = vmatprep.subr.mxu0 0.0
    %3372 = vmatpush2.msra.mxu0 0.0
    %3373 = vmatprep.subr.mxu0 0.0
    %3374 = vmatpush2.msra.mxu0 0.0
    %3375 = vmatprep.subr.mxu0 0.0
    %3376 = vmatpush2.msra.mxu0 0.0
    %3377 = vmatprep.subr.mxu0 0.0
    %3378 = vmatpush2.msra.mxu0 0.0
    %3379 = vmatprep.subr.mxu0 0.0
    %3380 = vmatpush2.msra.mxu0 0.0
    %3381 = vmatprep.subr.mxu0 0.0
    %3382 = vmatpush2.msra.mxu0 0.0
    %3383 = vmatprep.subr.mxu0 0.0
    %3384 = vmatpush2.msra.mxu0 0.0
    %3385 = vmatprep.subr.mxu0 0.0
    %3386 = vmatpush2.msra.mxu0 0.0
    %3387 = vmatprep.subr.mxu0 0.0
    %3388 = vmatpush2.msra.mxu0 0.0
    %3389 = vmatprep.subr.mxu0 0.0
    %3390 = vmatpush2.msra.mxu0 0.0
    %3391 = vmatprep.mubr.f32.mxu0 0.0
    %3392 = vmatmul.mubr.f32.gmra.mxu0 %v3325
    %v3393 = vpop.f32.mrf.mxu0
    %v3394 = vadd.f32 0.0, %v3393
    %v3395 = vpop.f32.mrf.mxu0
    %3396 = vdwg.mxu0
    %v3398 = vsel %vm437, %v3102, 0
    %3400 = vmatprep.subr.mxu0 0.0
    %3401 = vmatpush1.msra.mxu0 0.0
    %3402 = vmatprep.subr.mxu0 0.0
    %3403 = vmatpush1.msra.mxu0 0.0
    %3404 = vmatprep.subr.mxu0 0.0
    %3405 = vmatpush1.msra.mxu0 0.0
    %3406 = vmatprep.subr.mxu0 0.0
    %3407 = vmatpush1.msra.mxu0 0.0
    %3408 = vmatprep.subr.mxu0 0.0
    %3409 = vmatpush1.msra.mxu0 0.0
    %3410 = vmatprep.subr.mxu0 0.0
    %3411 = vmatpush1.msra.mxu0 0.0
    %3412 = vmatprep.subr.mxu0 0.0
    %3413 = vmatpush1.msra.mxu0 0.0
    %3414 = vmatprep.subr.mxu0 0.0
    %3415 = vmatpush1.msra.mxu0 0.0
    %3416 = vmatprep.subr.mxu0 0.0
    %3417 = vmatpush1.msra.mxu0 0.0
    %3418 = vmatprep.subr.mxu0 0.0
    %3419 = vmatpush1.msra.mxu0 0.0
    %3420 = vmatprep.subr.mxu0 0.0
    %3421 = vmatpush1.msra.mxu0 0.0
    %3422 = vmatprep.subr.mxu0 0.0
    %3423 = vmatpush1.msra.mxu0 0.0
    %3424 = vmatprep.subr.mxu0 0.0
    %3425 = vmatpush1.msra.mxu0 0.0
    %3426 = vmatprep.subr.mxu0 0.0
    %3427 = vmatpush1.msra.mxu0 0.0
    %3428 = vmatprep.subr.mxu0 0.0
    %3429 = vmatpush1.msra.mxu0 0.0
    %3430 = vmatprep.subr.mxu0 0.0
    %3431 = vmatpush1.msra.mxu0 %v2891
    %3432 = vmatprep.subr.mxu0 0.0
    %3433 = vmatpush2.msra.mxu0 0.0
    %3434 = vmatprep.subr.mxu0 0.0
    %3435 = vmatpush2.msra.mxu0 0.0
    %3436 = vmatprep.subr.mxu0 0.0
    %3437 = vmatpush2.msra.mxu0 0.0
    %3438 = vmatprep.subr.mxu0 0.0
    %3439 = vmatpush2.msra.mxu0 0.0
    %3440 = vmatprep.subr.mxu0 0.0
    %3441 = vmatpush2.msra.mxu0 0.0
    %3442 = vmatprep.subr.mxu0 0.0
    %3443 = vmatpush2.msra.mxu0 0.0
    %3444 = vmatprep.subr.mxu0 0.0
    %3445 = vmatpush2.msra.mxu0 0.0
    %3446 = vmatprep.subr.mxu0 0.0
    %3447 = vmatpush2.msra.mxu0 0.0
    %3448 = vmatprep.subr.mxu0 0.0
    %3449 = vmatpush2.msra.mxu0 0.0
    %3450 = vmatprep.subr.mxu0 0.0
    %3451 = vmatpush2.msra.mxu0 0.0
    %3452 = vmatprep.subr.mxu0 0.0
    %3453 = vmatpush2.msra.mxu0 0.0
    %3454 = vmatprep.subr.mxu0 0.0
    %3455 = vmatpush2.msra.mxu0 0.0
    %3456 = vmatprep.subr.mxu0 0.0
    %3457 = vmatpush2.msra.mxu0 0.0
    %3458 = vmatprep.subr.mxu0 0.0
    %3459 = vmatpush2.msra.mxu0 0.0
    %3460 = vmatprep.subr.mxu0 0.0
    %3461 = vmatpush2.msra.mxu0 0.0
    %3462 = vmatprep.subr.mxu0 0.0
    %3463 = vmatpush2.msra.mxu0 0.0
    %3464 = vmatprep.mubr.f32.mxu0 0.0
    %3465 = vmatmul.mubr.f32.gmra.mxu0 %v3398
    %v3466 = vpop.f32.mrf.mxu0
    %v3467 = vadd.f32 0.0, %v3466
    %v3468 = vpop.f32.mrf.mxu0
    %3469 = vdwg.mxu0
    %v3471 = vsel %vm437, %v3104, 0
    %3473 = vmatprep.subr.mxu0 0.0
    %3474 = vmatpush1.msra.mxu0 0.0
    %3475 = vmatprep.subr.mxu0 0.0
    %3476 = vmatpush1.msra.mxu0 0.0
    %3477 = vmatprep.subr.mxu0 0.0
    %3478 = vmatpush1.msra.mxu0 0.0
    %3479 = vmatprep.subr.mxu0 0.0
    %3480 = vmatpush1.msra.mxu0 0.0
    %3481 = vmatprep.subr.mxu0 0.0
    %3482 = vmatpush1.msra.mxu0 0.0
    %3483 = vmatprep.subr.mxu0 0.0
    %3484 = vmatpush1.msra.mxu0 0.0
    %3485 = vmatprep.subr.mxu0 0.0
    %3486 = vmatpush1.msra.mxu0 0.0
    %3487 = vmatprep.subr.mxu0 0.0
    %3488 = vmatpush1.msra.mxu0 0.0
    %3489 = vmatprep.subr.mxu0 0.0
    %3490 = vmatpush1.msra.mxu0 0.0
    %3491 = vmatprep.subr.mxu0 0.0
    %3492 = vmatpush1.msra.mxu0 0.0
    %3493 = vmatprep.subr.mxu0 0.0
    %3494 = vmatpush1.msra.mxu0 0.0
    %3495 = vmatprep.subr.mxu0 0.0
    %3496 = vmatpush1.msra.mxu0 0.0
    %3497 = vmatprep.subr.mxu0 0.0
    %3498 = vmatpush1.msra.mxu0 0.0
    %3499 = vmatprep.subr.mxu0 0.0
    %3500 = vmatpush1.msra.mxu0 0.0
    %3501 = vmatprep.subr.mxu0 0.0
    %3502 = vmatpush1.msra.mxu0 0.0
    %3503 = vmatprep.subr.mxu0 0.0
    %3504 = vmatpush1.msra.mxu0 %v2897
    %3505 = vmatprep.subr.mxu0 0.0
    %3506 = vmatpush2.msra.mxu0 0.0
    %3507 = vmatprep.subr.mxu0 0.0
    %3508 = vmatpush2.msra.mxu0 0.0
    %3509 = vmatprep.subr.mxu0 0.0
    %3510 = vmatpush2.msra.mxu0 0.0
    %3511 = vmatprep.subr.mxu0 0.0
    %3512 = vmatpush2.msra.mxu0 0.0
    %3513 = vmatprep.subr.mxu0 0.0
    %3514 = vmatpush2.msra.mxu0 0.0
    %3515 = vmatprep.subr.mxu0 0.0
    %3516 = vmatpush2.msra.mxu0 0.0
    %3517 = vmatprep.subr.mxu0 0.0
    %3518 = vmatpush2.msra.mxu0 0.0
    %3519 = vmatprep.subr.mxu0 0.0
    %3520 = vmatpush2.msra.mxu0 0.0
    %3521 = vmatprep.subr.mxu0 0.0
    %3522 = vmatpush2.msra.mxu0 0.0
    %3523 = vmatprep.subr.mxu0 0.0
    %3524 = vmatpush2.msra.mxu0 0.0
    %3525 = vmatprep.subr.mxu0 0.0
    %3526 = vmatpush2.msra.mxu0 0.0
    %3527 = vmatprep.subr.mxu0 0.0
    %3528 = vmatpush2.msra.mxu0 0.0
    %3529 = vmatprep.subr.mxu0 0.0
    %3530 = vmatpush2.msra.mxu0 0.0
    %3531 = vmatprep.subr.mxu0 0.0
    %3532 = vmatpush2.msra.mxu0 0.0
    %3533 = vmatprep.subr.mxu0 0.0
    %3534 = vmatpush2.msra.mxu0 0.0
    %3535 = vmatprep.subr.mxu0 0.0
    %3536 = vmatpush2.msra.mxu0 0.0
    %3537 = vmatprep.mubr.f32.mxu0 0.0
    %3538 = vmatmul.mubr.f32.gmra.mxu0 %v3471
    %v3539 = vpop.f32.mrf.mxu0
    %v3540 = vadd.f32 0.0, %v3539
    %v3541 = vpop.f32.mrf.mxu0
    %3542 = vdwg.mxu0
    %3543 = vrot.lane.b32.xlu0 %v2991, 88
    %v3544 = vpop.permute.xlu0 %3543
    %3545 = vrot.lane.b32.xlu0 %v2992, 88
    %v3546 = vpop.permute.xlu0 %3545
    %3547 = vrot.lane.b32.xlu0 %v2993, 88
    %v3548 = vpop.permute.xlu0 %3547
    %3549 = vrot.lane.b32.xlu0 %v2994, 88
    %v3550 = vpop.permute.xlu0 %3549
    %3551 = vrot.lane.b32.xlu0 %v2995, 88
    %v3552 = vpop.permute.xlu0 %3551
    %3553 = vrot.lane.b32.xlu0 %v2996, 88
    %v3554 = vpop.permute.xlu0 %3553
    %v3561 = vsel %vm77, %v3544, -1e+30
    %v3562 = vsel %vm78, %v3546, -1e+30
    %v3563 = vsel %vm79, %v3548, -1e+30
    %v3564 = vsel %vm80, %v3550, -1e+30
    %v3565 = vsel %vm81, %v3552, -1e+30
    %v3566 = vsel %vm82, %v3554, -1e+30
    %v3567 = vsel %vm437, %v3561, -inf
    %3568 = vmax.xlane.f32.xlu0 %v3567
    %v3569 = vpop.xlane.xlu0 %3568
    %v3570 = vsel %vm437, %v3562, -inf
    %3571 = vmax.xlane.f32.xlu0 %v3570
    %v3572 = vpop.xlane.xlu0 %3571
    %v3573 = vsel %vm437, %v3563, -inf
    %3574 = vmax.xlane.f32.xlu0 %v3573
    %v3575 = vpop.xlane.xlu0 %3574
    %v3576 = vsel %vm437, %v3564, -inf
    %3577 = vmax.xlane.f32.xlu0 %v3576
    %v3578 = vpop.xlane.xlu0 %3577
    %v3579 = vsel %vm437, %v3565, -inf
    %3580 = vmax.xlane.f32.xlu0 %v3579
    %v3581 = vpop.xlane.xlu0 %3580
    %v3582 = vsel %vm437, %v3566, -inf
    %3583 = vmax.xlane.f32.xlu0 %v3582
    %v3584 = vpop.xlane.xlu0 %3583
    %v3585 = vsub.f32 %v3561, %v3569
    %v3586 = vsub.f32 %v3562, %v3572
    %v3587 = vsub.f32 %v3563, %v3575
    %v3588 = vsub.f32 %v3564, %v3578
    %v3589 = vsub.f32 %v3565, %v3581
    %v3590 = vsub.f32 %v3566, %v3584
    %v3591 = vmul.f32 %v3585, 1.442695
    %v3592 = vpow.pop %v3591
    %v3593 = vmul.f32 %v3586, 1.442695
    %v3594 = vpow.pop %v3593
    %v3595 = vmul.f32 %v3587, 1.442695
    %v3596 = vpow.pop %v3595
    %v3597 = vmul.f32 %v3588, 1.442695
    %v3598 = vpow.pop %v3597
    %v3599 = vmul.f32 %v3589, 1.442695
    %v3600 = vpow.pop %v3599
    %v3601 = vmul.f32 %v3590, 1.442695
    %v3602 = vpow.pop %v3601
    %v3603 = vsel %vm77, %v3592, 0.0
    %v3604 = vsel %vm78, %v3594, 0.0
    %v3605 = vsel %vm79, %v3596, 0.0
    %v3606 = vsel %vm80, %v3598, 0.0
    %v3607 = vsel %vm81, %v3600, 0.0
    %v3608 = vsel %vm82, %v3602, 0.0
    %v3609 = vsel %vm437, %v3603, 0.0
    %3610 = vadd.xlane.f32.xlu0 %v3609
    %v3611 = vpop.xlane.xlu0 %3610
    %v3612 = vsel %vm437, %v3604, 0.0
    %3613 = vadd.xlane.f32.xlu0 %v3612
    %v3614 = vpop.xlane.xlu0 %3613
    %v3615 = vsel %vm437, %v3605, 0.0
    %3616 = vadd.xlane.f32.xlu0 %v3615
    %v3617 = vpop.xlane.xlu0 %3616
    %v3618 = vsel %vm437, %v3606, 0.0
    %3619 = vadd.xlane.f32.xlu0 %v3618
    %v3620 = vpop.xlane.xlu0 %3619
    %v3621 = vsel %vm437, %v3607, 0.0
    %3622 = vadd.xlane.f32.xlu0 %v3621
    %v3623 = vpop.xlane.xlu0 %3622
    %v3624 = vsel %vm437, %v3608, 0.0
    %3625 = vadd.xlane.f32.xlu0 %v3624
    %v3626 = vpop.xlane.xlu0 %3625
    %v3627 = vmax.f32 %v3611, 1e-30
    %v3628 = vmax.f32 %v3614, 1e-30
    %v3629 = vmax.f32 %v3617, 1e-30
    %v3630 = vmax.f32 %v3620, 1e-30
    %v3631 = vmax.f32 %v3623, 1e-30
    %v3632 = vmax.f32 %v3626, 1e-30
    %v3633 = vrcp.pop %v3627
    %v3634 = vmul.f32 %v3603, %v3633
    %v3635 = vrcp.pop %v3628
    %v3636 = vmul.f32 %v3604, %v3635
    %v3637 = vrcp.pop %v3629
    %v3638 = vmul.f32 %v3605, %v3637
    %v3639 = vrcp.pop %v3630
    %v3640 = vmul.f32 %v3606, %v3639
    %v3641 = vrcp.pop %v3631
    %v3642 = vmul.f32 %v3607, %v3641
    %v3643 = vrcp.pop %v3632
    %v3644 = vmul.f32 %v3608, %v3643
    %3646 = vrot.lane.b32.xlu0 %v2867, 96
    %v3647 = vpop.permute.xlu0 %3646
    %v3650 = vsel %vm437, %v3634, 0
    %3652 = vmatprep.subr.mxu0 0.0
    %3653 = vmatpush1.msra.mxu0 0.0
    %3654 = vmatprep.subr.mxu0 0.0
    %3655 = vmatpush1.msra.mxu0 0.0
    %3656 = vmatprep.subr.mxu0 0.0
    %3657 = vmatpush1.msra.mxu0 0.0
    %3658 = vmatprep.subr.mxu0 0.0
    %3659 = vmatpush1.msra.mxu0 0.0
    %3660 = vmatprep.subr.mxu0 0.0
    %3661 = vmatpush1.msra.mxu0 0.0
    %3662 = vmatprep.subr.mxu0 0.0
    %3663 = vmatpush1.msra.mxu0 0.0
    %3664 = vmatprep.subr.mxu0 0.0
    %3665 = vmatpush1.msra.mxu0 0.0
    %3666 = vmatprep.subr.mxu0 0.0
    %3667 = vmatpush1.msra.mxu0 0.0
    %3668 = vmatprep.subr.mxu0 0.0
    %3669 = vmatpush1.msra.mxu0 0.0
    %3670 = vmatprep.subr.mxu0 0.0
    %3671 = vmatpush1.msra.mxu0 0.0
    %3672 = vmatprep.subr.mxu0 0.0
    %3673 = vmatpush1.msra.mxu0 0.0
    %3674 = vmatprep.subr.mxu0 0.0
    %3675 = vmatpush1.msra.mxu0 0.0
    %3676 = vmatprep.subr.mxu0 0.0
    %3677 = vmatpush1.msra.mxu0 0.0
    %3678 = vmatprep.subr.mxu0 0.0
    %3679 = vmatpush1.msra.mxu0 0.0
    %3680 = vmatprep.subr.mxu0 0.0
    %3681 = vmatpush1.msra.mxu0 0.0
    %3682 = vmatprep.subr.mxu0 0.0
    %3683 = vmatpush1.msra.mxu0 %v3647
    %3684 = vmatprep.subr.mxu0 0.0
    %3685 = vmatpush2.msra.mxu0 0.0
    %3686 = vmatprep.subr.mxu0 0.0
    %3687 = vmatpush2.msra.mxu0 0.0
    %3688 = vmatprep.subr.mxu0 0.0
    %3689 = vmatpush2.msra.mxu0 0.0
    %3690 = vmatprep.subr.mxu0 0.0
    %3691 = vmatpush2.msra.mxu0 0.0
    %3692 = vmatprep.subr.mxu0 0.0
    %3693 = vmatpush2.msra.mxu0 0.0
    %3694 = vmatprep.subr.mxu0 0.0
    %3695 = vmatpush2.msra.mxu0 0.0
    %3696 = vmatprep.subr.mxu0 0.0
    %3697 = vmatpush2.msra.mxu0 0.0
    %3698 = vmatprep.subr.mxu0 0.0
    %3699 = vmatpush2.msra.mxu0 0.0
    %3700 = vmatprep.subr.mxu0 0.0
    %3701 = vmatpush2.msra.mxu0 0.0
    %3702 = vmatprep.subr.mxu0 0.0
    %3703 = vmatpush2.msra.mxu0 0.0
    %3704 = vmatprep.subr.mxu0 0.0
    %3705 = vmatpush2.msra.mxu0 0.0
    %3706 = vmatprep.subr.mxu0 0.0
    %3707 = vmatpush2.msra.mxu0 0.0
    %3708 = vmatprep.subr.mxu0 0.0
    %3709 = vmatpush2.msra.mxu0 0.0
    %3710 = vmatprep.subr.mxu0 0.0
    %3711 = vmatpush2.msra.mxu0 0.0
    %3712 = vmatprep.subr.mxu0 0.0
    %3713 = vmatpush2.msra.mxu0 0.0
    %3714 = vmatprep.subr.mxu0 0.0
    %3715 = vmatpush2.msra.mxu0 0.0
    %3716 = vmatprep.mubr.f32.mxu0 0.0
    %3717 = vmatmul.mubr.f32.gmra.mxu0 %v3650
    %v3718 = vpop.f32.mrf.mxu0
    %v3719 = vadd.f32 0.0, %v3718
    %v3720 = vpop.f32.mrf.mxu0
    %3721 = vdwg.mxu0
    %3723 = vrot.lane.b32.xlu0 %v2873, 96
    %v3724 = vpop.permute.xlu0 %3723
    %v3727 = vsel %vm437, %v3636, 0
    %3729 = vmatprep.subr.mxu0 0.0
    %3730 = vmatpush1.msra.mxu0 0.0
    %3731 = vmatprep.subr.mxu0 0.0
    %3732 = vmatpush1.msra.mxu0 0.0
    %3733 = vmatprep.subr.mxu0 0.0
    %3734 = vmatpush1.msra.mxu0 0.0
    %3735 = vmatprep.subr.mxu0 0.0
    %3736 = vmatpush1.msra.mxu0 0.0
    %3737 = vmatprep.subr.mxu0 0.0
    %3738 = vmatpush1.msra.mxu0 0.0
    %3739 = vmatprep.subr.mxu0 0.0
    %3740 = vmatpush1.msra.mxu0 0.0
    %3741 = vmatprep.subr.mxu0 0.0
    %3742 = vmatpush1.msra.mxu0 0.0
    %3743 = vmatprep.subr.mxu0 0.0
    %3744 = vmatpush1.msra.mxu0 0.0
    %3745 = vmatprep.subr.mxu0 0.0
    %3746 = vmatpush1.msra.mxu0 0.0
    %3747 = vmatprep.subr.mxu0 0.0
    %3748 = vmatpush1.msra.mxu0 0.0
    %3749 = vmatprep.subr.mxu0 0.0
    %3750 = vmatpush1.msra.mxu0 0.0
    %3751 = vmatprep.subr.mxu0 0.0
    %3752 = vmatpush1.msra.mxu0 0.0
    %3753 = vmatprep.subr.mxu0 0.0
    %3754 = vmatpush1.msra.mxu0 0.0
    %3755 = vmatprep.subr.mxu0 0.0
    %3756 = vmatpush1.msra.mxu0 0.0
    %3757 = vmatprep.subr.mxu0 0.0
    %3758 = vmatpush1.msra.mxu0 0.0
    %3759 = vmatprep.subr.mxu0 0.0
    %3760 = vmatpush1.msra.mxu0 %v3724
    %3761 = vmatprep.subr.mxu0 0.0
    %3762 = vmatpush2.msra.mxu0 0.0
    %3763 = vmatprep.subr.mxu0 0.0
    %3764 = vmatpush2.msra.mxu0 0.0
    %3765 = vmatprep.subr.mxu0 0.0
    %3766 = vmatpush2.msra.mxu0 0.0
    %3767 = vmatprep.subr.mxu0 0.0
    %3768 = vmatpush2.msra.mxu0 0.0
    %3769 = vmatprep.subr.mxu0 0.0
    %3770 = vmatpush2.msra.mxu0 0.0
    %3771 = vmatprep.subr.mxu0 0.0
    %3772 = vmatpush2.msra.mxu0 0.0
    %3773 = vmatprep.subr.mxu0 0.0
    %3774 = vmatpush2.msra.mxu0 0.0
    %3775 = vmatprep.subr.mxu0 0.0
    %3776 = vmatpush2.msra.mxu0 0.0
    %3777 = vmatprep.subr.mxu0 0.0
    %3778 = vmatpush2.msra.mxu0 0.0
    %3779 = vmatprep.subr.mxu0 0.0
    %3780 = vmatpush2.msra.mxu0 0.0
    %3781 = vmatprep.subr.mxu0 0.0
    %3782 = vmatpush2.msra.mxu0 0.0
    %3783 = vmatprep.subr.mxu0 0.0
    %3784 = vmatpush2.msra.mxu0 0.0
    %3785 = vmatprep.subr.mxu0 0.0
    %3786 = vmatpush2.msra.mxu0 0.0
    %3787 = vmatprep.subr.mxu0 0.0
    %3788 = vmatpush2.msra.mxu0 0.0
    %3789 = vmatprep.subr.mxu0 0.0
    %3790 = vmatpush2.msra.mxu0 0.0
    %3791 = vmatprep.subr.mxu0 0.0
    %3792 = vmatpush2.msra.mxu0 0.0
    %3793 = vmatprep.mubr.f32.mxu0 0.0
    %3794 = vmatmul.mubr.f32.gmra.mxu0 %v3727
    %v3795 = vpop.f32.mrf.mxu0
    %v3796 = vadd.f32 0.0, %v3795
    %v3797 = vpop.f32.mrf.mxu0
    %3798 = vdwg.mxu0
    %3800 = vrot.lane.b32.xlu0 %v2879, 96
    %v3801 = vpop.permute.xlu0 %3800
    %v3804 = vsel %vm437, %v3638, 0
    %3806 = vmatprep.subr.mxu0 0.0
    %3807 = vmatpush1.msra.mxu0 0.0
    %3808 = vmatprep.subr.mxu0 0.0
    %3809 = vmatpush1.msra.mxu0 0.0
    %3810 = vmatprep.subr.mxu0 0.0
    %3811 = vmatpush1.msra.mxu0 0.0
    %3812 = vmatprep.subr.mxu0 0.0
    %3813 = vmatpush1.msra.mxu0 0.0
    %3814 = vmatprep.subr.mxu0 0.0
    %3815 = vmatpush1.msra.mxu0 0.0
    %3816 = vmatprep.subr.mxu0 0.0
    %3817 = vmatpush1.msra.mxu0 0.0
    %3818 = vmatprep.subr.mxu0 0.0
    %3819 = vmatpush1.msra.mxu0 0.0
    %3820 = vmatprep.subr.mxu0 0.0
    %3821 = vmatpush1.msra.mxu0 0.0
    %3822 = vmatprep.subr.mxu0 0.0
    %3823 = vmatpush1.msra.mxu0 0.0
    %3824 = vmatprep.subr.mxu0 0.0
    %3825 = vmatpush1.msra.mxu0 0.0
    %3826 = vmatprep.subr.mxu0 0.0
    %3827 = vmatpush1.msra.mxu0 0.0
    %3828 = vmatprep.subr.mxu0 0.0
    %3829 = vmatpush1.msra.mxu0 0.0
    %3830 = vmatprep.subr.mxu0 0.0
    %3831 = vmatpush1.msra.mxu0 0.0
    %3832 = vmatprep.subr.mxu0 0.0
    %3833 = vmatpush1.msra.mxu0 0.0
    %3834 = vmatprep.subr.mxu0 0.0
    %3835 = vmatpush1.msra.mxu0 0.0
    %3836 = vmatprep.subr.mxu0 0.0
    %3837 = vmatpush1.msra.mxu0 %v3801
    %3838 = vmatprep.subr.mxu0 0.0
    %3839 = vmatpush2.msra.mxu0 0.0
    %3840 = vmatprep.subr.mxu0 0.0
    %3841 = vmatpush2.msra.mxu0 0.0
    %3842 = vmatprep.subr.mxu0 0.0
    %3843 = vmatpush2.msra.mxu0 0.0
    %3844 = vmatprep.subr.mxu0 0.0
    %3845 = vmatpush2.msra.mxu0 0.0
    %3846 = vmatprep.subr.mxu0 0.0
    %3847 = vmatpush2.msra.mxu0 0.0
    %3848 = vmatprep.subr.mxu0 0.0
    %3849 = vmatpush2.msra.mxu0 0.0
    %3850 = vmatprep.subr.mxu0 0.0
    %3851 = vmatpush2.msra.mxu0 0.0
    %3852 = vmatprep.subr.mxu0 0.0
    %3853 = vmatpush2.msra.mxu0 0.0
    %3854 = vmatprep.subr.mxu0 0.0
    %3855 = vmatpush2.msra.mxu0 0.0
    %3856 = vmatprep.subr.mxu0 0.0
    %3857 = vmatpush2.msra.mxu0 0.0
    %3858 = vmatprep.subr.mxu0 0.0
    %3859 = vmatpush2.msra.mxu0 0.0
    %3860 = vmatprep.subr.mxu0 0.0
    %3861 = vmatpush2.msra.mxu0 0.0
    %3862 = vmatprep.subr.mxu0 0.0
    %3863 = vmatpush2.msra.mxu0 0.0
    %3864 = vmatprep.subr.mxu0 0.0
    %3865 = vmatpush2.msra.mxu0 0.0
    %3866 = vmatprep.subr.mxu0 0.0
    %3867 = vmatpush2.msra.mxu0 0.0
    %3868 = vmatprep.subr.mxu0 0.0
    %3869 = vmatpush2.msra.mxu0 0.0
    %3870 = vmatprep.mubr.f32.mxu0 0.0
    %3871 = vmatmul.mubr.f32.gmra.mxu0 %v3804
    %v3872 = vpop.f32.mrf.mxu0
    %v3873 = vadd.f32 0.0, %v3872
    %v3874 = vpop.f32.mrf.mxu0
    %3875 = vdwg.mxu0
    %3877 = vrot.lane.b32.xlu0 %v2885, 96
    %v3878 = vpop.permute.xlu0 %3877
    %v3881 = vsel %vm437, %v3640, 0
    %3883 = vmatprep.subr.mxu0 0.0
    %3884 = vmatpush1.msra.mxu0 0.0
    %3885 = vmatprep.subr.mxu0 0.0
    %3886 = vmatpush1.msra.mxu0 0.0
    %3887 = vmatprep.subr.mxu0 0.0
    %3888 = vmatpush1.msra.mxu0 0.0
    %3889 = vmatprep.subr.mxu0 0.0
    %3890 = vmatpush1.msra.mxu0 0.0
    %3891 = vmatprep.subr.mxu0 0.0
    %3892 = vmatpush1.msra.mxu0 0.0
    %3893 = vmatprep.subr.mxu0 0.0
    %3894 = vmatpush1.msra.mxu0 0.0
    %3895 = vmatprep.subr.mxu0 0.0
    %3896 = vmatpush1.msra.mxu0 0.0
    %3897 = vmatprep.subr.mxu0 0.0
    %3898 = vmatpush1.msra.mxu0 0.0
    %3899 = vmatprep.subr.mxu0 0.0
    %3900 = vmatpush1.msra.mxu0 0.0
    %3901 = vmatprep.subr.mxu0 0.0
    %3902 = vmatpush1.msra.mxu0 0.0
    %3903 = vmatprep.subr.mxu0 0.0
    %3904 = vmatpush1.msra.mxu0 0.0
    %3905 = vmatprep.subr.mxu0 0.0
    %3906 = vmatpush1.msra.mxu0 0.0
    %3907 = vmatprep.subr.mxu0 0.0
    %3908 = vmatpush1.msra.mxu0 0.0
    %3909 = vmatprep.subr.mxu0 0.0
    %3910 = vmatpush1.msra.mxu0 0.0
    %3911 = vmatprep.subr.mxu0 0.0
    %3912 = vmatpush1.msra.mxu0 0.0
    %3913 = vmatprep.subr.mxu0 0.0
    %3914 = vmatpush1.msra.mxu0 %v3878
    %3915 = vmatprep.subr.mxu0 0.0
    %3916 = vmatpush2.msra.mxu0 0.0
    %3917 = vmatprep.subr.mxu0 0.0
    %3918 = vmatpush2.msra.mxu0 0.0
    %3919 = vmatprep.subr.mxu0 0.0
    %3920 = vmatpush2.msra.mxu0 0.0
    %3921 = vmatprep.subr.mxu0 0.0
    %3922 = vmatpush2.msra.mxu0 0.0
    %3923 = vmatprep.subr.mxu0 0.0
    %3924 = vmatpush2.msra.mxu0 0.0
    %3925 = vmatprep.subr.mxu0 0.0
    %3926 = vmatpush2.msra.mxu0 0.0
    %3927 = vmatprep.subr.mxu0 0.0
    %3928 = vmatpush2.msra.mxu0 0.0
    %3929 = vmatprep.subr.mxu0 0.0
    %3930 = vmatpush2.msra.mxu0 0.0
    %3931 = vmatprep.subr.mxu0 0.0
    %3932 = vmatpush2.msra.mxu0 0.0
    %3933 = vmatprep.subr.mxu0 0.0
    %3934 = vmatpush2.msra.mxu0 0.0
    %3935 = vmatprep.subr.mxu0 0.0
    %3936 = vmatpush2.msra.mxu0 0.0
    %3937 = vmatprep.subr.mxu0 0.0
    %3938 = vmatpush2.msra.mxu0 0.0
    %3939 = vmatprep.subr.mxu0 0.0
    %3940 = vmatpush2.msra.mxu0 0.0
    %3941 = vmatprep.subr.mxu0 0.0
    %3942 = vmatpush2.msra.mxu0 0.0
    %3943 = vmatprep.subr.mxu0 0.0
    %3944 = vmatpush2.msra.mxu0 0.0
    %3945 = vmatprep.subr.mxu0 0.0
    %3946 = vmatpush2.msra.mxu0 0.0
    %3947 = vmatprep.mubr.f32.mxu0 0.0
    %3948 = vmatmul.mubr.f32.gmra.mxu0 %v3881
    %v3949 = vpop.f32.mrf.mxu0
    %v3950 = vadd.f32 0.0, %v3949
    %v3951 = vpop.f32.mrf.mxu0
    %3952 = vdwg.mxu0
    %3954 = vrot.lane.b32.xlu0 %v2891, 96
    %v3955 = vpop.permute.xlu0 %3954
    %v3958 = vsel %vm437, %v3642, 0
    %3960 = vmatprep.subr.mxu0 0.0
    %3961 = vmatpush1.msra.mxu0 0.0
    %3962 = vmatprep.subr.mxu0 0.0
    %3963 = vmatpush1.msra.mxu0 0.0
    %3964 = vmatprep.subr.mxu0 0.0
    %3965 = vmatpush1.msra.mxu0 0.0
    %3966 = vmatprep.subr.mxu0 0.0
    %3967 = vmatpush1.msra.mxu0 0.0
    %3968 = vmatprep.subr.mxu0 0.0
    %3969 = vmatpush1.msra.mxu0 0.0
    %3970 = vmatprep.subr.mxu0 0.0
    %3971 = vmatpush1.msra.mxu0 0.0
    %3972 = vmatprep.subr.mxu0 0.0
    %3973 = vmatpush1.msra.mxu0 0.0
    %3974 = vmatprep.subr.mxu0 0.0
    %3975 = vmatpush1.msra.mxu0 0.0
    %3976 = vmatprep.subr.mxu0 0.0
    %3977 = vmatpush1.msra.mxu0 0.0
    %3978 = vmatprep.subr.mxu0 0.0
    %3979 = vmatpush1.msra.mxu0 0.0
    %3980 = vmatprep.subr.mxu0 0.0
    %3981 = vmatpush1.msra.mxu0 0.0
    %3982 = vmatprep.subr.mxu0 0.0
    %3983 = vmatpush1.msra.mxu0 0.0
    %3984 = vmatprep.subr.mxu0 0.0
    %3985 = vmatpush1.msra.mxu0 0.0
    %3986 = vmatprep.subr.mxu0 0.0
    %3987 = vmatpush1.msra.mxu0 0.0
    %3988 = vmatprep.subr.mxu0 0.0
    %3989 = vmatpush1.msra.mxu0 0.0
    %3990 = vmatprep.subr.mxu0 0.0
    %3991 = vmatpush1.msra.mxu0 %v3955
    %3992 = vmatprep.subr.mxu0 0.0
    %3993 = vmatpush2.msra.mxu0 0.0
    %3994 = vmatprep.subr.mxu0 0.0
    %3995 = vmatpush2.msra.mxu0 0.0
    %3996 = vmatprep.subr.mxu0 0.0
    %3997 = vmatpush2.msra.mxu0 0.0
    %3998 = vmatprep.subr.mxu0 0.0
    %3999 = vmatpush2.msra.mxu0 0.0
    %4000 = vmatprep.subr.mxu0 0.0
    %4001 = vmatpush2.msra.mxu0 0.0
    %4002 = vmatprep.subr.mxu0 0.0
    %4003 = vmatpush2.msra.mxu0 0.0
    %4004 = vmatprep.subr.mxu0 0.0
    %4005 = vmatpush2.msra.mxu0 0.0
    %4006 = vmatprep.subr.mxu0 0.0
    %4007 = vmatpush2.msra.mxu0 0.0
    %4008 = vmatprep.subr.mxu0 0.0
    %4009 = vmatpush2.msra.mxu0 0.0
    %4010 = vmatprep.subr.mxu0 0.0
    %4011 = vmatpush2.msra.mxu0 0.0
    %4012 = vmatprep.subr.mxu0 0.0
    %4013 = vmatpush2.msra.mxu0 0.0
    %4014 = vmatprep.subr.mxu0 0.0
    %4015 = vmatpush2.msra.mxu0 0.0
    %4016 = vmatprep.subr.mxu0 0.0
    %4017 = vmatpush2.msra.mxu0 0.0
    %4018 = vmatprep.subr.mxu0 0.0
    %4019 = vmatpush2.msra.mxu0 0.0
    %4020 = vmatprep.subr.mxu0 0.0
    %4021 = vmatpush2.msra.mxu0 0.0
    %4022 = vmatprep.subr.mxu0 0.0
    %4023 = vmatpush2.msra.mxu0 0.0
    %4024 = vmatprep.mubr.f32.mxu0 0.0
    %4025 = vmatmul.mubr.f32.gmra.mxu0 %v3958
    %v4026 = vpop.f32.mrf.mxu0
    %v4027 = vadd.f32 0.0, %v4026
    %v4028 = vpop.f32.mrf.mxu0
    %4029 = vdwg.mxu0
    %4031 = vrot.lane.b32.xlu0 %v2897, 96
    %v4032 = vpop.permute.xlu0 %4031
    %v4035 = vsel %vm437, %v3644, 0
    %4037 = vmatprep.subr.mxu0 0.0
    %4038 = vmatpush1.msra.mxu0 0.0
    %4039 = vmatprep.subr.mxu0 0.0
    %4040 = vmatpush1.msra.mxu0 0.0
    %4041 = vmatprep.subr.mxu0 0.0
    %4042 = vmatpush1.msra.mxu0 0.0
    %4043 = vmatprep.subr.mxu0 0.0
    %4044 = vmatpush1.msra.mxu0 0.0
    %4045 = vmatprep.subr.mxu0 0.0
    %4046 = vmatpush1.msra.mxu0 0.0
    %4047 = vmatprep.subr.mxu0 0.0
    %4048 = vmatpush1.msra.mxu0 0.0
    %4049 = vmatprep.subr.mxu0 0.0
    %4050 = vmatpush1.msra.mxu0 0.0
    %4051 = vmatprep.subr.mxu0 0.0
    %4052 = vmatpush1.msra.mxu0 0.0
    %4053 = vmatprep.subr.mxu0 0.0
    %4054 = vmatpush1.msra.mxu0 0.0
    %4055 = vmatprep.subr.mxu0 0.0
    %4056 = vmatpush1.msra.mxu0 0.0
    %4057 = vmatprep.subr.mxu0 0.0
    %4058 = vmatpush1.msra.mxu0 0.0
    %4059 = vmatprep.subr.mxu0 0.0
    %4060 = vmatpush1.msra.mxu0 0.0
    %4061 = vmatprep.subr.mxu0 0.0
    %4062 = vmatpush1.msra.mxu0 0.0
    %4063 = vmatprep.subr.mxu0 0.0
    %4064 = vmatpush1.msra.mxu0 0.0
    %4065 = vmatprep.subr.mxu0 0.0
    %4066 = vmatpush1.msra.mxu0 0.0
    %4067 = vmatprep.subr.mxu0 0.0
    %4068 = vmatpush1.msra.mxu0 %v4032
    %4069 = vmatprep.subr.mxu0 0.0
    %4070 = vmatpush2.msra.mxu0 0.0
    %4071 = vmatprep.subr.mxu0 0.0
    %4072 = vmatpush2.msra.mxu0 0.0
    %4073 = vmatprep.subr.mxu0 0.0
    %4074 = vmatpush2.msra.mxu0 0.0
    %4075 = vmatprep.subr.mxu0 0.0
    %4076 = vmatpush2.msra.mxu0 0.0
    %4077 = vmatprep.subr.mxu0 0.0
    %4078 = vmatpush2.msra.mxu0 0.0
    %4079 = vmatprep.subr.mxu0 0.0
    %4080 = vmatpush2.msra.mxu0 0.0
    %4081 = vmatprep.subr.mxu0 0.0
    %4082 = vmatpush2.msra.mxu0 0.0
    %4083 = vmatprep.subr.mxu0 0.0
    %4084 = vmatpush2.msra.mxu0 0.0
    %4085 = vmatprep.subr.mxu0 0.0
    %4086 = vmatpush2.msra.mxu0 0.0
    %4087 = vmatprep.subr.mxu0 0.0
    %4088 = vmatpush2.msra.mxu0 0.0
    %4089 = vmatprep.subr.mxu0 0.0
    %4090 = vmatpush2.msra.mxu0 0.0
    %4091 = vmatprep.subr.mxu0 0.0
    %4092 = vmatpush2.msra.mxu0 0.0
    %4093 = vmatprep.subr.mxu0 0.0
    %4094 = vmatpush2.msra.mxu0 0.0
    %4095 = vmatprep.subr.mxu0 0.0
    %4096 = vmatpush2.msra.mxu0 0.0
    %4097 = vmatprep.subr.mxu0 0.0
    %4098 = vmatpush2.msra.mxu0 0.0
    %4099 = vmatprep.subr.mxu0 0.0
    %4100 = vmatpush2.msra.mxu0 0.0
    %4101 = vmatprep.mubr.f32.mxu0 0.0
    %4102 = vmatmul.mubr.f32.gmra.mxu0 %v4035
    %v4103 = vpop.f32.mrf.mxu0
    %v4104 = vadd.f32 0.0, %v4103
    %v4105 = vpop.f32.mrf.mxu0
    %4106 = vdwg.mxu0
    %4107 = vrot.lane.b32.xlu0 %v2991, 80
    %v4108 = vpop.permute.xlu0 %4107
    %4109 = vrot.lane.b32.xlu0 %v2992, 80
    %v4110 = vpop.permute.xlu0 %4109
    %4111 = vrot.lane.b32.xlu0 %v2993, 80
    %v4112 = vpop.permute.xlu0 %4111
    %4113 = vrot.lane.b32.xlu0 %v2994, 80
    %v4114 = vpop.permute.xlu0 %4113
    %4115 = vrot.lane.b32.xlu0 %v2995, 80
    %v4116 = vpop.permute.xlu0 %4115
    %4117 = vrot.lane.b32.xlu0 %v2996, 80
    %v4118 = vpop.permute.xlu0 %4117
    %v4125 = vsel %vm77, %v4108, -1e+30
    %v4126 = vsel %vm78, %v4110, -1e+30
    %v4127 = vsel %vm79, %v4112, -1e+30
    %v4128 = vsel %vm80, %v4114, -1e+30
    %v4129 = vsel %vm81, %v4116, -1e+30
    %v4130 = vsel %vm82, %v4118, -1e+30
    %v4131 = vsel %vm437, %v4125, -inf
    %4132 = vmax.xlane.f32.xlu0 %v4131
    %v4133 = vpop.xlane.xlu0 %4132
    %v4134 = vsel %vm437, %v4126, -inf
    %4135 = vmax.xlane.f32.xlu0 %v4134
    %v4136 = vpop.xlane.xlu0 %4135
    %v4137 = vsel %vm437, %v4127, -inf
    %4138 = vmax.xlane.f32.xlu0 %v4137
    %v4139 = vpop.xlane.xlu0 %4138
    %v4140 = vsel %vm437, %v4128, -inf
    %4141 = vmax.xlane.f32.xlu0 %v4140
    %v4142 = vpop.xlane.xlu0 %4141
    %v4143 = vsel %vm437, %v4129, -inf
    %4144 = vmax.xlane.f32.xlu0 %v4143
    %v4145 = vpop.xlane.xlu0 %4144
    %v4146 = vsel %vm437, %v4130, -inf
    %4147 = vmax.xlane.f32.xlu0 %v4146
    %v4148 = vpop.xlane.xlu0 %4147
    %v4149 = vsub.f32 %v4125, %v4133
    %v4150 = vsub.f32 %v4126, %v4136
    %v4151 = vsub.f32 %v4127, %v4139
    %v4152 = vsub.f32 %v4128, %v4142
    %v4153 = vsub.f32 %v4129, %v4145
    %v4154 = vsub.f32 %v4130, %v4148
    %v4155 = vmul.f32 %v4149, 1.442695
    %v4156 = vpow.pop %v4155
    %v4157 = vmul.f32 %v4150, 1.442695
    %v4158 = vpow.pop %v4157
    %v4159 = vmul.f32 %v4151, 1.442695
    %v4160 = vpow.pop %v4159
    %v4161 = vmul.f32 %v4152, 1.442695
    %v4162 = vpow.pop %v4161
    %v4163 = vmul.f32 %v4153, 1.442695
    %v4164 = vpow.pop %v4163
    %v4165 = vmul.f32 %v4154, 1.442695
    %v4166 = vpow.pop %v4165
    %v4167 = vsel %vm77, %v4156, 0.0
    %v4168 = vsel %vm78, %v4158, 0.0
    %v4169 = vsel %vm79, %v4160, 0.0
    %v4170 = vsel %vm80, %v4162, 0.0
    %v4171 = vsel %vm81, %v4164, 0.0
    %v4172 = vsel %vm82, %v4166, 0.0
    %v4173 = vsel %vm437, %v4167, 0.0
    %4174 = vadd.xlane.f32.xlu0 %v4173
    %v4175 = vpop.xlane.xlu0 %4174
    %v4176 = vsel %vm437, %v4168, 0.0
    %4177 = vadd.xlane.f32.xlu0 %v4176
    %v4178 = vpop.xlane.xlu0 %4177
    %v4179 = vsel %vm437, %v4169, 0.0
    %4180 = vadd.xlane.f32.xlu0 %v4179
    %v4181 = vpop.xlane.xlu0 %4180
    %v4182 = vsel %vm437, %v4170, 0.0
    %4183 = vadd.xlane.f32.xlu0 %v4182
    %v4184 = vpop.xlane.xlu0 %4183
    %v4185 = vsel %vm437, %v4171, 0.0
    %4186 = vadd.xlane.f32.xlu0 %v4185
    %v4187 = vpop.xlane.xlu0 %4186
    %v4188 = vsel %vm437, %v4172, 0.0
    %4189 = vadd.xlane.f32.xlu0 %v4188
    %v4190 = vpop.xlane.xlu0 %4189
    %v4191 = vmax.f32 %v4175, 1e-30
    %v4192 = vmax.f32 %v4178, 1e-30
    %v4193 = vmax.f32 %v4181, 1e-30
    %v4194 = vmax.f32 %v4184, 1e-30
    %v4195 = vmax.f32 %v4187, 1e-30
    %v4196 = vmax.f32 %v4190, 1e-30
    %v4197 = vrcp.pop %v4191
    %v4198 = vmul.f32 %v4167, %v4197
    %v4199 = vrcp.pop %v4192
    %v4200 = vmul.f32 %v4168, %v4199
    %v4201 = vrcp.pop %v4193
    %v4202 = vmul.f32 %v4169, %v4201
    %v4203 = vrcp.pop %v4194
    %v4204 = vmul.f32 %v4170, %v4203
    %v4205 = vrcp.pop %v4195
    %v4206 = vmul.f32 %v4171, %v4205
    %v4207 = vrcp.pop %v4196
    %v4208 = vmul.f32 %v4172, %v4207
    %4209 = vrot.lane.b32.xlu0 %v2867, 64
    %v4210 = vpop.permute.xlu0 %4209
    %v4213 = vsel %vm437, %v4198, 0
    %4215 = vmatprep.subr.mxu0 0.0
    %4216 = vmatpush1.msra.mxu0 0.0
    %4217 = vmatprep.subr.mxu0 0.0
    %4218 = vmatpush1.msra.mxu0 0.0
    %4219 = vmatprep.subr.mxu0 0.0
    %4220 = vmatpush1.msra.mxu0 0.0
    %4221 = vmatprep.subr.mxu0 0.0
    %4222 = vmatpush1.msra.mxu0 0.0
    %4223 = vmatprep.subr.mxu0 0.0
    %4224 = vmatpush1.msra.mxu0 0.0
    %4225 = vmatprep.subr.mxu0 0.0
    %4226 = vmatpush1.msra.mxu0 0.0
    %4227 = vmatprep.subr.mxu0 0.0
    %4228 = vmatpush1.msra.mxu0 0.0
    %4229 = vmatprep.subr.mxu0 0.0
    %4230 = vmatpush1.msra.mxu0 0.0
    %4231 = vmatprep.subr.mxu0 0.0
    %4232 = vmatpush1.msra.mxu0 0.0
    %4233 = vmatprep.subr.mxu0 0.0
    %4234 = vmatpush1.msra.mxu0 0.0
    %4235 = vmatprep.subr.mxu0 0.0
    %4236 = vmatpush1.msra.mxu0 0.0
    %4237 = vmatprep.subr.mxu0 0.0
    %4238 = vmatpush1.msra.mxu0 0.0
    %4239 = vmatprep.subr.mxu0 0.0
    %4240 = vmatpush1.msra.mxu0 0.0
    %4241 = vmatprep.subr.mxu0 0.0
    %4242 = vmatpush1.msra.mxu0 0.0
    %4243 = vmatprep.subr.mxu0 0.0
    %4244 = vmatpush1.msra.mxu0 0.0
    %4245 = vmatprep.subr.mxu0 0.0
    %4246 = vmatpush1.msra.mxu0 %v4210
    %4247 = vmatprep.subr.mxu0 0.0
    %4248 = vmatpush2.msra.mxu0 0.0
    %4249 = vmatprep.subr.mxu0 0.0
    %4250 = vmatpush2.msra.mxu0 0.0
    %4251 = vmatprep.subr.mxu0 0.0
    %4252 = vmatpush2.msra.mxu0 0.0
    %4253 = vmatprep.subr.mxu0 0.0
    %4254 = vmatpush2.msra.mxu0 0.0
    %4255 = vmatprep.subr.mxu0 0.0
    %4256 = vmatpush2.msra.mxu0 0.0
    %4257 = vmatprep.subr.mxu0 0.0
    %4258 = vmatpush2.msra.mxu0 0.0
    %4259 = vmatprep.subr.mxu0 0.0
    %4260 = vmatpush2.msra.mxu0 0.0
    %4261 = vmatprep.subr.mxu0 0.0
    %4262 = vmatpush2.msra.mxu0 0.0
    %4263 = vmatprep.subr.mxu0 0.0
    %4264 = vmatpush2.msra.mxu0 0.0
    %4265 = vmatprep.subr.mxu0 0.0
    %4266 = vmatpush2.msra.mxu0 0.0
    %4267 = vmatprep.subr.mxu0 0.0
    %4268 = vmatpush2.msra.mxu0 0.0
    %4269 = vmatprep.subr.mxu0 0.0
    %4270 = vmatpush2.msra.mxu0 0.0
    %4271 = vmatprep.subr.mxu0 0.0
    %4272 = vmatpush2.msra.mxu0 0.0
    %4273 = vmatprep.subr.mxu0 0.0
    %4274 = vmatpush2.msra.mxu0 0.0
    %4275 = vmatprep.subr.mxu0 0.0
    %4276 = vmatpush2.msra.mxu0 0.0
    %4277 = vmatprep.subr.mxu0 0.0
    %4278 = vmatpush2.msra.mxu0 0.0
    %4279 = vmatprep.mubr.f32.mxu0 0.0
    %4280 = vmatmul.mubr.f32.gmra.mxu0 %v4213
    %v4281 = vpop.f32.mrf.mxu0
    %v4282 = vadd.f32 0.0, %v4281
    %v4283 = vpop.f32.mrf.mxu0
    %4284 = vdwg.mxu0
    %4285 = vrot.lane.b32.xlu0 %v2873, 64
    %v4286 = vpop.permute.xlu0 %4285
    %v4289 = vsel %vm437, %v4200, 0
    %4291 = vmatprep.subr.mxu0 0.0
    %4292 = vmatpush1.msra.mxu0 0.0
    %4293 = vmatprep.subr.mxu0 0.0
    %4294 = vmatpush1.msra.mxu0 0.0
    %4295 = vmatprep.subr.mxu0 0.0
    %4296 = vmatpush1.msra.mxu0 0.0
    %4297 = vmatprep.subr.mxu0 0.0
    %4298 = vmatpush1.msra.mxu0 0.0
    %4299 = vmatprep.subr.mxu0 0.0
    %4300 = vmatpush1.msra.mxu0 0.0
    %4301 = vmatprep.subr.mxu0 0.0
    %4302 = vmatpush1.msra.mxu0 0.0
    %4303 = vmatprep.subr.mxu0 0.0
    %4304 = vmatpush1.msra.mxu0 0.0
    %4305 = vmatprep.subr.mxu0 0.0
    %4306 = vmatpush1.msra.mxu0 0.0
    %4307 = vmatprep.subr.mxu0 0.0
    %4308 = vmatpush1.msra.mxu0 0.0
    %4309 = vmatprep.subr.mxu0 0.0
    %4310 = vmatpush1.msra.mxu0 0.0
    %4311 = vmatprep.subr.mxu0 0.0
    %4312 = vmatpush1.msra.mxu0 0.0
    %4313 = vmatprep.subr.mxu0 0.0
    %4314 = vmatpush1.msra.mxu0 0.0
    %4315 = vmatprep.subr.mxu0 0.0
    %4316 = vmatpush1.msra.mxu0 0.0
    %4317 = vmatprep.subr.mxu0 0.0
    %4318 = vmatpush1.msra.mxu0 0.0
    %4319 = vmatprep.subr.mxu0 0.0
    %4320 = vmatpush1.msra.mxu0 0.0
    %4321 = vmatprep.subr.mxu0 0.0
    %4322 = vmatpush1.msra.mxu0 %v4286
    %4323 = vmatprep.subr.mxu0 0.0
    %4324 = vmatpush2.msra.mxu0 0.0
    %4325 = vmatprep.subr.mxu0 0.0
    %4326 = vmatpush2.msra.mxu0 0.0
    %4327 = vmatprep.subr.mxu0 0.0
    %4328 = vmatpush2.msra.mxu0 0.0
    %4329 = vmatprep.subr.mxu0 0.0
    %4330 = vmatpush2.msra.mxu0 0.0
    %4331 = vmatprep.subr.mxu0 0.0
    %4332 = vmatpush2.msra.mxu0 0.0
    %4333 = vmatprep.subr.mxu0 0.0
    %4334 = vmatpush2.msra.mxu0 0.0
    %4335 = vmatprep.subr.mxu0 0.0
    %4336 = vmatpush2.msra.mxu0 0.0
    %4337 = vmatprep.subr.mxu0 0.0
    %4338 = vmatpush2.msra.mxu0 0.0
    %4339 = vmatprep.subr.mxu0 0.0
    %4340 = vmatpush2.msra.mxu0 0.0
    %4341 = vmatprep.subr.mxu0 0.0
    %4342 = vmatpush2.msra.mxu0 0.0
    %4343 = vmatprep.subr.mxu0 0.0
    %4344 = vmatpush2.msra.mxu0 0.0
    %4345 = vmatprep.subr.mxu0 0.0
    %4346 = vmatpush2.msra.mxu0 0.0
    %4347 = vmatprep.subr.mxu0 0.0
    %4348 = vmatpush2.msra.mxu0 0.0
    %4349 = vmatprep.subr.mxu0 0.0
    %4350 = vmatpush2.msra.mxu0 0.0
    %4351 = vmatprep.subr.mxu0 0.0
    %4352 = vmatpush2.msra.mxu0 0.0
    %4353 = vmatprep.subr.mxu0 0.0
    %4354 = vmatpush2.msra.mxu0 0.0
    %4355 = vmatprep.mubr.f32.mxu0 0.0
    %4356 = vmatmul.mubr.f32.gmra.mxu0 %v4289
    %v4357 = vpop.f32.mrf.mxu0
    %v4358 = vadd.f32 0.0, %v4357
    %v4359 = vpop.f32.mrf.mxu0
    %4360 = vdwg.mxu0
    %4361 = vrot.lane.b32.xlu0 %v2879, 64
    %v4362 = vpop.permute.xlu0 %4361
    %v4365 = vsel %vm437, %v4202, 0
    %4367 = vmatprep.subr.mxu0 0.0
    %4368 = vmatpush1.msra.mxu0 0.0
    %4369 = vmatprep.subr.mxu0 0.0
    %4370 = vmatpush1.msra.mxu0 0.0
    %4371 = vmatprep.subr.mxu0 0.0
    %4372 = vmatpush1.msra.mxu0 0.0
    %4373 = vmatprep.subr.mxu0 0.0
    %4374 = vmatpush1.msra.mxu0 0.0
    %4375 = vmatprep.subr.mxu0 0.0
    %4376 = vmatpush1.msra.mxu0 0.0
    %4377 = vmatprep.subr.mxu0 0.0
    %4378 = vmatpush1.msra.mxu0 0.0
    %4379 = vmatprep.subr.mxu0 0.0
    %4380 = vmatpush1.msra.mxu0 0.0
    %4381 = vmatprep.subr.mxu0 0.0
    %4382 = vmatpush1.msra.mxu0 0.0
    %4383 = vmatprep.subr.mxu0 0.0
    %4384 = vmatpush1.msra.mxu0 0.0
    %4385 = vmatprep.subr.mxu0 0.0
    %4386 = vmatpush1.msra.mxu0 0.0
    %4387 = vmatprep.subr.mxu0 0.0
    %4388 = vmatpush1.msra.mxu0 0.0
    %4389 = vmatprep.subr.mxu0 0.0
    %4390 = vmatpush1.msra.mxu0 0.0
    %4391 = vmatprep.subr.mxu0 0.0
    %4392 = vmatpush1.msra.mxu0 0.0
    %4393 = vmatprep.subr.mxu0 0.0
    %4394 = vmatpush1.msra.mxu0 0.0
    %4395 = vmatprep.subr.mxu0 0.0
    %4396 = vmatpush1.msra.mxu0 0.0
    %4397 = vmatprep.subr.mxu0 0.0
    %4398 = vmatpush1.msra.mxu0 %v4362
    %4399 = vmatprep.subr.mxu0 0.0
    %4400 = vmatpush2.msra.mxu0 0.0
    %4401 = vmatprep.subr.mxu0 0.0
    %4402 = vmatpush2.msra.mxu0 0.0
    %4403 = vmatprep.subr.mxu0 0.0
    %4404 = vmatpush2.msra.mxu0 0.0
    %4405 = vmatprep.subr.mxu0 0.0
    %4406 = vmatpush2.msra.mxu0 0.0
    %4407 = vmatprep.subr.mxu0 0.0
    %4408 = vmatpush2.msra.mxu0 0.0
    %4409 = vmatprep.subr.mxu0 0.0
    %4410 = vmatpush2.msra.mxu0 0.0
    %4411 = vmatprep.subr.mxu0 0.0
    %4412 = vmatpush2.msra.mxu0 0.0
    %4413 = vmatprep.subr.mxu0 0.0
    %4414 = vmatpush2.msra.mxu0 0.0
    %4415 = vmatprep.subr.mxu0 0.0
    %4416 = vmatpush2.msra.mxu0 0.0
    %4417 = vmatprep.subr.mxu0 0.0
    %4418 = vmatpush2.msra.mxu0 0.0
    %4419 = vmatprep.subr.mxu0 0.0
    %4420 = vmatpush2.msra.mxu0 0.0
    %4421 = vmatprep.subr.mxu0 0.0
    %4422 = vmatpush2.msra.mxu0 0.0
    %4423 = vmatprep.subr.mxu0 0.0
    %4424 = vmatpush2.msra.mxu0 0.0
    %4425 = vmatprep.subr.mxu0 0.0
    %4426 = vmatpush2.msra.mxu0 0.0
    %4427 = vmatprep.subr.mxu0 0.0
    %4428 = vmatpush2.msra.mxu0 0.0
    %4429 = vmatprep.subr.mxu0 0.0
    %4430 = vmatpush2.msra.mxu0 0.0
    %4431 = vmatprep.mubr.f32.mxu0 0.0
    %4432 = vmatmul.mubr.f32.gmra.mxu0 %v4365
    %v4433 = vpop.f32.mrf.mxu0
    %v4434 = vadd.f32 0.0, %v4433
    %v4435 = vpop.f32.mrf.mxu0
    %4436 = vdwg.mxu0
    %4437 = vrot.lane.b32.xlu0 %v2885, 64
    %v4438 = vpop.permute.xlu0 %4437
    %v4441 = vsel %vm437, %v4204, 0
    %4443 = vmatprep.subr.mxu0 0.0
    %4444 = vmatpush1.msra.mxu0 0.0
    %4445 = vmatprep.subr.mxu0 0.0
    %4446 = vmatpush1.msra.mxu0 0.0
    %4447 = vmatprep.subr.mxu0 0.0
    %4448 = vmatpush1.msra.mxu0 0.0
    %4449 = vmatprep.subr.mxu0 0.0
    %4450 = vmatpush1.msra.mxu0 0.0
    %4451 = vmatprep.subr.mxu0 0.0
    %4452 = vmatpush1.msra.mxu0 0.0
    %4453 = vmatprep.subr.mxu0 0.0
    %4454 = vmatpush1.msra.mxu0 0.0
    %4455 = vmatprep.subr.mxu0 0.0
    %4456 = vmatpush1.msra.mxu0 0.0
    %4457 = vmatprep.subr.mxu0 0.0
    %4458 = vmatpush1.msra.mxu0 0.0
    %4459 = vmatprep.subr.mxu0 0.0
    %4460 = vmatpush1.msra.mxu0 0.0
    %4461 = vmatprep.subr.mxu0 0.0
    %4462 = vmatpush1.msra.mxu0 0.0
    %4463 = vmatprep.subr.mxu0 0.0
    %4464 = vmatpush1.msra.mxu0 0.0
    %4465 = vmatprep.subr.mxu0 0.0
    %4466 = vmatpush1.msra.mxu0 0.0
    %4467 = vmatprep.subr.mxu0 0.0
    %4468 = vmatpush1.msra.mxu0 0.0
    %4469 = vmatprep.subr.mxu0 0.0
    %4470 = vmatpush1.msra.mxu0 0.0
    %4471 = vmatprep.subr.mxu0 0.0
    %4472 = vmatpush1.msra.mxu0 0.0
    %4473 = vmatprep.subr.mxu0 0.0
    %4474 = vmatpush1.msra.mxu0 %v4438
    %4475 = vmatprep.subr.mxu0 0.0
    %4476 = vmatpush2.msra.mxu0 0.0
    %4477 = vmatprep.subr.mxu0 0.0
    %4478 = vmatpush2.msra.mxu0 0.0
    %4479 = vmatprep.subr.mxu0 0.0
    %4480 = vmatpush2.msra.mxu0 0.0
    %4481 = vmatprep.subr.mxu0 0.0
    %4482 = vmatpush2.msra.mxu0 0.0
    %4483 = vmatprep.subr.mxu0 0.0
    %4484 = vmatpush2.msra.mxu0 0.0
    %4485 = vmatprep.subr.mxu0 0.0
    %4486 = vmatpush2.msra.mxu0 0.0
    %4487 = vmatprep.subr.mxu0 0.0
    %4488 = vmatpush2.msra.mxu0 0.0
    %4489 = vmatprep.subr.mxu0 0.0
    %4490 = vmatpush2.msra.mxu0 0.0
    %4491 = vmatprep.subr.mxu0 0.0
    %4492 = vmatpush2.msra.mxu0 0.0
    %4493 = vmatprep.subr.mxu0 0.0
    %4494 = vmatpush2.msra.mxu0 0.0
    %4495 = vmatprep.subr.mxu0 0.0
    %4496 = vmatpush2.msra.mxu0 0.0
    %4497 = vmatprep.subr.mxu0 0.0
    %4498 = vmatpush2.msra.mxu0 0.0
    %4499 = vmatprep.subr.mxu0 0.0
    %4500 = vmatpush2.msra.mxu0 0.0
    %4501 = vmatprep.subr.mxu0 0.0
    %4502 = vmatpush2.msra.mxu0 0.0
    %4503 = vmatprep.subr.mxu0 0.0
    %4504 = vmatpush2.msra.mxu0 0.0
    %4505 = vmatprep.subr.mxu0 0.0
    %4506 = vmatpush2.msra.mxu0 0.0
    %4507 = vmatprep.mubr.f32.mxu0 0.0
    %4508 = vmatmul.mubr.f32.gmra.mxu0 %v4441
    %v4509 = vpop.f32.mrf.mxu0
    %v4510 = vadd.f32 0.0, %v4509
    %v4511 = vpop.f32.mrf.mxu0
    %4512 = vdwg.mxu0
    %4513 = vrot.lane.b32.xlu0 %v2891, 64
    %v4514 = vpop.permute.xlu0 %4513
    %v4517 = vsel %vm437, %v4206, 0
    %4519 = vmatprep.subr.mxu0 0.0
    %4520 = vmatpush1.msra.mxu0 0.0
    %4521 = vmatprep.subr.mxu0 0.0
    %4522 = vmatpush1.msra.mxu0 0.0
    %4523 = vmatprep.subr.mxu0 0.0
    %4524 = vmatpush1.msra.mxu0 0.0
    %4525 = vmatprep.subr.mxu0 0.0
    %4526 = vmatpush1.msra.mxu0 0.0
    %4527 = vmatprep.subr.mxu0 0.0
    %4528 = vmatpush1.msra.mxu0 0.0
    %4529 = vmatprep.subr.mxu0 0.0
    %4530 = vmatpush1.msra.mxu0 0.0
    %4531 = vmatprep.subr.mxu0 0.0
    %4532 = vmatpush1.msra.mxu0 0.0
    %4533 = vmatprep.subr.mxu0 0.0
    %4534 = vmatpush1.msra.mxu0 0.0
    %4535 = vmatprep.subr.mxu0 0.0
    %4536 = vmatpush1.msra.mxu0 0.0
    %4537 = vmatprep.subr.mxu0 0.0
    %4538 = vmatpush1.msra.mxu0 0.0
    %4539 = vmatprep.subr.mxu0 0.0
    %4540 = vmatpush1.msra.mxu0 0.0
    %4541 = vmatprep.subr.mxu0 0.0
    %4542 = vmatpush1.msra.mxu0 0.0
    %4543 = vmatprep.subr.mxu0 0.0
    %4544 = vmatpush1.msra.mxu0 0.0
    %4545 = vmatprep.subr.mxu0 0.0
    %4546 = vmatpush1.msra.mxu0 0.0
    %4547 = vmatprep.subr.mxu0 0.0
    %4548 = vmatpush1.msra.mxu0 0.0
    %4549 = vmatprep.subr.mxu0 0.0
    %4550 = vmatpush1.msra.mxu0 %v4514
    %4551 = vmatprep.subr.mxu0 0.0
    %4552 = vmatpush2.msra.mxu0 0.0
    %4553 = vmatprep.subr.mxu0 0.0
    %4554 = vmatpush2.msra.mxu0 0.0
    %4555 = vmatprep.subr.mxu0 0.0
    %4556 = vmatpush2.msra.mxu0 0.0
    %4557 = vmatprep.subr.mxu0 0.0
    %4558 = vmatpush2.msra.mxu0 0.0
    %4559 = vmatprep.subr.mxu0 0.0
    %4560 = vmatpush2.msra.mxu0 0.0
    %4561 = vmatprep.subr.mxu0 0.0
    %4562 = vmatpush2.msra.mxu0 0.0
    %4563 = vmatprep.subr.mxu0 0.0
    %4564 = vmatpush2.msra.mxu0 0.0
    %4565 = vmatprep.subr.mxu0 0.0
    %4566 = vmatpush2.msra.mxu0 0.0
    %4567 = vmatprep.subr.mxu0 0.0
    %4568 = vmatpush2.msra.mxu0 0.0
    %4569 = vmatprep.subr.mxu0 0.0
    %4570 = vmatpush2.msra.mxu0 0.0
    %4571 = vmatprep.subr.mxu0 0.0
    %4572 = vmatpush2.msra.mxu0 0.0
    %4573 = vmatprep.subr.mxu0 0.0
    %4574 = vmatpush2.msra.mxu0 0.0
    %4575 = vmatprep.subr.mxu0 0.0
    %4576 = vmatpush2.msra.mxu0 0.0
    %4577 = vmatprep.subr.mxu0 0.0
    %4578 = vmatpush2.msra.mxu0 0.0
    %4579 = vmatprep.subr.mxu0 0.0
    %4580 = vmatpush2.msra.mxu0 0.0
    %4581 = vmatprep.subr.mxu0 0.0
    %4582 = vmatpush2.msra.mxu0 0.0
    %4583 = vmatprep.mubr.f32.mxu0 0.0
    %4584 = vmatmul.mubr.f32.gmra.mxu0 %v4517
    %v4585 = vpop.f32.mrf.mxu0
    %v4586 = vadd.f32 0.0, %v4585
    %v4587 = vpop.f32.mrf.mxu0
    %4588 = vdwg.mxu0
    %4589 = vrot.lane.b32.xlu0 %v2897, 64
    %v4590 = vpop.permute.xlu0 %4589
    %v4593 = vsel %vm437, %v4208, 0
    %4595 = vmatprep.subr.mxu0 0.0
    %4596 = vmatpush1.msra.mxu0 0.0
    %4597 = vmatprep.subr.mxu0 0.0
    %4598 = vmatpush1.msra.mxu0 0.0
    %4599 = vmatprep.subr.mxu0 0.0
    %4600 = vmatpush1.msra.mxu0 0.0
    %4601 = vmatprep.subr.mxu0 0.0
    %4602 = vmatpush1.msra.mxu0 0.0
    %4603 = vmatprep.subr.mxu0 0.0
    %4604 = vmatpush1.msra.mxu0 0.0
    %4605 = vmatprep.subr.mxu0 0.0
    %4606 = vmatpush1.msra.mxu0 0.0
    %4607 = vmatprep.subr.mxu0 0.0
    %4608 = vmatpush1.msra.mxu0 0.0
    %4609 = vmatprep.subr.mxu0 0.0
    %4610 = vmatpush1.msra.mxu0 0.0
    %4611 = vmatprep.subr.mxu0 0.0
    %4612 = vmatpush1.msra.mxu0 0.0
    %4613 = vmatprep.subr.mxu0 0.0
    %4614 = vmatpush1.msra.mxu0 0.0
    %4615 = vmatprep.subr.mxu0 0.0
    %4616 = vmatpush1.msra.mxu0 0.0
    %4617 = vmatprep.subr.mxu0 0.0
    %4618 = vmatpush1.msra.mxu0 0.0
    %4619 = vmatprep.subr.mxu0 0.0
    %4620 = vmatpush1.msra.mxu0 0.0
    %4621 = vmatprep.subr.mxu0 0.0
    %4622 = vmatpush1.msra.mxu0 0.0
    %4623 = vmatprep.subr.mxu0 0.0
    %4624 = vmatpush1.msra.mxu0 0.0
    %4625 = vmatprep.subr.mxu0 0.0
    %4626 = vmatpush1.msra.mxu0 %v4590
    %4627 = vmatprep.subr.mxu0 0.0
    %4628 = vmatpush2.msra.mxu0 0.0
    %4629 = vmatprep.subr.mxu0 0.0
    %4630 = vmatpush2.msra.mxu0 0.0
    %4631 = vmatprep.subr.mxu0 0.0
    %4632 = vmatpush2.msra.mxu0 0.0
    %4633 = vmatprep.subr.mxu0 0.0
    %4634 = vmatpush2.msra.mxu0 0.0
    %4635 = vmatprep.subr.mxu0 0.0
    %4636 = vmatpush2.msra.mxu0 0.0
    %4637 = vmatprep.subr.mxu0 0.0
    %4638 = vmatpush2.msra.mxu0 0.0
    %4639 = vmatprep.subr.mxu0 0.0
    %4640 = vmatpush2.msra.mxu0 0.0
    %4641 = vmatprep.subr.mxu0 0.0
    %4642 = vmatpush2.msra.mxu0 0.0
    %4643 = vmatprep.subr.mxu0 0.0
    %4644 = vmatpush2.msra.mxu0 0.0
    %4645 = vmatprep.subr.mxu0 0.0
    %4646 = vmatpush2.msra.mxu0 0.0
    %4647 = vmatprep.subr.mxu0 0.0
    %4648 = vmatpush2.msra.mxu0 0.0
    %4649 = vmatprep.subr.mxu0 0.0
    %4650 = vmatpush2.msra.mxu0 0.0
    %4651 = vmatprep.subr.mxu0 0.0
    %4652 = vmatpush2.msra.mxu0 0.0
    %4653 = vmatprep.subr.mxu0 0.0
    %4654 = vmatpush2.msra.mxu0 0.0
    %4655 = vmatprep.subr.mxu0 0.0
    %4656 = vmatpush2.msra.mxu0 0.0
    %4657 = vmatprep.subr.mxu0 0.0
    %4658 = vmatpush2.msra.mxu0 0.0
    %4659 = vmatprep.mubr.f32.mxu0 0.0
    %4660 = vmatmul.mubr.f32.gmra.mxu0 %v4593
    %v4661 = vpop.f32.mrf.mxu0
    %v4662 = vadd.f32 0.0, %v4661
    %v4663 = vpop.f32.mrf.mxu0
    %4664 = vdwg.mxu0
    %4665 = vrot.lane.b32.xlu0 %v2991, 72
    %v4666 = vpop.permute.xlu0 %4665
    %4667 = vrot.lane.b32.xlu0 %v2992, 72
    %v4668 = vpop.permute.xlu0 %4667
    %4669 = vrot.lane.b32.xlu0 %v2993, 72
    %v4670 = vpop.permute.xlu0 %4669
    %4671 = vrot.lane.b32.xlu0 %v2994, 72
    %v4672 = vpop.permute.xlu0 %4671
    %4673 = vrot.lane.b32.xlu0 %v2995, 72
    %v4674 = vpop.permute.xlu0 %4673
    %4675 = vrot.lane.b32.xlu0 %v2996, 72
    %v4676 = vpop.permute.xlu0 %4675
    %v4683 = vsel %vm77, %v4666, -1e+30
    %v4684 = vsel %vm78, %v4668, -1e+30
    %v4685 = vsel %vm79, %v4670, -1e+30
    %v4686 = vsel %vm80, %v4672, -1e+30
    %v4687 = vsel %vm81, %v4674, -1e+30
    %v4688 = vsel %vm82, %v4676, -1e+30
    %v4689 = vsel %vm437, %v4683, -inf
    %4690 = vmax.xlane.f32.xlu0 %v4689
    %v4691 = vpop.xlane.xlu0 %4690
    %v4692 = vsel %vm437, %v4684, -inf
    %4693 = vmax.xlane.f32.xlu0 %v4692
    %v4694 = vpop.xlane.xlu0 %4693
    %v4695 = vsel %vm437, %v4685, -inf
    %4696 = vmax.xlane.f32.xlu0 %v4695
    %v4697 = vpop.xlane.xlu0 %4696
    %v4698 = vsel %vm437, %v4686, -inf
    %4699 = vmax.xlane.f32.xlu0 %v4698
    %v4700 = vpop.xlane.xlu0 %4699
    %v4701 = vsel %vm437, %v4687, -inf
    %4702 = vmax.xlane.f32.xlu0 %v4701
    %v4703 = vpop.xlane.xlu0 %4702
    %v4704 = vsel %vm437, %v4688, -inf
    %4705 = vmax.xlane.f32.xlu0 %v4704
    %v4706 = vpop.xlane.xlu0 %4705
    %v4707 = vsub.f32 %v4683, %v4691
    %v4708 = vsub.f32 %v4684, %v4694
    %v4709 = vsub.f32 %v4685, %v4697
    %v4710 = vsub.f32 %v4686, %v4700
    %v4711 = vsub.f32 %v4687, %v4703
    %v4712 = vsub.f32 %v4688, %v4706
    %v4713 = vmul.f32 %v4707, 1.442695
    %v4714 = vpow.pop %v4713
    %v4715 = vmul.f32 %v4708, 1.442695
    %v4716 = vpow.pop %v4715
    %v4717 = vmul.f32 %v4709, 1.442695
    %v4718 = vpow.pop %v4717
    %v4719 = vmul.f32 %v4710, 1.442695
    %v4720 = vpow.pop %v4719
    %v4721 = vmul.f32 %v4711, 1.442695
    %v4722 = vpow.pop %v4721
    %v4723 = vmul.f32 %v4712, 1.442695
    %v4724 = vpow.pop %v4723
    %v4725 = vsel %vm77, %v4714, 0.0
    %v4726 = vsel %vm78, %v4716, 0.0
    %v4727 = vsel %vm79, %v4718, 0.0
    %v4728 = vsel %vm80, %v4720, 0.0
    %v4729 = vsel %vm81, %v4722, 0.0
    %v4730 = vsel %vm82, %v4724, 0.0
    %v4731 = vsel %vm437, %v4725, 0.0
    %4732 = vadd.xlane.f32.xlu0 %v4731
    %v4733 = vpop.xlane.xlu0 %4732
    %v4734 = vsel %vm437, %v4726, 0.0
    %4735 = vadd.xlane.f32.xlu0 %v4734
    %v4736 = vpop.xlane.xlu0 %4735
    %v4737 = vsel %vm437, %v4727, 0.0
    %4738 = vadd.xlane.f32.xlu0 %v4737
    %v4739 = vpop.xlane.xlu0 %4738
    %v4740 = vsel %vm437, %v4728, 0.0
    %4741 = vadd.xlane.f32.xlu0 %v4740
    %v4742 = vpop.xlane.xlu0 %4741
    %v4743 = vsel %vm437, %v4729, 0.0
    %4744 = vadd.xlane.f32.xlu0 %v4743
    %v4745 = vpop.xlane.xlu0 %4744
    %v4746 = vsel %vm437, %v4730, 0.0
    %4747 = vadd.xlane.f32.xlu0 %v4746
    %v4748 = vpop.xlane.xlu0 %4747
    %v4749 = vmax.f32 %v4733, 1e-30
    %v4750 = vmax.f32 %v4736, 1e-30
    %v4751 = vmax.f32 %v4739, 1e-30
    %v4752 = vmax.f32 %v4742, 1e-30
    %v4753 = vmax.f32 %v4745, 1e-30
    %v4754 = vmax.f32 %v4748, 1e-30
    %v4755 = vrcp.pop %v4749
    %v4756 = vmul.f32 %v4725, %v4755
    %v4757 = vrcp.pop %v4750
    %v4758 = vmul.f32 %v4726, %v4757
    %v4759 = vrcp.pop %v4751
    %v4760 = vmul.f32 %v4727, %v4759
    %v4761 = vrcp.pop %v4752
    %v4762 = vmul.f32 %v4728, %v4761
    %v4763 = vrcp.pop %v4753
    %v4764 = vmul.f32 %v4729, %v4763
    %v4765 = vrcp.pop %v4754
    %v4766 = vmul.f32 %v4730, %v4765
    %4767 = vrot.lane.b32.xlu0 %v2867, 32
    %v4768 = vpop.permute.xlu0 %4767
    %v4771 = vsel %vm437, %v4756, 0
    %4773 = vmatprep.subr.mxu0 0.0
    %4774 = vmatpush1.msra.mxu0 0.0
    %4775 = vmatprep.subr.mxu0 0.0
    %4776 = vmatpush1.msra.mxu0 0.0
    %4777 = vmatprep.subr.mxu0 0.0
    %4778 = vmatpush1.msra.mxu0 0.0
    %4779 = vmatprep.subr.mxu0 0.0
    %4780 = vmatpush1.msra.mxu0 0.0
    %4781 = vmatprep.subr.mxu0 0.0
    %4782 = vmatpush1.msra.mxu0 0.0
    %4783 = vmatprep.subr.mxu0 0.0
    %4784 = vmatpush1.msra.mxu0 0.0
    %4785 = vmatprep.subr.mxu0 0.0
    %4786 = vmatpush1.msra.mxu0 0.0
    %4787 = vmatprep.subr.mxu0 0.0
    %4788 = vmatpush1.msra.mxu0 0.0
    %4789 = vmatprep.subr.mxu0 0.0
    %4790 = vmatpush1.msra.mxu0 0.0
    %4791 = vmatprep.subr.mxu0 0.0
    %4792 = vmatpush1.msra.mxu0 0.0
    %4793 = vmatprep.subr.mxu0 0.0
    %4794 = vmatpush1.msra.mxu0 0.0
    %4795 = vmatprep.subr.mxu0 0.0
    %4796 = vmatpush1.msra.mxu0 0.0
    %4797 = vmatprep.subr.mxu0 0.0
    %4798 = vmatpush1.msra.mxu0 0.0
    %4799 = vmatprep.subr.mxu0 0.0
    %4800 = vmatpush1.msra.mxu0 0.0
    %4801 = vmatprep.subr.mxu0 0.0
    %4802 = vmatpush1.msra.mxu0 0.0
    %4803 = vmatprep.subr.mxu0 0.0
    %4804 = vmatpush1.msra.mxu0 %v4768
    %4805 = vmatprep.subr.mxu0 0.0
    %4806 = vmatpush2.msra.mxu0 0.0
    %4807 = vmatprep.subr.mxu0 0.0
    %4808 = vmatpush2.msra.mxu0 0.0
    %4809 = vmatprep.subr.mxu0 0.0
    %4810 = vmatpush2.msra.mxu0 0.0
    %4811 = vmatprep.subr.mxu0 0.0
    %4812 = vmatpush2.msra.mxu0 0.0
    %4813 = vmatprep.subr.mxu0 0.0
    %4814 = vmatpush2.msra.mxu0 0.0
    %4815 = vmatprep.subr.mxu0 0.0
    %4816 = vmatpush2.msra.mxu0 0.0
    %4817 = vmatprep.subr.mxu0 0.0
    %4818 = vmatpush2.msra.mxu0 0.0
    %4819 = vmatprep.subr.mxu0 0.0
    %4820 = vmatpush2.msra.mxu0 0.0
    %4821 = vmatprep.subr.mxu0 0.0
    %4822 = vmatpush2.msra.mxu0 0.0
    %4823 = vmatprep.subr.mxu0 0.0
    %4824 = vmatpush2.msra.mxu0 0.0
    %4825 = vmatprep.subr.mxu0 0.0
    %4826 = vmatpush2.msra.mxu0 0.0
    %4827 = vmatprep.subr.mxu0 0.0
    %4828 = vmatpush2.msra.mxu0 0.0
    %4829 = vmatprep.subr.mxu0 0.0
    %4830 = vmatpush2.msra.mxu0 0.0
    %4831 = vmatprep.subr.mxu0 0.0
    %4832 = vmatpush2.msra.mxu0 0.0
    %4833 = vmatprep.subr.mxu0 0.0
    %4834 = vmatpush2.msra.mxu0 0.0
    %4835 = vmatprep.subr.mxu0 0.0
    %4836 = vmatpush2.msra.mxu0 0.0
    %4837 = vmatprep.mubr.f32.mxu0 0.0
    %4838 = vmatmul.mubr.f32.gmra.mxu0 %v4771
    %v4839 = vpop.f32.mrf.mxu0
    %v4840 = vadd.f32 0.0, %v4839
    %v4841 = vpop.f32.mrf.mxu0
    %4842 = vdwg.mxu0
    %4843 = vrot.lane.b32.xlu0 %v2873, 32
    %v4844 = vpop.permute.xlu0 %4843
    %v4847 = vsel %vm437, %v4758, 0
    %4849 = vmatprep.subr.mxu0 0.0
    %4850 = vmatpush1.msra.mxu0 0.0
    %4851 = vmatprep.subr.mxu0 0.0
    %4852 = vmatpush1.msra.mxu0 0.0
    %4853 = vmatprep.subr.mxu0 0.0
    %4854 = vmatpush1.msra.mxu0 0.0
    %4855 = vmatprep.subr.mxu0 0.0
    %4856 = vmatpush1.msra.mxu0 0.0
    %4857 = vmatprep.subr.mxu0 0.0
    %4858 = vmatpush1.msra.mxu0 0.0
    %4859 = vmatprep.subr.mxu0 0.0
    %4860 = vmatpush1.msra.mxu0 0.0
    %4861 = vmatprep.subr.mxu0 0.0
    %4862 = vmatpush1.msra.mxu0 0.0
    %4863 = vmatprep.subr.mxu0 0.0
    %4864 = vmatpush1.msra.mxu0 0.0
    %4865 = vmatprep.subr.mxu0 0.0
    %4866 = vmatpush1.msra.mxu0 0.0
    %4867 = vmatprep.subr.mxu0 0.0
    %4868 = vmatpush1.msra.mxu0 0.0
    %4869 = vmatprep.subr.mxu0 0.0
    %4870 = vmatpush1.msra.mxu0 0.0
    %4871 = vmatprep.subr.mxu0 0.0
    %4872 = vmatpush1.msra.mxu0 0.0
    %4873 = vmatprep.subr.mxu0 0.0
    %4874 = vmatpush1.msra.mxu0 0.0
    %4875 = vmatprep.subr.mxu0 0.0
    %4876 = vmatpush1.msra.mxu0 0.0
    %4877 = vmatprep.subr.mxu0 0.0
    %4878 = vmatpush1.msra.mxu0 0.0
    %4879 = vmatprep.subr.mxu0 0.0
    %4880 = vmatpush1.msra.mxu0 %v4844
    %4881 = vmatprep.subr.mxu0 0.0
    %4882 = vmatpush2.msra.mxu0 0.0
    %4883 = vmatprep.subr.mxu0 0.0
    %4884 = vmatpush2.msra.mxu0 0.0
    %4885 = vmatprep.subr.mxu0 0.0
    %4886 = vmatpush2.msra.mxu0 0.0
    %4887 = vmatprep.subr.mxu0 0.0
    %4888 = vmatpush2.msra.mxu0 0.0
    %4889 = vmatprep.subr.mxu0 0.0
    %4890 = vmatpush2.msra.mxu0 0.0
    %4891 = vmatprep.subr.mxu0 0.0
    %4892 = vmatpush2.msra.mxu0 0.0
    %4893 = vmatprep.subr.mxu0 0.0
    %4894 = vmatpush2.msra.mxu0 0.0
    %4895 = vmatprep.subr.mxu0 0.0
    %4896 = vmatpush2.msra.mxu0 0.0
    %4897 = vmatprep.subr.mxu0 0.0
    %4898 = vmatpush2.msra.mxu0 0.0
    %4899 = vmatprep.subr.mxu0 0.0
    %4900 = vmatpush2.msra.mxu0 0.0
    %4901 = vmatprep.subr.mxu0 0.0
    %4902 = vmatpush2.msra.mxu0 0.0
    %4903 = vmatprep.subr.mxu0 0.0
    %4904 = vmatpush2.msra.mxu0 0.0
    %4905 = vmatprep.subr.mxu0 0.0
    %4906 = vmatpush2.msra.mxu0 0.0
    %4907 = vmatprep.subr.mxu0 0.0
    %4908 = vmatpush2.msra.mxu0 0.0
    %4909 = vmatprep.subr.mxu0 0.0
    %4910 = vmatpush2.msra.mxu0 0.0
    %4911 = vmatprep.subr.mxu0 0.0
    %4912 = vmatpush2.msra.mxu0 0.0
    %4913 = vmatprep.mubr.f32.mxu0 0.0
    %4914 = vmatmul.mubr.f32.gmra.mxu0 %v4847
    %v4915 = vpop.f32.mrf.mxu0
    %v4916 = vadd.f32 0.0, %v4915
    %v4917 = vpop.f32.mrf.mxu0
    %4918 = vdwg.mxu0
    %4919 = vrot.lane.b32.xlu0 %v2879, 32
    %v4920 = vpop.permute.xlu0 %4919
    %v4923 = vsel %vm437, %v4760, 0
    %4925 = vmatprep.subr.mxu0 0.0
    %4926 = vmatpush1.msra.mxu0 0.0
    %4927 = vmatprep.subr.mxu0 0.0
    %4928 = vmatpush1.msra.mxu0 0.0
    %4929 = vmatprep.subr.mxu0 0.0
    %4930 = vmatpush1.msra.mxu0 0.0
    %4931 = vmatprep.subr.mxu0 0.0
    %4932 = vmatpush1.msra.mxu0 0.0
    %4933 = vmatprep.subr.mxu0 0.0
    %4934 = vmatpush1.msra.mxu0 0.0
    %4935 = vmatprep.subr.mxu0 0.0
    %4936 = vmatpush1.msra.mxu0 0.0
    %4937 = vmatprep.subr.mxu0 0.0
    %4938 = vmatpush1.msra.mxu0 0.0
    %4939 = vmatprep.subr.mxu0 0.0
    %4940 = vmatpush1.msra.mxu0 0.0
    %4941 = vmatprep.subr.mxu0 0.0
    %4942 = vmatpush1.msra.mxu0 0.0
    %4943 = vmatprep.subr.mxu0 0.0
    %4944 = vmatpush1.msra.mxu0 0.0
    %4945 = vmatprep.subr.mxu0 0.0
    %4946 = vmatpush1.msra.mxu0 0.0
    %4947 = vmatprep.subr.mxu0 0.0
    %4948 = vmatpush1.msra.mxu0 0.0
    %4949 = vmatprep.subr.mxu0 0.0
    %4950 = vmatpush1.msra.mxu0 0.0
    %4951 = vmatprep.subr.mxu0 0.0
    %4952 = vmatpush1.msra.mxu0 0.0
    %4953 = vmatprep.subr.mxu0 0.0
    %4954 = vmatpush1.msra.mxu0 0.0
    %4955 = vmatprep.subr.mxu0 0.0
    %4956 = vmatpush1.msra.mxu0 %v4920
    %4957 = vmatprep.subr.mxu0 0.0
    %4958 = vmatpush2.msra.mxu0 0.0
    %4959 = vmatprep.subr.mxu0 0.0
    %4960 = vmatpush2.msra.mxu0 0.0
    %4961 = vmatprep.subr.mxu0 0.0
    %4962 = vmatpush2.msra.mxu0 0.0
    %4963 = vmatprep.subr.mxu0 0.0
    %4964 = vmatpush2.msra.mxu0 0.0
    %4965 = vmatprep.subr.mxu0 0.0
    %4966 = vmatpush2.msra.mxu0 0.0
    %4967 = vmatprep.subr.mxu0 0.0
    %4968 = vmatpush2.msra.mxu0 0.0
    %4969 = vmatprep.subr.mxu0 0.0
    %4970 = vmatpush2.msra.mxu0 0.0
    %4971 = vmatprep.subr.mxu0 0.0
    %4972 = vmatpush2.msra.mxu0 0.0
    %4973 = vmatprep.subr.mxu0 0.0
    %4974 = vmatpush2.msra.mxu0 0.0
    %4975 = vmatprep.subr.mxu0 0.0
    %4976 = vmatpush2.msra.mxu0 0.0
    %4977 = vmatprep.subr.mxu0 0.0
    %4978 = vmatpush2.msra.mxu0 0.0
    %4979 = vmatprep.subr.mxu0 0.0
    %4980 = vmatpush2.msra.mxu0 0.0
    %4981 = vmatprep.subr.mxu0 0.0
    %4982 = vmatpush2.msra.mxu0 0.0
    %4983 = vmatprep.subr.mxu0 0.0
    %4984 = vmatpush2.msra.mxu0 0.0
    %4985 = vmatprep.subr.mxu0 0.0
    %4986 = vmatpush2.msra.mxu0 0.0
    %4987 = vmatprep.subr.mxu0 0.0
    %4988 = vmatpush2.msra.mxu0 0.0
    %4989 = vmatprep.mubr.f32.mxu0 0.0
    %4990 = vmatmul.mubr.f32.gmra.mxu0 %v4923
    %v4991 = vpop.f32.mrf.mxu0
    %v4992 = vadd.f32 0.0, %v4991
    %v4993 = vpop.f32.mrf.mxu0
    %4994 = vdwg.mxu0
    %4995 = vrot.lane.b32.xlu0 %v2885, 32
    %v4996 = vpop.permute.xlu0 %4995
    %v4999 = vsel %vm437, %v4762, 0
    %5001 = vmatprep.subr.mxu0 0.0
    %5002 = vmatpush1.msra.mxu0 0.0
    %5003 = vmatprep.subr.mxu0 0.0
    %5004 = vmatpush1.msra.mxu0 0.0
    %5005 = vmatprep.subr.mxu0 0.0
    %5006 = vmatpush1.msra.mxu0 0.0
    %5007 = vmatprep.subr.mxu0 0.0
    %5008 = vmatpush1.msra.mxu0 0.0
    %5009 = vmatprep.subr.mxu0 0.0
    %5010 = vmatpush1.msra.mxu0 0.0
    %5011 = vmatprep.subr.mxu0 0.0
    %5012 = vmatpush1.msra.mxu0 0.0
    %5013 = vmatprep.subr.mxu0 0.0
    %5014 = vmatpush1.msra.mxu0 0.0
    %5015 = vmatprep.subr.mxu0 0.0
    %5016 = vmatpush1.msra.mxu0 0.0
    %5017 = vmatprep.subr.mxu0 0.0
    %5018 = vmatpush1.msra.mxu0 0.0
    %5019 = vmatprep.subr.mxu0 0.0
    %5020 = vmatpush1.msra.mxu0 0.0
    %5021 = vmatprep.subr.mxu0 0.0
    %5022 = vmatpush1.msra.mxu0 0.0
    %5023 = vmatprep.subr.mxu0 0.0
    %5024 = vmatpush1.msra.mxu0 0.0
    %5025 = vmatprep.subr.mxu0 0.0
    %5026 = vmatpush1.msra.mxu0 0.0
    %5027 = vmatprep.subr.mxu0 0.0
    %5028 = vmatpush1.msra.mxu0 0.0
    %5029 = vmatprep.subr.mxu0 0.0
    %5030 = vmatpush1.msra.mxu0 0.0
    %5031 = vmatprep.subr.mxu0 0.0
    %5032 = vmatpush1.msra.mxu0 %v4996
    %5033 = vmatprep.subr.mxu0 0.0
    %5034 = vmatpush2.msra.mxu0 0.0
    %5035 = vmatprep.subr.mxu0 0.0
    %5036 = vmatpush2.msra.mxu0 0.0
    %5037 = vmatprep.subr.mxu0 0.0
    %5038 = vmatpush2.msra.mxu0 0.0
    %5039 = vmatprep.subr.mxu0 0.0
    %5040 = vmatpush2.msra.mxu0 0.0
    %5041 = vmatprep.subr.mxu0 0.0
    %5042 = vmatpush2.msra.mxu0 0.0
    %5043 = vmatprep.subr.mxu0 0.0
    %5044 = vmatpush2.msra.mxu0 0.0
    %5045 = vmatprep.subr.mxu0 0.0
    %5046 = vmatpush2.msra.mxu0 0.0
    %5047 = vmatprep.subr.mxu0 0.0
    %5048 = vmatpush2.msra.mxu0 0.0
    %5049 = vmatprep.subr.mxu0 0.0
    %5050 = vmatpush2.msra.mxu0 0.0
    %5051 = vmatprep.subr.mxu0 0.0
    %5052 = vmatpush2.msra.mxu0 0.0
    %5053 = vmatprep.subr.mxu0 0.0
    %5054 = vmatpush2.msra.mxu0 0.0
    %5055 = vmatprep.subr.mxu0 0.0
    %5056 = vmatpush2.msra.mxu0 0.0
    %5057 = vmatprep.subr.mxu0 0.0
    %5058 = vmatpush2.msra.mxu0 0.0
    %5059 = vmatprep.subr.mxu0 0.0
    %5060 = vmatpush2.msra.mxu0 0.0
    %5061 = vmatprep.subr.mxu0 0.0
    %5062 = vmatpush2.msra.mxu0 0.0
    %5063 = vmatprep.subr.mxu0 0.0
    %5064 = vmatpush2.msra.mxu0 0.0
    %5065 = vmatprep.mubr.f32.mxu0 0.0
    %5066 = vmatmul.mubr.f32.gmra.mxu0 %v4999
    %v5067 = vpop.f32.mrf.mxu0
    %v5068 = vadd.f32 0.0, %v5067
    %v5069 = vpop.f32.mrf.mxu0
    %5070 = vdwg.mxu0
    %5071 = vrot.lane.b32.xlu0 %v2891, 32
    %v5072 = vpop.permute.xlu0 %5071
    %v5075 = vsel %vm437, %v4764, 0
    %5077 = vmatprep.subr.mxu0 0.0
    %5078 = vmatpush1.msra.mxu0 0.0
    %5079 = vmatprep.subr.mxu0 0.0
    %5080 = vmatpush1.msra.mxu0 0.0
    %5081 = vmatprep.subr.mxu0 0.0
    %5082 = vmatpush1.msra.mxu0 0.0
    %5083 = vmatprep.subr.mxu0 0.0
    %5084 = vmatpush1.msra.mxu0 0.0
    %5085 = vmatprep.subr.mxu0 0.0
    %5086 = vmatpush1.msra.mxu0 0.0
    %5087 = vmatprep.subr.mxu0 0.0
    %5088 = vmatpush1.msra.mxu0 0.0
    %5089 = vmatprep.subr.mxu0 0.0
    %5090 = vmatpush1.msra.mxu0 0.0
    %5091 = vmatprep.subr.mxu0 0.0
    %5092 = vmatpush1.msra.mxu0 0.0
    %5093 = vmatprep.subr.mxu0 0.0
    %5094 = vmatpush1.msra.mxu0 0.0
    %5095 = vmatprep.subr.mxu0 0.0
    %5096 = vmatpush1.msra.mxu0 0.0
    %5097 = vmatprep.subr.mxu0 0.0
    %5098 = vmatpush1.msra.mxu0 0.0
    %5099 = vmatprep.subr.mxu0 0.0
    %5100 = vmatpush1.msra.mxu0 0.0
    %5101 = vmatprep.subr.mxu0 0.0
    %5102 = vmatpush1.msra.mxu0 0.0
    %5103 = vmatprep.subr.mxu0 0.0
    %5104 = vmatpush1.msra.mxu0 0.0
    %5105 = vmatprep.subr.mxu0 0.0
    %5106 = vmatpush1.msra.mxu0 0.0
    %5107 = vmatprep.subr.mxu0 0.0
    %5108 = vmatpush1.msra.mxu0 %v5072
    %5109 = vmatprep.subr.mxu0 0.0
    %5110 = vmatpush2.msra.mxu0 0.0
    %5111 = vmatprep.subr.mxu0 0.0
    %5112 = vmatpush2.msra.mxu0 0.0
    %5113 = vmatprep.subr.mxu0 0.0
    %5114 = vmatpush2.msra.mxu0 0.0
    %5115 = vmatprep.subr.mxu0 0.0
    %5116 = vmatpush2.msra.mxu0 0.0
    %5117 = vmatprep.subr.mxu0 0.0
    %5118 = vmatpush2.msra.mxu0 0.0
    %5119 = vmatprep.subr.mxu0 0.0
    %5120 = vmatpush2.msra.mxu0 0.0
    %5121 = vmatprep.subr.mxu0 0.0
    %5122 = vmatpush2.msra.mxu0 0.0
    %5123 = vmatprep.subr.mxu0 0.0
    %5124 = vmatpush2.msra.mxu0 0.0
    %5125 = vmatprep.subr.mxu0 0.0
    %5126 = vmatpush2.msra.mxu0 0.0
    %5127 = vmatprep.subr.mxu0 0.0
    %5128 = vmatpush2.msra.mxu0 0.0
    %5129 = vmatprep.subr.mxu0 0.0
    %5130 = vmatpush2.msra.mxu0 0.0
    %5131 = vmatprep.subr.mxu0 0.0
    %5132 = vmatpush2.msra.mxu0 0.0
    %5133 = vmatprep.subr.mxu0 0.0
    %5134 = vmatpush2.msra.mxu0 0.0
    %5135 = vmatprep.subr.mxu0 0.0
    %5136 = vmatpush2.msra.mxu0 0.0
    %5137 = vmatprep.subr.mxu0 0.0
    %5138 = vmatpush2.msra.mxu0 0.0
    %5139 = vmatprep.subr.mxu0 0.0
    %5140 = vmatpush2.msra.mxu0 0.0
    %5141 = vmatprep.mubr.f32.mxu0 0.0
    %5142 = vmatmul.mubr.f32.gmra.mxu0 %v5075
    %v5143 = vpop.f32.mrf.mxu0
    %v5144 = vadd.f32 0.0, %v5143
    %v5145 = vpop.f32.mrf.mxu0
    %5146 = vdwg.mxu0
    %5147 = vrot.lane.b32.xlu0 %v2897, 32
    %v5148 = vpop.permute.xlu0 %5147
    %v5151 = vsel %vm437, %v4766, 0
    %5153 = vmatprep.subr.mxu0 0.0
    %5154 = vmatpush1.msra.mxu0 0.0
    %5155 = vmatprep.subr.mxu0 0.0
    %5156 = vmatpush1.msra.mxu0 0.0
    %5157 = vmatprep.subr.mxu0 0.0
    %5158 = vmatpush1.msra.mxu0 0.0
    %5159 = vmatprep.subr.mxu0 0.0
    %5160 = vmatpush1.msra.mxu0 0.0
    %5161 = vmatprep.subr.mxu0 0.0
    %5162 = vmatpush1.msra.mxu0 0.0
    %5163 = vmatprep.subr.mxu0 0.0
    %5164 = vmatpush1.msra.mxu0 0.0
    %5165 = vmatprep.subr.mxu0 0.0
    %5166 = vmatpush1.msra.mxu0 0.0
    %5167 = vmatprep.subr.mxu0 0.0
    %5168 = vmatpush1.msra.mxu0 0.0
    %5169 = vmatprep.subr.mxu0 0.0
    %5170 = vmatpush1.msra.mxu0 0.0
    %5171 = vmatprep.subr.mxu0 0.0
    %5172 = vmatpush1.msra.mxu0 0.0
    %5173 = vmatprep.subr.mxu0 0.0
    %5174 = vmatpush1.msra.mxu0 0.0
    %5175 = vmatprep.subr.mxu0 0.0
    %5176 = vmatpush1.msra.mxu0 0.0
    %5177 = vmatprep.subr.mxu0 0.0
    %5178 = vmatpush1.msra.mxu0 0.0
    %5179 = vmatprep.subr.mxu0 0.0
    %5180 = vmatpush1.msra.mxu0 0.0
    %5181 = vmatprep.subr.mxu0 0.0
    %5182 = vmatpush1.msra.mxu0 0.0
    %5183 = vmatprep.subr.mxu0 0.0
    %5184 = vmatpush1.msra.mxu0 %v5148
    %5185 = vmatprep.subr.mxu0 0.0
    %5186 = vmatpush2.msra.mxu0 0.0
    %5187 = vmatprep.subr.mxu0 0.0
    %5188 = vmatpush2.msra.mxu0 0.0
    %5189 = vmatprep.subr.mxu0 0.0
    %5190 = vmatpush2.msra.mxu0 0.0
    %5191 = vmatprep.subr.mxu0 0.0
    %5192 = vmatpush2.msra.mxu0 0.0
    %5193 = vmatprep.subr.mxu0 0.0
    %5194 = vmatpush2.msra.mxu0 0.0
    %5195 = vmatprep.subr.mxu0 0.0
    %5196 = vmatpush2.msra.mxu0 0.0
    %5197 = vmatprep.subr.mxu0 0.0
    %5198 = vmatpush2.msra.mxu0 0.0
    %5199 = vmatprep.subr.mxu0 0.0
    %5200 = vmatpush2.msra.mxu0 0.0
    %5201 = vmatprep.subr.mxu0 0.0
    %5202 = vmatpush2.msra.mxu0 0.0
    %5203 = vmatprep.subr.mxu0 0.0
    %5204 = vmatpush2.msra.mxu0 0.0
    %5205 = vmatprep.subr.mxu0 0.0
    %5206 = vmatpush2.msra.mxu0 0.0
    %5207 = vmatprep.subr.mxu0 0.0
    %5208 = vmatpush2.msra.mxu0 0.0
    %5209 = vmatprep.subr.mxu0 0.0
    %5210 = vmatpush2.msra.mxu0 0.0
    %5211 = vmatprep.subr.mxu0 0.0
    %5212 = vmatpush2.msra.mxu0 0.0
    %5213 = vmatprep.subr.mxu0 0.0
    %5214 = vmatpush2.msra.mxu0 0.0
    %5215 = vmatprep.subr.mxu0 0.0
    %5216 = vmatpush2.msra.mxu0 0.0
    %5217 = vmatprep.mubr.f32.mxu0 0.0
    %5218 = vmatmul.mubr.f32.gmra.mxu0 %v5151
    %v5219 = vpop.f32.mrf.mxu0
    %v5220 = vadd.f32 0.0, %v5219
    %v5221 = vpop.f32.mrf.mxu0
    %5222 = vdwg.mxu0
    %v5223 = vadd.f32 %v3175, %v3719
    %v5224 = vadd.f32 %v3248, %v3796
    %v5225 = vadd.f32 %v3321, %v3873
    %v5226 = vadd.f32 %v3394, %v3950
    %v5227 = vadd.f32 %v3467, %v4027
    %v5228 = vadd.f32 %v3540, %v4104
    %v5229 = vadd.f32 %v5223, %v4282
    %v5230 = vadd.f32 %v5224, %v4358
    %v5231 = vadd.f32 %v5225, %v4434
    %v5232 = vadd.f32 %v5226, %v4510
    %v5233 = vadd.f32 %v5227, %v4586
    %v5234 = vadd.f32 %v5228, %v4662
    %v5235 = vadd.f32 %v5229, %v4840
    %v5236 = vadd.f32 %v5230, %v4916
    %v5237 = vadd.f32 %v5231, %v4992
    %v5238 = vadd.f32 %v5232, %v5068
    %v5239 = vadd.f32 %v5233, %v5144
    %v5240 = vadd.f32 %v5234, %v5220
    %v5241 = vadd.f32 %v5235, %v2762
    %v5242 = vadd.f32 %v5236, %v2763
    %v5243 = vadd.f32 %v5237, %v2764
    %v5244 = vadd.f32 %v5238, %v2765
    %v5245 = vadd.f32 %v5239, %v2766
    %v5246 = vadd.f32 %v5240, %v2767
    %5253 = vrot.lane.b32.xlu0 %v2762, 96
    %v5254 = vpop.permute.xlu0 %5253
    %5255 = vrot.lane.b32.xlu0 %v2763, 96
    %v5256 = vpop.permute.xlu0 %5255
    %5257 = vrot.lane.b32.xlu0 %v2764, 96
    %v5258 = vpop.permute.xlu0 %5257
    %5259 = vrot.lane.b32.xlu0 %v2765, 96
    %v5260 = vpop.permute.xlu0 %5259
    %5261 = vrot.lane.b32.xlu0 %v2766, 96
    %v5262 = vpop.permute.xlu0 %5261
    %5263 = vrot.lane.b32.xlu0 %v2767, 96
    %v5264 = vpop.permute.xlu0 %5263
    %v5271 = vadd.f32 %v5241, %v5254
    %v5272 = vadd.f32 %v5242, %v5256
    %v5273 = vadd.f32 %v5243, %v5258
    %v5274 = vadd.f32 %v5244, %v5260
    %v5275 = vadd.f32 %v5245, %v5262
    %v5276 = vadd.f32 %v5246, %v5264
    %5277 = vrot.lane.b32.xlu0 %v2762, 64
    %v5278 = vpop.permute.xlu0 %5277
    %5279 = vrot.lane.b32.xlu0 %v2763, 64
    %v5280 = vpop.permute.xlu0 %5279
    %5281 = vrot.lane.b32.xlu0 %v2764, 64
    %v5282 = vpop.permute.xlu0 %5281
    %5283 = vrot.lane.b32.xlu0 %v2765, 64
    %v5284 = vpop.permute.xlu0 %5283
    %5285 = vrot.lane.b32.xlu0 %v2766, 64
    %v5286 = vpop.permute.xlu0 %5285
    %5287 = vrot.lane.b32.xlu0 %v2767, 64
    %v5288 = vpop.permute.xlu0 %5287
    %v5295 = vadd.f32 %v5271, %v5278
    %v5296 = vadd.f32 %v5272, %v5280
    %v5297 = vadd.f32 %v5273, %v5282
    %v5298 = vadd.f32 %v5274, %v5284
    %v5299 = vadd.f32 %v5275, %v5286
    %v5300 = vadd.f32 %v5276, %v5288
    %5301 = vrot.lane.b32.xlu0 %v2762, 32
    %v5302 = vpop.permute.xlu0 %5301
    %5303 = vrot.lane.b32.xlu0 %v2763, 32
    %v5304 = vpop.permute.xlu0 %5303
    %5305 = vrot.lane.b32.xlu0 %v2764, 32
    %v5306 = vpop.permute.xlu0 %5305
    %5307 = vrot.lane.b32.xlu0 %v2765, 32
    %v5308 = vpop.permute.xlu0 %5307
    %5309 = vrot.lane.b32.xlu0 %v2766, 32
    %v5310 = vpop.permute.xlu0 %5309
    %5311 = vrot.lane.b32.xlu0 %v2767, 32
    %v5312 = vpop.permute.xlu0 %5311
    %v5319 = vadd.f32 %v5295, %v5302
    %v5320 = vadd.f32 %v5296, %v5304
    %v5321 = vadd.f32 %v5297, %v5306
    %v5322 = vadd.f32 %v5298, %v5308
    %v5323 = vadd.f32 %v5299, %v5310
    %v5324 = vadd.f32 %v5300, %v5312
    %v5325 = vmul.f32 %v5319, 0.25
    %v5326 = vmul.f32 %v5320, 0.25
    %v5327 = vmul.f32 %v5321, 0.25
    %v5328 = vmul.f32 %v5322, 0.25
    %v5329 = vmul.f32 %v5323, 0.25
    %v5330 = vmul.f32 %v5324, 0.25
    %v5331 = vld [vmem:[%s4] sm:$0x1]
    %v5333 = vlaneseq
    %v5334 = vshrl.u32 %v5333, 7
    %v5335 = vsub.s32 0, %v5334
    %v5336 = vrot.slane %v5331, %v5335
    %v5338 = vmul.f32 %v5325, %v5336
    %v5339 = vmul.f32 %v5326, %v5336
    %v5340 = vmul.f32 %v5327, %v5336
    %v5341 = vmul.f32 %v5328, %v5336
    %v5342 = vmul.f32 %v5329, %v5336
    %v5343 = vmul.f32 %v5330, %v5336
    %v5344 = vsel %vm316, %v5338, 0.0
    %5345 = vadd.xlane.f32.xlu0 %v5344
    %v5346 = vpop.xlane.xlu0 %5345
    %v5347 = vsel %vm316, %v5339, 0.0
    %5348 = vadd.xlane.f32.xlu0 %v5347
    %v5349 = vpop.xlane.xlu0 %5348
    %v5350 = vsel %vm316, %v5340, 0.0
    %5351 = vadd.xlane.f32.xlu0 %v5350
    %v5352 = vpop.xlane.xlu0 %5351
    %v5353 = vsel %vm316, %v5341, 0.0
    %5354 = vadd.xlane.f32.xlu0 %v5353
    %v5355 = vpop.xlane.xlu0 %5354
    %v5356 = vsel %vm316, %v5342, 0.0
    %5357 = vadd.xlane.f32.xlu0 %v5356
    %v5358 = vpop.xlane.xlu0 %5357
    %v5359 = vsel %vm316, %v5343, 0.0
    %5360 = vadd.xlane.f32.xlu0 %v5359
    %v5361 = vpop.xlane.xlu0 %5360
    %s5362 = sld [smem:[#allocation2]]
    %v5363 = vstv %s5362
    %v5364 = vadd.f32 %v5346, %v5363
    %v5365 = vadd.f32 %v5349, %v5363
    %v5366 = vadd.f32 %v5352, %v5363
    %v5367 = vadd.f32 %v5355, %v5363
    %v5368 = vadd.f32 %v5358, %v5363
    %v5369 = vadd.f32 %v5361, %v5363
    %v5370 = vsub.f32 0.0, %v5364
    %v5371 = vsub.f32 0.0, %v5365
    %v5372 = vsub.f32 0.0, %v5366
    %v5373 = vsub.f32 0.0, %v5367
    %v5374 = vsub.f32 0.0, %v5368
    %v5375 = vsub.f32 0.0, %v5369
    %v5376 = vmul.f32 %v5370, 1.442695
    %v5377 = vpow.pop %v5376
    %v5378 = vmul.f32 %v5371, 1.442695
    %v5379 = vpow.pop %v5378
    %v5380 = vmul.f32 %v5372, 1.442695
    %v5381 = vpow.pop %v5380
    %v5382 = vmul.f32 %v5373, 1.442695
    %v5383 = vpow.pop %v5382
    %v5384 = vmul.f32 %v5374, 1.442695
    %v5385 = vpow.pop %v5384
    %v5386 = vmul.f32 %v5375, 1.442695
    %v5387 = vpow.pop %v5386
    %v5388 = vadd.f32 %v5377, 1.0
    %v5389 = vadd.f32 %v5379, 1.0
    %v5390 = vadd.f32 %v5381, 1.0
    %v5391 = vadd.f32 %v5383, 1.0
    %v5392 = vadd.f32 %v5385, 1.0
    %v5393 = vadd.f32 %v5387, 1.0
    %v5394 = vrcp.pop %v5388
    %v5395 = vmul.f32 1.0, %v5394
    %v5396 = vrcp.pop %v5389
    %v5397 = vmul.f32 1.0, %v5396
    %v5398 = vrcp.pop %v5390
    %v5399 = vmul.f32 1.0, %v5398
    %v5400 = vrcp.pop %v5391
    %v5401 = vmul.f32 1.0, %v5400
    %v5402 = vrcp.pop %v5392
    %v5403 = vmul.f32 1.0, %v5402
    %v5404 = vrcp.pop %v5393
    %v5405 = vmul.f32 1.0, %v5404
    %v5406 = vmul.f32 %v5395, %v5325
    %v5407 = vmul.f32 %v5397, %v5326
    %v5408 = vmul.f32 %v5399, %v5327
    %v5409 = vmul.f32 %v5401, %v5328
    %v5410 = vmul.f32 %v5403, %v5329
    %v5411 = vmul.f32 %v5405, %v5330
    %v5412 = vsel %vm316, %v5406, 0.0
    %v5413 = vrot.slane %v5412, 4
    %v5414 = vadd.f32 %v5412, %v5413
    %v5415 = vrot.slane %v5414, 2
    %v5416 = vadd.f32 %v5414, %v5415
    %v5417 = vrot.slane %v5416, 1
    %v5418 = vadd.f32 %v5416, %v5417
    %v5419 = vsel %vm316, %v5407, 0.0
    %v5420 = vrot.slane %v5419, 4
    %v5421 = vadd.f32 %v5419, %v5420
    %v5422 = vrot.slane %v5421, 2
    %v5423 = vadd.f32 %v5421, %v5422
    %v5424 = vrot.slane %v5423, 1
    %v5425 = vadd.f32 %v5423, %v5424
    %v5426 = vsel %vm316, %v5408, 0.0
    %v5427 = vrot.slane %v5426, 4
    %v5428 = vadd.f32 %v5426, %v5427
    %v5429 = vrot.slane %v5428, 2
    %v5430 = vadd.f32 %v5428, %v5429
    %v5431 = vrot.slane %v5430, 1
    %v5432 = vadd.f32 %v5430, %v5431
    %v5433 = vsel %vm316, %v5409, 0.0
    %v5434 = vrot.slane %v5433, 4
    %v5435 = vadd.f32 %v5433, %v5434
    %v5436 = vrot.slane %v5435, 2
    %v5437 = vadd.f32 %v5435, %v5436
    %v5438 = vrot.slane %v5437, 1
    %v5439 = vadd.f32 %v5437, %v5438
    %v5440 = vsel %vm316, %v5410, 0.0
    %v5441 = vrot.slane %v5440, 4
    %v5442 = vadd.f32 %v5440, %v5441
    %v5443 = vrot.slane %v5442, 2
    %v5444 = vadd.f32 %v5442, %v5443
    %v5445 = vrot.slane %v5444, 1
    %v5446 = vadd.f32 %v5444, %v5445
    %v5447 = vsel %vm316, %v5411, 0.0
    %v5448 = vrot.slane %v5447, 4
    %v5449 = vadd.f32 %v5447, %v5448
    %v5450 = vrot.slane %v5449, 2
    %v5451 = vadd.f32 %v5449, %v5450
    %v5452 = vrot.slane %v5451, 1
    %v5453 = vadd.f32 %v5451, %v5452
    %v5454 = vsel %vm316, %v5325, -inf
    %v5455 = vrot.slane %v5454, 4
    %v5456 = vmax.f32 %v5454, %v5455
    %v5457 = vrot.slane %v5456, 2
    %v5458 = vmax.f32 %v5456, %v5457
    %v5459 = vrot.slane %v5458, 1
    %v5460 = vmax.f32 %v5458, %v5459
    %v5461 = vsel %vm316, %v5326, -inf
    %v5462 = vrot.slane %v5461, 4
    %v5463 = vmax.f32 %v5461, %v5462
    %v5464 = vrot.slane %v5463, 2
    %v5465 = vmax.f32 %v5463, %v5464
    %v5466 = vrot.slane %v5465, 1
    %v5467 = vmax.f32 %v5465, %v5466
    %v5468 = vsel %vm316, %v5327, -inf
    %v5469 = vrot.slane %v5468, 4
    %v5470 = vmax.f32 %v5468, %v5469
    %v5471 = vrot.slane %v5470, 2
    %v5472 = vmax.f32 %v5470, %v5471
    %v5473 = vrot.slane %v5472, 1
    %v5474 = vmax.f32 %v5472, %v5473
    %v5475 = vsel %vm316, %v5328, -inf
    %v5476 = vrot.slane %v5475, 4
    %v5477 = vmax.f32 %v5475, %v5476
    %v5478 = vrot.slane %v5477, 2
    %v5479 = vmax.f32 %v5477, %v5478
    %v5480 = vrot.slane %v5479, 1
    %v5481 = vmax.f32 %v5479, %v5480
    %v5482 = vsel %vm316, %v5329, -inf
    %v5483 = vrot.slane %v5482, 4
    %v5484 = vmax.f32 %v5482, %v5483
    %v5485 = vrot.slane %v5484, 2
    %v5486 = vmax.f32 %v5484, %v5485
    %v5487 = vrot.slane %v5486, 1
    %v5488 = vmax.f32 %v5486, %v5487
    %v5489 = vsel %vm316, %v5330, -inf
    %v5490 = vrot.slane %v5489, 4
    %v5491 = vmax.f32 %v5489, %v5490
    %v5492 = vrot.slane %v5491, 2
    %v5493 = vmax.f32 %v5491, %v5492
    %v5494 = vrot.slane %v5493, 1
    %v5495 = vmax.f32 %v5493, %v5494
    %vm5502 = vcmask 1041409
    %v5503 = vsel %vm5502, %v5425, %v5418
    %vm5504 = vcmask 1042434
    %v5505 = vsel %vm5504, %v5432, %v5503
    %vm5506 = vcmask 1043459
    %v5507 = vsel %vm5506, %v5439, %v5505
    %vm5508 = vcmask 1044484
    %v5509 = vsel %vm5508, %v5446, %v5507
    %vm5510 = vcmask 1045509
    %v5511 = vsel %vm5510, %v5453, %v5509
    %v5519 = vsel %vm5502, %v5467, %v5460
    %v5520 = vsel %vm5504, %v5474, %v5519
    %v5521 = vsel %vm5506, %v5481, %v5520
    %v5522 = vsel %vm5508, %v5488, %v5521
    %v5523 = vsel %vm5510, %v5495, %v5522
    %5524 = vrot.lane.b32.xlu0 %v5523, 32
    %v5525 = vpop.permute.xlu0 %5524
    %v5527 = vsel %vm316, %v5511, %v5525
    %v5529 = vcombine.high %v5527, %v5527
    %v5531 = vunpack.c.l.s4 1983009808
    %v5532 = vunpack.c.0.s8 %v5531
    %v5533 = vlaneseq
    %v5534 = vshrl.u32 %v5533, 7
    %v5535 = vsub.s32 %v5532, %v5534
    %v5536 = vrot.slane %v5527, %v5535
    %v5538 = vunpack.c.l.s4 1983009808
    %v5539 = vunpack.c.0.s8 %v5538
    %v5540 = vlaneseq
    %v5541 = vshrl.u32 %v5540, 7
    %v5542 = vsub.s32 %v5539, %v5541
    %v5543 = vrot.slane %v5529, %v5542
    %v5544 = vcombine.high %v5536, %v5536
    %v5545 = vld [vmem:[%s5] sm:$0xff]
    %v5546 = vld [vmem:[%s5 + $0x8] sm:$0xff]
    %v5547 = vld [vmem:[%s5 + $0x10] sm:$0xff]
    %v5548 = vld [vmem:[%s5 + $0x18] sm:$0xff]
    %v5549 = vld [vmem:[%s5 + $0x20] sm:$0xff]
    %v5550 = vld [vmem:[%s5 + $0x28] sm:$0xff]
    %v5551 = vld [vmem:[%s5 + $0x30] sm:$0xff]
    %v5552 = vld [vmem:[%s5 + $0x38] sm:$0xff]
    %v5553 = vld [vmem:[%s5 + $0x40] sm:$0xff]
    %v5554 = vld [vmem:[%s5 + $0x48] sm:$0xff]
    %v5555 = vld [vmem:[%s5 + $0x50] sm:$0xff]
    %v5556 = vld [vmem:[%s5 + $0x58] sm:$0xff]
    %v5557 = vld [vmem:[%s5 + $0x60] sm:$0xff]
    %v5558 = vld [vmem:[%s5 + $0x68] sm:$0xff]
    %v5559 = vld [vmem:[%s5 + $0x70] sm:$0xff]
    %v5560 = vld [vmem:[%s5 + $0x78] sm:$0xff]
    %v5561 = vld [vmem:[%s5 + $0x80] sm:$0xff]
    %v5562 = vld [vmem:[%s5 + $0x88] sm:$0xff]
    %v5563 = vld [vmem:[%s5 + $0x90] sm:$0xff]
    %v5564 = vld [vmem:[%s5 + $0x98] sm:$0xff]
    %v5565 = vld [vmem:[%s5 + $0xa0] sm:$0xff]
    %v5566 = vld [vmem:[%s5 + $0xa8] sm:$0xff]
    %v5567 = vld [vmem:[%s5 + $0xb0] sm:$0xff]
    %v5568 = vld [vmem:[%s5 + $0xb8] sm:$0xff]
    %v5569 = vsel %vm2712, %v5536, 0
    %5571 = vmatprep.subr.mxu0 0.0
    %5572 = vmatpush1.msra.mxu0 0.0
    %5573 = vmatprep.subr.mxu0 0.0
    %5574 = vmatpush1.msra.mxu0 0.0
    %5575 = vmatprep.subr.mxu0 0.0
    %5576 = vmatpush1.msra.mxu0 0.0
    %5577 = vmatprep.subr.mxu0 0.0
    %5578 = vmatpush1.msra.mxu0 0.0
    %5579 = vmatprep.subr.mxu0 0.0
    %5580 = vmatpush1.msra.mxu0 0.0
    %5581 = vmatprep.subr.mxu0 0.0
    %5582 = vmatpush1.msra.mxu0 0.0
    %5583 = vmatprep.subr.mxu0 0.0
    %5584 = vmatpush1.msra.mxu0 0.0
    %5585 = vmatprep.subr.mxu0 0.0
    %5586 = vmatpush1.msra.mxu0 0.0
    %5587 = vmatprep.subr.mxu0 0.0
    %5588 = vmatpush1.msra.mxu0 %v5552
    %5589 = vmatprep.subr.mxu0 0.0
    %5590 = vmatpush1.msra.mxu0 %v5551
    %5591 = vmatprep.subr.mxu0 0.0
    %5592 = vmatpush1.msra.mxu0 %v5550
    %5593 = vmatprep.subr.mxu0 0.0
    %5594 = vmatpush1.msra.mxu0 %v5549
    %5595 = vmatprep.subr.mxu0 0.0
    %5596 = vmatpush1.msra.mxu0 %v5548
    %5597 = vmatprep.subr.mxu0 0.0
    %5598 = vmatpush1.msra.mxu0 %v5547
    %5599 = vmatprep.subr.mxu0 0.0
    %5600 = vmatpush1.msra.mxu0 %v5546
    %5601 = vmatprep.subr.mxu0 0.0
    %5602 = vmatpush1.msra.mxu0 %v5545
    %5603 = vmatprep.subr.mxu0 0.0
    %5604 = vmatpush2.msra.mxu0 0.0
    %5605 = vmatprep.subr.mxu0 0.0
    %5606 = vmatpush2.msra.mxu0 0.0
    %5607 = vmatprep.subr.mxu0 0.0
    %5608 = vmatpush2.msra.mxu0 0.0
    %5609 = vmatprep.subr.mxu0 0.0
    %5610 = vmatpush2.msra.mxu0 0.0
    %5611 = vmatprep.subr.mxu0 0.0
    %5612 = vmatpush2.msra.mxu0 0.0
    %5613 = vmatprep.subr.mxu0 0.0
    %5614 = vmatpush2.msra.mxu0 0.0
    %5615 = vmatprep.subr.mxu0 0.0
    %5616 = vmatpush2.msra.mxu0 0.0
    %5617 = vmatprep.subr.mxu0 0.0
    %5618 = vmatpush2.msra.mxu0 0.0
    %5619 = vmatprep.subr.mxu0 0.0
    %5620 = vmatpush2.msra.mxu0 0.0
    %5621 = vmatprep.subr.mxu0 0.0
    %5622 = vmatpush2.msra.mxu0 0.0
    %5623 = vmatprep.subr.mxu0 0.0
    %5624 = vmatpush2.msra.mxu0 0.0
    %5625 = vmatprep.subr.mxu0 0.0
    %5626 = vmatpush2.msra.mxu0 0.0
    %5627 = vmatprep.subr.mxu0 0.0
    %5628 = vmatpush2.msra.mxu0 0.0
    %5629 = vmatprep.subr.mxu0 0.0
    %5630 = vmatpush2.msra.mxu0 0.0
    %5631 = vmatprep.subr.mxu0 0.0
    %5632 = vmatpush2.msra.mxu0 0.0
    %5633 = vmatprep.subr.mxu0 0.0
    %5634 = vmatpush2.msra.mxu0 0.0
    %5635 = vmatprep.mubr.f32.mxu0 0.0
    %5636 = vmatmul.mubr.f32.gmra.mxu0 %v5569
    %v5637 = vpop.f32.mrf.mxu0
    %v5638 = vadd.f32 0.0, %v5637
    %v5639 = vpop.f32.mrf.mxu0
    %5640 = vdwg.mxu0
    %v5641 = vsel %vm2712, %v5544, 0
    %5643 = vmatprep.subr.mxu0 0.0
    %5644 = vmatpush1.msra.mxu0 0.0
    %5645 = vmatprep.subr.mxu0 0.0
    %5646 = vmatpush1.msra.mxu0 0.0
    %5647 = vmatprep.subr.mxu0 0.0
    %5648 = vmatpush1.msra.mxu0 0.0
    %5649 = vmatprep.subr.mxu0 0.0
    %5650 = vmatpush1.msra.mxu0 0.0
    %5651 = vmatprep.subr.mxu0 0.0
    %5652 = vmatpush1.msra.mxu0 0.0
    %5653 = vmatprep.subr.mxu0 0.0
    %5654 = vmatpush1.msra.mxu0 0.0
    %5655 = vmatprep.subr.mxu0 0.0
    %5656 = vmatpush1.msra.mxu0 0.0
    %5657 = vmatprep.subr.mxu0 0.0
    %5658 = vmatpush1.msra.mxu0 0.0
    %5659 = vmatprep.subr.mxu0 0.0
    %5660 = vmatpush1.msra.mxu0 %v5560
    %5661 = vmatprep.subr.mxu0 0.0
    %5662 = vmatpush1.msra.mxu0 %v5559
    %5663 = vmatprep.subr.mxu0 0.0
    %5664 = vmatpush1.msra.mxu0 %v5558
    %5665 = vmatprep.subr.mxu0 0.0
    %5666 = vmatpush1.msra.mxu0 %v5557
    %5667 = vmatprep.subr.mxu0 0.0
    %5668 = vmatpush1.msra.mxu0 %v5556
    %5669 = vmatprep.subr.mxu0 0.0
    %5670 = vmatpush1.msra.mxu0 %v5555
    %5671 = vmatprep.subr.mxu0 0.0
    %5672 = vmatpush1.msra.mxu0 %v5554
    %5673 = vmatprep.subr.mxu0 0.0
    %5674 = vmatpush1.msra.mxu0 %v5553
    %5675 = vmatprep.subr.mxu0 0.0
    %5676 = vmatpush2.msra.mxu0 0.0
    %5677 = vmatprep.subr.mxu0 0.0
    %5678 = vmatpush2.msra.mxu0 0.0
    %5679 = vmatprep.subr.mxu0 0.0
    %5680 = vmatpush2.msra.mxu0 0.0
    %5681 = vmatprep.subr.mxu0 0.0
    %5682 = vmatpush2.msra.mxu0 0.0
    %5683 = vmatprep.subr.mxu0 0.0
    %5684 = vmatpush2.msra.mxu0 0.0
    %5685 = vmatprep.subr.mxu0 0.0
    %5686 = vmatpush2.msra.mxu0 0.0
    %5687 = vmatprep.subr.mxu0 0.0
    %5688 = vmatpush2.msra.mxu0 0.0
    %5689 = vmatprep.subr.mxu0 0.0
    %5690 = vmatpush2.msra.mxu0 0.0
    %5691 = vmatprep.subr.mxu0 0.0
    %5692 = vmatpush2.msra.mxu0 0.0
    %5693 = vmatprep.subr.mxu0 0.0
    %5694 = vmatpush2.msra.mxu0 0.0
    %5695 = vmatprep.subr.mxu0 0.0
    %5696 = vmatpush2.msra.mxu0 0.0
    %5697 = vmatprep.subr.mxu0 0.0
    %5698 = vmatpush2.msra.mxu0 0.0
    %5699 = vmatprep.subr.mxu0 0.0
    %5700 = vmatpush2.msra.mxu0 0.0
    %5701 = vmatprep.subr.mxu0 0.0
    %5702 = vmatpush2.msra.mxu0 0.0
    %5703 = vmatprep.subr.mxu0 0.0
    %5704 = vmatpush2.msra.mxu0 0.0
    %5705 = vmatprep.subr.mxu0 0.0
    %5706 = vmatpush2.msra.mxu0 0.0
    %5707 = vmatprep.mubr.f32.mxu0 0.0
    %5708 = vmatmul.mubr.f32.gmra.mxu0 %v5641
    %v5709 = vpop.f32.mrf.mxu0
    %v5710 = vadd.f32 0.0, %v5709
    %v5711 = vpop.f32.mrf.mxu0
    %5712 = vdwg.mxu0
    %v5713 = vsel %vm2712, %v5543, 0
    %5715 = vmatprep.subr.mxu0 0.0
    %5716 = vmatpush1.msra.mxu0 0.0
    %5717 = vmatprep.subr.mxu0 0.0
    %5718 = vmatpush1.msra.mxu0 0.0
    %5719 = vmatprep.subr.mxu0 0.0
    %5720 = vmatpush1.msra.mxu0 0.0
    %5721 = vmatprep.subr.mxu0 0.0
    %5722 = vmatpush1.msra.mxu0 0.0
    %5723 = vmatprep.subr.mxu0 0.0
    %5724 = vmatpush1.msra.mxu0 0.0
    %5725 = vmatprep.subr.mxu0 0.0
    %5726 = vmatpush1.msra.mxu0 0.0
    %5727 = vmatprep.subr.mxu0 0.0
    %5728 = vmatpush1.msra.mxu0 0.0
    %5729 = vmatprep.subr.mxu0 0.0
    %5730 = vmatpush1.msra.mxu0 0.0
    %5731 = vmatprep.subr.mxu0 0.0
    %5732 = vmatpush1.msra.mxu0 %v5568
    %5733 = vmatprep.subr.mxu0 0.0
    %5734 = vmatpush1.msra.mxu0 %v5567
    %5735 = vmatprep.subr.mxu0 0.0
    %5736 = vmatpush1.msra.mxu0 %v5566
    %5737 = vmatprep.subr.mxu0 0.0
    %5738 = vmatpush1.msra.mxu0 %v5565
    %5739 = vmatprep.subr.mxu0 0.0
    %5740 = vmatpush1.msra.mxu0 %v5564
    %5741 = vmatprep.subr.mxu0 0.0
    %5742 = vmatpush1.msra.mxu0 %v5563
    %5743 = vmatprep.subr.mxu0 0.0
    %5744 = vmatpush1.msra.mxu0 %v5562
    %5745 = vmatprep.subr.mxu0 0.0
    %5746 = vmatpush1.msra.mxu0 %v5561
    %5747 = vmatprep.subr.mxu0 0.0
    %5748 = vmatpush2.msra.mxu0 0.0
    %5749 = vmatprep.subr.mxu0 0.0
    %5750 = vmatpush2.msra.mxu0 0.0
    %5751 = vmatprep.subr.mxu0 0.0
    %5752 = vmatpush2.msra.mxu0 0.0
    %5753 = vmatprep.subr.mxu0 0.0
    %5754 = vmatpush2.msra.mxu0 0.0
    %5755 = vmatprep.subr.mxu0 0.0
    %5756 = vmatpush2.msra.mxu0 0.0
    %5757 = vmatprep.subr.mxu0 0.0
    %5758 = vmatpush2.msra.mxu0 0.0
    %5759 = vmatprep.subr.mxu0 0.0
    %5760 = vmatpush2.msra.mxu0 0.0
    %5761 = vmatprep.subr.mxu0 0.0
    %5762 = vmatpush2.msra.mxu0 0.0
    %5763 = vmatprep.subr.mxu0 0.0
    %5764 = vmatpush2.msra.mxu0 0.0
    %5765 = vmatprep.subr.mxu0 0.0
    %5766 = vmatpush2.msra.mxu0 0.0
    %5767 = vmatprep.subr.mxu0 0.0
    %5768 = vmatpush2.msra.mxu0 0.0
    %5769 = vmatprep.subr.mxu0 0.0
    %5770 = vmatpush2.msra.mxu0 0.0
    %5771 = vmatprep.subr.mxu0 0.0
    %5772 = vmatpush2.msra.mxu0 0.0
    %5773 = vmatprep.subr.mxu0 0.0
    %5774 = vmatpush2.msra.mxu0 0.0
    %5775 = vmatprep.subr.mxu0 0.0
    %5776 = vmatpush2.msra.mxu0 0.0
    %5777 = vmatprep.subr.mxu0 0.0
    %5778 = vmatpush2.msra.mxu0 0.0
    %5779 = vmatprep.mubr.f32.mxu0 0.0
    %5780 = vmatmul.mubr.f32.gmra.mxu0 %v5713
    %v5781 = vpop.f32.mrf.mxu0
    %v5782 = vadd.f32 0.0, %v5781
    %v5783 = vpop.f32.mrf.mxu0
    %5784 = vdwg.mxu0
    %v5785 = vmul.f32 %v5638, 0.33333334
    %v5786 = vmul.f32 %v5710, 0.33333334
    %v5787 = vmul.f32 %v5782, 0.33333334
    %vm5788 = vcmask 254976
    %v5789 = vsel %vm5788, %v5785, 0.0
    %v5790 = vsel %vm5788, %v5786, 0.0
    %v5791 = vadd.f32 %v5789, %v5790
    %v5792 = vsel %vm5788, %v5787, 0.0
    %v5793 = vadd.f32 %v5791, %v5792
    %v5794 = vmul.f32 %v5793, %v5793
    %v5795 = vsel %vm5788, %v5794, 0.0
    %5796 = vadd.xlane.f32.xlu0 %v5795
    %v5797 = vpop.xlane.xlu0 %5796
    %v5798 = vadd.f32 %v5797, 1.0
    %v5799 = vrcp.pop %v5798
    %v5800 = vmul.f32 %v5797, %v5799
    %v5801 = vmul.f32 %v5800, %v5793
    %v5802 = vmax.f32 %v5797, 1e-30
    %v5803 = vrsqrt.pop %v5802
    %v5804 = vmul.f32 %v5802, %v5803
    %vm5805 = vcmp.eq.f32.partialorder %v5802, inf
    %v5806 = vsel %vm5805, %v5802, %v5804
    %vm5807 = vcmp.eq.f32.partialorder %v5802, 0.0
    %v5808 = vand.u32 %v5802, 2147483648
    %v5809 = vsel %vm5807, %v5808, %v5806
    %v5810 = vrcp.pop %v5809
    %v5811 = vmul.f32 %v5801, %v5810
    %v5812 = vmul.f32 %v5638, %v5811
    %v5813 = vmul.f32 %v5710, %v5811
    %v5814 = vmul.f32 %v5782, %v5811
    %v5815 = vsel %vm5788, %v5812, 0.0
    %5816 = vadd.xlane.f32.xlu0 %v5815
    %v5817 = vpop.xlane.xlu0 %5816
    %v5818 = vsel %vm5788, %v5813, 0.0
    %5819 = vadd.xlane.f32.xlu0 %v5818
    %v5820 = vpop.xlane.xlu0 %5819
    %v5821 = vsel %vm5788, %v5814, 0.0
    %5822 = vadd.xlane.f32.xlu0 %v5821
    %v5823 = vpop.xlane.xlu0 %5822
    %v5824 = vadd.f32 %v5817, 0.0
    %v5825 = vadd.f32 %v5820, 0.0
    %v5826 = vadd.f32 %v5823, 0.0
    %vm5827 = vcmask 1041408
    %v5828 = vsel %vm5827, %v5824, -inf
    %v5829 = vsel %vm5827, %v5825, -inf
    %v5830 = vsel %vm5827, %v5826, -inf
    %v5831 = vmax.f32 %v5828, %v5829
    %v5832 = vmax.f32 %v5831, %v5830
    %v5833 = vsub.f32 %v5824, %v5832
    %v5834 = vsub.f32 %v5825, %v5832
    %v5835 = vsub.f32 %v5826, %v5832
    %v5836 = vmul.f32 %v5833, 1.442695
    %v5837 = vpow.pop %v5836
    %v5838 = vmul.f32 %v5834, 1.442695
    %v5839 = vpow.pop %v5838
    %v5840 = vmul.f32 %v5835, 1.442695
    %v5841 = vpow.pop %v5840
    %v5842 = vsel %vm5827, %v5837, 0.0
    %v5843 = vsel %vm5827, %v5839, 0.0
    %v5844 = vadd.f32 %v5842, %v5843
    %v5845 = vsel %vm5827, %v5841, 0.0
    %v5846 = vadd.f32 %v5844, %v5845
    %v5847 = vrcp.pop %v5846
    %v5848 = vmul.f32 %v5837, %v5847
    %v5849 = vmul.f32 %v5839, %v5847
    %v5850 = vmul.f32 %v5841, %v5847
    %v5851 = vmul.f32 %v5848, %v5638
    %v5852 = vmul.f32 %v5849, %v5710
    %v5853 = vmul.f32 %v5850, %v5782
    %v5854 = vsel %vm5788, %v5851, 0.0
    %v5855 = vsel %vm5788, %v5852, 0.0
    %v5856 = vadd.f32 %v5854, %v5855
    %v5857 = vsel %vm5788, %v5853, 0.0
    %v5858 = vadd.f32 %v5856, %v5857
    %v5859 = vmul.f32 %v5858, %v5858
    %v5860 = vsel %vm5788, %v5859, 0.0
    %5861 = vadd.xlane.f32.xlu0 %v5860
    %v5862 = vpop.xlane.xlu0 %5861
    %v5863 = vadd.f32 %v5862, 1.0
    %v5864 = vrcp.pop %v5863
    %v5865 = vmul.f32 %v5862, %v5864
    %v5866 = vmul.f32 %v5865, %v5858
    %v5867 = vmax.f32 %v5862, 1e-30
    %v5868 = vrsqrt.pop %v5867
    %v5869 = vmul.f32 %v5867, %v5868
    %vm5870 = vcmp.eq.f32.partialorder %v5867, inf
    %v5871 = vsel %vm5870, %v5867, %v5869
    %vm5872 = vcmp.eq.f32.partialorder %v5867, 0.0
    %v5873 = vand.u32 %v5867, 2147483648
    %v5874 = vsel %vm5872, %v5873, %v5871
    %v5875 = vrcp.pop %v5874
    %v5876 = vmul.f32 %v5866, %v5875
    %v5877 = vmul.f32 %v5638, %v5876
    %v5878 = vmul.f32 %v5710, %v5876
    %v5879 = vmul.f32 %v5782, %v5876
    %v5880 = vsel %vm5788, %v5877, 0.0
    %5881 = vadd.xlane.f32.xlu0 %v5880
    %v5882 = vpop.xlane.xlu0 %5881
    %v5883 = vsel %vm5788, %v5878, 0.0
    %5884 = vadd.xlane.f32.xlu0 %v5883
    %v5885 = vpop.xlane.xlu0 %5884
    %v5886 = vsel %vm5788, %v5879, 0.0
    %5887 = vadd.xlane.f32.xlu0 %v5886
    %v5888 = vpop.xlane.xlu0 %5887
    %v5889 = vadd.f32 %v5824, %v5882
    %v5890 = vadd.f32 %v5825, %v5885
    %v5891 = vadd.f32 %v5826, %v5888
    %v5892 = vsel %vm5827, %v5889, -inf
    %v5893 = vsel %vm5827, %v5890, -inf
    %v5894 = vsel %vm5827, %v5891, -inf
    %v5895 = vmax.f32 %v5892, %v5893
    %v5896 = vmax.f32 %v5895, %v5894
    %v5897 = vsub.f32 %v5889, %v5896
    %v5898 = vsub.f32 %v5890, %v5896
    %v5899 = vsub.f32 %v5891, %v5896
    %v5900 = vmul.f32 %v5897, 1.442695
    %v5901 = vpow.pop %v5900
    %v5902 = vmul.f32 %v5898, 1.442695
    %v5903 = vpow.pop %v5902
    %v5904 = vmul.f32 %v5899, 1.442695
    %v5905 = vpow.pop %v5904
    %v5906 = vsel %vm5827, %v5901, 0.0
    %v5907 = vsel %vm5827, %v5903, 0.0
    %v5908 = vadd.f32 %v5906, %v5907
    %v5909 = vsel %vm5827, %v5905, 0.0
    %v5910 = vadd.f32 %v5908, %v5909
    %v5911 = vrcp.pop %v5910
    %v5912 = vmul.f32 %v5901, %v5911
    %v5913 = vmul.f32 %v5903, %v5911
    %v5914 = vmul.f32 %v5905, %v5911
    %v5915 = vmul.f32 %v5912, %v5638
    %v5916 = vmul.f32 %v5913, %v5710
    %v5917 = vmul.f32 %v5914, %v5782
    %v5918 = vsel %vm5788, %v5915, 0.0
    %v5919 = vsel %vm5788, %v5916, 0.0
    %v5920 = vadd.f32 %v5918, %v5919
    %v5921 = vsel %vm5788, %v5917, 0.0
    %v5922 = vadd.f32 %v5920, %v5921
    %v5923 = vmul.f32 %v5922, %v5922
    %v5924 = vsel %vm5788, %v5923, 0.0
    %5925 = vadd.xlane.f32.xlu0 %v5924
    %v5926 = vpop.xlane.xlu0 %5925
    %v5927 = vadd.f32 %v5926, 1.0
    %v5928 = vrcp.pop %v5927
    %v5929 = vmul.f32 %v5926, %v5928
    %v5930 = vmul.f32 %v5929, %v5922
    %v5931 = vmax.f32 %v5926, 1e-30
    %v5932 = vrsqrt.pop %v5931
    %v5933 = vmul.f32 %v5931, %v5932
    %vm5934 = vcmp.eq.f32.partialorder %v5931, inf
    %v5935 = vsel %vm5934, %v5931, %v5933
    %vm5936 = vcmp.eq.f32.partialorder %v5931, 0.0
    %v5937 = vand.u32 %v5931, 2147483648
    %v5938 = vsel %vm5936, %v5937, %v5935
    %v5939 = vrcp.pop %v5938
    %v5940 = vmul.f32 %v5930, %v5939
    %s5941 = scalar_lea.vmem %s5, 192
    %v5942 = vld [vmem:[%s5941] sm:$0xff]
    %v5943 = vld [vmem:[%s5941 + $0x8] sm:$0xff]
    %v5944 = vld [vmem:[%s5941 + $0x10] sm:$0xff]
    %v5945 = vld [vmem:[%s5941 + $0x18] sm:$0xff]
    %v5946 = vld [vmem:[%s5941 + $0x20] sm:$0xff]
    %v5947 = vld [vmem:[%s5941 + $0x28] sm:$0xff]
    %v5948 = vld [vmem:[%s5941 + $0x30] sm:$0xff]
    %v5949 = vld [vmem:[%s5941 + $0x38] sm:$0xff]
    %v5950 = vld [vmem:[%s5941 + $0x40] sm:$0xff]
    %v5951 = vld [vmem:[%s5941 + $0x48] sm:$0xff]
    %v5952 = vld [vmem:[%s5941 + $0x50] sm:$0xff]
    %v5953 = vld [vmem:[%s5941 + $0x58] sm:$0xff]
    %v5954 = vld [vmem:[%s5941 + $0x60] sm:$0xff]
    %v5955 = vld [vmem:[%s5941 + $0x68] sm:$0xff]
    %v5956 = vld [vmem:[%s5941 + $0x70] sm:$0xff]
    %v5957 = vld [vmem:[%s5941 + $0x78] sm:$0xff]
    %v5958 = vld [vmem:[%s5941 + $0x80] sm:$0xff]
    %v5959 = vld [vmem:[%s5941 + $0x88] sm:$0xff]
    %v5960 = vld [vmem:[%s5941 + $0x90] sm:$0xff]
    %v5961 = vld [vmem:[%s5941 + $0x98] sm:$0xff]
    %v5962 = vld [vmem:[%s5941 + $0xa0] sm:$0xff]
    %v5963 = vld [vmem:[%s5941 + $0xa8] sm:$0xff]
    %v5964 = vld [vmem:[%s5941 + $0xb0] sm:$0xff]
    %v5965 = vld [vmem:[%s5941 + $0xb8] sm:$0xff]
    %5966 = vmatprep.subr.mxu0 0.0
    %5967 = vmatpush1.msra.mxu0 0.0
    %5968 = vmatprep.subr.mxu0 0.0
    %5969 = vmatpush1.msra.mxu0 0.0
    %5970 = vmatprep.subr.mxu0 0.0
    %5971 = vmatpush1.msra.mxu0 0.0
    %5972 = vmatprep.subr.mxu0 0.0
    %5973 = vmatpush1.msra.mxu0 0.0
    %5974 = vmatprep.subr.mxu0 0.0
    %5975 = vmatpush1.msra.mxu0 0.0
    %5976 = vmatprep.subr.mxu0 0.0
    %5977 = vmatpush1.msra.mxu0 0.0
    %5978 = vmatprep.subr.mxu0 0.0
    %5979 = vmatpush1.msra.mxu0 0.0
    %5980 = vmatprep.subr.mxu0 0.0
    %5981 = vmatpush1.msra.mxu0 0.0
    %5982 = vmatprep.subr.mxu0 0.0
    %5983 = vmatpush1.msra.mxu0 %v5949
    %5984 = vmatprep.subr.mxu0 0.0
    %5985 = vmatpush1.msra.mxu0 %v5948
    %5986 = vmatprep.subr.mxu0 0.0
    %5987 = vmatpush1.msra.mxu0 %v5947
    %5988 = vmatprep.subr.mxu0 0.0
    %5989 = vmatpush1.msra.mxu0 %v5946
    %5990 = vmatprep.subr.mxu0 0.0
    %5991 = vmatpush1.msra.mxu0 %v5945
    %5992 = vmatprep.subr.mxu0 0.0
    %5993 = vmatpush1.msra.mxu0 %v5944
    %5994 = vmatprep.subr.mxu0 0.0
    %5995 = vmatpush1.msra.mxu0 %v5943
    %5996 = vmatprep.subr.mxu0 0.0
    %5997 = vmatpush1.msra.mxu0 %v5942
    %5998 = vmatprep.subr.mxu0 0.0
    %5999 = vmatpush2.msra.mxu0 0.0
    %6000 = vmatprep.subr.mxu0 0.0
    %6001 = vmatpush2.msra.mxu0 0.0
    %6002 = vmatprep.subr.mxu0 0.0
    %6003 = vmatpush2.msra.mxu0 0.0
    %6004 = vmatprep.subr.mxu0 0.0
    %6005 = vmatpush2.msra.mxu0 0.0
    %6006 = vmatprep.subr.mxu0 0.0
    %6007 = vmatpush2.msra.mxu0 0.0
    %6008 = vmatprep.subr.mxu0 0.0
    %6009 = vmatpush2.msra.mxu0 0.0
    %6010 = vmatprep.subr.mxu0 0.0
    %6011 = vmatpush2.msra.mxu0 0.0
    %6012 = vmatprep.subr.mxu0 0.0
    %6013 = vmatpush2.msra.mxu0 0.0
    %6014 = vmatprep.subr.mxu0 0.0
    %6015 = vmatpush2.msra.mxu0 0.0
    %6016 = vmatprep.subr.mxu0 0.0
    %6017 = vmatpush2.msra.mxu0 0.0
    %6018 = vmatprep.subr.mxu0 0.0
    %6019 = vmatpush2.msra.mxu0 0.0
    %6020 = vmatprep.subr.mxu0 0.0
    %6021 = vmatpush2.msra.mxu0 0.0
    %6022 = vmatprep.subr.mxu0 0.0
    %6023 = vmatpush2.msra.mxu0 0.0
    %6024 = vmatprep.subr.mxu0 0.0
    %6025 = vmatpush2.msra.mxu0 0.0
    %6026 = vmatprep.subr.mxu0 0.0
    %6027 = vmatpush2.msra.mxu0 0.0
    %6028 = vmatprep.subr.mxu0 0.0
    %6029 = vmatpush2.msra.mxu0 0.0
    %6030 = vmatprep.mubr.f32.mxu0 0.0
    %6031 = vmatmul.mubr.f32.gmra.mxu0 %v5569
    %v6032 = vpop.f32.mrf.mxu0
    %v6033 = vadd.f32 0.0, %v6032
    %v6034 = vpop.f32.mrf.mxu0
    %6035 = vdwg.mxu0
    %6036 = vmatprep.subr.mxu0 0.0
    %6037 = vmatpush1.msra.mxu0 0.0
    %6038 = vmatprep.subr.mxu0 0.0
    %6039 = vmatpush1.msra.mxu0 0.0
    %6040 = vmatprep.subr.mxu0 0.0
    %6041 = vmatpush1.msra.mxu0 0.0
    %6042 = vmatprep.subr.mxu0 0.0
    %6043 = vmatpush1.msra.mxu0 0.0
    %6044 = vmatprep.subr.mxu0 0.0
    %6045 = vmatpush1.msra.mxu0 0.0
    %6046 = vmatprep.subr.mxu0 0.0
    %6047 = vmatpush1.msra.mxu0 0.0
    %6048 = vmatprep.subr.mxu0 0.0
    %6049 = vmatpush1.msra.mxu0 0.0
    %6050 = vmatprep.subr.mxu0 0.0
    %6051 = vmatpush1.msra.mxu0 0.0
    %6052 = vmatprep.subr.mxu0 0.0
    %6053 = vmatpush1.msra.mxu0 %v5957
    %6054 = vmatprep.subr.mxu0 0.0
    %6055 = vmatpush1.msra.mxu0 %v5956
    %6056 = vmatprep.subr.mxu0 0.0
    %6057 = vmatpush1.msra.mxu0 %v5955
    %6058 = vmatprep.subr.mxu0 0.0
    %6059 = vmatpush1.msra.mxu0 %v5954
    %6060 = vmatprep.subr.mxu0 0.0
    %6061 = vmatpush1.msra.mxu0 %v5953
    %6062 = vmatprep.subr.mxu0 0.0
    %6063 = vmatpush1.msra.mxu0 %v5952
    %6064 = vmatprep.subr.mxu0 0.0
    %6065 = vmatpush1.msra.mxu0 %v5951
    %6066 = vmatprep.subr.mxu0 0.0
    %6067 = vmatpush1.msra.mxu0 %v5950
    %6068 = vmatprep.subr.mxu0 0.0
    %6069 = vmatpush2.msra.mxu0 0.0
    %6070 = vmatprep.subr.mxu0 0.0
    %6071 = vmatpush2.msra.mxu0 0.0
    %6072 = vmatprep.subr.mxu0 0.0
    %6073 = vmatpush2.msra.mxu0 0.0
    %6074 = vmatprep.subr.mxu0 0.0
    %6075 = vmatpush2.msra.mxu0 0.0
    %6076 = vmatprep.subr.mxu0 0.0
    %6077 = vmatpush2.msra.mxu0 0.0
    %6078 = vmatprep.subr.mxu0 0.0
    %6079 = vmatpush2.msra.mxu0 0.0
    %6080 = vmatprep.subr.mxu0 0.0
    %6081 = vmatpush2.msra.mxu0 0.0
    %6082 = vmatprep.subr.mxu0 0.0
    %6083 = vmatpush2.msra.mxu0 0.0
    %6084 = vmatprep.subr.mxu0 0.0
    %6085 = vmatpush2.msra.mxu0 0.0
    %6086 = vmatprep.subr.mxu0 0.0
    %6087 = vmatpush2.msra.mxu0 0.0
    %6088 = vmatprep.subr.mxu0 0.0
    %6089 = vmatpush2.msra.mxu0 0.0
    %6090 = vmatprep.subr.mxu0 0.0
    %6091 = vmatpush2.msra.mxu0 0.0
    %6092 = vmatprep.subr.mxu0 0.0
    %6093 = vmatpush2.msra.mxu0 0.0
    %6094 = vmatprep.subr.mxu0 0.0
    %6095 = vmatpush2.msra.mxu0 0.0
    %6096 = vmatprep.subr.mxu0 0.0
    %6097 = vmatpush2.msra.mxu0 0.0
    %6098 = vmatprep.subr.mxu0 0.0
    %6099 = vmatpush2.msra.mxu0 0.0
    %6100 = vmatprep.mubr.f32.mxu0 0.0
    %6101 = vmatmul.mubr.f32.gmra.mxu0 %v5641
    %v6102 = vpop.f32.mrf.mxu0
    %v6103 = vadd.f32 0.0, %v6102
    %v6104 = vpop.f32.mrf.mxu0
    %6105 = vdwg.mxu0
    %6106 = vmatprep.subr.mxu0 0.0
    %6107 = vmatpush1.msra.mxu0 0.0
    %6108 = vmatprep.subr.mxu0 0.0
    %6109 = vmatpush1.msra.mxu0 0.0
    %6110 = vmatprep.subr.mxu0 0.0
    %6111 = vmatpush1.msra.mxu0 0.0
    %6112 = vmatprep.subr.mxu0 0.0
    %6113 = vmatpush1.msra.mxu0 0.0
    %6114 = vmatprep.subr.mxu0 0.0
    %6115 = vmatpush1.msra.mxu0 0.0
    %6116 = vmatprep.subr.mxu0 0.0
    %6117 = vmatpush1.msra.mxu0 0.0
    %6118 = vmatprep.subr.mxu0 0.0
    %6119 = vmatpush1.msra.mxu0 0.0
    %6120 = vmatprep.subr.mxu0 0.0
    %6121 = vmatpush1.msra.mxu0 0.0
    %6122 = vmatprep.subr.mxu0 0.0
    %6123 = vmatpush1.msra.mxu0 %v5965
    %6124 = vmatprep.subr.mxu0 0.0
    %6125 = vmatpush1.msra.mxu0 %v5964
    %6126 = vmatprep.subr.mxu0 0.0
    %6127 = vmatpush1.msra.mxu0 %v5963
    %6128 = vmatprep.subr.mxu0 0.0
    %6129 = vmatpush1.msra.mxu0 %v5962
    %6130 = vmatprep.subr.mxu0 0.0
    %6131 = vmatpush1.msra.mxu0 %v5961
    %6132 = vmatprep.subr.mxu0 0.0
    %6133 = vmatpush1.msra.mxu0 %v5960
    %6134 = vmatprep.subr.mxu0 0.0
    %6135 = vmatpush1.msra.mxu0 %v5959
    %6136 = vmatprep.subr.mxu0 0.0
    %6137 = vmatpush1.msra.mxu0 %v5958
    %6138 = vmatprep.subr.mxu0 0.0
    %6139 = vmatpush2.msra.mxu0 0.0
    %6140 = vmatprep.subr.mxu0 0.0
    %6141 = vmatpush2.msra.mxu0 0.0
    %6142 = vmatprep.subr.mxu0 0.0
    %6143 = vmatpush2.msra.mxu0 0.0
    %6144 = vmatprep.subr.mxu0 0.0
    %6145 = vmatpush2.msra.mxu0 0.0
    %6146 = vmatprep.subr.mxu0 0.0
    %6147 = vmatpush2.msra.mxu0 0.0
    %6148 = vmatprep.subr.mxu0 0.0
    %6149 = vmatpush2.msra.mxu0 0.0
    %6150 = vmatprep.subr.mxu0 0.0
    %6151 = vmatpush2.msra.mxu0 0.0
    %6152 = vmatprep.subr.mxu0 0.0
    %6153 = vmatpush2.msra.mxu0 0.0
    %6154 = vmatprep.subr.mxu0 0.0
    %6155 = vmatpush2.msra.mxu0 0.0
    %6156 = vmatprep.subr.mxu0 0.0
    %6157 = vmatpush2.msra.mxu0 0.0
    %6158 = vmatprep.subr.mxu0 0.0
    %6159 = vmatpush2.msra.mxu0 0.0
    %6160 = vmatprep.subr.mxu0 0.0
    %6161 = vmatpush2.msra.mxu0 0.0
    %6162 = vmatprep.subr.mxu0 0.0
    %6163 = vmatpush2.msra.mxu0 0.0
    %6164 = vmatprep.subr.mxu0 0.0
    %6165 = vmatpush2.msra.mxu0 0.0
    %6166 = vmatprep.subr.mxu0 0.0
    %6167 = vmatpush2.msra.mxu0 0.0
    %6168 = vmatprep.subr.mxu0 0.0
    %6169 = vmatpush2.msra.mxu0 0.0
    %6170 = vmatprep.mubr.f32.mxu0 0.0
    %6171 = vmatmul.mubr.f32.gmra.mxu0 %v5713
    %v6172 = vpop.f32.mrf.mxu0
    %v6173 = vadd.f32 0.0, %v6172
    %v6174 = vpop.f32.mrf.mxu0
    %6175 = vdwg.mxu0
    %v6176 = vmul.f32 %v6033, 0.33333334
    %v6177 = vmul.f32 %v6103, 0.33333334
    %v6178 = vmul.f32 %v6173, 0.33333334
    %v6179 = vsel %vm5788, %v6176, 0.0
    %v6180 = vsel %vm5788, %v6177, 0.0
    %v6181 = vadd.f32 %v6179, %v6180
    %v6182 = vsel %vm5788, %v6178, 0.0
    %v6183 = vadd.f32 %v6181, %v6182
    %v6184 = vmul.f32 %v6183, %v6183
    %v6185 = vsel %vm5788, %v6184, 0.0
    %6186 = vadd.xlane.f32.xlu0 %v6185
    %v6187 = vpop.xlane.xlu0 %6186
    %v6188 = vadd.f32 %v6187, 1.0
    %v6189 = vrcp.pop %v6188
    %v6190 = vmul.f32 %v6187, %v6189
    %v6191 = vmul.f32 %v6190, %v6183
    %v6192 = vmax.f32 %v6187, 1e-30
    %v6193 = vrsqrt.pop %v6192
    %v6194 = vmul.f32 %v6192, %v6193
    %vm6195 = vcmp.eq.f32.partialorder %v6192, inf
    %v6196 = vsel %vm6195, %v6192, %v6194
    %vm6197 = vcmp.eq.f32.partialorder %v6192, 0.0
    %v6198 = vand.u32 %v6192, 2147483648
    %v6199 = vsel %vm6197, %v6198, %v6196
    %v6200 = vrcp.pop %v6199
    %v6201 = vmul.f32 %v6191, %v6200
    %v6202 = vmul.f32 %v6033, %v6201
    %v6203 = vmul.f32 %v6103, %v6201
    %v6204 = vmul.f32 %v6173, %v6201
    %v6205 = vsel %vm5788, %v6202, 0.0
    %6206 = vadd.xlane.f32.xlu0 %v6205
    %v6207 = vpop.xlane.xlu0 %6206
    %v6208 = vsel %vm5788, %v6203, 0.0
    %6209 = vadd.xlane.f32.xlu0 %v6208
    %v6210 = vpop.xlane.xlu0 %6209
    %v6211 = vsel %vm5788, %v6204, 0.0
    %6212 = vadd.xlane.f32.xlu0 %v6211
    %v6213 = vpop.xlane.xlu0 %6212
    %v6214 = vadd.f32 %v6207, 0.0
    %v6215 = vadd.f32 %v6210, 0.0
    %v6216 = vadd.f32 %v6213, 0.0
    %v6217 = vsel %vm5827, %v6214, -inf
    %v6218 = vsel %vm5827, %v6215, -inf
    %v6219 = vsel %vm5827, %v6216, -inf
    %v6220 = vmax.f32 %v6217, %v6218
    %v6221 = vmax.f32 %v6220, %v6219
    %v6222 = vsub.f32 %v6214, %v6221
    %v6223 = vsub.f32 %v6215, %v6221
    %v6224 = vsub.f32 %v6216, %v6221
    %v6225 = vmul.f32 %v6222, 1.442695
    %v6226 = vpow.pop %v6225
    %v6227 = vmul.f32 %v6223, 1.442695
    %v6228 = vpow.pop %v6227
    %v6229 = vmul.f32 %v6224, 1.442695
    %v6230 = vpow.pop %v6229
    %v6231 = vsel %vm5827, %v6226, 0.0
    %v6232 = vsel %vm5827, %v6228, 0.0
    %v6233 = vadd.f32 %v6231, %v6232
    %v6234 = vsel %vm5827, %v6230, 0.0
    %v6235 = vadd.f32 %v6233, %v6234
    %v6236 = vrcp.pop %v6235
    %v6237 = vmul.f32 %v6226, %v6236
    %v6238 = vmul.f32 %v6228, %v6236
    %v6239 = vmul.f32 %v6230, %v6236
    %v6240 = vmul.f32 %v6237, %v6033
    %v6241 = vmul.f32 %v6238, %v6103
    %v6242 = vmul.f32 %v6239, %v6173
    %v6243 = vsel %vm5788, %v6240, 0.0
    %v6244 = vsel %vm5788, %v6241, 0.0
    %v6245 = vadd.f32 %v6243, %v6244
    %v6246 = vsel %vm5788, %v6242, 0.0
    %v6247 = vadd.f32 %v6245, %v6246
    %v6248 = vmul.f32 %v6247, %v6247
    %v6249 = vsel %vm5788, %v6248, 0.0
    %6250 = vadd.xlane.f32.xlu0 %v6249
    %v6251 = vpop.xlane.xlu0 %6250
    %v6252 = vadd.f32 %v6251, 1.0
    %v6253 = vrcp.pop %v6252
    %v6254 = vmul.f32 %v6251, %v6253
    %v6255 = vmul.f32 %v6254, %v6247
    %v6256 = vmax.f32 %v6251, 1e-30
    %v6257 = vrsqrt.pop %v6256
    %v6258 = vmul.f32 %v6256, %v6257
    %vm6259 = vcmp.eq.f32.partialorder %v6256, inf
    %v6260 = vsel %vm6259, %v6256, %v6258
    %vm6261 = vcmp.eq.f32.partialorder %v6256, 0.0
    %v6262 = vand.u32 %v6256, 2147483648
    %v6263 = vsel %vm6261, %v6262, %v6260
    %v6264 = vrcp.pop %v6263
    %v6265 = vmul.f32 %v6255, %v6264
    %v6266 = vmul.f32 %v6033, %v6265
    %v6267 = vmul.f32 %v6103, %v6265
    %v6268 = vmul.f32 %v6173, %v6265
    %v6269 = vsel %vm5788, %v6266, 0.0
    %6270 = vadd.xlane.f32.xlu0 %v6269
    %v6271 = vpop.xlane.xlu0 %6270
    %v6272 = vsel %vm5788, %v6267, 0.0
    %6273 = vadd.xlane.f32.xlu0 %v6272
    %v6274 = vpop.xlane.xlu0 %6273
    %v6275 = vsel %vm5788, %v6268, 0.0
    %6276 = vadd.xlane.f32.xlu0 %v6275
    %v6277 = vpop.xlane.xlu0 %6276
    %v6278 = vadd.f32 %v6214, %v6271
    %v6279 = vadd.f32 %v6215, %v6274
    %v6280 = vadd.f32 %v6216, %v6277
    %v6281 = vsel %vm5827, %v6278, -inf
    %v6282 = vsel %vm5827, %v6279, -inf
    %v6283 = vsel %vm5827, %v6280, -inf
    %v6284 = vmax.f32 %v6281, %v6282
    %v6285 = vmax.f32 %v6284, %v6283
    %v6286 = vsub.f32 %v6278, %v6285
    %v6287 = vsub.f32 %v6279, %v6285
    %v6288 = vsub.f32 %v6280, %v6285
    %v6289 = vmul.f32 %v6286, 1.442695
    %v6290 = vpow.pop %v6289
    %v6291 = vmul.f32 %v6287, 1.442695
    %v6292 = vpow.pop %v6291
    %v6293 = vmul.f32 %v6288, 1.442695
    %v6294 = vpow.pop %v6293
    %v6295 = vsel %vm5827, %v6290, 0.0
    %v6296 = vsel %vm5827, %v6292, 0.0
    %v6297 = vadd.f32 %v6295, %v6296
    %v6298 = vsel %vm5827, %v6294, 0.0
    %v6299 = vadd.f32 %v6297, %v6298
    %v6300 = vrcp.pop %v6299
    %v6301 = vmul.f32 %v6290, %v6300
    %v6302 = vmul.f32 %v6292, %v6300
    %v6303 = vmul.f32 %v6294, %v6300
    %v6304 = vmul.f32 %v6301, %v6033
    %v6305 = vmul.f32 %v6302, %v6103
    %v6306 = vmul.f32 %v6303, %v6173
    %v6307 = vsel %vm5788, %v6304, 0.0
    %v6308 = vsel %vm5788, %v6305, 0.0
    %v6309 = vadd.f32 %v6307, %v6308
    %v6310 = vsel %vm5788, %v6306, 0.0
    %v6311 = vadd.f32 %v6309, %v6310
    %v6312 = vmul.f32 %v6311, %v6311
    %v6313 = vsel %vm5788, %v6312, 0.0
    %6314 = vadd.xlane.f32.xlu0 %v6313
    %v6315 = vpop.xlane.xlu0 %6314
    %v6316 = vadd.f32 %v6315, 1.0
    %v6317 = vrcp.pop %v6316
    %v6318 = vmul.f32 %v6315, %v6317
    %v6319 = vmul.f32 %v6318, %v6311
    %v6320 = vmax.f32 %v6315, 1e-30
    %v6321 = vrsqrt.pop %v6320
    %v6322 = vmul.f32 %v6320, %v6321
    %vm6323 = vcmp.eq.f32.partialorder %v6320, inf
    %v6324 = vsel %vm6323, %v6320, %v6322
    %vm6325 = vcmp.eq.f32.partialorder %v6320, 0.0
    %v6326 = vand.u32 %v6320, 2147483648
    %v6327 = vsel %vm6325, %v6326, %v6324
    %v6328 = vrcp.pop %v6327
    %v6329 = vmul.f32 %v6319, %v6328
    %6331 = vrot.lane.b32.xlu0 %v6329, 32
    %v6332 = vpop.permute.xlu0 %6331
    %v6334 = vsel %vm316, %v5940, %v6332
    %vm6335 = vcmask 517120
    %6336 = vst.msk [vmem:[#allocation4] sm:$0x3] %vm6335, %v6334
    %v6337 = vld [vmem:[%s6] sm:$0x1]
    %v6339 = vlaneseq
    %v6340 = vshrl.u32 %v6339, 7
    %v6341 = vsub.s32 0, %v6340
    %v6342 = vrot.slane %v6337, %v6341
    %v6344 = vmul.f32 %v6334, %v6342
    %v6345 = vsel %vm6335, %v6344, 0.0
    %6346 = vadd.xlane.f32.xlu0 %v6345
    %v6347 = vpop.xlane.xlu0 %6346
    %s6348 = sld [smem:[#allocation3]]
    %v6349 = vstv %s6348
    %v6350 = vadd.f32 %v6347, %v6349
    %vm6351 = vcmask 1024
    %6352 = vst.msk [vmem:[%s10] sm:$0x3] %vm6351, %v6350
    // Predicated region
    $region38: #{tpu_custom_call.1} parent=1 // pred_check
      _
    $region39: #{tpu_custom_call.1} parent=1 // pred_check_branch
      %6354 = sbr.rel (0) target = $region41
    $region40: #{tpu_custom_call.1} parent=1 // pred_region
      %s6356 = ssub.s32 32, 32
      %6357 = vsyncadd [#allocation5], %s6356
      %s6359 = sshll.u32 [#allocation4], 4
      %s6360 = int_to_ptr.vmem [resolvable:$true] %s6359
      %6362 = dma.vmem_to_hbm [thread:$0]  %s6360, 32, %s9, [#allocation5]
    $region41: #{tpu_custom_call.1} parent=1 // pred_fallthru
      _
    // Predicated region
    $region42: #{tpu_custom_call.1} parent=1 // pred_check
      _
    $region43: #{tpu_custom_call.1} parent=1 // pred_check_branch
      %6364 = sbr.rel (0) target = $region45
    $region44: #{tpu_custom_call.1} parent=1 // pred_region
      _
    $region45: #{tpu_custom_call.1} parent=1 // pred_fallthru
      _
    // Predicated region
    $region46: #{tpu_custom_call.1} parent=1 // pred_check
      _
    $region47: #{tpu_custom_call.1} parent=1 // pred_check_branch
      %6366 = sbr.rel (0) target = $region49
    $region48: #{tpu_custom_call.1} parent=1 // pred_region
      %6367 = dma.done [#allocation5], 32
    $region49: #{tpu_custom_call.1} parent=1 // pred_fallthru
      _
    // Predicated region
    $region50: #{tpu_custom_call.1} parent=1 // pred_check
      _
    $region51: #{tpu_custom_call.1} parent=1 // pred_check_branch
      %6369 = sbr.rel (0) target = $region53
    $region52: #{tpu_custom_call.1} parent=1 // pred_region
      _
    $region53: #{tpu_custom_call.1} parent=1 // pred_fallthru
      _
    %6370 = vsyncpa [#allocation5], 1

</llo_original>
